<compile_context>
chip_gen: v7x
topology: tpu7x:2x2x1
jax: 0.10.0
libtpu: 0.0.40
codegen_flags: <defaults>
</compile_context>

<pallas_src>
import numpy as np
import jax
import jax.numpy as jnp
from jax.experimental import pallas as pl
from jax.experimental.pallas import tpu as pltpu

N_H1 = 128            # fc1 output padded 96 -> 128
N_H2 = 256            # fc2 output (already 2*128)
N_H3 = 8 * 12 * 12    # 1152 = 9*128
N_OUT = 28 * 28       # 784
N_OUT_PAD = 896       # 7*128


# ---------------------------------------------------------------------------
# Setup glue: lower ConvTranspose2d (padding=0) to a dense matrix + bias vector
# ---------------------------------------------------------------------------
def convtranspose2d_as_matrix(w, b, h_in, w_in, stride, output_padding):
    """w: (Cin, Cout, kH, kW) torch ConvTranspose2d weight layout; b: (Cout,)."""
    c_in, c_out, k_h, k_w = w.shape
    h_out = (h_in - 1) * stride + k_h + output_padding
    w_out = (w_in - 1) * stride + k_w + output_padding
    m = np.zeros((c_in * h_in * w_in, c_out * h_out * w_out), dtype=np.float32)
    for ci in range(c_in):
        for i in range(h_in):
            for j in range(w_in):
                row = ci * h_in * w_in + i * w_in + j
                for co in range(c_out):
                    for kh in range(k_h):
                        for kw in range(k_w):
                            oi = i * stride + kh
                            oj = j * stride + kw
                            col = co * h_out * w_out + oi * w_out + oj
                            m[row, col] += float(w[ci, co, kh, kw])
    bias_vec = np.repeat(np.asarray(b, dtype=np.float32), h_out * w_out)
    return m, bias_vec, (c_out, h_out, w_out)


def _pad_to(a, rows=None, cols=None):
    r, c = a.shape
    rows = r if rows is None else rows
    cols = c if cols is None else cols
    out = np.zeros((rows, cols), dtype=a.dtype)
    out[:r, :c] = a
    return out


# ---------------------------------------------------------------------------
# Pallas kernel: fc1 -> relu -> fc2 -> relu -> deconv2 -> relu -> deconv1 -> sigmoid
# ---------------------------------------------------------------------------
def decoder_kernel(x_ref, w1_ref, b1_ref, w2_ref, b2_ref,
                   m2_ref, bv2_ref, m1_ref, bv1_ref, o_ref):
    x = x_ref[...].astype(jnp.bfloat16)
    h1 = jnp.dot(x, w1_ref[...], preferred_element_type=jnp.float32) + b1_ref[...]
    h1 = jnp.maximum(h1, 0.0).astype(jnp.bfloat16)
    h2 = jnp.dot(h1, w2_ref[...], preferred_element_type=jnp.float32) + b2_ref[...]
    h2 = jnp.maximum(h2, 0.0).astype(jnp.bfloat16)
    # h2 is (TB, 256) == NCHW (TB, 16, 4, 4) flattened -> conv-transpose as matmul
    h3 = jnp.dot(h2, m2_ref[...], preferred_element_type=jnp.float32) + bv2_ref[...]
    h3 = jnp.maximum(h3, 0.0).astype(jnp.bfloat16)
    h4 = jnp.dot(h3, m1_ref[...], preferred_element_type=jnp.float32) + bv1_ref[...]
    # Numerically stable sigmoid; reciprocal on the EUP slot (approx) keeps it off the VALU.
    e = jnp.exp(-jnp.abs(h4))
    num = jnp.where(h4 >= 0.0, 1.0, e)
    o_ref[...] = num * pl.reciprocal(1.0 + e, approx=True)


def decoder_forward(x, kernel_params, *, tb=128):
    """x: (B, 32) float32. Returns (B, 1, 28, 28) float32 (NCHW)."""
    (w1, b1, w2, b2, m2, bv2, m1, bv1) = kernel_params
    B = x.shape[0]
    b_pad = ((B + tb - 1) // tb) * tb
    if b_pad != B:
        x = jnp.pad(x, ((0, b_pad - B), (0, 0)))

    def resident(shape):
        # Same block index for every grid step -> fetched from HBM once, stays in VMEM.
        return pl.BlockSpec(shape, lambda i: (0,) * len(shape))

    out_flat = pl.pallas_call(
        decoder_kernel,
        out_shape=jax.ShapeDtypeStruct((b_pad, N_OUT_PAD), jnp.float32),
        grid=(b_pad // tb,),
        in_specs=[
            pl.BlockSpec((tb, x.shape[1]), lambda i: (i, 0)),
            resident(w1.shape), resident(b1.shape),
            resident(w2.shape), resident(b2.shape),
            resident(m2.shape), resident(bv2.shape),
            resident(m1.shape), resident(bv1.shape),
        ],
        out_specs=pl.BlockSpec((tb, N_OUT_PAD), lambda i: (i, 0)),
        compiler_params=pltpu.CompilerParams(
            # batch tiles are independent -> shard across both TensorCores on v7x
            dimension_semantics=("parallel",),
        ),
    )(x, w1, b1, w2, b2, m2, bv2, m1, bv1)
    return out_flat[:B, :N_OUT].reshape(B, 1, 28, 28)


# ---------------------------------------------------------------------------
# Deterministic parameter construction (shapes from the PyTorch __init__)
# ---------------------------------------------------------------------------
def make_params(key):
    ks = jax.random.split(key, 8)

    def u(k, shape, fan_in):
        bound = 1.0 / np.sqrt(fan_in)
        return np.asarray(jax.random.uniform(k, shape, jnp.float32, -bound, bound))

    # nn.Linear(32, 96) / nn.Linear(96, 256)
    w_fc1 = u(ks[0], (96, 32), 32)
    b_fc1 = u(ks[1], (96,), 32)
    w_fc2 = u(ks[2], (256, 96), 96)
    b_fc2 = u(ks[3], (256,), 96)
    # nn.ConvTranspose2d(16, 8, 5, 2, output_padding=1) / nn.ConvTranspose2d(8, 1, 5, 2, output_padding=1)
    w_ct2 = u(ks[4], (16, 8, 5, 5), 16 * 5 * 5)
    b_ct2 = u(ks[5], (8,), 16 * 5 * 5)
    w_ct1 = u(ks[6], (8, 1, 5, 5), 8 * 5 * 5)
    b_ct1 = u(ks[7], (1,), 8 * 5 * 5)

    m2_np, bv2_np, shape2 = convtranspose2d_as_matrix(w_ct2, b_ct2, 4, 4, 2, 1)
    assert shape2 == (8, 12, 12)
    m1_np, bv1_np, shape1 = convtranspose2d_as_matrix(w_ct1, b_ct1, 12, 12, 2, 1)
    assert shape1 == (1, 28, 28)

    # f32 padded tensors; padding is zeros so the math is unchanged (pads sliced at the end).
    w1_f = _pad_to(np.ascontiguousarray(w_fc1.T), cols=N_H1)       # (32, 128)
    b1_f = _pad_to(b_fc1.reshape(1, -1), cols=N_H1)                 # (1, 128)
    w2_f = _pad_to(np.ascontiguousarray(w_fc2.T), rows=N_H1)        # (128, 256)
    b2_f = b_fc2.reshape(1, -1)                                      # (1, 256)
    m2_f = m2_np                                                     # (256, 1152)
    bv2_f = bv2_np.reshape(1, -1)                                    # (1, 1152)
    m1_f = _pad_to(m1_np, cols=N_OUT_PAD)                            # (1152, 896)
    bv1_f = _pad_to(bv1_np.reshape(1, -1), cols=N_OUT_PAD)           # (1, 896)

    ref_params = tuple(jnp.asarray(a, jnp.float32)
                       for a in (w1_f, b1_f, w2_f, b2_f, m2_f, bv2_f, m1_f, bv1_f))
    # Kernel params: bf16 matmul operands, f32 biases (added after f32 accumulation).
    kernel_params = (
        jnp.asarray(w1_f, jnp.bfloat16), jnp.asarray(b1_f, jnp.float32),
        jnp.asarray(w2_f, jnp.bfloat16), jnp.asarray(b2_f, jnp.float32),
        jnp.asarray(m2_f, jnp.bfloat16), jnp.asarray(bv2_f, jnp.float32),
        jnp.asarray(m1_f, jnp.bfloat16), jnp.asarray(bv1_f, jnp.float32),
    )
    return kernel_params, ref_params


def reference_forward(x, ref_params):
    """Pure-JAX f32 reference of the identical math (matches the PyTorch forward)."""
    (w1, b1, w2, b2, m2, bv2, m1, bv1) = ref_params
    h = jnp.maximum(x @ w1 + b1, 0.0)
    h = jnp.maximum(h @ w2 + b2, 0.0)
    h = jnp.maximum(h @ m2 + bv2, 0.0)
    h = jax.nn.sigmoid(h @ m1 + bv1)
    return h[:, :N_OUT].reshape(x.shape[0], 1, 28, 28)


if __name__ == "__main__":
    key = jax.random.PRNGKey(0)
    pkey, xkey = jax.random.split(key)
    kernel_params, ref_params = make_params(pkey)

    B = 4
    x = jax.random.normal(xkey, (B, 32), dtype=jnp.float32)  # latent code (fc1: 32 -> 96)

    out = decoder_forward(x, kernel_params)
    out = jax.block_until_ready(out)

    assert out.shape == (B, 1, 28, 28), out.shape
    ref = jax.block_until_ready(reference_forward(x, ref_params))
    # bf16 weights/activations in the kernel vs f32 reference -> loose tolerance.
    np.testing.assert_allclose(np.asarray(out), np.asarray(ref), rtol=2e-2, atol=2e-2)

    print("KERNEL_OK")
</pallas_src>

<mosaic_0001>
module attributes {stable_mosaic.version = 11 : i64} {
  func.func @decoder_kernel(%arg0: i32, %arg1: memref<128x32xf32, #tpu.memory_space<vmem>>, %arg2: memref<32x128xbf16, #tpu.memory_space<vmem>>, %arg3: memref<1x128xf32, #tpu.memory_space<vmem>>, %arg4: memref<128x256xbf16, #tpu.memory_space<vmem>>, %arg5: memref<1x256xf32, #tpu.memory_space<vmem>>, %arg6: memref<256x1152xbf16, #tpu.memory_space<vmem>>, %arg7: memref<1x1152xf32, #tpu.memory_space<vmem>>, %arg8: memref<1152x896xbf16, #tpu.memory_space<vmem>>, %arg9: memref<1x896xf32, #tpu.memory_space<vmem>>, %arg10: memref<128x896xf32, #tpu.memory_space<vmem>>) attributes {dimension_semantics = [#tpu.dimension_semantics<parallel>], iteration_bounds = array<i64: 1>, scalar_prefetch = 0 : i64, scratch_operands = 0 : i64, tpu.core_type = #tpu.core_type<tc>, window_params = [{transform_indices = @transform_0, window_bounds = array<i64: 128, 32>}, {pipeline_mode = #tpu.pipeline_mode<synchronous>, transform_indices = @transform_1, window_bounds = array<i64: 32, 128>}, {pipeline_mode = #tpu.pipeline_mode<synchronous>, transform_indices = @transform_2, window_bounds = array<i64: 1, 128>}, {pipeline_mode = #tpu.pipeline_mode<synchronous>, transform_indices = @transform_3, window_bounds = array<i64: 128, 256>}, {pipeline_mode = #tpu.pipeline_mode<synchronous>, transform_indices = @transform_4, window_bounds = array<i64: 1, 256>}, {pipeline_mode = #tpu.pipeline_mode<synchronous>, transform_indices = @transform_5, window_bounds = array<i64: 256, 1152>}, {pipeline_mode = #tpu.pipeline_mode<synchronous>, transform_indices = @transform_6, window_bounds = array<i64: 1, 1152>}, {pipeline_mode = #tpu.pipeline_mode<synchronous>, transform_indices = @transform_7, window_bounds = array<i64: 1152, 896>}, {pipeline_mode = #tpu.pipeline_mode<synchronous>, transform_indices = @transform_8, window_bounds = array<i64: 1, 896>}, {transform_indices = @transform_9, window_bounds = array<i64: 128, 896>}]} {
    %c0 = arith.constant 0 : index
    %c0_0 = arith.constant 0 : index
    %0 = vector.load %arg1[%c0, %c0_0] : memref<128x32xf32, #tpu.memory_space<vmem>>, vector<128x32xf32>
    %1 = arith.truncf %0 : vector<128x32xf32> to vector<128x32xbf16>
    %c0_1 = arith.constant 0 : index
    %c0_2 = arith.constant 0 : index
    %2 = vector.load %arg2[%c0_1, %c0_2] : memref<32x128xbf16, #tpu.memory_space<vmem>>, vector<32x128xbf16>
    %cst = arith.constant dense<0.000000e+00> : vector<128x128xf32>
    %3 = tpu.matmul %1, %2, %cst {dimension_numbers = #tpu.dot_dimension_numbers<[1], [0], [0], [1], [0, 0, 1, 1], [], []>} : vector<128x32xbf16>, vector<32x128xbf16>, vector<128x128xf32> -> vector<128x128xf32>
    %c0_3 = arith.constant 0 : index
    %c0_4 = arith.constant 0 : index
    %4 = vector.load %arg3[%c0_3, %c0_4] : memref<1x128xf32, #tpu.memory_space<vmem>>, vector<1x128xf32>
    %5 = vector.broadcast %4 : vector<1x128xf32> to vector<128x128xf32>
    %6 = arith.addf %3, %5 : vector<128x128xf32>
    %cst_5 = arith.constant 0.000000e+00 : f32
    %7 = vector.broadcast %cst_5 : f32 to vector<128x128xf32>
    %8 = arith.maximumf %6, %7 : vector<128x128xf32>
    %9 = arith.truncf %8 : vector<128x128xf32> to vector<128x128xbf16>
    %c0_6 = arith.constant 0 : index
    %c0_7 = arith.constant 0 : index
    %10 = vector.load %arg4[%c0_6, %c0_7] : memref<128x256xbf16, #tpu.memory_space<vmem>>, vector<128x256xbf16>
    %cst_8 = arith.constant dense<0.000000e+00> : vector<128x256xf32>
    %11 = tpu.matmul %9, %10, %cst_8 {dimension_numbers = #tpu.dot_dimension_numbers<[1], [0], [0], [1], [0, 0, 1, 1], [], []>} : vector<128x128xbf16>, vector<128x256xbf16>, vector<128x256xf32> -> vector<128x256xf32>
    %c0_9 = arith.constant 0 : index
    %c0_10 = arith.constant 0 : index
    %12 = vector.load %arg5[%c0_9, %c0_10] : memref<1x256xf32, #tpu.memory_space<vmem>>, vector<1x256xf32>
    %13 = vector.broadcast %12 : vector<1x256xf32> to vector<128x256xf32>
    %14 = arith.addf %11, %13 : vector<128x256xf32>
    %cst_11 = arith.constant 0.000000e+00 : f32
    %15 = vector.broadcast %cst_11 : f32 to vector<128x256xf32>
    %16 = arith.maximumf %14, %15 : vector<128x256xf32>
    %17 = arith.truncf %16 : vector<128x256xf32> to vector<128x256xbf16>
    %c0_12 = arith.constant 0 : index
    %c0_13 = arith.constant 0 : index
    %18 = vector.load %arg6[%c0_12, %c0_13] : memref<256x1152xbf16, #tpu.memory_space<vmem>>, vector<256x1152xbf16>
    %cst_14 = arith.constant dense<0.000000e+00> : vector<128x1152xf32>
    %19 = tpu.matmul %17, %18, %cst_14 {dimension_numbers = #tpu.dot_dimension_numbers<[1], [0], [0], [1], [0, 0, 1, 1], [], []>} : vector<128x256xbf16>, vector<256x1152xbf16>, vector<128x1152xf32> -> vector<128x1152xf32>
    %c0_15 = arith.constant 0 : index
    %c0_16 = arith.constant 0 : index
    %20 = vector.load %arg7[%c0_15, %c0_16] : memref<1x1152xf32, #tpu.memory_space<vmem>>, vector<1x1152xf32>
    %21 = vector.broadcast %20 : vector<1x1152xf32> to vector<128x1152xf32>
    %22 = arith.addf %19, %21 : vector<128x1152xf32>
    %cst_17 = arith.constant 0.000000e+00 : f32
    %23 = vector.broadcast %cst_17 : f32 to vector<128x1152xf32>
    %24 = arith.maximumf %22, %23 : vector<128x1152xf32>
    %25 = arith.truncf %24 : vector<128x1152xf32> to vector<128x1152xbf16>
    %c0_18 = arith.constant 0 : index
    %c0_19 = arith.constant 0 : index
    %26 = vector.load %arg8[%c0_18, %c0_19] : memref<1152x896xbf16, #tpu.memory_space<vmem>>, vector<1152x896xbf16>
    %cst_20 = arith.constant dense<0.000000e+00> : vector<128x896xf32>
    %27 = tpu.matmul %25, %26, %cst_20 {dimension_numbers = #tpu.dot_dimension_numbers<[1], [0], [0], [1], [0, 0, 1, 1], [], []>} : vector<128x1152xbf16>, vector<1152x896xbf16>, vector<128x896xf32> -> vector<128x896xf32>
    %c0_21 = arith.constant 0 : index
    %c0_22 = arith.constant 0 : index
    %28 = vector.load %arg9[%c0_21, %c0_22] : memref<1x896xf32, #tpu.memory_space<vmem>>, vector<1x896xf32>
    %29 = vector.broadcast %28 : vector<1x896xf32> to vector<128x896xf32>
    %30 = arith.addf %27, %29 : vector<128x896xf32>
    %31 = math.absf %30 : vector<128x896xf32>
    %cst_23 = arith.constant 0.000000e+00 : f32
    %32 = vector.broadcast %cst_23 : f32 to vector<128x896xf32>
    %33 = arith.subf %32, %31 : vector<128x896xf32>
    %34 = math.exp %33 : vector<128x896xf32>
    %cst_24 = arith.constant 0.000000e+00 : f32
    %35 = vector.broadcast %cst_24 : f32 to vector<128x896xf32>
    %36 = arith.cmpf oge, %30, %35 : vector<128x896xf32>
    %cst_25 = arith.constant 1.000000e+00 : f32
    %37 = vector.broadcast %cst_25 : f32 to vector<128x896xf32>
    %38 = arith.select %36, %37, %34 : vector<128x896xi1>, vector<128x896xf32>
    %cst_26 = arith.constant 1.000000e+00 : f32
    %39 = vector.broadcast %cst_26 : f32 to vector<128x896xf32>
    %40 = arith.addf %39, %34 : vector<128x896xf32>
    %41 = tpu.reciprocal %40 {approx = true} : vector<128x896xf32> -> vector<128x896xf32>
    %42 = arith.mulf %38, %41 : vector<128x896xf32>
    %c0_27 = arith.constant 0 : index
    %c0_28 = arith.constant 0 : index
    %43 = vector.load %arg10[%c0_27, %c0_28] : memref<128x896xf32, #tpu.memory_space<vmem>>, vector<128x896xf32>
    tpu.vector_store %arg10[%c0_27, %c0_28], %42 {strides = array<i32>} : memref<128x896xf32, #tpu.memory_space<vmem>>, vector<128x896xf32>,
    return
  }
  func.func @transform_0(%arg0: i32) -> (i32, i32) {
    %c0_i32 = arith.constant 0 : i32
    %c0_i32_0 = arith.constant 0 : i32
    return %arg0, %c0_i32 : i32, i32
  }
  func.func @transform_1(%arg0: i32) -> (i32, i32) {
    %c0_i32 = arith.constant 0 : i32
    %c0_i32_0 = arith.constant 0 : i32
    %c0_i32_1 = arith.constant 0 : i32
    return %c0_i32, %c0_i32_0 : i32, i32
  }
  func.func @transform_2(%arg0: i32) -> (i32, i32) {
    %c0_i32 = arith.constant 0 : i32
    %c0_i32_0 = arith.constant 0 : i32
    %c0_i32_1 = arith.constant 0 : i32
    return %c0_i32, %c0_i32_0 : i32, i32
  }
  func.func @transform_3(%arg0: i32) -> (i32, i32) {
    %c0_i32 = arith.constant 0 : i32
    %c0_i32_0 = arith.constant 0 : i32
    %c0_i32_1 = arith.constant 0 : i32
    return %c0_i32, %c0_i32_0 : i32, i32
  }
  func.func @transform_4(%arg0: i32) -> (i32, i32) {
    %c0_i32 = arith.constant 0 : i32
    %c0_i32_0 = arith.constant 0 : i32
    %c0_i32_1 = arith.constant 0 : i32
    return %c0_i32, %c0_i32_0 : i32, i32
  }
  func.func @transform_5(%arg0: i32) -> (i32, i32) {
    %c0_i32 = arith.constant 0 : i32
    %c0_i32_0 = arith.constant 0 : i32
    %c0_i32_1 = arith.constant 0 : i32
    return %c0_i32, %c0_i32_0 : i32, i32
  }
  func.func @transform_6(%arg0: i32) -> (i32, i32) {
    %c0_i32 = arith.constant 0 : i32
    %c0_i32_0 = arith.constant 0 : i32
    %c0_i32_1 = arith.constant 0 : i32
    return %c0_i32, %c0_i32_0 : i32, i32
  }
  func.func @transform_7(%arg0: i32) -> (i32, i32) {
    %c0_i32 = arith.constant 0 : i32
    %c0_i32_0 = arith.constant 0 : i32
    %c0_i32_1 = arith.constant 0 : i32
    return %c0_i32, %c0_i32_0 : i32, i32
  }
  func.func @transform_8(%arg0: i32) -> (i32, i32) {
    %c0_i32 = arith.constant 0 : i32
    %c0_i32_0 = arith.constant 0 : i32
    %c0_i32_1 = arith.constant 0 : i32
    return %c0_i32, %c0_i32_0 : i32, i32
  }
  func.func @transform_9(%arg0: i32) -> (i32, i32) {
    %c0_i32 = arith.constant 0 : i32
    %c0_i32_0 = arith.constant 0 : i32
    return %arg0, %c0_i32 : i32, i32
  }
}

</mosaic_0001>

<llo_original>
// kernel: tpu_custom_call.1
$region0: #{tpu_custom_call.1}
  #allocation0 [shape = 'u32[]', space=smem, size = 0x4, offset = 0x4, fixed_abs, tag = 'smem constant byte address 0x4 - core index']
  #allocation1 [shape = 'u32[144,128]{1,0:T(1,128)}', space=vmem, size = 0x12000, scoped, tag = 'internal scratch']
  %s0 = inlined_call_operand.vmem [shape: f32[128,32], index: 0, kind: input, shape index: {}]
  %s1 = inlined_call_operand.hbm [shape: bf16[32,128], index: 1, kind: input, shape index: {}]
  %s2 = inlined_call_operand.hbm [shape: f32[1,128], index: 2, kind: input, shape index: {}]
  %s3 = inlined_call_operand.hbm [shape: bf16[128,256], index: 3, kind: input, shape index: {}]
  %s4 = inlined_call_operand.hbm [shape: f32[1,256], index: 4, kind: input, shape index: {}]
  %s5 = inlined_call_operand.hbm [shape: bf16[256,1152], index: 5, kind: input, shape index: {}]
  %s6 = inlined_call_operand.hbm [shape: f32[1,1152], index: 6, kind: input, shape index: {}]
  %s7 = inlined_call_operand.hbm [shape: bf16[1152,896], index: 7, kind: input, shape index: {}]
  %s8 = inlined_call_operand.hbm [shape: f32[1,896], index: 8, kind: input, shape index: {}]
  %s9 = inlined_call_operand.hbm [shape: f32[128,896], index: 9, kind: output, shape index: {}]
  %s10 = sld [smem:[#allocation0]]
  $region78: #{tpu_custom_call.1} parent=0
    _
  %s12 = ssub.s32 1, %s10
  %s13 = scalar_select 0, %s12, %s10
  $region1: #{tpu_custom_call.1} parent=0
    #allocation2 [shape = 'u8[8192]{0}', space=vmem, size = 0x2000, scoped, tag = 'input window, operand 1, single buffered']
    #allocation3 [shape = 's32[1]{0}', space=sflag, size = 0x4, scoped, tag = 'scoped memory for tpu_custom_call.1']
    #allocation4 [shape = 's32[1]{0}', space=sflag, size = 0x4, scoped, tag = 'scoped memory for tpu_custom_call.1']
    #allocation5 [shape = 'u8[512]{0}', space=vmem, size = 0x400, scoped, tag = 'input window, operand 2, single buffered']
    #allocation6 [shape = 's32[1]{0}', space=sflag, size = 0x4, scoped, tag = 'scoped memory for tpu_custom_call.1']
    #allocation7 [shape = 'u8[65536]{0}', space=vmem, size = 0x10000, scoped, tag = 'input window, operand 3, single buffered']
    #allocation8 [shape = 'u8[1024]{0}', space=vmem, size = 0x400, scoped, tag = 'input window, operand 4, single buffered']
    #allocation9 [shape = 's32[1]{0}', space=sflag, size = 0x4, scoped, tag = 'scoped memory for tpu_custom_call.1']
    #allocation10 [shape = 'u8[589824]{0}', space=vmem, size = 0x90000, scoped, tag = 'input window, operand 5, single buffered']
    #allocation11 [shape = 'u8[4608]{0}', space=vmem, size = 0x1400, scoped, tag = 'input window, operand 6, single buffered']
    #allocation12 [shape = 's32[1]{0}', space=sflag, size = 0x4, scoped, tag = 'scoped memory for tpu_custom_call.1']
    #allocation13 [shape = 'u8[2064384]{0}', space=vmem, size = 0x1f8000, scoped, tag = 'input window, operand 7, single buffered']
    #allocation14 [shape = 'u8[3584]{0}', space=vmem, size = 0x1000, scoped, tag = 'input window, operand 8, single buffered']
    #allocation15 [shape = 's32[1]{0}', space=sflag, size = 0x4, scoped, tag = 'scoped memory for tpu_custom_call.1']
    #allocation16 [shape = 'u8[458752]{0}', space=vmem, size = 0x70000, scoped, tag = 'output window, operand 0, single buffered']
    %14 = vsyncpa [#allocation3], 0
    %15 = vsyncpa [#allocation6], 0
    %16 = vsyncpa [#allocation9], 0
    %17 = vsyncpa [#allocation12], 0
    %18 = vsyncpa [#allocation15], 0
    %19 = vsyncpa [#allocation4], 0
    // Predicated region
    $region2: #{tpu_custom_call.1} parent=1 // pred_check
      _
    $region3: #{tpu_custom_call.1} parent=1 // pred_check_branch
      %21 = sbr.rel (0) target = $region5
    $region4: #{tpu_custom_call.1} parent=1 // pred_region
      _
    $region5: #{tpu_custom_call.1} parent=1 // pred_fallthru
      _
    // Predicated region
    $region6: #{tpu_custom_call.1} parent=1 // pred_check
      _
    $region7: #{tpu_custom_call.1} parent=1 // pred_check_branch
      %23 = sbr.rel (0) target = $region9
    $region8: #{tpu_custom_call.1} parent=1 // pred_region
      %s25 = ssub.s32 256, 256
      %26 = vsyncadd [#allocation3], %s25
      %s27 = sshll.u32 [#allocation2], 4
      %s28 = int_to_ptr.vmem [resolvable:$true] %s27
      %33 = dma.hbm_to_vmem [thread:$0]  %s1, 256, %s28, [#allocation3], 64, 64, 4
    $region9: #{tpu_custom_call.1} parent=1 // pred_fallthru
      _
    // Predicated region
    $region10: #{tpu_custom_call.1} parent=1 // pred_check
      _
    $region11: #{tpu_custom_call.1} parent=1 // pred_check_branch
      %35 = sbr.rel (0) target = $region13
    $region12: #{tpu_custom_call.1} parent=1 // pred_region
      %s37 = ssub.s32 16, 16
      %38 = vsyncadd [#allocation6], %s37
      %s40 = sshll.u32 [#allocation5], 4
      %s41 = int_to_ptr.vmem [resolvable:$true] %s40
      %43 = dma.hbm_to_vmem [thread:$0]  %s2, 16, %s41, [#allocation6]
    $region13: #{tpu_custom_call.1} parent=1 // pred_fallthru
      _
    // Predicated region
    $region14: #{tpu_custom_call.1} parent=1 // pred_check
      _
    $region15: #{tpu_custom_call.1} parent=1 // pred_check_branch
      %45 = sbr.rel (0) target = $region17
    $region16: #{tpu_custom_call.1} parent=1 // pred_region
      %s47 = ssub.s32 2048, 2048
      %48 = vsyncadd [#allocation6], %s47
      %s49 = sshll.u32 [#allocation7], 4
      %s50 = int_to_ptr.vmem [resolvable:$true] %s49
      %55 = dma.hbm_to_vmem [thread:$0]  %s3, 2048, %s50, [#allocation6], 128, 128, 8
    $region17: #{tpu_custom_call.1} parent=1 // pred_fallthru
      _
    // Predicated region
    $region18: #{tpu_custom_call.1} parent=1 // pred_check
      _
    $region19: #{tpu_custom_call.1} parent=1 // pred_check_branch
      %57 = sbr.rel (0) target = $region21
    $region20: #{tpu_custom_call.1} parent=1 // pred_region
      %s59 = ssub.s32 32, 32
      %60 = vsyncadd [#allocation9], %s59
      %s62 = sshll.u32 [#allocation8], 4
      %s63 = int_to_ptr.vmem [resolvable:$true] %s62
      %65 = dma.hbm_to_vmem [thread:$0]  %s4, 32, %s63, [#allocation9]
    $region21: #{tpu_custom_call.1} parent=1 // pred_fallthru
      _
    // Predicated region
    $region22: #{tpu_custom_call.1} parent=1 // pred_check
      _
    $region23: #{tpu_custom_call.1} parent=1 // pred_check_branch
      %67 = sbr.rel (0) target = $region25
    $region24: #{tpu_custom_call.1} parent=1 // pred_region
      %s69 = ssub.s32 18432, 18432
      %70 = vsyncadd [#allocation9], %s69
      %s71 = sshll.u32 [#allocation10], 4
      %s72 = int_to_ptr.vmem [resolvable:$true] %s71
      %77 = dma.hbm_to_vmem [thread:$0]  %s5, 18432, %s72, [#allocation9], 576, 576, 36
    $region25: #{tpu_custom_call.1} parent=1 // pred_fallthru
      _
    // Predicated region
    $region26: #{tpu_custom_call.1} parent=1 // pred_check
      _
    $region27: #{tpu_custom_call.1} parent=1 // pred_check_branch
      %79 = sbr.rel (0) target = $region29
    $region28: #{tpu_custom_call.1} parent=1 // pred_region
      %s81 = ssub.s32 144, 144
      %82 = vsyncadd [#allocation12], %s81
      %s84 = sshll.u32 [#allocation11], 4
      %s85 = int_to_ptr.vmem [resolvable:$true] %s84
      %87 = dma.hbm_to_vmem [thread:$0]  %s6, 144, %s85, [#allocation12]
    $region29: #{tpu_custom_call.1} parent=1 // pred_fallthru
      _
    // Predicated region
    $region30: #{tpu_custom_call.1} parent=1 // pred_check
      _
    $region31: #{tpu_custom_call.1} parent=1 // pred_check_branch
      %89 = sbr.rel (0) target = $region33
    $region32: #{tpu_custom_call.1} parent=1 // pred_region
      %s91 = ssub.s32 64512, 64512
      %92 = vsyncadd [#allocation12], %s91
      %s93 = sshll.u32 [#allocation13], 4
      %s94 = int_to_ptr.vmem [resolvable:$true] %s93
      %99 = dma.hbm_to_vmem [thread:$0]  %s7, 64512, %s94, [#allocation12], 448, 448, 28
    $region33: #{tpu_custom_call.1} parent=1 // pred_fallthru
      _
    // Predicated region
    $region34: #{tpu_custom_call.1} parent=1 // pred_check
      _
    $region35: #{tpu_custom_call.1} parent=1 // pred_check_branch
      %101 = sbr.rel (0) target = $region37
    $region36: #{tpu_custom_call.1} parent=1 // pred_region
      %s103 = ssub.s32 112, 112
      %104 = vsyncadd [#allocation15], %s103
      %s106 = sshll.u32 [#allocation14], 4
      %s107 = int_to_ptr.vmem [resolvable:$true] %s106
      %109 = dma.hbm_to_vmem [thread:$0]  %s8, 112, %s107, [#allocation15]
    $region37: #{tpu_custom_call.1} parent=1 // pred_fallthru
      _
    // Predicated region
    $region38: #{tpu_custom_call.1} parent=1 // pred_check
      _
    $region39: #{tpu_custom_call.1} parent=1 // pred_check_branch
      %111 = sbr.rel (0) target = $region41
    $region40: #{tpu_custom_call.1} parent=1 // pred_region
      %112 = dma.done [#allocation3], 256
    $region41: #{tpu_custom_call.1} parent=1 // pred_fallthru
      _
    // Predicated region
    $region42: #{tpu_custom_call.1} parent=1 // pred_check
      _
    $region43: #{tpu_custom_call.1} parent=1 // pred_check_branch
      %114 = sbr.rel (0) target = $region45
    $region44: #{tpu_custom_call.1} parent=1 // pred_region
      %115 = dma.done [#allocation6], 16
    $region45: #{tpu_custom_call.1} parent=1 // pred_fallthru
      _
    // Predicated region
    $region46: #{tpu_custom_call.1} parent=1 // pred_check
      _
    $region47: #{tpu_custom_call.1} parent=1 // pred_check_branch
      %117 = sbr.rel (0) target = $region49
    $region48: #{tpu_custom_call.1} parent=1 // pred_region
      %118 = dma.done [#allocation6], 2048
    $region49: #{tpu_custom_call.1} parent=1 // pred_fallthru
      _
    // Predicated region
    $region50: #{tpu_custom_call.1} parent=1 // pred_check
      _
    $region51: #{tpu_custom_call.1} parent=1 // pred_check_branch
      %120 = sbr.rel (0) target = $region53
    $region52: #{tpu_custom_call.1} parent=1 // pred_region
      %121 = dma.done [#allocation9], 32
    $region53: #{tpu_custom_call.1} parent=1 // pred_fallthru
      _
    // Predicated region
    $region54: #{tpu_custom_call.1} parent=1 // pred_check
      _
    $region55: #{tpu_custom_call.1} parent=1 // pred_check_branch
      %123 = sbr.rel (0) target = $region57
    $region56: #{tpu_custom_call.1} parent=1 // pred_region
      %124 = dma.done [#allocation9], 18432
    $region57: #{tpu_custom_call.1} parent=1 // pred_fallthru
      _
    // Predicated region
    $region58: #{tpu_custom_call.1} parent=1 // pred_check
      _
    $region59: #{tpu_custom_call.1} parent=1 // pred_check_branch
      %126 = sbr.rel (0) target = $region61
    $region60: #{tpu_custom_call.1} parent=1 // pred_region
      %127 = dma.done [#allocation12], 144
    $region61: #{tpu_custom_call.1} parent=1 // pred_fallthru
      _
    // Predicated region
    $region62: #{tpu_custom_call.1} parent=1 // pred_check
      _
    $region63: #{tpu_custom_call.1} parent=1 // pred_check_branch
      %129 = sbr.rel (0) target = $region65
    $region64: #{tpu_custom_call.1} parent=1 // pred_region
      %130 = dma.done [#allocation12], 64512
    $region65: #{tpu_custom_call.1} parent=1 // pred_fallthru
      _
    // Predicated region
    $region66: #{tpu_custom_call.1} parent=1 // pred_check
      _
    $region67: #{tpu_custom_call.1} parent=1 // pred_check_branch
      %132 = sbr.rel (0) target = $region69
    $region68: #{tpu_custom_call.1} parent=1 // pred_region
      %133 = dma.done [#allocation15], 112
    $region69: #{tpu_custom_call.1} parent=1 // pred_fallthru
      _
    %v135 = vld [vmem:[%s0] sm:$0xff]
    %v136 = vld [vmem:[%s0 + $0x8] sm:$0xff]
    %v137 = vld [vmem:[%s0 + $0x10] sm:$0xff]
    %v138 = vld [vmem:[%s0 + $0x18] sm:$0xff]
    %v139 = vld [vmem:[%s0 + $0x20] sm:$0xff]
    %v140 = vld [vmem:[%s0 + $0x28] sm:$0xff]
    %v141 = vld [vmem:[%s0 + $0x30] sm:$0xff]
    %v142 = vld [vmem:[%s0 + $0x38] sm:$0xff]
    %v143 = vld [vmem:[%s0 + $0x40] sm:$0xff]
    %v144 = vld [vmem:[%s0 + $0x48] sm:$0xff]
    %v145 = vld [vmem:[%s0 + $0x50] sm:$0xff]
    %v146 = vld [vmem:[%s0 + $0x58] sm:$0xff]
    %v147 = vld [vmem:[%s0 + $0x60] sm:$0xff]
    %v148 = vld [vmem:[%s0 + $0x68] sm:$0xff]
    %v149 = vld [vmem:[%s0 + $0x70] sm:$0xff]
    %v150 = vld [vmem:[%s0 + $0x78] sm:$0xff]
    %v151 = vpack.c.bf16 %v136, %v135
    %v152 = vpack.c.bf16 %v138, %v137
    %v153 = vpack.c.bf16 %v140, %v139
    %v154 = vpack.c.bf16 %v142, %v141
    %v155 = vpack.c.bf16 %v144, %v143
    %v156 = vpack.c.bf16 %v146, %v145
    %v157 = vpack.c.bf16 %v148, %v147
    %v158 = vpack.c.bf16 %v150, %v149
    %v159 = vld [vmem:[#allocation2] sm:$0xf]
    %v160 = vld [vmem:[#allocation2 + $0x4] sm:$0xf]
    %v161 = vld [vmem:[#allocation2 + $0x8] sm:$0xf]
    %v162 = vld [vmem:[#allocation2 + $0xc] sm:$0xf]
    %v163 = vld [vmem:[#allocation5] sm:$0x1]
    %v165 = vlaneseq
    %v166 = vshrl.u32 %v165, 7
    %v167 = vsub.s32 0, %v166
    %v168 = vrot.slane %v163, %v167
    %v174 = vunpack.c.l.b16 %v159
    %v175 = vunpack.c.l.b16 %v160
    %v176 = vunpack.c.l.b16 %v161
    %v177 = vunpack.c.l.b16 %v162
    %v178 = vpack.c.b16 %v175, %v174
    %v179 = vpack.c.b16 %v177, %v176
    %vm182 = vcmask 261120
    %v184 = vsel %vm182, %v151, 0
    %v187 = vsel %vm182, %v152, 0
    %v190 = vsel %vm182, %v153, 0
    %v193 = vsel %vm182, %v154, 0
    %v196 = vsel %vm182, %v155, 0
    %v199 = vsel %vm182, %v156, 0
    %v202 = vsel %vm182, %v157, 0
    %v205 = vsel %vm182, %v158, 0
    %207 = vmatprep.subr.bf16.mxu0 0
    %208 = vmatpush1.bf16.msra.mxu0 %v178
    %209 = vmatprep.subr.bf16.mxu0 0
    %210 = vmatpush1.bf16.msra.mxu0 %v179
    %211 = vmatprep.subr.bf16.mxu0 0
    %212 = vmatpush1.bf16.msra.mxu0 0
    %213 = vmatprep.subr.bf16.mxu0 0
    %214 = vmatpush1.bf16.msra.mxu0 0
    %215 = vmatprep.subr.bf16.mxu0 0
    %216 = vmatpush1.bf16.msra.mxu0 0
    %217 = vmatprep.subr.bf16.mxu0 0
    %218 = vmatpush1.bf16.msra.mxu0 0
    %219 = vmatprep.subr.bf16.mxu0 0
    %220 = vmatpush1.bf16.msra.mxu0 0
    %221 = vmatprep.subr.bf16.mxu0 0
    %222 = vmatpush1.bf16.msra.mxu0 0
    %223 = vmatprep.subr.bf16.mxu0 0
    %224 = vmatpush1.bf16.msra.mxu0 0
    %225 = vmatprep.subr.bf16.mxu0 0
    %226 = vmatpush1.bf16.msra.mxu0 0
    %227 = vmatprep.subr.bf16.mxu0 0
    %228 = vmatpush1.bf16.msra.mxu0 0
    %229 = vmatprep.subr.bf16.mxu0 0
    %230 = vmatpush1.bf16.msra.mxu0 0
    %231 = vmatprep.subr.bf16.mxu0 0
    %232 = vmatpush1.bf16.msra.mxu0 0
    %233 = vmatprep.subr.bf16.mxu0 0
    %234 = vmatpush1.bf16.msra.mxu0 0
    %235 = vmatprep.subr.bf16.mxu0 0
    %236 = vmatpush1.bf16.msra.mxu0 0
    %237 = vmatprep.subr.bf16.mxu0 0
    %238 = vmatpush1.bf16.msra.mxu0 0
    %239 = vmatprep.mubr.bf16.mxu0 0
    %240 = vmatmul.mubr.bf16.gmra.mrb[0].mxu0 %v184
    %v241 = vpop.f32.mrb[0].mxu0
    %v242 = vadd.f32 %v168, %v241
    %v243 = vpop.f32.mrb[0].mxu0
    %v244 = vpop.f32.mrb[0].mxu0
    %v245 = vadd.f32 %v168, %v244
    %v246 = vpop.f32.mrb[0].mxu0
    %247 = vmatprep.mubr.bf16.mxu0 0
    %248 = vmatmul.mubr.bf16.gmra.mrb[0].mxu0 %v187
    %v249 = vpop.f32.mrb[0].mxu0
    %v250 = vadd.f32 %v168, %v249
    %v251 = vpop.f32.mrb[0].mxu0
    %v252 = vpop.f32.mrb[0].mxu0
    %v253 = vadd.f32 %v168, %v252
    %v254 = vpop.f32.mrb[0].mxu0
    %255 = vmatprep.mubr.bf16.mxu0 0
    %256 = vmatmul.mubr.bf16.gmra.mrb[0].mxu0 %v190
    %v257 = vpop.f32.mrb[0].mxu0
    %v258 = vadd.f32 %v168, %v257
    %v259 = vpop.f32.mrb[0].mxu0
    %v260 = vpop.f32.mrb[0].mxu0
    %v261 = vadd.f32 %v168, %v260
    %v262 = vpop.f32.mrb[0].mxu0
    %263 = vmatprep.mubr.bf16.mxu0 0
    %264 = vmatmul.mubr.bf16.gmra.mrb[0].mxu0 %v193
    %v265 = vpop.f32.mrb[0].mxu0
    %v266 = vadd.f32 %v168, %v265
    %v267 = vpop.f32.mrb[0].mxu0
    %v268 = vpop.f32.mrb[0].mxu0
    %v269 = vadd.f32 %v168, %v268
    %v270 = vpop.f32.mrb[0].mxu0
    %271 = vmatprep.mubr.bf16.mxu0 0
    %272 = vmatmul.mubr.bf16.gmra.mrb[0].mxu0 %v196
    %v273 = vpop.f32.mrb[0].mxu0
    %v274 = vadd.f32 %v168, %v273
    %v275 = vpop.f32.mrb[0].mxu0
    %v276 = vpop.f32.mrb[0].mxu0
    %v277 = vadd.f32 %v168, %v276
    %v278 = vpop.f32.mrb[0].mxu0
    %279 = vmatprep.mubr.bf16.mxu0 0
    %280 = vmatmul.mubr.bf16.gmra.mrb[0].mxu0 %v199
    %v281 = vpop.f32.mrb[0].mxu0
    %v282 = vadd.f32 %v168, %v281
    %v283 = vpop.f32.mrb[0].mxu0
    %v284 = vpop.f32.mrb[0].mxu0
    %v285 = vadd.f32 %v168, %v284
    %v286 = vpop.f32.mrb[0].mxu0
    %287 = vmatprep.mubr.bf16.mxu0 0
    %288 = vmatmul.mubr.bf16.gmra.mrb[0].mxu0 %v202
    %v289 = vpop.f32.mrb[0].mxu0
    %v290 = vadd.f32 %v168, %v289
    %v291 = vpop.f32.mrb[0].mxu0
    %v292 = vpop.f32.mrb[0].mxu0
    %v293 = vadd.f32 %v168, %v292
    %v294 = vpop.f32.mrb[0].mxu0
    %295 = vmatprep.mubr.bf16.mxu0 0
    %296 = vmatmul.mubr.bf16.gmra.mrb[0].mxu0 %v205
    %v297 = vpop.f32.mrb[0].mxu0
    %v298 = vadd.f32 %v168, %v297
    %v299 = vpop.f32.mrb[0].mxu0
    %v300 = vpop.f32.mrb[0].mxu0
    %v301 = vadd.f32 %v168, %v300
    %v302 = vpop.f32.mrb[0].mxu0
    %303 = vdwg.mxu0
    %v304 = vmax.f32 %v242, 0.0
    %v305 = vmax.f32 %v245, 0.0
    %v306 = vmax.f32 %v250, 0.0
    %v307 = vmax.f32 %v253, 0.0
    %v308 = vmax.f32 %v258, 0.0
    %v309 = vmax.f32 %v261, 0.0
    %v310 = vmax.f32 %v266, 0.0
    %v311 = vmax.f32 %v269, 0.0
    %v312 = vmax.f32 %v274, 0.0
    %v313 = vmax.f32 %v277, 0.0
    %v314 = vmax.f32 %v282, 0.0
    %v315 = vmax.f32 %v285, 0.0
    %v316 = vmax.f32 %v290, 0.0
    %v317 = vmax.f32 %v293, 0.0
    %v318 = vmax.f32 %v298, 0.0
    %v319 = vmax.f32 %v301, 0.0
    %v320 = vpack.c.bf16 %v305, %v304
    %v321 = vpack.c.bf16 %v307, %v306
    %v322 = vpack.c.bf16 %v309, %v308
    %v323 = vpack.c.bf16 %v311, %v310
    %v324 = vpack.c.bf16 %v313, %v312
    %v325 = vpack.c.bf16 %v315, %v314
    %v326 = vpack.c.bf16 %v317, %v316
    %v327 = vpack.c.bf16 %v319, %v318
    %v328 = vld [vmem:[#allocation7] sm:$0xff]
    %v329 = vld [vmem:[#allocation7 + $0x8] sm:$0xff]
    %v330 = vld [vmem:[#allocation7 + $0x10] sm:$0xff]
    %v331 = vld [vmem:[#allocation7 + $0x18] sm:$0xff]
    %v332 = vld [vmem:[#allocation7 + $0x20] sm:$0xff]
    %v333 = vld [vmem:[#allocation7 + $0x28] sm:$0xff]
    %v334 = vld [vmem:[#allocation7 + $0x30] sm:$0xff]
    %v335 = vld [vmem:[#allocation7 + $0x38] sm:$0xff]
    %v336 = vld [vmem:[#allocation7 + $0x40] sm:$0xff]
    %v337 = vld [vmem:[#allocation7 + $0x48] sm:$0xff]
    %v338 = vld [vmem:[#allocation7 + $0x50] sm:$0xff]
    %v339 = vld [vmem:[#allocation7 + $0x58] sm:$0xff]
    %v340 = vld [vmem:[#allocation7 + $0x60] sm:$0xff]
    %v341 = vld [vmem:[#allocation7 + $0x68] sm:$0xff]
    %v342 = vld [vmem:[#allocation7 + $0x70] sm:$0xff]
    %v343 = vld [vmem:[#allocation7 + $0x78] sm:$0xff]
    %v344 = vld [vmem:[#allocation8] sm:$0x3]
    %v346 = vlaneseq
    %v347 = vshrl.u32 %v346, 7
    %v348 = vsub.s32 0, %v347
    %v349 = vrot.slane %v344, %v348
    %v350 = vlaneseq
    %v351 = vshrl.u32 %v350, 7
    %v352 = vsub.s32 1, %v351
    %v353 = vrot.slane %v344, %v352
    %v372 = vunpack.c.l.b16 %v328
    %v373 = vunpack.c.h.b16 %v328
    %v374 = vunpack.c.l.b16 %v329
    %v375 = vunpack.c.h.b16 %v329
    %v376 = vunpack.c.l.b16 %v330
    %v377 = vunpack.c.h.b16 %v330
    %v378 = vunpack.c.l.b16 %v331
    %v379 = vunpack.c.h.b16 %v331
    %v380 = vunpack.c.l.b16 %v332
    %v381 = vunpack.c.h.b16 %v332
    %v382 = vunpack.c.l.b16 %v333
    %v383 = vunpack.c.h.b16 %v333
    %v384 = vunpack.c.l.b16 %v334
    %v385 = vunpack.c.h.b16 %v334
    %v386 = vunpack.c.l.b16 %v335
    %v387 = vunpack.c.h.b16 %v335
    %v388 = vunpack.c.l.b16 %v336
    %v389 = vunpack.c.h.b16 %v336
    %v390 = vunpack.c.l.b16 %v337
    %v391 = vunpack.c.h.b16 %v337
    %v392 = vunpack.c.l.b16 %v338
    %v393 = vunpack.c.h.b16 %v338
    %v394 = vunpack.c.l.b16 %v339
    %v395 = vunpack.c.h.b16 %v339
    %v396 = vunpack.c.l.b16 %v340
    %v397 = vunpack.c.h.b16 %v340
    %v398 = vunpack.c.l.b16 %v341
    %v399 = vunpack.c.h.b16 %v341
    %v400 = vunpack.c.l.b16 %v342
    %v401 = vunpack.c.h.b16 %v342
    %v402 = vunpack.c.l.b16 %v343
    %v403 = vunpack.c.h.b16 %v343
    %v404 = vpack.c.b16 %v374, %v372
    %v405 = vpack.c.b16 %v375, %v373
    %v406 = vpack.c.b16 %v378, %v376
    %v407 = vpack.c.b16 %v379, %v377
    %v408 = vpack.c.b16 %v382, %v380
    %v409 = vpack.c.b16 %v383, %v381
    %v410 = vpack.c.b16 %v386, %v384
    %v411 = vpack.c.b16 %v387, %v385
    %v412 = vpack.c.b16 %v390, %v388
    %v413 = vpack.c.b16 %v391, %v389
    %v414 = vpack.c.b16 %v394, %v392
    %v415 = vpack.c.b16 %v395, %v393
    %v416 = vpack.c.b16 %v398, %v396
    %v417 = vpack.c.b16 %v399, %v397
    %v418 = vpack.c.b16 %v402, %v400
    %v419 = vpack.c.b16 %v403, %v401
    %436 = vmatprep.subr.bf16.mxu0 %v405
    %437 = vmatpush1.bf16.msra.mxu0 %v404
    %438 = vmatprep.subr.bf16.mxu0 %v407
    %439 = vmatpush1.bf16.msra.mxu0 %v406
    %440 = vmatprep.subr.bf16.mxu0 %v409
    %441 = vmatpush1.bf16.msra.mxu0 %v408
    %442 = vmatprep.subr.bf16.mxu0 %v411
    %443 = vmatpush1.bf16.msra.mxu0 %v410
    %444 = vmatprep.subr.bf16.mxu0 %v413
    %445 = vmatpush1.bf16.msra.mxu0 %v412
    %446 = vmatprep.subr.bf16.mxu0 %v415
    %447 = vmatpush1.bf16.msra.mxu0 %v414
    %448 = vmatprep.subr.bf16.mxu0 %v417
    %449 = vmatpush1.bf16.msra.mxu0 %v416
    %450 = vmatprep.subr.bf16.mxu0 %v419
    %451 = vmatpush1.bf16.msra.mxu0 %v418
    %452 = vmatprep.subr.bf16.mxu0 0
    %453 = vmatpush1.bf16.msra.mxu0 0
    %454 = vmatprep.subr.bf16.mxu0 0
    %455 = vmatpush1.bf16.msra.mxu0 0
    %456 = vmatprep.subr.bf16.mxu0 0
    %457 = vmatpush1.bf16.msra.mxu0 0
    %458 = vmatprep.subr.bf16.mxu0 0
    %459 = vmatpush1.bf16.msra.mxu0 0
    %460 = vmatprep.subr.bf16.mxu0 0
    %461 = vmatpush1.bf16.msra.mxu0 0
    %462 = vmatprep.subr.bf16.mxu0 0
    %463 = vmatpush1.bf16.msra.mxu0 0
    %464 = vmatprep.subr.bf16.mxu0 0
    %465 = vmatpush1.bf16.msra.mxu0 0
    %466 = vmatprep.subr.bf16.mxu0 0
    %467 = vmatpush1.bf16.msra.mxu0 0
    %468 = vmatprep.mubr.bf16.mxu0 0
    %469 = vmatmul.mubr.bf16.gmra.mrb[0].mxu0 %v320
    %v470 = vpop.f32.mrb[0].mxu0
    %v471 = vadd.f32 %v349, %v470
    %v472 = vpop.f32.mrb[0].mxu0
    %v473 = vadd.f32 %v353, %v472
    %v474 = vpop.f32.mrb[0].mxu0
    %v475 = vadd.f32 %v349, %v474
    %v476 = vpop.f32.mrb[0].mxu0
    %v477 = vadd.f32 %v353, %v476
    %478 = vmatprep.mubr.bf16.mxu0 0
    %479 = vmatmul.mubr.bf16.gmra.mrb[0].mxu0 %v321
    %v480 = vpop.f32.mrb[0].mxu0
    %v481 = vadd.f32 %v349, %v480
    %v482 = vpop.f32.mrb[0].mxu0
    %v483 = vadd.f32 %v353, %v482
    %v484 = vpop.f32.mrb[0].mxu0
    %v485 = vadd.f32 %v349, %v484
    %v486 = vpop.f32.mrb[0].mxu0
    %v487 = vadd.f32 %v353, %v486
    %488 = vmatprep.mubr.bf16.mxu0 0
    %489 = vmatmul.mubr.bf16.gmra.mrb[0].mxu0 %v322
    %v490 = vpop.f32.mrb[0].mxu0
    %v491 = vadd.f32 %v349, %v490
    %v492 = vpop.f32.mrb[0].mxu0
    %v493 = vadd.f32 %v353, %v492
    %v494 = vpop.f32.mrb[0].mxu0
    %v495 = vadd.f32 %v349, %v494
    %v496 = vpop.f32.mrb[0].mxu0
    %v497 = vadd.f32 %v353, %v496
    %498 = vmatprep.mubr.bf16.mxu0 0
    %499 = vmatmul.mubr.bf16.gmra.mrb[0].mxu0 %v323
    %v500 = vpop.f32.mrb[0].mxu0
    %v501 = vadd.f32 %v349, %v500
    %v502 = vpop.f32.mrb[0].mxu0
    %v503 = vadd.f32 %v353, %v502
    %v504 = vpop.f32.mrb[0].mxu0
    %v505 = vadd.f32 %v349, %v504
    %v506 = vpop.f32.mrb[0].mxu0
    %v507 = vadd.f32 %v353, %v506
    %508 = vmatprep.mubr.bf16.mxu0 0
    %509 = vmatmul.mubr.bf16.gmra.mrb[0].mxu0 %v324
    %v510 = vpop.f32.mrb[0].mxu0
    %v511 = vadd.f32 %v349, %v510
    %v512 = vpop.f32.mrb[0].mxu0
    %v513 = vadd.f32 %v353, %v512
    %v514 = vpop.f32.mrb[0].mxu0
    %v515 = vadd.f32 %v349, %v514
    %v516 = vpop.f32.mrb[0].mxu0
    %v517 = vadd.f32 %v353, %v516
    %518 = vmatprep.mubr.bf16.mxu0 0
    %519 = vmatmul.mubr.bf16.gmra.mrb[0].mxu0 %v325
    %v520 = vpop.f32.mrb[0].mxu0
    %v521 = vadd.f32 %v349, %v520
    %v522 = vpop.f32.mrb[0].mxu0
    %v523 = vadd.f32 %v353, %v522
    %v524 = vpop.f32.mrb[0].mxu0
    %v525 = vadd.f32 %v349, %v524
    %v526 = vpop.f32.mrb[0].mxu0
    %v527 = vadd.f32 %v353, %v526
    %528 = vmatprep.mubr.bf16.mxu0 0
    %529 = vmatmul.mubr.bf16.gmra.mrb[0].mxu0 %v326
    %v530 = vpop.f32.mrb[0].mxu0
    %v531 = vadd.f32 %v349, %v530
    %v532 = vpop.f32.mrb[0].mxu0
    %v533 = vadd.f32 %v353, %v532
    %v534 = vpop.f32.mrb[0].mxu0
    %v535 = vadd.f32 %v349, %v534
    %v536 = vpop.f32.mrb[0].mxu0
    %v537 = vadd.f32 %v353, %v536
    %538 = vmatprep.mubr.bf16.mxu0 0
    %539 = vmatmul.mubr.bf16.gmra.mrb[0].mxu0 %v327
    %v540 = vpop.f32.mrb[0].mxu0
    %v541 = vadd.f32 %v349, %v540
    %v542 = vpop.f32.mrb[0].mxu0
    %v543 = vadd.f32 %v353, %v542
    %v544 = vpop.f32.mrb[0].mxu0
    %v545 = vadd.f32 %v349, %v544
    %v546 = vpop.f32.mrb[0].mxu0
    %v547 = vadd.f32 %v353, %v546
    %548 = vdwg.mxu0
    %v549 = vmax.f32 %v471, 0.0
    %v550 = vmax.f32 %v473, 0.0
    %v551 = vmax.f32 %v475, 0.0
    %v552 = vmax.f32 %v477, 0.0
    %v553 = vmax.f32 %v481, 0.0
    %v554 = vmax.f32 %v483, 0.0
    %v555 = vmax.f32 %v485, 0.0
    %v556 = vmax.f32 %v487, 0.0
    %v557 = vmax.f32 %v491, 0.0
    %v558 = vmax.f32 %v493, 0.0
    %v559 = vmax.f32 %v495, 0.0
    %v560 = vmax.f32 %v497, 0.0
    %v561 = vmax.f32 %v501, 0.0
    %v562 = vmax.f32 %v503, 0.0
    %v563 = vmax.f32 %v505, 0.0
    %v564 = vmax.f32 %v507, 0.0
    %v565 = vmax.f32 %v511, 0.0
    %v566 = vmax.f32 %v513, 0.0
    %v567 = vmax.f32 %v515, 0.0
    %v568 = vmax.f32 %v517, 0.0
    %v569 = vmax.f32 %v521, 0.0
    %v570 = vmax.f32 %v523, 0.0
    %v571 = vmax.f32 %v525, 0.0
    %v572 = vmax.f32 %v527, 0.0
    %v573 = vmax.f32 %v531, 0.0
    %v574 = vmax.f32 %v533, 0.0
    %v575 = vmax.f32 %v535, 0.0
    %v576 = vmax.f32 %v537, 0.0
    %v577 = vmax.f32 %v541, 0.0
    %v578 = vmax.f32 %v543, 0.0
    %v579 = vmax.f32 %v545, 0.0
    %v580 = vmax.f32 %v547, 0.0
    %v581 = vpack.c.bf16 %v551, %v549
    %v582 = vpack.c.bf16 %v552, %v550
    %v583 = vpack.c.bf16 %v555, %v553
    %v584 = vpack.c.bf16 %v556, %v554
    %v585 = vpack.c.bf16 %v559, %v557
    %v586 = vpack.c.bf16 %v560, %v558
    %v587 = vpack.c.bf16 %v563, %v561
    %v588 = vpack.c.bf16 %v564, %v562
    %v589 = vpack.c.bf16 %v567, %v565
    %v590 = vpack.c.bf16 %v568, %v566
    %v591 = vpack.c.bf16 %v571, %v569
    %v592 = vpack.c.bf16 %v572, %v570
    %v593 = vpack.c.bf16 %v575, %v573
    %v594 = vpack.c.bf16 %v576, %v574
    %v595 = vpack.c.bf16 %v579, %v577
    %v596 = vpack.c.bf16 %v580, %v578
    %v597 = vld [vmem:[#allocation10] sm:$0xff]
    %v598 = vld [vmem:[#allocation10 + $0x8] sm:$0xff]
    %v599 = vld [vmem:[#allocation10 + $0x10] sm:$0xff]
    %v600 = vld [vmem:[#allocation10 + $0x18] sm:$0xff]
    %v601 = vld [vmem:[#allocation10 + $0x20] sm:$0xf]
    %v602 = vld [vmem:[#allocation10 + $0x24] sm:$0xff]
    %v603 = vld [vmem:[#allocation10 + $0x2c] sm:$0xff]
    %v604 = vld [vmem:[#allocation10 + $0x34] sm:$0xff]
    %v605 = vld [vmem:[#allocation10 + $0x3c] sm:$0xff]
    %v606 = vld [vmem:[#allocation10 + $0x44] sm:$0xf]
    %v607 = vld [vmem:[#allocation10 + $0x48] sm:$0xff]
    %v608 = vld [vmem:[#allocation10 + $0x50] sm:$0xff]
    %v609 = vld [vmem:[#allocation10 + $0x58] sm:$0xff]
    %v610 = vld [vmem:[#allocation10 + $0x60] sm:$0xff]
    %v611 = vld [vmem:[#allocation10 + $0x68] sm:$0xf]
    %v612 = vld [vmem:[#allocation10 + $0x6c] sm:$0xff]
    %v613 = vld [vmem:[#allocation10 + $0x74] sm:$0xff]
    %v614 = vld [vmem:[#allocation10 + $0x7c] sm:$0xff]
    %v615 = vld [vmem:[#allocation10 + $0x84] sm:$0xff]
    %v616 = vld [vmem:[#allocation10 + $0x8c] sm:$0xf]
    %v617 = vld [vmem:[#allocation10 + $0x90] sm:$0xff]
    %v618 = vld [vmem:[#allocation10 + $0x98] sm:$0xff]
    %v619 = vld [vmem:[#allocation10 + $0xa0] sm:$0xff]
    %v620 = vld [vmem:[#allocation10 + $0xa8] sm:$0xff]
    %v621 = vld [vmem:[#allocation10 + $0xb0] sm:$0xf]
    %v622 = vld [vmem:[#allocation10 + $0xb4] sm:$0xff]
    %v623 = vld [vmem:[#allocation10 + $0xbc] sm:$0xff]
    %v624 = vld [vmem:[#allocation10 + $0xc4] sm:$0xff]
    %v625 = vld [vmem:[#allocation10 + $0xcc] sm:$0xff]
    %v626 = vld [vmem:[#allocation10 + $0xd4] sm:$0xf]
    %v627 = vld [vmem:[#allocation10 + $0xd8] sm:$0xff]
    %v628 = vld [vmem:[#allocation10 + $0xe0] sm:$0xff]
    %v629 = vld [vmem:[#allocation10 + $0xe8] sm:$0xff]
    %v630 = vld [vmem:[#allocation10 + $0xf0] sm:$0xff]
    %v631 = vld [vmem:[#allocation10 + $0xf8] sm:$0xf]
    %v632 = vld [vmem:[#allocation10 + $0xfc] sm:$0xff]
    %v633 = vld [vmem:[#allocation10 + $0x104] sm:$0xff]
    %v634 = vld [vmem:[#allocation10 + $0x10c] sm:$0xff]
    %v635 = vld [vmem:[#allocation10 + $0x114] sm:$0xff]
    %v636 = vld [vmem:[#allocation10 + $0x11c] sm:$0xf]
    %v637 = vld [vmem:[#allocation10 + $0x120] sm:$0xff]
    %v638 = vld [vmem:[#allocation10 + $0x128] sm:$0xff]
    %v639 = vld [vmem:[#allocation10 + $0x130] sm:$0xff]
    %v640 = vld [vmem:[#allocation10 + $0x138] sm:$0xff]
    %v641 = vld [vmem:[#allocation10 + $0x140] sm:$0xf]
    %v642 = vld [vmem:[#allocation10 + $0x144] sm:$0xff]
    %v643 = vld [vmem:[#allocation10 + $0x14c] sm:$0xff]
    %v644 = vld [vmem:[#allocation10 + $0x154] sm:$0xff]
    %v645 = vld [vmem:[#allocation10 + $0x15c] sm:$0xff]
    %v646 = vld [vmem:[#allocation10 + $0x164] sm:$0xf]
    %v647 = vld [vmem:[#allocation10 + $0x168] sm:$0xff]
    %v648 = vld [vmem:[#allocation10 + $0x170] sm:$0xff]
    %v649 = vld [vmem:[#allocation10 + $0x178] sm:$0xff]
    %v650 = vld [vmem:[#allocation10 + $0x180] sm:$0xff]
    %v651 = vld [vmem:[#allocation10 + $0x188] sm:$0xf]
    %v652 = vld [vmem:[#allocation10 + $0x18c] sm:$0xff]
    %v653 = vld [vmem:[#allocation10 + $0x194] sm:$0xff]
    %v654 = vld [vmem:[#allocation10 + $0x19c] sm:$0xff]
    %v655 = vld [vmem:[#allocation10 + $0x1a4] sm:$0xff]
    %v656 = vld [vmem:[#allocation10 + $0x1ac] sm:$0xf]
    %v657 = vld [vmem:[#allocation10 + $0x1b0] sm:$0xff]
    %v658 = vld [vmem:[#allocation10 + $0x1b8] sm:$0xff]
    %v659 = vld [vmem:[#allocation10 + $0x1c0] sm:$0xff]
    %v660 = vld [vmem:[#allocation10 + $0x1c8] sm:$0xff]
    %v661 = vld [vmem:[#allocation10 + $0x1d0] sm:$0xf]
    %v662 = vld [vmem:[#allocation10 + $0x1d4] sm:$0xff]
    %v663 = vld [vmem:[#allocation10 + $0x1dc] sm:$0xff]
    %v664 = vld [vmem:[#allocation10 + $0x1e4] sm:$0xff]
    %v665 = vld [vmem:[#allocation10 + $0x1ec] sm:$0xff]
    %v666 = vld [vmem:[#allocation10 + $0x1f4] sm:$0xf]
    %v667 = vld [vmem:[#allocation10 + $0x1f8] sm:$0xff]
    %v668 = vld [vmem:[#allocation10 + $0x200] sm:$0xff]
    %v669 = vld [vmem:[#allocation10 + $0x208] sm:$0xff]
    %v670 = vld [vmem:[#allocation10 + $0x210] sm:$0xff]
    %v671 = vld [vmem:[#allocation10 + $0x218] sm:$0xf]
    %v672 = vld [vmem:[#allocation10 + $0x21c] sm:$0xff]
    %v673 = vld [vmem:[#allocation10 + $0x224] sm:$0xff]
    %v674 = vld [vmem:[#allocation10 + $0x22c] sm:$0xff]
    %v675 = vld [vmem:[#allocation10 + $0x234] sm:$0xff]
    %v676 = vld [vmem:[#allocation10 + $0x23c] sm:$0xf]
    %v677 = vld [vmem:[#allocation10 + $0x240] sm:$0xff]
    %v678 = vld [vmem:[#allocation10 + $0x248] sm:$0xff]
    %v679 = vld [vmem:[#allocation10 + $0x250] sm:$0xff]
    %v680 = vld [vmem:[#allocation10 + $0x258] sm:$0xff]
    %v681 = vld [vmem:[#allocation10 + $0x260] sm:$0xf]
    %v682 = vld [vmem:[#allocation10 + $0x264] sm:$0xff]
    %v683 = vld [vmem:[#allocation10 + $0x26c] sm:$0xff]
    %v684 = vld [vmem:[#allocation10 + $0x274] sm:$0xff]
    %v685 = vld [vmem:[#allocation10 + $0x27c] sm:$0xff]
    %v686 = vld [vmem:[#allocation10 + $0x284] sm:$0xf]
    %v687 = vld [vmem:[#allocation10 + $0x288] sm:$0xff]
    %v688 = vld [vmem:[#allocation10 + $0x290] sm:$0xff]
    %v689 = vld [vmem:[#allocation10 + $0x298] sm:$0xff]
    %v690 = vld [vmem:[#allocation10 + $0x2a0] sm:$0xff]
    %v691 = vld [vmem:[#allocation10 + $0x2a8] sm:$0xf]
    %v692 = vld [vmem:[#allocation10 + $0x2ac] sm:$0xff]
    %v693 = vld [vmem:[#allocation10 + $0x2b4] sm:$0xff]
    %v694 = vld [vmem:[#allocation10 + $0x2bc] sm:$0xff]
    %v695 = vld [vmem:[#allocation10 + $0x2c4] sm:$0xff]
    %v696 = vld [vmem:[#allocation10 + $0x2cc] sm:$0xf]
    %v697 = vld [vmem:[#allocation10 + $0x2d0] sm:$0xff]
    %v698 = vld [vmem:[#allocation10 + $0x2d8] sm:$0xff]
    %v699 = vld [vmem:[#allocation10 + $0x2e0] sm:$0xff]
    %v700 = vld [vmem:[#allocation10 + $0x2e8] sm:$0xff]
    %v701 = vld [vmem:[#allocation10 + $0x2f0] sm:$0xf]
    %v702 = vld [vmem:[#allocation10 + $0x2f4] sm:$0xff]
    %v703 = vld [vmem:[#allocation10 + $0x2fc] sm:$0xff]
    %v704 = vld [vmem:[#allocation10 + $0x304] sm:$0xff]
    %v705 = vld [vmem:[#allocation10 + $0x30c] sm:$0xff]
    %v706 = vld [vmem:[#allocation10 + $0x314] sm:$0xf]
    %v707 = vld [vmem:[#allocation10 + $0x318] sm:$0xff]
    %v708 = vld [vmem:[#allocation10 + $0x320] sm:$0xff]
    %v709 = vld [vmem:[#allocation10 + $0x328] sm:$0xff]
    %v710 = vld [vmem:[#allocation10 + $0x330] sm:$0xff]
    %v711 = vld [vmem:[#allocation10 + $0x338] sm:$0xf]
    %v712 = vld [vmem:[#allocation10 + $0x33c] sm:$0xff]
    %v713 = vld [vmem:[#allocation10 + $0x344] sm:$0xff]
    %v714 = vld [vmem:[#allocation10 + $0x34c] sm:$0xff]
    %v715 = vld [vmem:[#allocation10 + $0x354] sm:$0xff]
    %v716 = vld [vmem:[#allocation10 + $0x35c] sm:$0xf]
    %v717 = vld [vmem:[#allocation10 + $0x360] sm:$0xff]
    %v718 = vld [vmem:[#allocation10 + $0x368] sm:$0xff]
    %v719 = vld [vmem:[#allocation10 + $0x370] sm:$0xff]
    %v720 = vld [vmem:[#allocation10 + $0x378] sm:$0xff]
    %v721 = vld [vmem:[#allocation10 + $0x380] sm:$0xf]
    %v722 = vld [vmem:[#allocation10 + $0x384] sm:$0xff]
    %v723 = vld [vmem:[#allocation10 + $0x38c] sm:$0xff]
    %v724 = vld [vmem:[#allocation10 + $0x394] sm:$0xff]
    %v725 = vld [vmem:[#allocation10 + $0x39c] sm:$0xff]
    %v726 = vld [vmem:[#allocation10 + $0x3a4] sm:$0xf]
    %v727 = vld [vmem:[#allocation10 + $0x3a8] sm:$0xff]
    %v728 = vld [vmem:[#allocation10 + $0x3b0] sm:$0xff]
    %v729 = vld [vmem:[#allocation10 + $0x3b8] sm:$0xff]
    %v730 = vld [vmem:[#allocation10 + $0x3c0] sm:$0xff]
    %v731 = vld [vmem:[#allocation10 + $0x3c8] sm:$0xf]
    %v732 = vld [vmem:[#allocation10 + $0x3cc] sm:$0xff]
    %v733 = vld [vmem:[#allocation10 + $0x3d4] sm:$0xff]
    %v734 = vld [vmem:[#allocation10 + $0x3dc] sm:$0xff]
    %v735 = vld [vmem:[#allocation10 + $0x3e4] sm:$0xff]
    %v736 = vld [vmem:[#allocation10 + $0x3ec] sm:$0xf]
    %v737 = vld [vmem:[#allocation10 + $0x3f0] sm:$0xff]
    %v738 = vld [vmem:[#allocation10 + $0x3f8] sm:$0xff]
    %v739 = vld [vmem:[#allocation10 + $0x400] sm:$0xff]
    %v740 = vld [vmem:[#allocation10 + $0x408] sm:$0xff]
    %v741 = vld [vmem:[#allocation10 + $0x410] sm:$0xf]
    %v742 = vld [vmem:[#allocation10 + $0x414] sm:$0xff]
    %v743 = vld [vmem:[#allocation10 + $0x41c] sm:$0xff]
    %v744 = vld [vmem:[#allocation10 + $0x424] sm:$0xff]
    %v745 = vld [vmem:[#allocation10 + $0x42c] sm:$0xff]
    %v746 = vld [vmem:[#allocation10 + $0x434] sm:$0xf]
    %v747 = vld [vmem:[#allocation10 + $0x438] sm:$0xff]
    %v748 = vld [vmem:[#allocation10 + $0x440] sm:$0xff]
    %v749 = vld [vmem:[#allocation10 + $0x448] sm:$0xff]
    %v750 = vld [vmem:[#allocation10 + $0x450] sm:$0xff]
    %v751 = vld [vmem:[#allocation10 + $0x458] sm:$0xf]
    %v752 = vld [vmem:[#allocation10 + $0x45c] sm:$0xff]
    %v753 = vld [vmem:[#allocation10 + $0x464] sm:$0xff]
    %v754 = vld [vmem:[#allocation10 + $0x46c] sm:$0xff]
    %v755 = vld [vmem:[#allocation10 + $0x474] sm:$0xff]
    %v756 = vld [vmem:[#allocation10 + $0x47c] sm:$0xf]
    %v757 = vld [vmem:[#allocation11] sm:$0xff]
    %v758 = vld [vmem:[#allocation11 + $0x8] sm:$0x1]
    %v761 = vlaneseq
    %v762 = vshrl.u32 %v761, 7
    %v763 = vsub.s32 0, %v762
    %v764 = vrot.slane %v757, %v763
    %v765 = vlaneseq
    %v766 = vshrl.u32 %v765, 7
    %v767 = vsub.s32 1, %v766
    %v768 = vrot.slane %v757, %v767
    %v769 = vlaneseq
    %v770 = vshrl.u32 %v769, 7
    %v771 = vsub.s32 2, %v770
    %v772 = vrot.slane %v757, %v771
    %v773 = vlaneseq
    %v774 = vshrl.u32 %v773, 7
    %v775 = vsub.s32 3, %v774
    %v776 = vrot.slane %v757, %v775
    %v777 = vlaneseq
    %v778 = vshrl.u32 %v777, 7
    %v779 = vsub.s32 4, %v778
    %v780 = vrot.slane %v757, %v779
    %v781 = vlaneseq
    %v782 = vshrl.u32 %v781, 7
    %v783 = vsub.s32 5, %v782
    %v784 = vrot.slane %v757, %v783
    %v785 = vlaneseq
    %v786 = vshrl.u32 %v785, 7
    %v787 = vsub.s32 6, %v786
    %v788 = vrot.slane %v757, %v787
    %v789 = vlaneseq
    %v790 = vshrl.u32 %v789, 7
    %v791 = vsub.s32 7, %v790
    %v792 = vrot.slane %v757, %v791
    %v793 = vlaneseq
    %v794 = vshrl.u32 %v793, 7
    %v795 = vsub.s32 0, %v794
    %v796 = vrot.slane %v758, %v795
    %v966 = vunpack.c.l.b16 %v597
    %v967 = vunpack.c.h.b16 %v597
    %v968 = vunpack.c.l.b16 %v598
    %v969 = vunpack.c.h.b16 %v598
    %v970 = vunpack.c.l.b16 %v599
    %v971 = vunpack.c.h.b16 %v599
    %v972 = vunpack.c.l.b16 %v600
    %v973 = vunpack.c.h.b16 %v600
    %v974 = vunpack.c.l.b16 %v601
    %v975 = vunpack.c.l.b16 %v602
    %v976 = vunpack.c.h.b16 %v602
    %v977 = vunpack.c.l.b16 %v603
    %v978 = vunpack.c.h.b16 %v603
    %v979 = vunpack.c.l.b16 %v604
    %v980 = vunpack.c.h.b16 %v604
    %v981 = vunpack.c.l.b16 %v605
    %v982 = vunpack.c.h.b16 %v605
    %v983 = vunpack.c.l.b16 %v606
    %v984 = vunpack.c.l.b16 %v607
    %v985 = vunpack.c.h.b16 %v607
    %v986 = vunpack.c.l.b16 %v608
    %v987 = vunpack.c.h.b16 %v608
    %v988 = vunpack.c.l.b16 %v609
    %v989 = vunpack.c.h.b16 %v609
    %v990 = vunpack.c.l.b16 %v610
    %v991 = vunpack.c.h.b16 %v610
    %v992 = vunpack.c.l.b16 %v611
    %v993 = vunpack.c.l.b16 %v612
    %v994 = vunpack.c.h.b16 %v612
    %v995 = vunpack.c.l.b16 %v613
    %v996 = vunpack.c.h.b16 %v613
    %v997 = vunpack.c.l.b16 %v614
    %v998 = vunpack.c.h.b16 %v614
    %v999 = vunpack.c.l.b16 %v615
    %v1000 = vunpack.c.h.b16 %v615
    %v1001 = vunpack.c.l.b16 %v616
    %v1002 = vunpack.c.l.b16 %v617
    %v1003 = vunpack.c.h.b16 %v617
    %v1004 = vunpack.c.l.b16 %v618
    %v1005 = vunpack.c.h.b16 %v618
    %v1006 = vunpack.c.l.b16 %v619
    %v1007 = vunpack.c.h.b16 %v619
    %v1008 = vunpack.c.l.b16 %v620
    %v1009 = vunpack.c.h.b16 %v620
    %v1010 = vunpack.c.l.b16 %v621
    %v1011 = vunpack.c.l.b16 %v622
    %v1012 = vunpack.c.h.b16 %v622
    %v1013 = vunpack.c.l.b16 %v623
    %v1014 = vunpack.c.h.b16 %v623
    %v1015 = vunpack.c.l.b16 %v624
    %v1016 = vunpack.c.h.b16 %v624
    %v1017 = vunpack.c.l.b16 %v625
    %v1018 = vunpack.c.h.b16 %v625
    %v1019 = vunpack.c.l.b16 %v626
    %v1020 = vunpack.c.l.b16 %v627
    %v1021 = vunpack.c.h.b16 %v627
    %v1022 = vunpack.c.l.b16 %v628
    %v1023 = vunpack.c.h.b16 %v628
    %v1024 = vunpack.c.l.b16 %v629
    %v1025 = vunpack.c.h.b16 %v629
    %v1026 = vunpack.c.l.b16 %v630
    %v1027 = vunpack.c.h.b16 %v630
    %v1028 = vunpack.c.l.b16 %v631
    %v1029 = vunpack.c.l.b16 %v632
    %v1030 = vunpack.c.h.b16 %v632
    %v1031 = vunpack.c.l.b16 %v633
    %v1032 = vunpack.c.h.b16 %v633
    %v1033 = vunpack.c.l.b16 %v634
    %v1034 = vunpack.c.h.b16 %v634
    %v1035 = vunpack.c.l.b16 %v635
    %v1036 = vunpack.c.h.b16 %v635
    %v1037 = vunpack.c.l.b16 %v636
    %v1038 = vunpack.c.l.b16 %v637
    %v1039 = vunpack.c.h.b16 %v637
    %v1040 = vunpack.c.l.b16 %v638
    %v1041 = vunpack.c.h.b16 %v638
    %v1042 = vunpack.c.l.b16 %v639
    %v1043 = vunpack.c.h.b16 %v639
    %v1044 = vunpack.c.l.b16 %v640
    %v1045 = vunpack.c.h.b16 %v640
    %v1046 = vunpack.c.l.b16 %v641
    %v1047 = vunpack.c.l.b16 %v642
    %v1048 = vunpack.c.h.b16 %v642
    %v1049 = vunpack.c.l.b16 %v643
    %v1050 = vunpack.c.h.b16 %v643
    %v1051 = vunpack.c.l.b16 %v644
    %v1052 = vunpack.c.h.b16 %v644
    %v1053 = vunpack.c.l.b16 %v645
    %v1054 = vunpack.c.h.b16 %v645
    %v1055 = vunpack.c.l.b16 %v646
    %v1056 = vunpack.c.l.b16 %v647
    %v1057 = vunpack.c.h.b16 %v647
    %v1058 = vunpack.c.l.b16 %v648
    %v1059 = vunpack.c.h.b16 %v648
    %v1060 = vunpack.c.l.b16 %v649
    %v1061 = vunpack.c.h.b16 %v649
    %v1062 = vunpack.c.l.b16 %v650
    %v1063 = vunpack.c.h.b16 %v650
    %v1064 = vunpack.c.l.b16 %v651
    %v1065 = vunpack.c.l.b16 %v652
    %v1066 = vunpack.c.h.b16 %v652
    %v1067 = vunpack.c.l.b16 %v653
    %v1068 = vunpack.c.h.b16 %v653
    %v1069 = vunpack.c.l.b16 %v654
    %v1070 = vunpack.c.h.b16 %v654
    %v1071 = vunpack.c.l.b16 %v655
    %v1072 = vunpack.c.h.b16 %v655
    %v1073 = vunpack.c.l.b16 %v656
    %v1074 = vunpack.c.l.b16 %v657
    %v1075 = vunpack.c.h.b16 %v657
    %v1076 = vunpack.c.l.b16 %v658
    %v1077 = vunpack.c.h.b16 %v658
    %v1078 = vunpack.c.l.b16 %v659
    %v1079 = vunpack.c.h.b16 %v659
    %v1080 = vunpack.c.l.b16 %v660
    %v1081 = vunpack.c.h.b16 %v660
    %v1082 = vunpack.c.l.b16 %v661
    %v1083 = vunpack.c.l.b16 %v662
    %v1084 = vunpack.c.h.b16 %v662
    %v1085 = vunpack.c.l.b16 %v663
    %v1086 = vunpack.c.h.b16 %v663
    %v1087 = vunpack.c.l.b16 %v664
    %v1088 = vunpack.c.h.b16 %v664
    %v1089 = vunpack.c.l.b16 %v665
    %v1090 = vunpack.c.h.b16 %v665
    %v1091 = vunpack.c.l.b16 %v666
    %v1092 = vunpack.c.l.b16 %v667
    %v1093 = vunpack.c.h.b16 %v667
    %v1094 = vunpack.c.l.b16 %v668
    %v1095 = vunpack.c.h.b16 %v668
    %v1096 = vunpack.c.l.b16 %v669
    %v1097 = vunpack.c.h.b16 %v669
    %v1098 = vunpack.c.l.b16 %v670
    %v1099 = vunpack.c.h.b16 %v670
    %v1100 = vunpack.c.l.b16 %v671
    %v1101 = vunpack.c.l.b16 %v672
    %v1102 = vunpack.c.h.b16 %v672
    %v1103 = vunpack.c.l.b16 %v673
    %v1104 = vunpack.c.h.b16 %v673
    %v1105 = vunpack.c.l.b16 %v674
    %v1106 = vunpack.c.h.b16 %v674
    %v1107 = vunpack.c.l.b16 %v675
    %v1108 = vunpack.c.h.b16 %v675
    %v1109 = vunpack.c.l.b16 %v676
    %v1110 = vunpack.c.l.b16 %v677
    %v1111 = vunpack.c.h.b16 %v677
    %v1112 = vunpack.c.l.b16 %v678
    %v1113 = vunpack.c.h.b16 %v678
    %v1114 = vunpack.c.l.b16 %v679
    %v1115 = vunpack.c.h.b16 %v679
    %v1116 = vunpack.c.l.b16 %v680
    %v1117 = vunpack.c.h.b16 %v680
    %v1118 = vunpack.c.l.b16 %v681
    %v1119 = vunpack.c.l.b16 %v682
    %v1120 = vunpack.c.h.b16 %v682
    %v1121 = vunpack.c.l.b16 %v683
    %v1122 = vunpack.c.h.b16 %v683
    %v1123 = vunpack.c.l.b16 %v684
    %v1124 = vunpack.c.h.b16 %v684
    %v1125 = vunpack.c.l.b16 %v685
    %v1126 = vunpack.c.h.b16 %v685
    %v1127 = vunpack.c.l.b16 %v686
    %v1128 = vunpack.c.l.b16 %v687
    %v1129 = vunpack.c.h.b16 %v687
    %v1130 = vunpack.c.l.b16 %v688
    %v1131 = vunpack.c.h.b16 %v688
    %v1132 = vunpack.c.l.b16 %v689
    %v1133 = vunpack.c.h.b16 %v689
    %v1134 = vunpack.c.l.b16 %v690
    %v1135 = vunpack.c.h.b16 %v690
    %v1136 = vunpack.c.l.b16 %v691
    %v1137 = vunpack.c.l.b16 %v692
    %v1138 = vunpack.c.h.b16 %v692
    %v1139 = vunpack.c.l.b16 %v693
    %v1140 = vunpack.c.h.b16 %v693
    %v1141 = vunpack.c.l.b16 %v694
    %v1142 = vunpack.c.h.b16 %v694
    %v1143 = vunpack.c.l.b16 %v695
    %v1144 = vunpack.c.h.b16 %v695
    %v1145 = vunpack.c.l.b16 %v696
    %v1146 = vunpack.c.l.b16 %v697
    %v1147 = vunpack.c.h.b16 %v697
    %v1148 = vunpack.c.l.b16 %v698
    %v1149 = vunpack.c.h.b16 %v698
    %v1150 = vunpack.c.l.b16 %v699
    %v1151 = vunpack.c.h.b16 %v699
    %v1152 = vunpack.c.l.b16 %v700
    %v1153 = vunpack.c.h.b16 %v700
    %v1154 = vunpack.c.l.b16 %v701
    %v1155 = vunpack.c.l.b16 %v702
    %v1156 = vunpack.c.h.b16 %v702
    %v1157 = vunpack.c.l.b16 %v703
    %v1158 = vunpack.c.h.b16 %v703
    %v1159 = vunpack.c.l.b16 %v704
    %v1160 = vunpack.c.h.b16 %v704
    %v1161 = vunpack.c.l.b16 %v705
    %v1162 = vunpack.c.h.b16 %v705
    %v1163 = vunpack.c.l.b16 %v706
    %v1164 = vunpack.c.l.b16 %v707
    %v1165 = vunpack.c.h.b16 %v707
    %v1166 = vunpack.c.l.b16 %v708
    %v1167 = vunpack.c.h.b16 %v708
    %v1168 = vunpack.c.l.b16 %v709
    %v1169 = vunpack.c.h.b16 %v709
    %v1170 = vunpack.c.l.b16 %v710
    %v1171 = vunpack.c.h.b16 %v710
    %v1172 = vunpack.c.l.b16 %v711
    %v1173 = vunpack.c.l.b16 %v712
    %v1174 = vunpack.c.h.b16 %v712
    %v1175 = vunpack.c.l.b16 %v713
    %v1176 = vunpack.c.h.b16 %v713
    %v1177 = vunpack.c.l.b16 %v714
    %v1178 = vunpack.c.h.b16 %v714
    %v1179 = vunpack.c.l.b16 %v715
    %v1180 = vunpack.c.h.b16 %v715
    %v1181 = vunpack.c.l.b16 %v716
    %v1182 = vunpack.c.l.b16 %v717
    %v1183 = vunpack.c.h.b16 %v717
    %v1184 = vunpack.c.l.b16 %v718
    %v1185 = vunpack.c.h.b16 %v718
    %v1186 = vunpack.c.l.b16 %v719
    %v1187 = vunpack.c.h.b16 %v719
    %v1188 = vunpack.c.l.b16 %v720
    %v1189 = vunpack.c.h.b16 %v720
    %v1190 = vunpack.c.l.b16 %v721
    %v1191 = vunpack.c.l.b16 %v722
    %v1192 = vunpack.c.h.b16 %v722
    %v1193 = vunpack.c.l.b16 %v723
    %v1194 = vunpack.c.h.b16 %v723
    %v1195 = vunpack.c.l.b16 %v724
    %v1196 = vunpack.c.h.b16 %v724
    %v1197 = vunpack.c.l.b16 %v725
    %v1198 = vunpack.c.h.b16 %v725
    %v1199 = vunpack.c.l.b16 %v726
    %v1200 = vunpack.c.l.b16 %v727
    %v1201 = vunpack.c.h.b16 %v727
    %v1202 = vunpack.c.l.b16 %v728
    %v1203 = vunpack.c.h.b16 %v728
    %v1204 = vunpack.c.l.b16 %v729
    %v1205 = vunpack.c.h.b16 %v729
    %v1206 = vunpack.c.l.b16 %v730
    %v1207 = vunpack.c.h.b16 %v730
    %v1208 = vunpack.c.l.b16 %v731
    %v1209 = vunpack.c.l.b16 %v732
    %v1210 = vunpack.c.h.b16 %v732
    %v1211 = vunpack.c.l.b16 %v733
    %v1212 = vunpack.c.h.b16 %v733
    %v1213 = vunpack.c.l.b16 %v734
    %v1214 = vunpack.c.h.b16 %v734
    %v1215 = vunpack.c.l.b16 %v735
    %v1216 = vunpack.c.h.b16 %v735
    %v1217 = vunpack.c.l.b16 %v736
    %v1218 = vunpack.c.l.b16 %v737
    %v1219 = vunpack.c.h.b16 %v737
    %v1220 = vunpack.c.l.b16 %v738
    %v1221 = vunpack.c.h.b16 %v738
    %v1222 = vunpack.c.l.b16 %v739
    %v1223 = vunpack.c.h.b16 %v739
    %v1224 = vunpack.c.l.b16 %v740
    %v1225 = vunpack.c.h.b16 %v740
    %v1226 = vunpack.c.l.b16 %v741
    %v1227 = vunpack.c.l.b16 %v742
    %v1228 = vunpack.c.h.b16 %v742
    %v1229 = vunpack.c.l.b16 %v743
    %v1230 = vunpack.c.h.b16 %v743
    %v1231 = vunpack.c.l.b16 %v744
    %v1232 = vunpack.c.h.b16 %v744
    %v1233 = vunpack.c.l.b16 %v745
    %v1234 = vunpack.c.h.b16 %v745
    %v1235 = vunpack.c.l.b16 %v746
    %v1236 = vunpack.c.l.b16 %v747
    %v1237 = vunpack.c.h.b16 %v747
    %v1238 = vunpack.c.l.b16 %v748
    %v1239 = vunpack.c.h.b16 %v748
    %v1240 = vunpack.c.l.b16 %v749
    %v1241 = vunpack.c.h.b16 %v749
    %v1242 = vunpack.c.l.b16 %v750
    %v1243 = vunpack.c.h.b16 %v750
    %v1244 = vunpack.c.l.b16 %v751
    %v1245 = vunpack.c.l.b16 %v752
    %v1246 = vunpack.c.h.b16 %v752
    %v1247 = vunpack.c.l.b16 %v753
    %v1248 = vunpack.c.h.b16 %v753
    %v1249 = vunpack.c.l.b16 %v754
    %v1250 = vunpack.c.h.b16 %v754
    %v1251 = vunpack.c.l.b16 %v755
    %v1252 = vunpack.c.h.b16 %v755
    %v1253 = vunpack.c.l.b16 %v756
    %v1254 = vpack.c.b16 %v975, %v966
    %v1255 = vpack.c.b16 %v976, %v967
    %v1256 = vpack.c.b16 %v977, %v968
    %v1257 = vpack.c.b16 %v978, %v969
    %v1258 = vpack.c.b16 %v979, %v970
    %v1259 = vpack.c.b16 %v980, %v971
    %v1260 = vpack.c.b16 %v981, %v972
    %v1261 = vpack.c.b16 %v982, %v973
    %v1262 = vpack.c.b16 %v983, %v974
    %v1263 = vpack.c.b16 %v993, %v984
    %v1264 = vpack.c.b16 %v994, %v985
    %v1265 = vpack.c.b16 %v995, %v986
    %v1266 = vpack.c.b16 %v996, %v987
    %v1267 = vpack.c.b16 %v997, %v988
    %v1268 = vpack.c.b16 %v998, %v989
    %v1269 = vpack.c.b16 %v999, %v990
    %v1270 = vpack.c.b16 %v1000, %v991
    %v1271 = vpack.c.b16 %v1001, %v992
    %v1272 = vpack.c.b16 %v1011, %v1002
    %v1273 = vpack.c.b16 %v1012, %v1003
    %v1274 = vpack.c.b16 %v1013, %v1004
    %v1275 = vpack.c.b16 %v1014, %v1005
    %v1276 = vpack.c.b16 %v1015, %v1006
    %v1277 = vpack.c.b16 %v1016, %v1007
    %v1278 = vpack.c.b16 %v1017, %v1008
    %v1279 = vpack.c.b16 %v1018, %v1009
    %v1280 = vpack.c.b16 %v1019, %v1010
    %v1281 = vpack.c.b16 %v1029, %v1020
    %v1282 = vpack.c.b16 %v1030, %v1021
    %v1283 = vpack.c.b16 %v1031, %v1022
    %v1284 = vpack.c.b16 %v1032, %v1023
    %v1285 = vpack.c.b16 %v1033, %v1024
    %v1286 = vpack.c.b16 %v1034, %v1025
    %v1287 = vpack.c.b16 %v1035, %v1026
    %v1288 = vpack.c.b16 %v1036, %v1027
    %v1289 = vpack.c.b16 %v1037, %v1028
    %v1290 = vpack.c.b16 %v1047, %v1038
    %v1291 = vpack.c.b16 %v1048, %v1039
    %v1292 = vpack.c.b16 %v1049, %v1040
    %v1293 = vpack.c.b16 %v1050, %v1041
    %v1294 = vpack.c.b16 %v1051, %v1042
    %v1295 = vpack.c.b16 %v1052, %v1043
    %v1296 = vpack.c.b16 %v1053, %v1044
    %v1297 = vpack.c.b16 %v1054, %v1045
    %v1298 = vpack.c.b16 %v1055, %v1046
    %v1299 = vpack.c.b16 %v1065, %v1056
    %v1300 = vpack.c.b16 %v1066, %v1057
    %v1301 = vpack.c.b16 %v1067, %v1058
    %v1302 = vpack.c.b16 %v1068, %v1059
    %v1303 = vpack.c.b16 %v1069, %v1060
    %v1304 = vpack.c.b16 %v1070, %v1061
    %v1305 = vpack.c.b16 %v1071, %v1062
    %v1306 = vpack.c.b16 %v1072, %v1063
    %v1307 = vpack.c.b16 %v1073, %v1064
    %v1308 = vpack.c.b16 %v1083, %v1074
    %v1309 = vpack.c.b16 %v1084, %v1075
    %v1310 = vpack.c.b16 %v1085, %v1076
    %v1311 = vpack.c.b16 %v1086, %v1077
    %v1312 = vpack.c.b16 %v1087, %v1078
    %v1313 = vpack.c.b16 %v1088, %v1079
    %v1314 = vpack.c.b16 %v1089, %v1080
    %v1315 = vpack.c.b16 %v1090, %v1081
    %v1316 = vpack.c.b16 %v1091, %v1082
    %v1317 = vpack.c.b16 %v1101, %v1092
    %v1318 = vpack.c.b16 %v1102, %v1093
    %v1319 = vpack.c.b16 %v1103, %v1094
    %v1320 = vpack.c.b16 %v1104, %v1095
    %v1321 = vpack.c.b16 %v1105, %v1096
    %v1322 = vpack.c.b16 %v1106, %v1097
    %v1323 = vpack.c.b16 %v1107, %v1098
    %v1324 = vpack.c.b16 %v1108, %v1099
    %v1325 = vpack.c.b16 %v1109, %v1100
    %v1326 = vpack.c.b16 %v1119, %v1110
    %v1327 = vpack.c.b16 %v1120, %v1111
    %v1328 = vpack.c.b16 %v1121, %v1112
    %v1329 = vpack.c.b16 %v1122, %v1113
    %v1330 = vpack.c.b16 %v1123, %v1114
    %v1331 = vpack.c.b16 %v1124, %v1115
    %v1332 = vpack.c.b16 %v1125, %v1116
    %v1333 = vpack.c.b16 %v1126, %v1117
    %v1334 = vpack.c.b16 %v1127, %v1118
    %v1335 = vpack.c.b16 %v1137, %v1128
    %v1336 = vpack.c.b16 %v1138, %v1129
    %v1337 = vpack.c.b16 %v1139, %v1130
    %v1338 = vpack.c.b16 %v1140, %v1131
    %v1339 = vpack.c.b16 %v1141, %v1132
    %v1340 = vpack.c.b16 %v1142, %v1133
    %v1341 = vpack.c.b16 %v1143, %v1134
    %v1342 = vpack.c.b16 %v1144, %v1135
    %v1343 = vpack.c.b16 %v1145, %v1136
    %v1344 = vpack.c.b16 %v1155, %v1146
    %v1345 = vpack.c.b16 %v1156, %v1147
    %v1346 = vpack.c.b16 %v1157, %v1148
    %v1347 = vpack.c.b16 %v1158, %v1149
    %v1348 = vpack.c.b16 %v1159, %v1150
    %v1349 = vpack.c.b16 %v1160, %v1151
    %v1350 = vpack.c.b16 %v1161, %v1152
    %v1351 = vpack.c.b16 %v1162, %v1153
    %v1352 = vpack.c.b16 %v1163, %v1154
    %v1353 = vpack.c.b16 %v1173, %v1164
    %v1354 = vpack.c.b16 %v1174, %v1165
    %v1355 = vpack.c.b16 %v1175, %v1166
    %v1356 = vpack.c.b16 %v1176, %v1167
    %v1357 = vpack.c.b16 %v1177, %v1168
    %v1358 = vpack.c.b16 %v1178, %v1169
    %v1359 = vpack.c.b16 %v1179, %v1170
    %v1360 = vpack.c.b16 %v1180, %v1171
    %v1361 = vpack.c.b16 %v1181, %v1172
    %v1362 = vpack.c.b16 %v1191, %v1182
    %v1363 = vpack.c.b16 %v1192, %v1183
    %v1364 = vpack.c.b16 %v1193, %v1184
    %v1365 = vpack.c.b16 %v1194, %v1185
    %v1366 = vpack.c.b16 %v1195, %v1186
    %v1367 = vpack.c.b16 %v1196, %v1187
    %v1368 = vpack.c.b16 %v1197, %v1188
    %v1369 = vpack.c.b16 %v1198, %v1189
    %v1370 = vpack.c.b16 %v1199, %v1190
    %v1371 = vpack.c.b16 %v1209, %v1200
    %v1372 = vpack.c.b16 %v1210, %v1201
    %v1373 = vpack.c.b16 %v1211, %v1202
    %v1374 = vpack.c.b16 %v1212, %v1203
    %v1375 = vpack.c.b16 %v1213, %v1204
    %v1376 = vpack.c.b16 %v1214, %v1205
    %v1377 = vpack.c.b16 %v1215, %v1206
    %v1378 = vpack.c.b16 %v1216, %v1207
    %v1379 = vpack.c.b16 %v1217, %v1208
    %v1380 = vpack.c.b16 %v1227, %v1218
    %v1381 = vpack.c.b16 %v1228, %v1219
    %v1382 = vpack.c.b16 %v1229, %v1220
    %v1383 = vpack.c.b16 %v1230, %v1221
    %v1384 = vpack.c.b16 %v1231, %v1222
    %v1385 = vpack.c.b16 %v1232, %v1223
    %v1386 = vpack.c.b16 %v1233, %v1224
    %v1387 = vpack.c.b16 %v1234, %v1225
    %v1388 = vpack.c.b16 %v1235, %v1226
    %v1389 = vpack.c.b16 %v1245, %v1236
    %v1390 = vpack.c.b16 %v1246, %v1237
    %v1391 = vpack.c.b16 %v1247, %v1238
    %v1392 = vpack.c.b16 %v1248, %v1239
    %v1393 = vpack.c.b16 %v1249, %v1240
    %v1394 = vpack.c.b16 %v1250, %v1241
    %v1395 = vpack.c.b16 %v1251, %v1242
    %v1396 = vpack.c.b16 %v1252, %v1243
    %v1397 = vpack.c.b16 %v1253, %v1244
    %1542 = vmatprep.subr.bf16.mxu0 %v1255
    %1543 = vmatpush1.bf16.msra.mxu0 %v1254
    %1544 = vmatprep.subr.bf16.mxu0 %v1264
    %1545 = vmatpush1.bf16.msra.mxu0 %v1263
    %1546 = vmatprep.subr.bf16.mxu0 %v1273
    %1547 = vmatpush1.bf16.msra.mxu0 %v1272
    %1548 = vmatprep.subr.bf16.mxu0 %v1282
    %1549 = vmatpush1.bf16.msra.mxu0 %v1281
    %1550 = vmatprep.subr.bf16.mxu0 %v1291
    %1551 = vmatpush1.bf16.msra.mxu0 %v1290
    %1552 = vmatprep.subr.bf16.mxu0 %v1300
    %1553 = vmatpush1.bf16.msra.mxu0 %v1299
    %1554 = vmatprep.subr.bf16.mxu0 %v1309
    %1555 = vmatpush1.bf16.msra.mxu0 %v1308
    %1556 = vmatprep.subr.bf16.mxu0 %v1318
    %1557 = vmatpush1.bf16.msra.mxu0 %v1317
    %1558 = vmatprep.subr.bf16.mxu0 %v1327
    %1559 = vmatpush1.bf16.msra.mxu0 %v1326
    %1560 = vmatprep.subr.bf16.mxu0 %v1336
    %1561 = vmatpush1.bf16.msra.mxu0 %v1335
    %1562 = vmatprep.subr.bf16.mxu0 %v1345
    %1563 = vmatpush1.bf16.msra.mxu0 %v1344
    %1564 = vmatprep.subr.bf16.mxu0 %v1354
    %1565 = vmatpush1.bf16.msra.mxu0 %v1353
    %1566 = vmatprep.subr.bf16.mxu0 %v1363
    %1567 = vmatpush1.bf16.msra.mxu0 %v1362
    %1568 = vmatprep.subr.bf16.mxu0 %v1372
    %1569 = vmatpush1.bf16.msra.mxu0 %v1371
    %1570 = vmatprep.subr.bf16.mxu0 %v1381
    %1571 = vmatpush1.bf16.msra.mxu0 %v1380
    %1572 = vmatprep.subr.bf16.mxu0 %v1390
    %1573 = vmatpush1.bf16.msra.mxu0 %v1389
    %1574 = vmatprep.mubr.bf16.mxu0 %v582
    %1575 = vmatmul.mubr.bf16.gmra.mrb[0].mxu0 %v581
    %v1576 = vpop.f32.mrb[0].mxu0
    %v1577 = vadd.f32 %v764, %v1576
    %v1578 = vpop.f32.mrb[0].mxu0
    %v1579 = vadd.f32 %v768, %v1578
    %v1580 = vpop.f32.mrb[0].mxu0
    %v1581 = vadd.f32 %v764, %v1580
    %v1582 = vpop.f32.mrb[0].mxu0
    %v1583 = vadd.f32 %v768, %v1582
    %1584 = vmatprep.mubr.bf16.mxu0 %v584
    %1585 = vmatmul.mubr.bf16.gmra.mrb[0].mxu0 %v583
    %v1586 = vpop.f32.mrb[0].mxu0
    %v1587 = vadd.f32 %v764, %v1586
    %v1588 = vpop.f32.mrb[0].mxu0
    %v1589 = vadd.f32 %v768, %v1588
    %v1590 = vpop.f32.mrb[0].mxu0
    %v1591 = vadd.f32 %v764, %v1590
    %v1592 = vpop.f32.mrb[0].mxu0
    %v1593 = vadd.f32 %v768, %v1592
    %1594 = vmatprep.mubr.bf16.mxu0 %v586
    %1595 = vmatmul.mubr.bf16.gmra.mrb[0].mxu0 %v585
    %v1596 = vpop.f32.mrb[0].mxu0
    %v1597 = vadd.f32 %v764, %v1596
    %v1598 = vpop.f32.mrb[0].mxu0
    %v1599 = vadd.f32 %v768, %v1598
    %v1600 = vpop.f32.mrb[0].mxu0
    %v1601 = vadd.f32 %v764, %v1600
    %v1602 = vpop.f32.mrb[0].mxu0
    %v1603 = vadd.f32 %v768, %v1602
    %1604 = vmatprep.mubr.bf16.mxu0 %v588
    %1605 = vmatmul.mubr.bf16.gmra.mrb[0].mxu0 %v587
    %v1606 = vpop.f32.mrb[0].mxu0
    %v1607 = vadd.f32 %v764, %v1606
    %v1608 = vpop.f32.mrb[0].mxu0
    %v1609 = vadd.f32 %v768, %v1608
    %v1610 = vpop.f32.mrb[0].mxu0
    %v1611 = vadd.f32 %v764, %v1610
    %v1612 = vpop.f32.mrb[0].mxu0
    %v1613 = vadd.f32 %v768, %v1612
    %1614 = vmatprep.mubr.bf16.mxu0 %v590
    %1615 = vmatmul.mubr.bf16.gmra.mrb[0].mxu0 %v589
    %v1616 = vpop.f32.mrb[0].mxu0
    %v1617 = vadd.f32 %v764, %v1616
    %v1618 = vpop.f32.mrb[0].mxu0
    %v1619 = vadd.f32 %v768, %v1618
    %v1620 = vpop.f32.mrb[0].mxu0
    %v1621 = vadd.f32 %v764, %v1620
    %v1622 = vpop.f32.mrb[0].mxu0
    %v1623 = vadd.f32 %v768, %v1622
    %1624 = vmatprep.mubr.bf16.mxu0 %v592
    %1625 = vmatmul.mubr.bf16.gmra.mrb[0].mxu0 %v591
    %v1626 = vpop.f32.mrb[0].mxu0
    %v1627 = vadd.f32 %v764, %v1626
    %v1628 = vpop.f32.mrb[0].mxu0
    %v1629 = vadd.f32 %v768, %v1628
    %v1630 = vpop.f32.mrb[0].mxu0
    %v1631 = vadd.f32 %v764, %v1630
    %v1632 = vpop.f32.mrb[0].mxu0
    %v1633 = vadd.f32 %v768, %v1632
    %1634 = vmatprep.mubr.bf16.mxu0 %v594
    %1635 = vmatmul.mubr.bf16.gmra.mrb[0].mxu0 %v593
    %v1636 = vpop.f32.mrb[0].mxu0
    %v1637 = vadd.f32 %v764, %v1636
    %v1638 = vpop.f32.mrb[0].mxu0
    %v1639 = vadd.f32 %v768, %v1638
    %v1640 = vpop.f32.mrb[0].mxu0
    %v1641 = vadd.f32 %v764, %v1640
    %v1642 = vpop.f32.mrb[0].mxu0
    %v1643 = vadd.f32 %v768, %v1642
    %1644 = vmatprep.mubr.bf16.mxu0 %v596
    %1645 = vmatmul.mubr.bf16.gmra.mrb[0].mxu0 %v595
    %v1646 = vpop.f32.mrb[0].mxu0
    %v1647 = vadd.f32 %v764, %v1646
    %v1648 = vpop.f32.mrb[0].mxu0
    %v1649 = vadd.f32 %v768, %v1648
    %v1650 = vpop.f32.mrb[0].mxu0
    %v1651 = vadd.f32 %v764, %v1650
    %v1652 = vpop.f32.mrb[0].mxu0
    %v1653 = vadd.f32 %v768, %v1652
    %1654 = vdwg.mxu0
    %1655 = vmatprep.subr.bf16.mxu0 %v1257
    %1656 = vmatpush1.bf16.msra.mxu0 %v1256
    %1657 = vmatprep.subr.bf16.mxu0 %v1266
    %1658 = vmatpush1.bf16.msra.mxu0 %v1265
    %1659 = vmatprep.subr.bf16.mxu0 %v1275
    %1660 = vmatpush1.bf16.msra.mxu0 %v1274
    %1661 = vmatprep.subr.bf16.mxu0 %v1284
    %1662 = vmatpush1.bf16.msra.mxu0 %v1283
    %1663 = vmatprep.subr.bf16.mxu0 %v1293
    %1664 = vmatpush1.bf16.msra.mxu0 %v1292
    %1665 = vmatprep.subr.bf16.mxu0 %v1302
    %1666 = vmatpush1.bf16.msra.mxu0 %v1301
    %1667 = vmatprep.subr.bf16.mxu0 %v1311
    %1668 = vmatpush1.bf16.msra.mxu0 %v1310
    %1669 = vmatprep.subr.bf16.mxu0 %v1320
    %1670 = vmatpush1.bf16.msra.mxu0 %v1319
    %1671 = vmatprep.subr.bf16.mxu0 %v1329
    %1672 = vmatpush1.bf16.msra.mxu0 %v1328
    %1673 = vmatprep.subr.bf16.mxu0 %v1338
    %1674 = vmatpush1.bf16.msra.mxu0 %v1337
    %1675 = vmatprep.subr.bf16.mxu0 %v1347
    %1676 = vmatpush1.bf16.msra.mxu0 %v1346
    %1677 = vmatprep.subr.bf16.mxu0 %v1356
    %1678 = vmatpush1.bf16.msra.mxu0 %v1355
    %1679 = vmatprep.subr.bf16.mxu0 %v1365
    %1680 = vmatpush1.bf16.msra.mxu0 %v1364
    %1681 = vmatprep.subr.bf16.mxu0 %v1374
    %1682 = vmatpush1.bf16.msra.mxu0 %v1373
    %1683 = vmatprep.subr.bf16.mxu0 %v1383
    %1684 = vmatpush1.bf16.msra.mxu0 %v1382
    %1685 = vmatprep.subr.bf16.mxu0 %v1392
    %1686 = vmatpush1.bf16.msra.mxu0 %v1391
    %1687 = vmatprep.mubr.bf16.mxu0 %v582
    %1688 = vmatmul.mubr.bf16.gmra.mrb[0].mxu0 %v581
    %v1689 = vpop.f32.mrb[0].mxu0
    %v1690 = vadd.f32 %v772, %v1689
    %v1691 = vpop.f32.mrb[0].mxu0
    %v1692 = vadd.f32 %v776, %v1691
    %v1693 = vpop.f32.mrb[0].mxu0
    %v1694 = vadd.f32 %v772, %v1693
    %v1695 = vpop.f32.mrb[0].mxu0
    %v1696 = vadd.f32 %v776, %v1695
    %1697 = vmatprep.mubr.bf16.mxu0 %v584
    %1698 = vmatmul.mubr.bf16.gmra.mrb[0].mxu0 %v583
    %v1699 = vpop.f32.mrb[0].mxu0
    %v1700 = vadd.f32 %v772, %v1699
    %v1701 = vpop.f32.mrb[0].mxu0
    %v1702 = vadd.f32 %v776, %v1701
    %v1703 = vpop.f32.mrb[0].mxu0
    %v1704 = vadd.f32 %v772, %v1703
    %v1705 = vpop.f32.mrb[0].mxu0
    %v1706 = vadd.f32 %v776, %v1705
    %1707 = vmatprep.mubr.bf16.mxu0 %v586
    %1708 = vmatmul.mubr.bf16.gmra.mrb[0].mxu0 %v585
    %v1709 = vpop.f32.mrb[0].mxu0
    %v1710 = vadd.f32 %v772, %v1709
    %v1711 = vpop.f32.mrb[0].mxu0
    %v1712 = vadd.f32 %v776, %v1711
    %v1713 = vpop.f32.mrb[0].mxu0
    %v1714 = vadd.f32 %v772, %v1713
    %v1715 = vpop.f32.mrb[0].mxu0
    %v1716 = vadd.f32 %v776, %v1715
    %1717 = vmatprep.mubr.bf16.mxu0 %v588
    %1718 = vmatmul.mubr.bf16.gmra.mrb[0].mxu0 %v587
    %v1719 = vpop.f32.mrb[0].mxu0
    %v1720 = vadd.f32 %v772, %v1719
    %v1721 = vpop.f32.mrb[0].mxu0
    %v1722 = vadd.f32 %v776, %v1721
    %v1723 = vpop.f32.mrb[0].mxu0
    %v1724 = vadd.f32 %v772, %v1723
    %v1725 = vpop.f32.mrb[0].mxu0
    %v1726 = vadd.f32 %v776, %v1725
    %1727 = vmatprep.mubr.bf16.mxu0 %v590
    %1728 = vmatmul.mubr.bf16.gmra.mrb[0].mxu0 %v589
    %v1729 = vpop.f32.mrb[0].mxu0
    %v1730 = vadd.f32 %v772, %v1729
    %v1731 = vpop.f32.mrb[0].mxu0
    %v1732 = vadd.f32 %v776, %v1731
    %v1733 = vpop.f32.mrb[0].mxu0
    %v1734 = vadd.f32 %v772, %v1733
    %v1735 = vpop.f32.mrb[0].mxu0
    %v1736 = vadd.f32 %v776, %v1735
    %1737 = vmatprep.mubr.bf16.mxu0 %v592
    %1738 = vmatmul.mubr.bf16.gmra.mrb[0].mxu0 %v591
    %v1739 = vpop.f32.mrb[0].mxu0
    %v1740 = vadd.f32 %v772, %v1739
    %v1741 = vpop.f32.mrb[0].mxu0
    %v1742 = vadd.f32 %v776, %v1741
    %v1743 = vpop.f32.mrb[0].mxu0
    %v1744 = vadd.f32 %v772, %v1743
    %v1745 = vpop.f32.mrb[0].mxu0
    %v1746 = vadd.f32 %v776, %v1745
    %1747 = vmatprep.mubr.bf16.mxu0 %v594
    %1748 = vmatmul.mubr.bf16.gmra.mrb[0].mxu0 %v593
    %v1749 = vpop.f32.mrb[0].mxu0
    %v1750 = vadd.f32 %v772, %v1749
    %v1751 = vpop.f32.mrb[0].mxu0
    %v1752 = vadd.f32 %v776, %v1751
    %v1753 = vpop.f32.mrb[0].mxu0
    %v1754 = vadd.f32 %v772, %v1753
    %v1755 = vpop.f32.mrb[0].mxu0
    %v1756 = vadd.f32 %v776, %v1755
    %1757 = vmatprep.mubr.bf16.mxu0 %v596
    %1758 = vmatmul.mubr.bf16.gmra.mrb[0].mxu0 %v595
    %v1759 = vpop.f32.mrb[0].mxu0
    %v1760 = vadd.f32 %v772, %v1759
    %v1761 = vpop.f32.mrb[0].mxu0
    %v1762 = vadd.f32 %v776, %v1761
    %v1763 = vpop.f32.mrb[0].mxu0
    %v1764 = vadd.f32 %v772, %v1763
    %v1765 = vpop.f32.mrb[0].mxu0
    %v1766 = vadd.f32 %v776, %v1765
    %1767 = vdwg.mxu0
    %1768 = vmatprep.subr.bf16.mxu0 %v1259
    %1769 = vmatpush1.bf16.msra.mxu0 %v1258
    %1770 = vmatprep.subr.bf16.mxu0 %v1268
    %1771 = vmatpush1.bf16.msra.mxu0 %v1267
    %1772 = vmatprep.subr.bf16.mxu0 %v1277
    %1773 = vmatpush1.bf16.msra.mxu0 %v1276
    %1774 = vmatprep.subr.bf16.mxu0 %v1286
    %1775 = vmatpush1.bf16.msra.mxu0 %v1285
    %1776 = vmatprep.subr.bf16.mxu0 %v1295
    %1777 = vmatpush1.bf16.msra.mxu0 %v1294
    %1778 = vmatprep.subr.bf16.mxu0 %v1304
    %1779 = vmatpush1.bf16.msra.mxu0 %v1303
    %1780 = vmatprep.subr.bf16.mxu0 %v1313
    %1781 = vmatpush1.bf16.msra.mxu0 %v1312
    %1782 = vmatprep.subr.bf16.mxu0 %v1322
    %1783 = vmatpush1.bf16.msra.mxu0 %v1321
    %1784 = vmatprep.subr.bf16.mxu0 %v1331
    %1785 = vmatpush1.bf16.msra.mxu0 %v1330
    %1786 = vmatprep.subr.bf16.mxu0 %v1340
    %1787 = vmatpush1.bf16.msra.mxu0 %v1339
    %1788 = vmatprep.subr.bf16.mxu0 %v1349
    %1789 = vmatpush1.bf16.msra.mxu0 %v1348
    %1790 = vmatprep.subr.bf16.mxu0 %v1358
    %1791 = vmatpush1.bf16.msra.mxu0 %v1357
    %1792 = vmatprep.subr.bf16.mxu0 %v1367
    %1793 = vmatpush1.bf16.msra.mxu0 %v1366
    %1794 = vmatprep.subr.bf16.mxu0 %v1376
    %1795 = vmatpush1.bf16.msra.mxu0 %v1375
    %1796 = vmatprep.subr.bf16.mxu0 %v1385
    %1797 = vmatpush1.bf16.msra.mxu0 %v1384
    %1798 = vmatprep.subr.bf16.mxu0 %v1394
    %1799 = vmatpush1.bf16.msra.mxu0 %v1393
    %1800 = vmatprep.mubr.bf16.mxu0 %v582
    %1801 = vmatmul.mubr.bf16.gmra.mrb[0].mxu0 %v581
    %v1802 = vpop.f32.mrb[0].mxu0
    %v1803 = vadd.f32 %v780, %v1802
    %v1804 = vpop.f32.mrb[0].mxu0
    %v1805 = vadd.f32 %v784, %v1804
    %v1806 = vpop.f32.mrb[0].mxu0
    %v1807 = vadd.f32 %v780, %v1806
    %v1808 = vpop.f32.mrb[0].mxu0
    %v1809 = vadd.f32 %v784, %v1808
    %1810 = vmatprep.mubr.bf16.mxu0 %v584
    %1811 = vmatmul.mubr.bf16.gmra.mrb[0].mxu0 %v583
    %v1812 = vpop.f32.mrb[0].mxu0
    %v1813 = vadd.f32 %v780, %v1812
    %v1814 = vpop.f32.mrb[0].mxu0
    %v1815 = vadd.f32 %v784, %v1814
    %v1816 = vpop.f32.mrb[0].mxu0
    %v1817 = vadd.f32 %v780, %v1816
    %v1818 = vpop.f32.mrb[0].mxu0
    %v1819 = vadd.f32 %v784, %v1818
    %1820 = vmatprep.mubr.bf16.mxu0 %v586
    %1821 = vmatmul.mubr.bf16.gmra.mrb[0].mxu0 %v585
    %v1822 = vpop.f32.mrb[0].mxu0
    %v1823 = vadd.f32 %v780, %v1822
    %v1824 = vpop.f32.mrb[0].mxu0
    %v1825 = vadd.f32 %v784, %v1824
    %v1826 = vpop.f32.mrb[0].mxu0
    %v1827 = vadd.f32 %v780, %v1826
    %v1828 = vpop.f32.mrb[0].mxu0
    %v1829 = vadd.f32 %v784, %v1828
    %1830 = vmatprep.mubr.bf16.mxu0 %v588
    %1831 = vmatmul.mubr.bf16.gmra.mrb[0].mxu0 %v587
    %v1832 = vpop.f32.mrb[0].mxu0
    %v1833 = vadd.f32 %v780, %v1832
    %v1834 = vpop.f32.mrb[0].mxu0
    %v1835 = vadd.f32 %v784, %v1834
    %v1836 = vpop.f32.mrb[0].mxu0
    %v1837 = vadd.f32 %v780, %v1836
    %v1838 = vpop.f32.mrb[0].mxu0
    %v1839 = vadd.f32 %v784, %v1838
    %1840 = vmatprep.mubr.bf16.mxu0 %v590
    %1841 = vmatmul.mubr.bf16.gmra.mrb[0].mxu0 %v589
    %v1842 = vpop.f32.mrb[0].mxu0
    %v1843 = vadd.f32 %v780, %v1842
    %v1844 = vpop.f32.mrb[0].mxu0
    %v1845 = vadd.f32 %v784, %v1844
    %v1846 = vpop.f32.mrb[0].mxu0
    %v1847 = vadd.f32 %v780, %v1846
    %v1848 = vpop.f32.mrb[0].mxu0
    %v1849 = vadd.f32 %v784, %v1848
    %1850 = vmatprep.mubr.bf16.mxu0 %v592
    %1851 = vmatmul.mubr.bf16.gmra.mrb[0].mxu0 %v591
    %v1852 = vpop.f32.mrb[0].mxu0
    %v1853 = vadd.f32 %v780, %v1852
    %v1854 = vpop.f32.mrb[0].mxu0
    %v1855 = vadd.f32 %v784, %v1854
    %v1856 = vpop.f32.mrb[0].mxu0
    %v1857 = vadd.f32 %v780, %v1856
    %v1858 = vpop.f32.mrb[0].mxu0
    %v1859 = vadd.f32 %v784, %v1858
    %1860 = vmatprep.mubr.bf16.mxu0 %v594
    %1861 = vmatmul.mubr.bf16.gmra.mrb[0].mxu0 %v593
    %v1862 = vpop.f32.mrb[0].mxu0
    %v1863 = vadd.f32 %v780, %v1862
    %v1864 = vpop.f32.mrb[0].mxu0
    %v1865 = vadd.f32 %v784, %v1864
    %v1866 = vpop.f32.mrb[0].mxu0
    %v1867 = vadd.f32 %v780, %v1866
    %v1868 = vpop.f32.mrb[0].mxu0
    %v1869 = vadd.f32 %v784, %v1868
    %1870 = vmatprep.mubr.bf16.mxu0 %v596
    %1871 = vmatmul.mubr.bf16.gmra.mrb[0].mxu0 %v595
    %v1872 = vpop.f32.mrb[0].mxu0
    %v1873 = vadd.f32 %v780, %v1872
    %v1874 = vpop.f32.mrb[0].mxu0
    %v1875 = vadd.f32 %v784, %v1874
    %v1876 = vpop.f32.mrb[0].mxu0
    %v1877 = vadd.f32 %v780, %v1876
    %v1878 = vpop.f32.mrb[0].mxu0
    %v1879 = vadd.f32 %v784, %v1878
    %1880 = vdwg.mxu0
    %1881 = vmatprep.subr.bf16.mxu0 %v1261
    %1882 = vmatpush1.bf16.msra.mxu0 %v1260
    %1883 = vmatprep.subr.bf16.mxu0 %v1270
    %1884 = vmatpush1.bf16.msra.mxu0 %v1269
    %1885 = vmatprep.subr.bf16.mxu0 %v1279
    %1886 = vmatpush1.bf16.msra.mxu0 %v1278
    %1887 = vmatprep.subr.bf16.mxu0 %v1288
    %1888 = vmatpush1.bf16.msra.mxu0 %v1287
    %1889 = vmatprep.subr.bf16.mxu0 %v1297
    %1890 = vmatpush1.bf16.msra.mxu0 %v1296
    %1891 = vmatprep.subr.bf16.mxu0 %v1306
    %1892 = vmatpush1.bf16.msra.mxu0 %v1305
    %1893 = vmatprep.subr.bf16.mxu0 %v1315
    %1894 = vmatpush1.bf16.msra.mxu0 %v1314
    %1895 = vmatprep.subr.bf16.mxu0 %v1324
    %1896 = vmatpush1.bf16.msra.mxu0 %v1323
    %1897 = vmatprep.subr.bf16.mxu0 %v1333
    %1898 = vmatpush1.bf16.msra.mxu0 %v1332
    %1899 = vmatprep.subr.bf16.mxu0 %v1342
    %1900 = vmatpush1.bf16.msra.mxu0 %v1341
    %1901 = vmatprep.subr.bf16.mxu0 %v1351
    %1902 = vmatpush1.bf16.msra.mxu0 %v1350
    %1903 = vmatprep.subr.bf16.mxu0 %v1360
    %1904 = vmatpush1.bf16.msra.mxu0 %v1359
    %1905 = vmatprep.subr.bf16.mxu0 %v1369
    %1906 = vmatpush1.bf16.msra.mxu0 %v1368
    %1907 = vmatprep.subr.bf16.mxu0 %v1378
    %1908 = vmatpush1.bf16.msra.mxu0 %v1377
    %1909 = vmatprep.subr.bf16.mxu0 %v1387
    %1910 = vmatpush1.bf16.msra.mxu0 %v1386
    %1911 = vmatprep.subr.bf16.mxu0 %v1396
    %1912 = vmatpush1.bf16.msra.mxu0 %v1395
    %1913 = vmatprep.mubr.bf16.mxu0 %v582
    %1914 = vmatmul.mubr.bf16.gmra.mrb[0].mxu0 %v581
    %v1915 = vpop.f32.mrb[0].mxu0
    %v1916 = vadd.f32 %v788, %v1915
    %v1917 = vpop.f32.mrb[0].mxu0
    %v1918 = vadd.f32 %v792, %v1917
    %v1919 = vpop.f32.mrb[0].mxu0
    %v1920 = vadd.f32 %v788, %v1919
    %v1921 = vpop.f32.mrb[0].mxu0
    %v1922 = vadd.f32 %v792, %v1921
    %1923 = vmatprep.mubr.bf16.mxu0 %v584
    %1924 = vmatmul.mubr.bf16.gmra.mrb[0].mxu0 %v583
    %v1925 = vpop.f32.mrb[0].mxu0
    %v1926 = vadd.f32 %v788, %v1925
    %v1927 = vpop.f32.mrb[0].mxu0
    %v1928 = vadd.f32 %v792, %v1927
    %v1929 = vpop.f32.mrb[0].mxu0
    %v1930 = vadd.f32 %v788, %v1929
    %v1931 = vpop.f32.mrb[0].mxu0
    %v1932 = vadd.f32 %v792, %v1931
    %1933 = vmatprep.mubr.bf16.mxu0 %v586
    %1934 = vmatmul.mubr.bf16.gmra.mrb[0].mxu0 %v585
    %v1935 = vpop.f32.mrb[0].mxu0
    %v1936 = vadd.f32 %v788, %v1935
    %v1937 = vpop.f32.mrb[0].mxu0
    %v1938 = vadd.f32 %v792, %v1937
    %v1939 = vpop.f32.mrb[0].mxu0
    %v1940 = vadd.f32 %v788, %v1939
    %v1941 = vpop.f32.mrb[0].mxu0
    %v1942 = vadd.f32 %v792, %v1941
    %1943 = vmatprep.mubr.bf16.mxu0 %v588
    %1944 = vmatmul.mubr.bf16.gmra.mrb[0].mxu0 %v587
    %v1945 = vpop.f32.mrb[0].mxu0
    %v1946 = vadd.f32 %v788, %v1945
    %v1947 = vpop.f32.mrb[0].mxu0
    %v1948 = vadd.f32 %v792, %v1947
    %v1949 = vpop.f32.mrb[0].mxu0
    %v1950 = vadd.f32 %v788, %v1949
    %v1951 = vpop.f32.mrb[0].mxu0
    %v1952 = vadd.f32 %v792, %v1951
    %1953 = vmatprep.mubr.bf16.mxu0 %v590
    %1954 = vmatmul.mubr.bf16.gmra.mrb[0].mxu0 %v589
    %v1955 = vpop.f32.mrb[0].mxu0
    %v1956 = vadd.f32 %v788, %v1955
    %v1957 = vpop.f32.mrb[0].mxu0
    %v1958 = vadd.f32 %v792, %v1957
    %v1959 = vpop.f32.mrb[0].mxu0
    %v1960 = vadd.f32 %v788, %v1959
    %v1961 = vpop.f32.mrb[0].mxu0
    %v1962 = vadd.f32 %v792, %v1961
    %1963 = vmatprep.mubr.bf16.mxu0 %v592
    %1964 = vmatmul.mubr.bf16.gmra.mrb[0].mxu0 %v591
    %v1965 = vpop.f32.mrb[0].mxu0
    %v1966 = vadd.f32 %v788, %v1965
    %v1967 = vpop.f32.mrb[0].mxu0
    %v1968 = vadd.f32 %v792, %v1967
    %v1969 = vpop.f32.mrb[0].mxu0
    %v1970 = vadd.f32 %v788, %v1969
    %v1971 = vpop.f32.mrb[0].mxu0
    %v1972 = vadd.f32 %v792, %v1971
    %1973 = vmatprep.mubr.bf16.mxu0 %v594
    %1974 = vmatmul.mubr.bf16.gmra.mrb[0].mxu0 %v593
    %v1975 = vpop.f32.mrb[0].mxu0
    %v1976 = vadd.f32 %v788, %v1975
    %v1977 = vpop.f32.mrb[0].mxu0
    %v1978 = vadd.f32 %v792, %v1977
    %v1979 = vpop.f32.mrb[0].mxu0
    %v1980 = vadd.f32 %v788, %v1979
    %v1981 = vpop.f32.mrb[0].mxu0
    %v1982 = vadd.f32 %v792, %v1981
    %1983 = vmatprep.mubr.bf16.mxu0 %v596
    %1984 = vmatmul.mubr.bf16.gmra.mrb[0].mxu0 %v595
    %v1985 = vpop.f32.mrb[0].mxu0
    %v1986 = vadd.f32 %v788, %v1985
    %v1987 = vpop.f32.mrb[0].mxu0
    %v1988 = vadd.f32 %v792, %v1987
    %v1989 = vpop.f32.mrb[0].mxu0
    %v1990 = vadd.f32 %v788, %v1989
    %v1991 = vpop.f32.mrb[0].mxu0
    %v1992 = vadd.f32 %v792, %v1991
    %1993 = vdwg.mxu0
    %1994 = vmatprep.subr.bf16.mxu0 0
    %1995 = vmatpush1.bf16.msra.mxu0 %v1262
    %1996 = vmatprep.subr.bf16.mxu0 0
    %1997 = vmatpush1.bf16.msra.mxu0 %v1271
    %1998 = vmatprep.subr.bf16.mxu0 0
    %1999 = vmatpush1.bf16.msra.mxu0 %v1280
    %2000 = vmatprep.subr.bf16.mxu0 0
    %2001 = vmatpush1.bf16.msra.mxu0 %v1289
    %2002 = vmatprep.subr.bf16.mxu0 0
    %2003 = vmatpush1.bf16.msra.mxu0 %v1298
    %2004 = vmatprep.subr.bf16.mxu0 0
    %2005 = vmatpush1.bf16.msra.mxu0 %v1307
    %2006 = vmatprep.subr.bf16.mxu0 0
    %2007 = vmatpush1.bf16.msra.mxu0 %v1316
    %2008 = vmatprep.subr.bf16.mxu0 0
    %2009 = vmatpush1.bf16.msra.mxu0 %v1325
    %2010 = vmatprep.subr.bf16.mxu0 0
    %2011 = vmatpush1.bf16.msra.mxu0 %v1334
    %2012 = vmatprep.subr.bf16.mxu0 0
    %2013 = vmatpush1.bf16.msra.mxu0 %v1343
    %2014 = vmatprep.subr.bf16.mxu0 0
    %2015 = vmatpush1.bf16.msra.mxu0 %v1352
    %2016 = vmatprep.subr.bf16.mxu0 0
    %2017 = vmatpush1.bf16.msra.mxu0 %v1361
    %2018 = vmatprep.subr.bf16.mxu0 0
    %2019 = vmatpush1.bf16.msra.mxu0 %v1370
    %2020 = vmatprep.subr.bf16.mxu0 0
    %2021 = vmatpush1.bf16.msra.mxu0 %v1379
    %2022 = vmatprep.subr.bf16.mxu0 0
    %2023 = vmatpush1.bf16.msra.mxu0 %v1388
    %2024 = vmatprep.subr.bf16.mxu0 0
    %2025 = vmatpush1.bf16.msra.mxu0 %v1397
    %2026 = vmatprep.mubr.bf16.mxu0 %v582
    %2027 = vmatmul.mubr.bf16.gmra.mrb[0].mxu0 %v581
    %v2028 = vpop.f32.mrb[0].mxu0
    %v2029 = vadd.f32 %v796, %v2028
    %v2030 = vpop.f32.mrb[0].mxu0
    %v2031 = vpop.f32.mrb[0].mxu0
    %v2032 = vadd.f32 %v796, %v2031
    %v2033 = vpop.f32.mrb[0].mxu0
    %2034 = vmatprep.mubr.bf16.mxu0 %v584
    %2035 = vmatmul.mubr.bf16.gmra.mrb[0].mxu0 %v583
    %v2036 = vpop.f32.mrb[0].mxu0
    %v2037 = vadd.f32 %v796, %v2036
    %v2038 = vpop.f32.mrb[0].mxu0
    %v2039 = vpop.f32.mrb[0].mxu0
    %v2040 = vadd.f32 %v796, %v2039
    %v2041 = vpop.f32.mrb[0].mxu0
    %2042 = vmatprep.mubr.bf16.mxu0 %v586
    %2043 = vmatmul.mubr.bf16.gmra.mrb[0].mxu0 %v585
    %v2044 = vpop.f32.mrb[0].mxu0
    %v2045 = vadd.f32 %v796, %v2044
    %v2046 = vpop.f32.mrb[0].mxu0
    %v2047 = vpop.f32.mrb[0].mxu0
    %v2048 = vadd.f32 %v796, %v2047
    %v2049 = vpop.f32.mrb[0].mxu0
    %2050 = vmatprep.mubr.bf16.mxu0 %v588
    %2051 = vmatmul.mubr.bf16.gmra.mrb[0].mxu0 %v587
    %v2052 = vpop.f32.mrb[0].mxu0
    %v2053 = vadd.f32 %v796, %v2052
    %v2054 = vpop.f32.mrb[0].mxu0
    %v2055 = vpop.f32.mrb[0].mxu0
    %v2056 = vadd.f32 %v796, %v2055
    %v2057 = vpop.f32.mrb[0].mxu0
    %2058 = vmatprep.mubr.bf16.mxu0 %v590
    %2059 = vmatmul.mubr.bf16.gmra.mrb[0].mxu0 %v589
    %v2060 = vpop.f32.mrb[0].mxu0
    %v2061 = vadd.f32 %v796, %v2060
    %v2062 = vpop.f32.mrb[0].mxu0
    %v2063 = vpop.f32.mrb[0].mxu0
    %v2064 = vadd.f32 %v796, %v2063
    %v2065 = vpop.f32.mrb[0].mxu0
    %2066 = vmatprep.mubr.bf16.mxu0 %v592
    %2067 = vmatmul.mubr.bf16.gmra.mrb[0].mxu0 %v591
    %v2068 = vpop.f32.mrb[0].mxu0
    %v2069 = vadd.f32 %v796, %v2068
    %v2070 = vpop.f32.mrb[0].mxu0
    %v2071 = vpop.f32.mrb[0].mxu0
    %v2072 = vadd.f32 %v796, %v2071
    %v2073 = vpop.f32.mrb[0].mxu0
    %2074 = vmatprep.mubr.bf16.mxu0 %v594
    %2075 = vmatmul.mubr.bf16.gmra.mrb[0].mxu0 %v593
    %v2076 = vpop.f32.mrb[0].mxu0
    %v2077 = vadd.f32 %v796, %v2076
    %v2078 = vpop.f32.mrb[0].mxu0
    %v2079 = vpop.f32.mrb[0].mxu0
    %v2080 = vadd.f32 %v796, %v2079
    %v2081 = vpop.f32.mrb[0].mxu0
    %2082 = vmatprep.mubr.bf16.mxu0 %v596
    %2083 = vmatmul.mubr.bf16.gmra.mrb[0].mxu0 %v595
    %v2084 = vpop.f32.mrb[0].mxu0
    %v2085 = vadd.f32 %v796, %v2084
    %v2086 = vpop.f32.mrb[0].mxu0
    %v2087 = vpop.f32.mrb[0].mxu0
    %v2088 = vadd.f32 %v796, %v2087
    %v2089 = vpop.f32.mrb[0].mxu0
    %2090 = vdwg.mxu0
    %v2091 = vmax.f32 %v1577, 0.0
    %v2092 = vmax.f32 %v1579, 0.0
    %v2093 = vmax.f32 %v1690, 0.0
    %v2094 = vmax.f32 %v1692, 0.0
    %v2095 = vmax.f32 %v1803, 0.0
    %v2096 = vmax.f32 %v1805, 0.0
    %v2097 = vmax.f32 %v1916, 0.0
    %v2098 = vmax.f32 %v1918, 0.0
    %v2099 = vmax.f32 %v2029, 0.0
    %v2100 = vmax.f32 %v1581, 0.0
    %v2101 = vmax.f32 %v1583, 0.0
    %v2102 = vmax.f32 %v1694, 0.0
    %v2103 = vmax.f32 %v1696, 0.0
    %v2104 = vmax.f32 %v1807, 0.0
    %v2105 = vmax.f32 %v1809, 0.0
    %v2106 = vmax.f32 %v1920, 0.0
    %v2107 = vmax.f32 %v1922, 0.0
    %v2108 = vmax.f32 %v2032, 0.0
    %v2109 = vmax.f32 %v1587, 0.0
    %v2110 = vmax.f32 %v1589, 0.0
    %v2111 = vmax.f32 %v1700, 0.0
    %v2112 = vmax.f32 %v1702, 0.0
    %v2113 = vmax.f32 %v1813, 0.0
    %v2114 = vmax.f32 %v1815, 0.0
    %v2115 = vmax.f32 %v1926, 0.0
    %v2116 = vmax.f32 %v1928, 0.0
    %v2117 = vmax.f32 %v2037, 0.0
    %v2118 = vmax.f32 %v1591, 0.0
    %v2119 = vmax.f32 %v1593, 0.0
    %v2120 = vmax.f32 %v1704, 0.0
    %v2121 = vmax.f32 %v1706, 0.0
    %v2122 = vmax.f32 %v1817, 0.0
    %v2123 = vmax.f32 %v1819, 0.0
    %v2124 = vmax.f32 %v1930, 0.0
    %v2125 = vmax.f32 %v1932, 0.0
    %v2126 = vmax.f32 %v2040, 0.0
    %v2127 = vmax.f32 %v1597, 0.0
    %v2128 = vmax.f32 %v1599, 0.0
    %v2129 = vmax.f32 %v1710, 0.0
    %v2130 = vmax.f32 %v1712, 0.0
    %v2131 = vmax.f32 %v1823, 0.0
    %v2132 = vmax.f32 %v1825, 0.0
    %v2133 = vmax.f32 %v1936, 0.0
    %v2134 = vmax.f32 %v1938, 0.0
    %v2135 = vmax.f32 %v2045, 0.0
    %v2136 = vmax.f32 %v1601, 0.0
    %v2137 = vmax.f32 %v1603, 0.0
    %v2138 = vmax.f32 %v1714, 0.0
    %v2139 = vmax.f32 %v1716, 0.0
    %v2140 = vmax.f32 %v1827, 0.0
    %v2141 = vmax.f32 %v1829, 0.0
    %v2142 = vmax.f32 %v1940, 0.0
    %v2143 = vmax.f32 %v1942, 0.0
    %v2144 = vmax.f32 %v2048, 0.0
    %v2145 = vmax.f32 %v1607, 0.0
    %v2146 = vmax.f32 %v1609, 0.0
    %v2147 = vmax.f32 %v1720, 0.0
    %v2148 = vmax.f32 %v1722, 0.0
    %v2149 = vmax.f32 %v1833, 0.0
    %v2150 = vmax.f32 %v1835, 0.0
    %v2151 = vmax.f32 %v1946, 0.0
    %v2152 = vmax.f32 %v1948, 0.0
    %v2153 = vmax.f32 %v2053, 0.0
    %v2154 = vmax.f32 %v1611, 0.0
    %v2155 = vmax.f32 %v1613, 0.0
    %v2156 = vmax.f32 %v1724, 0.0
    %v2157 = vmax.f32 %v1726, 0.0
    %v2158 = vmax.f32 %v1837, 0.0
    %v2159 = vmax.f32 %v1839, 0.0
    %v2160 = vmax.f32 %v1950, 0.0
    %v2161 = vmax.f32 %v1952, 0.0
    %v2162 = vmax.f32 %v2056, 0.0
    %v2163 = vmax.f32 %v1617, 0.0
    %v2164 = vmax.f32 %v1619, 0.0
    %v2165 = vmax.f32 %v1730, 0.0
    %v2166 = vmax.f32 %v1732, 0.0
    %v2167 = vmax.f32 %v1843, 0.0
    %v2168 = vmax.f32 %v1845, 0.0
    %v2169 = vmax.f32 %v1956, 0.0
    %v2170 = vmax.f32 %v1958, 0.0
    %v2171 = vmax.f32 %v2061, 0.0
    %v2172 = vmax.f32 %v1621, 0.0
    %v2173 = vmax.f32 %v1623, 0.0
    %v2174 = vmax.f32 %v1734, 0.0
    %v2175 = vmax.f32 %v1736, 0.0
    %v2176 = vmax.f32 %v1847, 0.0
    %v2177 = vmax.f32 %v1849, 0.0
    %v2178 = vmax.f32 %v1960, 0.0
    %v2179 = vmax.f32 %v1962, 0.0
    %v2180 = vmax.f32 %v2064, 0.0
    %v2181 = vmax.f32 %v1627, 0.0
    %v2182 = vmax.f32 %v1629, 0.0
    %v2183 = vmax.f32 %v1740, 0.0
    %v2184 = vmax.f32 %v1742, 0.0
    %v2185 = vmax.f32 %v1853, 0.0
    %v2186 = vmax.f32 %v1855, 0.0
    %v2187 = vmax.f32 %v1966, 0.0
    %v2188 = vmax.f32 %v1968, 0.0
    %v2189 = vmax.f32 %v2069, 0.0
    %v2190 = vmax.f32 %v1631, 0.0
    %v2191 = vmax.f32 %v1633, 0.0
    %v2192 = vmax.f32 %v1744, 0.0
    %v2193 = vmax.f32 %v1746, 0.0
    %v2194 = vmax.f32 %v1857, 0.0
    %v2195 = vmax.f32 %v1859, 0.0
    %v2196 = vmax.f32 %v1970, 0.0
    %v2197 = vmax.f32 %v1972, 0.0
    %v2198 = vmax.f32 %v2072, 0.0
    %v2199 = vmax.f32 %v1637, 0.0
    %v2200 = vmax.f32 %v1639, 0.0
    %v2201 = vmax.f32 %v1750, 0.0
    %v2202 = vmax.f32 %v1752, 0.0
    %v2203 = vmax.f32 %v1863, 0.0
    %v2204 = vmax.f32 %v1865, 0.0
    %v2205 = vmax.f32 %v1976, 0.0
    %v2206 = vmax.f32 %v1978, 0.0
    %v2207 = vmax.f32 %v2077, 0.0
    %v2208 = vmax.f32 %v1641, 0.0
    %v2209 = vmax.f32 %v1643, 0.0
    %v2210 = vmax.f32 %v1754, 0.0
    %v2211 = vmax.f32 %v1756, 0.0
    %v2212 = vmax.f32 %v1867, 0.0
    %v2213 = vmax.f32 %v1869, 0.0
    %v2214 = vmax.f32 %v1980, 0.0
    %v2215 = vmax.f32 %v1982, 0.0
    %v2216 = vmax.f32 %v2080, 0.0
    %v2217 = vmax.f32 %v1647, 0.0
    %v2218 = vmax.f32 %v1649, 0.0
    %v2219 = vmax.f32 %v1760, 0.0
    %v2220 = vmax.f32 %v1762, 0.0
    %v2221 = vmax.f32 %v1873, 0.0
    %v2222 = vmax.f32 %v1875, 0.0
    %v2223 = vmax.f32 %v1986, 0.0
    %v2224 = vmax.f32 %v1988, 0.0
    %v2225 = vmax.f32 %v2085, 0.0
    %v2226 = vmax.f32 %v1651, 0.0
    %v2227 = vmax.f32 %v1653, 0.0
    %v2228 = vmax.f32 %v1764, 0.0
    %v2229 = vmax.f32 %v1766, 0.0
    %v2230 = vmax.f32 %v1877, 0.0
    %v2231 = vmax.f32 %v1879, 0.0
    %v2232 = vmax.f32 %v1990, 0.0
    %v2233 = vmax.f32 %v1992, 0.0
    %v2234 = vmax.f32 %v2088, 0.0
    %v2235 = vpack.c.bf16 %v2100, %v2091
    %v2236 = vpack.c.bf16 %v2101, %v2092
    %v2237 = vpack.c.bf16 %v2102, %v2093
    %v2238 = vpack.c.bf16 %v2103, %v2094
    %v2239 = vpack.c.bf16 %v2104, %v2095
    %v2240 = vpack.c.bf16 %v2105, %v2096
    %v2241 = vpack.c.bf16 %v2106, %v2097
    %v2242 = vpack.c.bf16 %v2107, %v2098
    %v2243 = vpack.c.bf16 %v2108, %v2099
    %v2244 = vpack.c.bf16 %v2118, %v2109
    %v2245 = vpack.c.bf16 %v2119, %v2110
    %v2246 = vpack.c.bf16 %v2120, %v2111
    %v2247 = vpack.c.bf16 %v2121, %v2112
    %v2248 = vpack.c.bf16 %v2122, %v2113
    %v2249 = vpack.c.bf16 %v2123, %v2114
    %v2250 = vpack.c.bf16 %v2124, %v2115
    %v2251 = vpack.c.bf16 %v2125, %v2116
    %v2252 = vpack.c.bf16 %v2126, %v2117
    %v2253 = vpack.c.bf16 %v2136, %v2127
    %v2254 = vpack.c.bf16 %v2137, %v2128
    %v2255 = vpack.c.bf16 %v2138, %v2129
    %v2256 = vpack.c.bf16 %v2139, %v2130
    %v2257 = vpack.c.bf16 %v2140, %v2131
    %v2258 = vpack.c.bf16 %v2141, %v2132
    %v2259 = vpack.c.bf16 %v2142, %v2133
    %v2260 = vpack.c.bf16 %v2143, %v2134
    %v2261 = vpack.c.bf16 %v2144, %v2135
    %v2262 = vpack.c.bf16 %v2154, %v2145
    %v2263 = vpack.c.bf16 %v2155, %v2146
    %v2264 = vpack.c.bf16 %v2156, %v2147
    %v2265 = vpack.c.bf16 %v2157, %v2148
    %v2266 = vpack.c.bf16 %v2158, %v2149
    %v2267 = vpack.c.bf16 %v2159, %v2150
    %v2268 = vpack.c.bf16 %v2160, %v2151
    %v2269 = vpack.c.bf16 %v2161, %v2152
    %v2270 = vpack.c.bf16 %v2162, %v2153
    %v2271 = vpack.c.bf16 %v2172, %v2163
    %v2272 = vpack.c.bf16 %v2173, %v2164
    %v2273 = vpack.c.bf16 %v2174, %v2165
    %v2274 = vpack.c.bf16 %v2175, %v2166
    %v2275 = vpack.c.bf16 %v2176, %v2167
    %v2276 = vpack.c.bf16 %v2177, %v2168
    %v2277 = vpack.c.bf16 %v2178, %v2169
    %v2278 = vpack.c.bf16 %v2179, %v2170
    %v2279 = vpack.c.bf16 %v2180, %v2171
    %v2280 = vpack.c.bf16 %v2190, %v2181
    %v2281 = vpack.c.bf16 %v2191, %v2182
    %v2282 = vpack.c.bf16 %v2192, %v2183
    %v2283 = vpack.c.bf16 %v2193, %v2184
    %v2284 = vpack.c.bf16 %v2194, %v2185
    %v2285 = vpack.c.bf16 %v2195, %v2186
    %v2286 = vpack.c.bf16 %v2196, %v2187
    %v2287 = vpack.c.bf16 %v2197, %v2188
    %v2288 = vpack.c.bf16 %v2198, %v2189
    %v2289 = vpack.c.bf16 %v2208, %v2199
    %v2290 = vpack.c.bf16 %v2209, %v2200
    %v2291 = vpack.c.bf16 %v2210, %v2201
    %v2292 = vpack.c.bf16 %v2211, %v2202
    %v2293 = vpack.c.bf16 %v2212, %v2203
    %v2294 = vpack.c.bf16 %v2213, %v2204
    %v2295 = vpack.c.bf16 %v2214, %v2205
    %v2296 = vpack.c.bf16 %v2215, %v2206
    %v2297 = vpack.c.bf16 %v2216, %v2207
    %v2298 = vpack.c.bf16 %v2226, %v2217
    %v2299 = vpack.c.bf16 %v2227, %v2218
    %v2300 = vpack.c.bf16 %v2228, %v2219
    %v2301 = vpack.c.bf16 %v2229, %v2220
    %v2302 = vpack.c.bf16 %v2230, %v2221
    %v2303 = vpack.c.bf16 %v2231, %v2222
    %v2304 = vpack.c.bf16 %v2232, %v2223
    %v2305 = vpack.c.bf16 %v2233, %v2224
    %v2306 = vpack.c.bf16 %v2234, %v2225
    %v2307 = vld [vmem:[#allocation13] sm:$0xff]
    %v2308 = vld [vmem:[#allocation13 + $0x8] sm:$0xff]
    %v2309 = vld [vmem:[#allocation13 + $0x10] sm:$0xff]
    %v2310 = vld [vmem:[#allocation13 + $0x18] sm:$0xf]
    %v2311 = vld [vmem:[#allocation13 + $0x1c] sm:$0xff]
    %v2312 = vld [vmem:[#allocation13 + $0x24] sm:$0xff]
    %v2313 = vld [vmem:[#allocation13 + $0x2c] sm:$0xff]
    %v2314 = vld [vmem:[#allocation13 + $0x34] sm:$0xf]
    %v2315 = vld [vmem:[#allocation13 + $0x38] sm:$0xff]
    %v2316 = vld [vmem:[#allocation13 + $0x40] sm:$0xff]
    %v2317 = vld [vmem:[#allocation13 + $0x48] sm:$0xff]
    %v2318 = vld [vmem:[#allocation13 + $0x50] sm:$0xf]
    %v2319 = vld [vmem:[#allocation13 + $0x54] sm:$0xff]
    %v2320 = vld [vmem:[#allocation13 + $0x5c] sm:$0xff]
    %v2321 = vld [vmem:[#allocation13 + $0x64] sm:$0xff]
    %v2322 = vld [vmem:[#allocation13 + $0x6c] sm:$0xf]
    %v2323 = vld [vmem:[#allocation13 + $0x70] sm:$0xff]
    %v2324 = vld [vmem:[#allocation13 + $0x78] sm:$0xff]
    %v2325 = vld [vmem:[#allocation13 + $0x80] sm:$0xff]
    %v2326 = vld [vmem:[#allocation13 + $0x88] sm:$0xf]
    %v2327 = vld [vmem:[#allocation13 + $0x8c] sm:$0xff]
    %v2328 = vld [vmem:[#allocation13 + $0x94] sm:$0xff]
    %v2329 = vld [vmem:[#allocation13 + $0x9c] sm:$0xff]
    %v2330 = vld [vmem:[#allocation13 + $0xa4] sm:$0xf]
    %v2331 = vld [vmem:[#allocation13 + $0xa8] sm:$0xff]
    %v2332 = vld [vmem:[#allocation13 + $0xb0] sm:$0xff]
    %v2333 = vld [vmem:[#allocation13 + $0xb8] sm:$0xff]
    %v2334 = vld [vmem:[#allocation13 + $0xc0] sm:$0xf]
    %v2335 = vld [vmem:[#allocation13 + $0xc4] sm:$0xff]
    %v2336 = vld [vmem:[#allocation13 + $0xcc] sm:$0xff]
    %v2337 = vld [vmem:[#allocation13 + $0xd4] sm:$0xff]
    %v2338 = vld [vmem:[#allocation13 + $0xdc] sm:$0xf]
    %v2339 = vld [vmem:[#allocation13 + $0xe0] sm:$0xff]
    %v2340 = vld [vmem:[#allocation13 + $0xe8] sm:$0xff]
    %v2341 = vld [vmem:[#allocation13 + $0xf0] sm:$0xff]
    %v2342 = vld [vmem:[#allocation13 + $0xf8] sm:$0xf]
    %v2343 = vld [vmem:[#allocation13 + $0xfc] sm:$0xff]
    %v2344 = vld [vmem:[#allocation13 + $0x104] sm:$0xff]
    %v2345 = vld [vmem:[#allocation13 + $0x10c] sm:$0xff]
    %v2346 = vld [vmem:[#allocation13 + $0x114] sm:$0xf]
    %v2347 = vld [vmem:[#allocation13 + $0x118] sm:$0xff]
    %v2348 = vld [vmem:[#allocation13 + $0x120] sm:$0xff]
    %v2349 = vld [vmem:[#allocation13 + $0x128] sm:$0xff]
    %v2350 = vld [vmem:[#allocation13 + $0x130] sm:$0xf]
    %v2351 = vld [vmem:[#allocation13 + $0x134] sm:$0xff]
    %v2352 = vld [vmem:[#allocation13 + $0x13c] sm:$0xff]
    %v2353 = vld [vmem:[#allocation13 + $0x144] sm:$0xff]
    %v2354 = vld [vmem:[#allocation13 + $0x14c] sm:$0xf]
    %v2355 = vld [vmem:[#allocation13 + $0x150] sm:$0xff]
    %v2356 = vld [vmem:[#allocation13 + $0x158] sm:$0xff]
    %v2357 = vld [vmem:[#allocation13 + $0x160] sm:$0xff]
    %v2358 = vld [vmem:[#allocation13 + $0x168] sm:$0xf]
    %v2359 = vld [vmem:[#allocation13 + $0x16c] sm:$0xff]
    %v2360 = vld [vmem:[#allocation13 + $0x174] sm:$0xff]
    %v2361 = vld [vmem:[#allocation13 + $0x17c] sm:$0xff]
    %v2362 = vld [vmem:[#allocation13 + $0x184] sm:$0xf]
    %v2363 = vld [vmem:[#allocation13 + $0x188] sm:$0xff]
    %v2364 = vld [vmem:[#allocation13 + $0x190] sm:$0xff]
    %v2365 = vld [vmem:[#allocation13 + $0x198] sm:$0xff]
    %v2366 = vld [vmem:[#allocation13 + $0x1a0] sm:$0xf]
    %v2367 = vld [vmem:[#allocation13 + $0x1a4] sm:$0xff]
    %v2368 = vld [vmem:[#allocation13 + $0x1ac] sm:$0xff]
    %v2369 = vld [vmem:[#allocation13 + $0x1b4] sm:$0xff]
    %v2370 = vld [vmem:[#allocation13 + $0x1bc] sm:$0xf]
    %v2371 = vld [vmem:[#allocation13 + $0x1c0] sm:$0xff]
    %v2372 = vld [vmem:[#allocation13 + $0x1c8] sm:$0xff]
    %v2373 = vld [vmem:[#allocation13 + $0x1d0] sm:$0xff]
    %v2374 = vld [vmem:[#allocation13 + $0x1d8] sm:$0xf]
    %v2375 = vld [vmem:[#allocation13 + $0x1dc] sm:$0xff]
    %v2376 = vld [vmem:[#allocation13 + $0x1e4] sm:$0xff]
    %v2377 = vld [vmem:[#allocation13 + $0x1ec] sm:$0xff]
    %v2378 = vld [vmem:[#allocation13 + $0x1f4] sm:$0xf]
    %v2379 = vld [vmem:[#allocation13 + $0x1f8] sm:$0xff]
    %v2380 = vld [vmem:[#allocation13 + $0x200] sm:$0xff]
    %v2381 = vld [vmem:[#allocation13 + $0x208] sm:$0xff]
    %v2382 = vld [vmem:[#allocation13 + $0x210] sm:$0xf]
    %v2383 = vld [vmem:[#allocation13 + $0x214] sm:$0xff]
    %v2384 = vld [vmem:[#allocation13 + $0x21c] sm:$0xff]
    %v2385 = vld [vmem:[#allocation13 + $0x224] sm:$0xff]
    %v2386 = vld [vmem:[#allocation13 + $0x22c] sm:$0xf]
    %v2387 = vld [vmem:[#allocation13 + $0x230] sm:$0xff]
    %v2388 = vld [vmem:[#allocation13 + $0x238] sm:$0xff]
    %v2389 = vld [vmem:[#allocation13 + $0x240] sm:$0xff]
    %v2390 = vld [vmem:[#allocation13 + $0x248] sm:$0xf]
    %v2391 = vld [vmem:[#allocation13 + $0x24c] sm:$0xff]
    %v2392 = vld [vmem:[#allocation13 + $0x254] sm:$0xff]
    %v2393 = vld [vmem:[#allocation13 + $0x25c] sm:$0xff]
    %v2394 = vld [vmem:[#allocation13 + $0x264] sm:$0xf]
    %v2395 = vld [vmem:[#allocation13 + $0x268] sm:$0xff]
    %v2396 = vld [vmem:[#allocation13 + $0x270] sm:$0xff]
    %v2397 = vld [vmem:[#allocation13 + $0x278] sm:$0xff]
    %v2398 = vld [vmem:[#allocation13 + $0x280] sm:$0xf]
    %v2399 = vld [vmem:[#allocation13 + $0x284] sm:$0xff]
    %v2400 = vld [vmem:[#allocation13 + $0x28c] sm:$0xff]
    %v2401 = vld [vmem:[#allocation13 + $0x294] sm:$0xff]
    %v2402 = vld [vmem:[#allocation13 + $0x29c] sm:$0xf]
    %v2403 = vld [vmem:[#allocation13 + $0x2a0] sm:$0xff]
    %v2404 = vld [vmem:[#allocation13 + $0x2a8] sm:$0xff]
    %v2405 = vld [vmem:[#allocation13 + $0x2b0] sm:$0xff]
    %v2406 = vld [vmem:[#allocation13 + $0x2b8] sm:$0xf]
    %v2407 = vld [vmem:[#allocation13 + $0x2bc] sm:$0xff]
    %v2408 = vld [vmem:[#allocation13 + $0x2c4] sm:$0xff]
    %v2409 = vld [vmem:[#allocation13 + $0x2cc] sm:$0xff]
    %v2410 = vld [vmem:[#allocation13 + $0x2d4] sm:$0xf]
    %v2411 = vld [vmem:[#allocation13 + $0x2d8] sm:$0xff]
    %v2412 = vld [vmem:[#allocation13 + $0x2e0] sm:$0xff]
    %v2413 = vld [vmem:[#allocation13 + $0x2e8] sm:$0xff]
    %v2414 = vld [vmem:[#allocation13 + $0x2f0] sm:$0xf]
    %v2415 = vld [vmem:[#allocation13 + $0x2f4] sm:$0xff]
    %v2416 = vld [vmem:[#allocation13 + $0x2fc] sm:$0xff]
    %v2417 = vld [vmem:[#allocation13 + $0x304] sm:$0xff]
    %v2418 = vld [vmem:[#allocation13 + $0x30c] sm:$0xf]
    %v2419 = vld [vmem:[#allocation13 + $0x310] sm:$0xff]
    %v2420 = vld [vmem:[#allocation13 + $0x318] sm:$0xff]
    %v2421 = vld [vmem:[#allocation13 + $0x320] sm:$0xff]
    %v2422 = vld [vmem:[#allocation13 + $0x328] sm:$0xf]
    %v2423 = vld [vmem:[#allocation13 + $0x32c] sm:$0xff]
    %v2424 = vld [vmem:[#allocation13 + $0x334] sm:$0xff]
    %v2425 = vld [vmem:[#allocation13 + $0x33c] sm:$0xff]
    %v2426 = vld [vmem:[#allocation13 + $0x344] sm:$0xf]
    %v2427 = vld [vmem:[#allocation13 + $0x348] sm:$0xff]
    %v2428 = vld [vmem:[#allocation13 + $0x350] sm:$0xff]
    %v2429 = vld [vmem:[#allocation13 + $0x358] sm:$0xff]
    %v2430 = vld [vmem:[#allocation13 + $0x360] sm:$0xf]
    %v2431 = vld [vmem:[#allocation13 + $0x364] sm:$0xff]
    %v2432 = vld [vmem:[#allocation13 + $0x36c] sm:$0xff]
    %v2433 = vld [vmem:[#allocation13 + $0x374] sm:$0xff]
    %v2434 = vld [vmem:[#allocation13 + $0x37c] sm:$0xf]
    %v2435 = vld [vmem:[#allocation13 + $0x380] sm:$0xff]
    %v2436 = vld [vmem:[#allocation13 + $0x388] sm:$0xff]
    %v2437 = vld [vmem:[#allocation13 + $0x390] sm:$0xff]
    %v2438 = vld [vmem:[#allocation13 + $0x398] sm:$0xf]
    %v2439 = vld [vmem:[#allocation13 + $0x39c] sm:$0xff]
    %v2440 = vld [vmem:[#allocation13 + $0x3a4] sm:$0xff]
    %v2441 = vld [vmem:[#allocation13 + $0x3ac] sm:$0xff]
    %v2442 = vld [vmem:[#allocation13 + $0x3b4] sm:$0xf]
    %v2443 = vld [vmem:[#allocation13 + $0x3b8] sm:$0xff]
    %v2444 = vld [vmem:[#allocation13 + $0x3c0] sm:$0xff]
    %v2445 = vld [vmem:[#allocation13 + $0x3c8] sm:$0xff]
    %v2446 = vld [vmem:[#allocation13 + $0x3d0] sm:$0xf]
    %v2447 = vld [vmem:[#allocation13 + $0x3d4] sm:$0xff]
    %v2448 = vld [vmem:[#allocation13 + $0x3dc] sm:$0xff]
    %v2449 = vld [vmem:[#allocation13 + $0x3e4] sm:$0xff]
    %v2450 = vld [vmem:[#allocation13 + $0x3ec] sm:$0xf]
    %v2451 = vld [vmem:[#allocation13 + $0x3f0] sm:$0xff]
    %v2452 = vld [vmem:[#allocation13 + $0x3f8] sm:$0xff]
    %v2453 = vld [vmem:[#allocation13 + $0x400] sm:$0xff]
    %v2454 = vld [vmem:[#allocation13 + $0x408] sm:$0xf]
    %v2455 = vld [vmem:[#allocation13 + $0x40c] sm:$0xff]
    %v2456 = vld [vmem:[#allocation13 + $0x414] sm:$0xff]
    %v2457 = vld [vmem:[#allocation13 + $0x41c] sm:$0xff]
    %v2458 = vld [vmem:[#allocation13 + $0x424] sm:$0xf]
    %v2459 = vld [vmem:[#allocation13 + $0x428] sm:$0xff]
    %v2460 = vld [vmem:[#allocation13 + $0x430] sm:$0xff]
    %v2461 = vld [vmem:[#allocation13 + $0x438] sm:$0xff]
    %v2462 = vld [vmem:[#allocation13 + $0x440] sm:$0xf]
    %v2463 = vld [vmem:[#allocation13 + $0x444] sm:$0xff]
    %v2464 = vld [vmem:[#allocation13 + $0x44c] sm:$0xff]
    %v2465 = vld [vmem:[#allocation13 + $0x454] sm:$0xff]
    %v2466 = vld [vmem:[#allocation13 + $0x45c] sm:$0xf]
    %v2467 = vld [vmem:[#allocation13 + $0x460] sm:$0xff]
    %v2468 = vld [vmem:[#allocation13 + $0x468] sm:$0xff]
    %v2469 = vld [vmem:[#allocation13 + $0x470] sm:$0xff]
    %v2470 = vld [vmem:[#allocation13 + $0x478] sm:$0xf]
    %v2471 = vld [vmem:[#allocation13 + $0x47c] sm:$0xff]
    %v2472 = vld [vmem:[#allocation13 + $0x484] sm:$0xff]
    %v2473 = vld [vmem:[#allocation13 + $0x48c] sm:$0xff]
    %v2474 = vld [vmem:[#allocation13 + $0x494] sm:$0xf]
    %v2475 = vld [vmem:[#allocation13 + $0x498] sm:$0xff]
    %v2476 = vld [vmem:[#allocation13 + $0x4a0] sm:$0xff]
    %v2477 = vld [vmem:[#allocation13 + $0x4a8] sm:$0xff]
    %v2478 = vld [vmem:[#allocation13 + $0x4b0] sm:$0xf]
    %v2479 = vld [vmem:[#allocation13 + $0x4b4] sm:$0xff]
    %v2480 = vld [vmem:[#allocation13 + $0x4bc] sm:$0xff]
    %v2481 = vld [vmem:[#allocation13 + $0x4c4] sm:$0xff]
    %v2482 = vld [vmem:[#allocation13 + $0x4cc] sm:$0xf]
    %v2483 = vld [vmem:[#allocation13 + $0x4d0] sm:$0xff]
    %v2484 = vld [vmem:[#allocation13 + $0x4d8] sm:$0xff]
    %v2485 = vld [vmem:[#allocation13 + $0x4e0] sm:$0xff]
    %v2486 = vld [vmem:[#allocation13 + $0x4e8] sm:$0xf]
    %v2487 = vld [vmem:[#allocation13 + $0x4ec] sm:$0xff]
    %v2488 = vld [vmem:[#allocation13 + $0x4f4] sm:$0xff]
    %v2489 = vld [vmem:[#allocation13 + $0x4fc] sm:$0xff]
    %v2490 = vld [vmem:[#allocation13 + $0x504] sm:$0xf]
    %v2491 = vld [vmem:[#allocation13 + $0x508] sm:$0xff]
    %v2492 = vld [vmem:[#allocation13 + $0x510] sm:$0xff]
    %v2493 = vld [vmem:[#allocation13 + $0x518] sm:$0xff]
    %v2494 = vld [vmem:[#allocation13 + $0x520] sm:$0xf]
    %v2495 = vld [vmem:[#allocation13 + $0x524] sm:$0xff]
    %v2496 = vld [vmem:[#allocation13 + $0x52c] sm:$0xff]
    %v2497 = vld [vmem:[#allocation13 + $0x534] sm:$0xff]
    %v2498 = vld [vmem:[#allocation13 + $0x53c] sm:$0xf]
    %v2499 = vld [vmem:[#allocation13 + $0x540] sm:$0xff]
    %v2500 = vld [vmem:[#allocation13 + $0x548] sm:$0xff]
    %v2501 = vld [vmem:[#allocation13 + $0x550] sm:$0xff]
    %v2502 = vld [vmem:[#allocation13 + $0x558] sm:$0xf]
    %v2503 = vld [vmem:[#allocation13 + $0x55c] sm:$0xff]
    %v2504 = vld [vmem:[#allocation13 + $0x564] sm:$0xff]
    %v2505 = vld [vmem:[#allocation13 + $0x56c] sm:$0xff]
    %v2506 = vld [vmem:[#allocation13 + $0x574] sm:$0xf]
    %v2507 = vld [vmem:[#allocation13 + $0x578] sm:$0xff]
    %v2508 = vld [vmem:[#allocation13 + $0x580] sm:$0xff]
    %v2509 = vld [vmem:[#allocation13 + $0x588] sm:$0xff]
    %v2510 = vld [vmem:[#allocation13 + $0x590] sm:$0xf]
    %v2511 = vld [vmem:[#allocation13 + $0x594] sm:$0xff]
    %v2512 = vld [vmem:[#allocation13 + $0x59c] sm:$0xff]
    %v2513 = vld [vmem:[#allocation13 + $0x5a4] sm:$0xff]
    %v2514 = vld [vmem:[#allocation13 + $0x5ac] sm:$0xf]
    %v2515 = vld [vmem:[#allocation13 + $0x5b0] sm:$0xff]
    %v2516 = vld [vmem:[#allocation13 + $0x5b8] sm:$0xff]
    %v2517 = vld [vmem:[#allocation13 + $0x5c0] sm:$0xff]
    %v2518 = vld [vmem:[#allocation13 + $0x5c8] sm:$0xf]
    %v2519 = vld [vmem:[#allocation13 + $0x5cc] sm:$0xff]
    %v2520 = vld [vmem:[#allocation13 + $0x5d4] sm:$0xff]
    %v2521 = vld [vmem:[#allocation13 + $0x5dc] sm:$0xff]
    %v2522 = vld [vmem:[#allocation13 + $0x5e4] sm:$0xf]
    %v2523 = vld [vmem:[#allocation13 + $0x5e8] sm:$0xff]
    %v2524 = vld [vmem:[#allocation13 + $0x5f0] sm:$0xff]
    %v2525 = vld [vmem:[#allocation13 + $0x5f8] sm:$0xff]
    %v2526 = vld [vmem:[#allocation13 + $0x600] sm:$0xf]
    %v2527 = vld [vmem:[#allocation13 + $0x604] sm:$0xff]
    %v2528 = vld [vmem:[#allocation13 + $0x60c] sm:$0xff]
    %v2529 = vld [vmem:[#allocation13 + $0x614] sm:$0xff]
    %v2530 = vld [vmem:[#allocation13 + $0x61c] sm:$0xf]
    %v2531 = vld [vmem:[#allocation13 + $0x620] sm:$0xff]
    %v2532 = vld [vmem:[#allocation13 + $0x628] sm:$0xff]
    %v2533 = vld [vmem:[#allocation13 + $0x630] sm:$0xff]
    %v2534 = vld [vmem:[#allocation13 + $0x638] sm:$0xf]
    %v2535 = vld [vmem:[#allocation13 + $0x63c] sm:$0xff]
    %v2536 = vld [vmem:[#allocation13 + $0x644] sm:$0xff]
    %v2537 = vld [vmem:[#allocation13 + $0x64c] sm:$0xff]
    %v2538 = vld [vmem:[#allocation13 + $0x654] sm:$0xf]
    %v2539 = vld [vmem:[#allocation13 + $0x658] sm:$0xff]
    %v2540 = vld [vmem:[#allocation13 + $0x660] sm:$0xff]
    %v2541 = vld [vmem:[#allocation13 + $0x668] sm:$0xff]
    %v2542 = vld [vmem:[#allocation13 + $0x670] sm:$0xf]
    %v2543 = vld [vmem:[#allocation13 + $0x674] sm:$0xff]
    %v2544 = vld [vmem:[#allocation13 + $0x67c] sm:$0xff]
    %v2545 = vld [vmem:[#allocation13 + $0x684] sm:$0xff]
    %v2546 = vld [vmem:[#allocation13 + $0x68c] sm:$0xf]
    %v2547 = vld [vmem:[#allocation13 + $0x690] sm:$0xff]
    %v2548 = vld [vmem:[#allocation13 + $0x698] sm:$0xff]
    %v2549 = vld [vmem:[#allocation13 + $0x6a0] sm:$0xff]
    %v2550 = vld [vmem:[#allocation13 + $0x6a8] sm:$0xf]
    %v2551 = vld [vmem:[#allocation13 + $0x6ac] sm:$0xff]
    %v2552 = vld [vmem:[#allocation13 + $0x6b4] sm:$0xff]
    %v2553 = vld [vmem:[#allocation13 + $0x6bc] sm:$0xff]
    %v2554 = vld [vmem:[#allocation13 + $0x6c4] sm:$0xf]
    %v2555 = vld [vmem:[#allocation13 + $0x6c8] sm:$0xff]
    %v2556 = vld [vmem:[#allocation13 + $0x6d0] sm:$0xff]
    %v2557 = vld [vmem:[#allocation13 + $0x6d8] sm:$0xff]
    %v2558 = vld [vmem:[#allocation13 + $0x6e0] sm:$0xf]
    %v2559 = vld [vmem:[#allocation13 + $0x6e4] sm:$0xff]
    %v2560 = vld [vmem:[#allocation13 + $0x6ec] sm:$0xff]
    %v2561 = vld [vmem:[#allocation13 + $0x6f4] sm:$0xff]
    %v2562 = vld [vmem:[#allocation13 + $0x6fc] sm:$0xf]
    %v2563 = vld [vmem:[#allocation13 + $0x700] sm:$0xff]
    %v2564 = vld [vmem:[#allocation13 + $0x708] sm:$0xff]
    %v2565 = vld [vmem:[#allocation13 + $0x710] sm:$0xff]
    %v2566 = vld [vmem:[#allocation13 + $0x718] sm:$0xf]
    %v2567 = vld [vmem:[#allocation13 + $0x71c] sm:$0xff]
    %v2568 = vld [vmem:[#allocation13 + $0x724] sm:$0xff]
    %v2569 = vld [vmem:[#allocation13 + $0x72c] sm:$0xff]
    %v2570 = vld [vmem:[#allocation13 + $0x734] sm:$0xf]
    %v2571 = vld [vmem:[#allocation13 + $0x738] sm:$0xff]
    %v2572 = vld [vmem:[#allocation13 + $0x740] sm:$0xff]
    %v2573 = vld [vmem:[#allocation13 + $0x748] sm:$0xff]
    %v2574 = vld [vmem:[#allocation13 + $0x750] sm:$0xf]
    %v2575 = vld [vmem:[#allocation13 + $0x754] sm:$0xff]
    %v2576 = vld [vmem:[#allocation13 + $0x75c] sm:$0xff]
    %v2577 = vld [vmem:[#allocation13 + $0x764] sm:$0xff]
    %v2578 = vld [vmem:[#allocation13 + $0x76c] sm:$0xf]
    %v2579 = vld [vmem:[#allocation13 + $0x770] sm:$0xff]
    %v2580 = vld [vmem:[#allocation13 + $0x778] sm:$0xff]
    %v2581 = vld [vmem:[#allocation13 + $0x780] sm:$0xff]
    %v2582 = vld [vmem:[#allocation13 + $0x788] sm:$0xf]
    %v2583 = vld [vmem:[#allocation13 + $0x78c] sm:$0xff]
    %v2584 = vld [vmem:[#allocation13 + $0x794] sm:$0xff]
    %v2585 = vld [vmem:[#allocation13 + $0x79c] sm:$0xff]
    %v2586 = vld [vmem:[#allocation13 + $0x7a4] sm:$0xf]
    %v2587 = vld [vmem:[#allocation13 + $0x7a8] sm:$0xff]
    %v2588 = vld [vmem:[#allocation13 + $0x7b0] sm:$0xff]
    %v2589 = vld [vmem:[#allocation13 + $0x7b8] sm:$0xff]
    %v2590 = vld [vmem:[#allocation13 + $0x7c0] sm:$0xf]
    %v2591 = vld [vmem:[#allocation13 + $0x7c4] sm:$0xff]
    %v2592 = vld [vmem:[#allocation13 + $0x7cc] sm:$0xff]
    %v2593 = vld [vmem:[#allocation13 + $0x7d4] sm:$0xff]
    %v2594 = vld [vmem:[#allocation13 + $0x7dc] sm:$0xf]
    %v2595 = vld [vmem:[#allocation13 + $0x7e0] sm:$0xff]
    %v2596 = vld [vmem:[#allocation13 + $0x7e8] sm:$0xff]
    %v2597 = vld [vmem:[#allocation13 + $0x7f0] sm:$0xff]
    %v2598 = vld [vmem:[#allocation13 + $0x7f8] sm:$0xf]
    %v2599 = vld [vmem:[#allocation13 + $0x7fc] sm:$0xff]
    %v2600 = vld [vmem:[#allocation13 + $0x804] sm:$0xff]
    %v2601 = vld [vmem:[#allocation13 + $0x80c] sm:$0xff]
    %v2602 = vld [vmem:[#allocation13 + $0x814] sm:$0xf]
    %v2603 = vld [vmem:[#allocation13 + $0x818] sm:$0xff]
    %v2604 = vld [vmem:[#allocation13 + $0x820] sm:$0xff]
    %v2605 = vld [vmem:[#allocation13 + $0x828] sm:$0xff]
    %v2606 = vld [vmem:[#allocation13 + $0x830] sm:$0xf]
    %v2607 = vld [vmem:[#allocation13 + $0x834] sm:$0xff]
    %v2608 = vld [vmem:[#allocation13 + $0x83c] sm:$0xff]
    %v2609 = vld [vmem:[#allocation13 + $0x844] sm:$0xff]
    %v2610 = vld [vmem:[#allocation13 + $0x84c] sm:$0xf]
    %v2611 = vld [vmem:[#allocation13 + $0x850] sm:$0xff]
    %v2612 = vld [vmem:[#allocation13 + $0x858] sm:$0xff]
    %v2613 = vld [vmem:[#allocation13 + $0x860] sm:$0xff]
    %v2614 = vld [vmem:[#allocation13 + $0x868] sm:$0xf]
    %v2615 = vld [vmem:[#allocation13 + $0x86c] sm:$0xff]
    %v2616 = vld [vmem:[#allocation13 + $0x874] sm:$0xff]
    %v2617 = vld [vmem:[#allocation13 + $0x87c] sm:$0xff]
    %v2618 = vld [vmem:[#allocation13 + $0x884] sm:$0xf]
    %v2619 = vld [vmem:[#allocation13 + $0x888] sm:$0xff]
    %v2620 = vld [vmem:[#allocation13 + $0x890] sm:$0xff]
    %v2621 = vld [vmem:[#allocation13 + $0x898] sm:$0xff]
    %v2622 = vld [vmem:[#allocation13 + $0x8a0] sm:$0xf]
    %v2623 = vld [vmem:[#allocation13 + $0x8a4] sm:$0xff]
    %v2624 = vld [vmem:[#allocation13 + $0x8ac] sm:$0xff]
    %v2625 = vld [vmem:[#allocation13 + $0x8b4] sm:$0xff]
    %v2626 = vld [vmem:[#allocation13 + $0x8bc] sm:$0xf]
    %v2627 = vld [vmem:[#allocation13 + $0x8c0] sm:$0xff]
    %v2628 = vld [vmem:[#allocation13 + $0x8c8] sm:$0xff]
    %v2629 = vld [vmem:[#allocation13 + $0x8d0] sm:$0xff]
    %v2630 = vld [vmem:[#allocation13 + $0x8d8] sm:$0xf]
    %v2631 = vld [vmem:[#allocation13 + $0x8dc] sm:$0xff]
    %v2632 = vld [vmem:[#allocation13 + $0x8e4] sm:$0xff]
    %v2633 = vld [vmem:[#allocation13 + $0x8ec] sm:$0xff]
    %v2634 = vld [vmem:[#allocation13 + $0x8f4] sm:$0xf]
    %v2635 = vld [vmem:[#allocation13 + $0x8f8] sm:$0xff]
    %v2636 = vld [vmem:[#allocation13 + $0x900] sm:$0xff]
    %v2637 = vld [vmem:[#allocation13 + $0x908] sm:$0xff]
    %v2638 = vld [vmem:[#allocation13 + $0x910] sm:$0xf]
    %v2639 = vld [vmem:[#allocation13 + $0x914] sm:$0xff]
    %v2640 = vld [vmem:[#allocation13 + $0x91c] sm:$0xff]
    %v2641 = vld [vmem:[#allocation13 + $0x924] sm:$0xff]
    %v2642 = vld [vmem:[#allocation13 + $0x92c] sm:$0xf]
    %v2643 = vld [vmem:[#allocation13 + $0x930] sm:$0xff]
    %v2644 = vld [vmem:[#allocation13 + $0x938] sm:$0xff]
    %v2645 = vld [vmem:[#allocation13 + $0x940] sm:$0xff]
    %v2646 = vld [vmem:[#allocation13 + $0x948] sm:$0xf]
    %v2647 = vld [vmem:[#allocation13 + $0x94c] sm:$0xff]
    %v2648 = vld [vmem:[#allocation13 + $0x954] sm:$0xff]
    %v2649 = vld [vmem:[#allocation13 + $0x95c] sm:$0xff]
    %v2650 = vld [vmem:[#allocation13 + $0x964] sm:$0xf]
    %v2651 = vld [vmem:[#allocation13 + $0x968] sm:$0xff]
    %v2652 = vld [vmem:[#allocation13 + $0x970] sm:$0xff]
    %v2653 = vld [vmem:[#allocation13 + $0x978] sm:$0xff]
    %v2654 = vld [vmem:[#allocation13 + $0x980] sm:$0xf]
    %v2655 = vld [vmem:[#allocation13 + $0x984] sm:$0xff]
    %v2656 = vld [vmem:[#allocation13 + $0x98c] sm:$0xff]
    %v2657 = vld [vmem:[#allocation13 + $0x994] sm:$0xff]
    %v2658 = vld [vmem:[#allocation13 + $0x99c] sm:$0xf]
    %v2659 = vld [vmem:[#allocation13 + $0x9a0] sm:$0xff]
    %v2660 = vld [vmem:[#allocation13 + $0x9a8] sm:$0xff]
    %v2661 = vld [vmem:[#allocation13 + $0x9b0] sm:$0xff]
    %v2662 = vld [vmem:[#allocation13 + $0x9b8] sm:$0xf]
    %v2663 = vld [vmem:[#allocation13 + $0x9bc] sm:$0xff]
    %v2664 = vld [vmem:[#allocation13 + $0x9c4] sm:$0xff]
    %v2665 = vld [vmem:[#allocation13 + $0x9cc] sm:$0xff]
    %v2666 = vld [vmem:[#allocation13 + $0x9d4] sm:$0xf]
    %v2667 = vld [vmem:[#allocation13 + $0x9d8] sm:$0xff]
    %v2668 = vld [vmem:[#allocation13 + $0x9e0] sm:$0xff]
    %v2669 = vld [vmem:[#allocation13 + $0x9e8] sm:$0xff]
    %v2670 = vld [vmem:[#allocation13 + $0x9f0] sm:$0xf]
    %v2671 = vld [vmem:[#allocation13 + $0x9f4] sm:$0xff]
    %v2672 = vld [vmem:[#allocation13 + $0x9fc] sm:$0xff]
    %v2673 = vld [vmem:[#allocation13 + $0xa04] sm:$0xff]
    %v2674 = vld [vmem:[#allocation13 + $0xa0c] sm:$0xf]
    %v2675 = vld [vmem:[#allocation13 + $0xa10] sm:$0xff]
    %v2676 = vld [vmem:[#allocation13 + $0xa18] sm:$0xff]
    %v2677 = vld [vmem:[#allocation13 + $0xa20] sm:$0xff]
    %v2678 = vld [vmem:[#allocation13 + $0xa28] sm:$0xf]
    %v2679 = vld [vmem:[#allocation13 + $0xa2c] sm:$0xff]
    %v2680 = vld [vmem:[#allocation13 + $0xa34] sm:$0xff]
    %v2681 = vld [vmem:[#allocation13 + $0xa3c] sm:$0xff]
    %v2682 = vld [vmem:[#allocation13 + $0xa44] sm:$0xf]
    %v2683 = vld [vmem:[#allocation13 + $0xa48] sm:$0xff]
    %v2684 = vld [vmem:[#allocation13 + $0xa50] sm:$0xff]
    %v2685 = vld [vmem:[#allocation13 + $0xa58] sm:$0xff]
    %v2686 = vld [vmem:[#allocation13 + $0xa60] sm:$0xf]
    %v2687 = vld [vmem:[#allocation13 + $0xa64] sm:$0xff]
    %v2688 = vld [vmem:[#allocation13 + $0xa6c] sm:$0xff]
    %v2689 = vld [vmem:[#allocation13 + $0xa74] sm:$0xff]
    %v2690 = vld [vmem:[#allocation13 + $0xa7c] sm:$0xf]
    %v2691 = vld [vmem:[#allocation13 + $0xa80] sm:$0xff]
    %v2692 = vld [vmem:[#allocation13 + $0xa88] sm:$0xff]
    %v2693 = vld [vmem:[#allocation13 + $0xa90] sm:$0xff]
    %v2694 = vld [vmem:[#allocation13 + $0xa98] sm:$0xf]
    %v2695 = vld [vmem:[#allocation13 + $0xa9c] sm:$0xff]
    %v2696 = vld [vmem:[#allocation13 + $0xaa4] sm:$0xff]
    %v2697 = vld [vmem:[#allocation13 + $0xaac] sm:$0xff]
    %v2698 = vld [vmem:[#allocation13 + $0xab4] sm:$0xf]
    %v2699 = vld [vmem:[#allocation13 + $0xab8] sm:$0xff]
    %v2700 = vld [vmem:[#allocation13 + $0xac0] sm:$0xff]
    %v2701 = vld [vmem:[#allocation13 + $0xac8] sm:$0xff]
    %v2702 = vld [vmem:[#allocation13 + $0xad0] sm:$0xf]
    %v2703 = vld [vmem:[#allocation13 + $0xad4] sm:$0xff]
    %v2704 = vld [vmem:[#allocation13 + $0xadc] sm:$0xff]
    %v2705 = vld [vmem:[#allocation13 + $0xae4] sm:$0xff]
    %v2706 = vld [vmem:[#allocation13 + $0xaec] sm:$0xf]
    %v2707 = vld [vmem:[#allocation13 + $0xaf0] sm:$0xff]
    %v2708 = vld [vmem:[#allocation13 + $0xaf8] sm:$0xff]
    %v2709 = vld [vmem:[#allocation13 + $0xb00] sm:$0xff]
    %v2710 = vld [vmem:[#allocation13 + $0xb08] sm:$0xf]
    %v2711 = vld [vmem:[#allocation13 + $0xb0c] sm:$0xff]
    %v2712 = vld [vmem:[#allocation13 + $0xb14] sm:$0xff]
    %v2713 = vld [vmem:[#allocation13 + $0xb1c] sm:$0xff]
    %v2714 = vld [vmem:[#allocation13 + $0xb24] sm:$0xf]
    %v2715 = vld [vmem:[#allocation13 + $0xb28] sm:$0xff]
    %v2716 = vld [vmem:[#allocation13 + $0xb30] sm:$0xff]
    %v2717 = vld [vmem:[#allocation13 + $0xb38] sm:$0xff]
    %v2718 = vld [vmem:[#allocation13 + $0xb40] sm:$0xf]
    %v2719 = vld [vmem:[#allocation13 + $0xb44] sm:$0xff]
    %v2720 = vld [vmem:[#allocation13 + $0xb4c] sm:$0xff]
    %v2721 = vld [vmem:[#allocation13 + $0xb54] sm:$0xff]
    %v2722 = vld [vmem:[#allocation13 + $0xb5c] sm:$0xf]
    %v2723 = vld [vmem:[#allocation13 + $0xb60] sm:$0xff]
    %v2724 = vld [vmem:[#allocation13 + $0xb68] sm:$0xff]
    %v2725 = vld [vmem:[#allocation13 + $0xb70] sm:$0xff]
    %v2726 = vld [vmem:[#allocation13 + $0xb78] sm:$0xf]
    %v2727 = vld [vmem:[#allocation13 + $0xb7c] sm:$0xff]
    %v2728 = vld [vmem:[#allocation13 + $0xb84] sm:$0xff]
    %v2729 = vld [vmem:[#allocation13 + $0xb8c] sm:$0xff]
    %v2730 = vld [vmem:[#allocation13 + $0xb94] sm:$0xf]
    %v2731 = vld [vmem:[#allocation13 + $0xb98] sm:$0xff]
    %v2732 = vld [vmem:[#allocation13 + $0xba0] sm:$0xff]
    %v2733 = vld [vmem:[#allocation13 + $0xba8] sm:$0xff]
    %v2734 = vld [vmem:[#allocation13 + $0xbb0] sm:$0xf]
    %v2735 = vld [vmem:[#allocation13 + $0xbb4] sm:$0xff]
    %v2736 = vld [vmem:[#allocation13 + $0xbbc] sm:$0xff]
    %v2737 = vld [vmem:[#allocation13 + $0xbc4] sm:$0xff]
    %v2738 = vld [vmem:[#allocation13 + $0xbcc] sm:$0xf]
    %v2739 = vld [vmem:[#allocation13 + $0xbd0] sm:$0xff]
    %v2740 = vld [vmem:[#allocation13 + $0xbd8] sm:$0xff]
    %v2741 = vld [vmem:[#allocation13 + $0xbe0] sm:$0xff]
    %v2742 = vld [vmem:[#allocation13 + $0xbe8] sm:$0xf]
    %v2743 = vld [vmem:[#allocation13 + $0xbec] sm:$0xff]
    %v2744 = vld [vmem:[#allocation13 + $0xbf4] sm:$0xff]
    %v2745 = vld [vmem:[#allocation13 + $0xbfc] sm:$0xff]
    %v2746 = vld [vmem:[#allocation13 + $0xc04] sm:$0xf]
    %v2747 = vld [vmem:[#allocation13 + $0xc08] sm:$0xff]
    %v2748 = vld [vmem:[#allocation13 + $0xc10] sm:$0xff]
    %v2749 = vld [vmem:[#allocation13 + $0xc18] sm:$0xff]
    %v2750 = vld [vmem:[#allocation13 + $0xc20] sm:$0xf]
    %v2751 = vld [vmem:[#allocation13 + $0xc24] sm:$0xff]
    %v2752 = vld [vmem:[#allocation13 + $0xc2c] sm:$0xff]
    %v2753 = vld [vmem:[#allocation13 + $0xc34] sm:$0xff]
    %v2754 = vld [vmem:[#allocation13 + $0xc3c] sm:$0xf]
    %v2755 = vld [vmem:[#allocation13 + $0xc40] sm:$0xff]
    %v2756 = vld [vmem:[#allocation13 + $0xc48] sm:$0xff]
    %v2757 = vld [vmem:[#allocation13 + $0xc50] sm:$0xff]
    %v2758 = vld [vmem:[#allocation13 + $0xc58] sm:$0xf]
    %v2759 = vld [vmem:[#allocation13 + $0xc5c] sm:$0xff]
    %v2760 = vld [vmem:[#allocation13 + $0xc64] sm:$0xff]
    %v2761 = vld [vmem:[#allocation13 + $0xc6c] sm:$0xff]
    %v2762 = vld [vmem:[#allocation13 + $0xc74] sm:$0xf]
    %v2763 = vld [vmem:[#allocation13 + $0xc78] sm:$0xff]
    %v2764 = vld [vmem:[#allocation13 + $0xc80] sm:$0xff]
    %v2765 = vld [vmem:[#allocation13 + $0xc88] sm:$0xff]
    %v2766 = vld [vmem:[#allocation13 + $0xc90] sm:$0xf]
    %v2767 = vld [vmem:[#allocation13 + $0xc94] sm:$0xff]
    %v2768 = vld [vmem:[#allocation13 + $0xc9c] sm:$0xff]
    %v2769 = vld [vmem:[#allocation13 + $0xca4] sm:$0xff]
    %v2770 = vld [vmem:[#allocation13 + $0xcac] sm:$0xf]
    %v2771 = vld [vmem:[#allocation13 + $0xcb0] sm:$0xff]
    %v2772 = vld [vmem:[#allocation13 + $0xcb8] sm:$0xff]
    %v2773 = vld [vmem:[#allocation13 + $0xcc0] sm:$0xff]
    %v2774 = vld [vmem:[#allocation13 + $0xcc8] sm:$0xf]
    %v2775 = vld [vmem:[#allocation13 + $0xccc] sm:$0xff]
    %v2776 = vld [vmem:[#allocation13 + $0xcd4] sm:$0xff]
    %v2777 = vld [vmem:[#allocation13 + $0xcdc] sm:$0xff]
    %v2778 = vld [vmem:[#allocation13 + $0xce4] sm:$0xf]
    %v2779 = vld [vmem:[#allocation13 + $0xce8] sm:$0xff]
    %v2780 = vld [vmem:[#allocation13 + $0xcf0] sm:$0xff]
    %v2781 = vld [vmem:[#allocation13 + $0xcf8] sm:$0xff]
    %v2782 = vld [vmem:[#allocation13 + $0xd00] sm:$0xf]
    %v2783 = vld [vmem:[#allocation13 + $0xd04] sm:$0xff]
    %v2784 = vld [vmem:[#allocation13 + $0xd0c] sm:$0xff]
    %v2785 = vld [vmem:[#allocation13 + $0xd14] sm:$0xff]
    %v2786 = vld [vmem:[#allocation13 + $0xd1c] sm:$0xf]
    %v2787 = vld [vmem:[#allocation13 + $0xd20] sm:$0xff]
    %v2788 = vld [vmem:[#allocation13 + $0xd28] sm:$0xff]
    %v2789 = vld [vmem:[#allocation13 + $0xd30] sm:$0xff]
    %v2790 = vld [vmem:[#allocation13 + $0xd38] sm:$0xf]
    %v2791 = vld [vmem:[#allocation13 + $0xd3c] sm:$0xff]
    %v2792 = vld [vmem:[#allocation13 + $0xd44] sm:$0xff]
    %v2793 = vld [vmem:[#allocation13 + $0xd4c] sm:$0xff]
    %v2794 = vld [vmem:[#allocation13 + $0xd54] sm:$0xf]
    %v2795 = vld [vmem:[#allocation13 + $0xd58] sm:$0xff]
    %v2796 = vld [vmem:[#allocation13 + $0xd60] sm:$0xff]
    %v2797 = vld [vmem:[#allocation13 + $0xd68] sm:$0xff]
    %v2798 = vld [vmem:[#allocation13 + $0xd70] sm:$0xf]
    %v2799 = vld [vmem:[#allocation13 + $0xd74] sm:$0xff]
    %v2800 = vld [vmem:[#allocation13 + $0xd7c] sm:$0xff]
    %v2801 = vld [vmem:[#allocation13 + $0xd84] sm:$0xff]
    %v2802 = vld [vmem:[#allocation13 + $0xd8c] sm:$0xf]
    %v2803 = vld [vmem:[#allocation13 + $0xd90] sm:$0xff]
    %v2804 = vld [vmem:[#allocation13 + $0xd98] sm:$0xff]
    %v2805 = vld [vmem:[#allocation13 + $0xda0] sm:$0xff]
    %v2806 = vld [vmem:[#allocation13 + $0xda8] sm:$0xf]
    %v2807 = vld [vmem:[#allocation13 + $0xdac] sm:$0xff]
    %v2808 = vld [vmem:[#allocation13 + $0xdb4] sm:$0xff]
    %v2809 = vld [vmem:[#allocation13 + $0xdbc] sm:$0xff]
    %v2810 = vld [vmem:[#allocation13 + $0xdc4] sm:$0xf]
    %v2811 = vld [vmem:[#allocation13 + $0xdc8] sm:$0xff]
    %v2812 = vld [vmem:[#allocation13 + $0xdd0] sm:$0xff]
    %v2813 = vld [vmem:[#allocation13 + $0xdd8] sm:$0xff]
    %v2814 = vld [vmem:[#allocation13 + $0xde0] sm:$0xf]
    %v2815 = vld [vmem:[#allocation13 + $0xde4] sm:$0xff]
    %v2816 = vld [vmem:[#allocation13 + $0xdec] sm:$0xff]
    %v2817 = vld [vmem:[#allocation13 + $0xdf4] sm:$0xff]
    %v2818 = vld [vmem:[#allocation13 + $0xdfc] sm:$0xf]
    %v2819 = vld [vmem:[#allocation13 + $0xe00] sm:$0xff]
    %v2820 = vld [vmem:[#allocation13 + $0xe08] sm:$0xff]
    %v2821 = vld [vmem:[#allocation13 + $0xe10] sm:$0xff]
    %v2822 = vld [vmem:[#allocation13 + $0xe18] sm:$0xf]
    %v2823 = vld [vmem:[#allocation13 + $0xe1c] sm:$0xff]
    %v2824 = vld [vmem:[#allocation13 + $0xe24] sm:$0xff]
    %v2825 = vld [vmem:[#allocation13 + $0xe2c] sm:$0xff]
    %v2826 = vld [vmem:[#allocation13 + $0xe34] sm:$0xf]
    %v2827 = vld [vmem:[#allocation13 + $0xe38] sm:$0xff]
    %v2828 = vld [vmem:[#allocation13 + $0xe40] sm:$0xff]
    %v2829 = vld [vmem:[#allocation13 + $0xe48] sm:$0xff]
    %v2830 = vld [vmem:[#allocation13 + $0xe50] sm:$0xf]
    %v2831 = vld [vmem:[#allocation13 + $0xe54] sm:$0xff]
    %v2832 = vld [vmem:[#allocation13 + $0xe5c] sm:$0xff]
    %v2833 = vld [vmem:[#allocation13 + $0xe64] sm:$0xff]
    %v2834 = vld [vmem:[#allocation13 + $0xe6c] sm:$0xf]
    %v2835 = vld [vmem:[#allocation13 + $0xe70] sm:$0xff]
    %v2836 = vld [vmem:[#allocation13 + $0xe78] sm:$0xff]
    %v2837 = vld [vmem:[#allocation13 + $0xe80] sm:$0xff]
    %v2838 = vld [vmem:[#allocation13 + $0xe88] sm:$0xf]
    %v2839 = vld [vmem:[#allocation13 + $0xe8c] sm:$0xff]
    %v2840 = vld [vmem:[#allocation13 + $0xe94] sm:$0xff]
    %v2841 = vld [vmem:[#allocation13 + $0xe9c] sm:$0xff]
    %v2842 = vld [vmem:[#allocation13 + $0xea4] sm:$0xf]
    %v2843 = vld [vmem:[#allocation13 + $0xea8] sm:$0xff]
    %v2844 = vld [vmem:[#allocation13 + $0xeb0] sm:$0xff]
    %v2845 = vld [vmem:[#allocation13 + $0xeb8] sm:$0xff]
    %v2846 = vld [vmem:[#allocation13 + $0xec0] sm:$0xf]
    %v2847 = vld [vmem:[#allocation13 + $0xec4] sm:$0xff]
    %v2848 = vld [vmem:[#allocation13 + $0xecc] sm:$0xff]
    %v2849 = vld [vmem:[#allocation13 + $0xed4] sm:$0xff]
    %v2850 = vld [vmem:[#allocation13 + $0xedc] sm:$0xf]
    %v2851 = vld [vmem:[#allocation13 + $0xee0] sm:$0xff]
    %v2852 = vld [vmem:[#allocation13 + $0xee8] sm:$0xff]
    %v2853 = vld [vmem:[#allocation13 + $0xef0] sm:$0xff]
    %v2854 = vld [vmem:[#allocation13 + $0xef8] sm:$0xf]
    %v2855 = vld [vmem:[#allocation13 + $0xefc] sm:$0xff]
    %v2856 = vld [vmem:[#allocation13 + $0xf04] sm:$0xff]
    %v2857 = vld [vmem:[#allocation13 + $0xf0c] sm:$0xff]
    %v2858 = vld [vmem:[#allocation13 + $0xf14] sm:$0xf]
    %v2859 = vld [vmem:[#allocation13 + $0xf18] sm:$0xff]
    %v2860 = vld [vmem:[#allocation13 + $0xf20] sm:$0xff]
    %v2861 = vld [vmem:[#allocation13 + $0xf28] sm:$0xff]
    %v2862 = vld [vmem:[#allocation13 + $0xf30] sm:$0xf]
    %v2863 = vld [vmem:[#allocation13 + $0xf34] sm:$0xff]
    %v2864 = vld [vmem:[#allocation13 + $0xf3c] sm:$0xff]
    %v2865 = vld [vmem:[#allocation13 + $0xf44] sm:$0xff]
    %v2866 = vld [vmem:[#allocation13 + $0xf4c] sm:$0xf]
    %v2867 = vld [vmem:[#allocation13 + $0xf50] sm:$0xff]
    %v2868 = vld [vmem:[#allocation13 + $0xf58] sm:$0xff]
    %v2869 = vld [vmem:[#allocation13 + $0xf60] sm:$0xff]
    %v2870 = vld [vmem:[#allocation13 + $0xf68] sm:$0xf]
    %v2871 = vld [vmem:[#allocation13 + $0xf6c] sm:$0xff]
    %v2872 = vld [vmem:[#allocation13 + $0xf74] sm:$0xff]
    %v2873 = vld [vmem:[#allocation13 + $0xf7c] sm:$0xff]
    %v2874 = vld [vmem:[#allocation13 + $0xf84] sm:$0xf]
    %v2875 = vld [vmem:[#allocation13 + $0xf88] sm:$0xff]
    %v2876 = vld [vmem:[#allocation13 + $0xf90] sm:$0xff]
    %v2877 = vld [vmem:[#allocation13 + $0xf98] sm:$0xff]
    %v2878 = vld [vmem:[#allocation13 + $0xfa0] sm:$0xf]
    %v2879 = vld [vmem:[#allocation13 + $0xfa4] sm:$0xff]
    %v2880 = vld [vmem:[#allocation13 + $0xfac] sm:$0xff]
    %v2881 = vld [vmem:[#allocation13 + $0xfb4] sm:$0xff]
    %v2882 = vld [vmem:[#allocation13 + $0xfbc] sm:$0xf]
    %v2883 = vld [vmem:[#allocation14] sm:$0xff]
    %v2885 = vlaneseq
    %v2886 = vshrl.u32 %v2885, 7
    %v2887 = vsub.s32 0, %v2886
    %v2888 = vrot.slane %v2883, %v2887
    %v2889 = vlaneseq
    %v2890 = vshrl.u32 %v2889, 7
    %v2891 = vsub.s32 1, %v2890
    %v2892 = vrot.slane %v2883, %v2891
    %v2893 = vlaneseq
    %v2894 = vshrl.u32 %v2893, 7
    %v2895 = vsub.s32 2, %v2894
    %v2896 = vrot.slane %v2883, %v2895
    %v2897 = vlaneseq
    %v2898 = vshrl.u32 %v2897, 7
    %v2899 = vsub.s32 3, %v2898
    %v2900 = vrot.slane %v2883, %v2899
    %v2901 = vlaneseq
    %v2902 = vshrl.u32 %v2901, 7
    %v2903 = vsub.s32 4, %v2902
    %v2904 = vrot.slane %v2883, %v2903
    %v2905 = vlaneseq
    %v2906 = vshrl.u32 %v2905, 7
    %v2907 = vsub.s32 5, %v2906
    %v2908 = vrot.slane %v2883, %v2907
    %v2909 = vlaneseq
    %v2910 = vshrl.u32 %v2909, 7
    %v2911 = vsub.s32 6, %v2910
    %v2912 = vrot.slane %v2883, %v2911
    %v3496 = vunpack.c.l.b16 %v2307
    %v3497 = vunpack.c.h.b16 %v2307
    %v3498 = vunpack.c.l.b16 %v2308
    %v3499 = vunpack.c.h.b16 %v2308
    %v3500 = vunpack.c.l.b16 %v2309
    %v3501 = vunpack.c.h.b16 %v2309
    %v3502 = vunpack.c.l.b16 %v2310
    %v3503 = vunpack.c.l.b16 %v2311
    %v3504 = vunpack.c.h.b16 %v2311
    %v3505 = vunpack.c.l.b16 %v2312
    %v3506 = vunpack.c.h.b16 %v2312
    %v3507 = vunpack.c.l.b16 %v2313
    %v3508 = vunpack.c.h.b16 %v2313
    %v3509 = vunpack.c.l.b16 %v2314
    %v3510 = vunpack.c.l.b16 %v2315
    %v3511 = vunpack.c.h.b16 %v2315
    %v3512 = vunpack.c.l.b16 %v2316
    %v3513 = vunpack.c.h.b16 %v2316
    %v3514 = vunpack.c.l.b16 %v2317
    %v3515 = vunpack.c.h.b16 %v2317
    %v3516 = vunpack.c.l.b16 %v2318
    %v3517 = vunpack.c.l.b16 %v2319
    %v3518 = vunpack.c.h.b16 %v2319
    %v3519 = vunpack.c.l.b16 %v2320
    %v3520 = vunpack.c.h.b16 %v2320
    %v3521 = vunpack.c.l.b16 %v2321
    %v3522 = vunpack.c.h.b16 %v2321
    %v3523 = vunpack.c.l.b16 %v2322
    %v3524 = vunpack.c.l.b16 %v2323
    %v3525 = vunpack.c.h.b16 %v2323
    %v3526 = vunpack.c.l.b16 %v2324
    %v3527 = vunpack.c.h.b16 %v2324
    %v3528 = vunpack.c.l.b16 %v2325
    %v3529 = vunpack.c.h.b16 %v2325
    %v3530 = vunpack.c.l.b16 %v2326
    %v3531 = vunpack.c.l.b16 %v2327
    %v3532 = vunpack.c.h.b16 %v2327
    %v3533 = vunpack.c.l.b16 %v2328
    %v3534 = vunpack.c.h.b16 %v2328
    %v3535 = vunpack.c.l.b16 %v2329
    %v3536 = vunpack.c.h.b16 %v2329
    %v3537 = vunpack.c.l.b16 %v2330
    %v3538 = vunpack.c.l.b16 %v2331
    %v3539 = vunpack.c.h.b16 %v2331
    %v3540 = vunpack.c.l.b16 %v2332
    %v3541 = vunpack.c.h.b16 %v2332
    %v3542 = vunpack.c.l.b16 %v2333
    %v3543 = vunpack.c.h.b16 %v2333
    %v3544 = vunpack.c.l.b16 %v2334
    %v3545 = vunpack.c.l.b16 %v2335
    %v3546 = vunpack.c.h.b16 %v2335
    %v3547 = vunpack.c.l.b16 %v2336
    %v3548 = vunpack.c.h.b16 %v2336
    %v3549 = vunpack.c.l.b16 %v2337
    %v3550 = vunpack.c.h.b16 %v2337
    %v3551 = vunpack.c.l.b16 %v2338
    %v3552 = vunpack.c.l.b16 %v2339
    %v3553 = vunpack.c.h.b16 %v2339
    %v3554 = vunpack.c.l.b16 %v2340
    %v3555 = vunpack.c.h.b16 %v2340
    %v3556 = vunpack.c.l.b16 %v2341
    %v3557 = vunpack.c.h.b16 %v2341
    %v3558 = vunpack.c.l.b16 %v2342
    %v3559 = vunpack.c.l.b16 %v2343
    %v3560 = vunpack.c.h.b16 %v2343
    %v3561 = vunpack.c.l.b16 %v2344
    %v3562 = vunpack.c.h.b16 %v2344
    %v3563 = vunpack.c.l.b16 %v2345
    %v3564 = vunpack.c.h.b16 %v2345
    %v3565 = vunpack.c.l.b16 %v2346
    %v3566 = vunpack.c.l.b16 %v2347
    %v3567 = vunpack.c.h.b16 %v2347
    %v3568 = vunpack.c.l.b16 %v2348
    %v3569 = vunpack.c.h.b16 %v2348
    %v3570 = vunpack.c.l.b16 %v2349
    %v3571 = vunpack.c.h.b16 %v2349
    %v3572 = vunpack.c.l.b16 %v2350
    %v3573 = vunpack.c.l.b16 %v2351
    %v3574 = vunpack.c.h.b16 %v2351
    %v3575 = vunpack.c.l.b16 %v2352
    %v3576 = vunpack.c.h.b16 %v2352
    %v3577 = vunpack.c.l.b16 %v2353
    %v3578 = vunpack.c.h.b16 %v2353
    %v3579 = vunpack.c.l.b16 %v2354
    %v3580 = vunpack.c.l.b16 %v2355
    %v3581 = vunpack.c.h.b16 %v2355
    %v3582 = vunpack.c.l.b16 %v2356
    %v3583 = vunpack.c.h.b16 %v2356
    %v3584 = vunpack.c.l.b16 %v2357
    %v3585 = vunpack.c.h.b16 %v2357
    %v3586 = vunpack.c.l.b16 %v2358
    %v3587 = vunpack.c.l.b16 %v2359
    %v3588 = vunpack.c.h.b16 %v2359
    %v3589 = vunpack.c.l.b16 %v2360
    %v3590 = vunpack.c.h.b16 %v2360
    %v3591 = vunpack.c.l.b16 %v2361
    %v3592 = vunpack.c.h.b16 %v2361
    %v3593 = vunpack.c.l.b16 %v2362
    %v3594 = vunpack.c.l.b16 %v2363
    %v3595 = vunpack.c.h.b16 %v2363
    %v3596 = vunpack.c.l.b16 %v2364
    %v3597 = vunpack.c.h.b16 %v2364
    %v3598 = vunpack.c.l.b16 %v2365
    %v3599 = vunpack.c.h.b16 %v2365
    %v3600 = vunpack.c.l.b16 %v2366
    %v3601 = vunpack.c.l.b16 %v2367
    %v3602 = vunpack.c.h.b16 %v2367
    %v3603 = vunpack.c.l.b16 %v2368
    %v3604 = vunpack.c.h.b16 %v2368
    %v3605 = vunpack.c.l.b16 %v2369
    %v3606 = vunpack.c.h.b16 %v2369
    %v3607 = vunpack.c.l.b16 %v2370
    %v3608 = vunpack.c.l.b16 %v2371
    %v3609 = vunpack.c.h.b16 %v2371
    %v3610 = vunpack.c.l.b16 %v2372
    %v3611 = vunpack.c.h.b16 %v2372
    %v3612 = vunpack.c.l.b16 %v2373
    %v3613 = vunpack.c.h.b16 %v2373
    %v3614 = vunpack.c.l.b16 %v2374
    %v3615 = vunpack.c.l.b16 %v2375
    %v3616 = vunpack.c.h.b16 %v2375
    %v3617 = vunpack.c.l.b16 %v2376
    %v3618 = vunpack.c.h.b16 %v2376
    %v3619 = vunpack.c.l.b16 %v2377
    %v3620 = vunpack.c.h.b16 %v2377
    %v3621 = vunpack.c.l.b16 %v2378
    %v3622 = vunpack.c.l.b16 %v2379
    %v3623 = vunpack.c.h.b16 %v2379
    %v3624 = vunpack.c.l.b16 %v2380
    %v3625 = vunpack.c.h.b16 %v2380
    %v3626 = vunpack.c.l.b16 %v2381
    %v3627 = vunpack.c.h.b16 %v2381
    %v3628 = vunpack.c.l.b16 %v2382
    %v3629 = vunpack.c.l.b16 %v2383
    %v3630 = vunpack.c.h.b16 %v2383
    %v3631 = vunpack.c.l.b16 %v2384
    %v3632 = vunpack.c.h.b16 %v2384
    %v3633 = vunpack.c.l.b16 %v2385
    %v3634 = vunpack.c.h.b16 %v2385
    %v3635 = vunpack.c.l.b16 %v2386
    %v3636 = vunpack.c.l.b16 %v2387
    %v3637 = vunpack.c.h.b16 %v2387
    %v3638 = vunpack.c.l.b16 %v2388
    %v3639 = vunpack.c.h.b16 %v2388
    %v3640 = vunpack.c.l.b16 %v2389
    %v3641 = vunpack.c.h.b16 %v2389
    %v3642 = vunpack.c.l.b16 %v2390
    %v3643 = vunpack.c.l.b16 %v2391
    %v3644 = vunpack.c.h.b16 %v2391
    %v3645 = vunpack.c.l.b16 %v2392
    %v3646 = vunpack.c.h.b16 %v2392
    %v3647 = vunpack.c.l.b16 %v2393
    %v3648 = vunpack.c.h.b16 %v2393
    %v3649 = vunpack.c.l.b16 %v2394
    %v3650 = vunpack.c.l.b16 %v2395
    %v3651 = vunpack.c.h.b16 %v2395
    %v3652 = vunpack.c.l.b16 %v2396
    %v3653 = vunpack.c.h.b16 %v2396
    %v3654 = vunpack.c.l.b16 %v2397
    %v3655 = vunpack.c.h.b16 %v2397
    %v3656 = vunpack.c.l.b16 %v2398
    %v3657 = vunpack.c.l.b16 %v2399
    %v3658 = vunpack.c.h.b16 %v2399
    %v3659 = vunpack.c.l.b16 %v2400
    %v3660 = vunpack.c.h.b16 %v2400
    %v3661 = vunpack.c.l.b16 %v2401
    %v3662 = vunpack.c.h.b16 %v2401
    %v3663 = vunpack.c.l.b16 %v2402
    %v3664 = vunpack.c.l.b16 %v2403
    %v3665 = vunpack.c.h.b16 %v2403
    %v3666 = vunpack.c.l.b16 %v2404
    %v3667 = vunpack.c.h.b16 %v2404
    %v3668 = vunpack.c.l.b16 %v2405
    %v3669 = vunpack.c.h.b16 %v2405
    %v3670 = vunpack.c.l.b16 %v2406
    %v3671 = vunpack.c.l.b16 %v2407
    %v3672 = vunpack.c.h.b16 %v2407
    %v3673 = vunpack.c.l.b16 %v2408
    %v3674 = vunpack.c.h.b16 %v2408
    %v3675 = vunpack.c.l.b16 %v2409
    %v3676 = vunpack.c.h.b16 %v2409
    %v3677 = vunpack.c.l.b16 %v2410
    %v3678 = vunpack.c.l.b16 %v2411
    %v3679 = vunpack.c.h.b16 %v2411
    %v3680 = vunpack.c.l.b16 %v2412
    %v3681 = vunpack.c.h.b16 %v2412
    %v3682 = vunpack.c.l.b16 %v2413
    %v3683 = vunpack.c.h.b16 %v2413
    %v3684 = vunpack.c.l.b16 %v2414
    %v3685 = vunpack.c.l.b16 %v2415
    %v3686 = vunpack.c.h.b16 %v2415
    %v3687 = vunpack.c.l.b16 %v2416
    %v3688 = vunpack.c.h.b16 %v2416
    %v3689 = vunpack.c.l.b16 %v2417
    %v3690 = vunpack.c.h.b16 %v2417
    %v3691 = vunpack.c.l.b16 %v2418
    %v3692 = vunpack.c.l.b16 %v2419
    %v3693 = vunpack.c.h.b16 %v2419
    %v3694 = vunpack.c.l.b16 %v2420
    %v3695 = vunpack.c.h.b16 %v2420
    %v3696 = vunpack.c.l.b16 %v2421
    %v3697 = vunpack.c.h.b16 %v2421
    %v3698 = vunpack.c.l.b16 %v2422
    %v3699 = vunpack.c.l.b16 %v2423
    %v3700 = vunpack.c.h.b16 %v2423
    %v3701 = vunpack.c.l.b16 %v2424
    %v3702 = vunpack.c.h.b16 %v2424
    %v3703 = vunpack.c.l.b16 %v2425
    %v3704 = vunpack.c.h.b16 %v2425
    %v3705 = vunpack.c.l.b16 %v2426
    %v3706 = vunpack.c.l.b16 %v2427
    %v3707 = vunpack.c.h.b16 %v2427
    %v3708 = vunpack.c.l.b16 %v2428
    %v3709 = vunpack.c.h.b16 %v2428
    %v3710 = vunpack.c.l.b16 %v2429
    %v3711 = vunpack.c.h.b16 %v2429
    %v3712 = vunpack.c.l.b16 %v2430
    %v3713 = vunpack.c.l.b16 %v2431
    %v3714 = vunpack.c.h.b16 %v2431
    %v3715 = vunpack.c.l.b16 %v2432
    %v3716 = vunpack.c.h.b16 %v2432
    %v3717 = vunpack.c.l.b16 %v2433
    %v3718 = vunpack.c.h.b16 %v2433
    %v3719 = vunpack.c.l.b16 %v2434
    %v3720 = vunpack.c.l.b16 %v2435
    %v3721 = vunpack.c.h.b16 %v2435
    %v3722 = vunpack.c.l.b16 %v2436
    %v3723 = vunpack.c.h.b16 %v2436
    %v3724 = vunpack.c.l.b16 %v2437
    %v3725 = vunpack.c.h.b16 %v2437
    %v3726 = vunpack.c.l.b16 %v2438
    %v3727 = vunpack.c.l.b16 %v2439
    %v3728 = vunpack.c.h.b16 %v2439
    %v3729 = vunpack.c.l.b16 %v2440
    %v3730 = vunpack.c.h.b16 %v2440
    %v3731 = vunpack.c.l.b16 %v2441
    %v3732 = vunpack.c.h.b16 %v2441
    %v3733 = vunpack.c.l.b16 %v2442
    %v3734 = vunpack.c.l.b16 %v2443
    %v3735 = vunpack.c.h.b16 %v2443
    %v3736 = vunpack.c.l.b16 %v2444
    %v3737 = vunpack.c.h.b16 %v2444
    %v3738 = vunpack.c.l.b16 %v2445
    %v3739 = vunpack.c.h.b16 %v2445
    %v3740 = vunpack.c.l.b16 %v2446
    %v3741 = vunpack.c.l.b16 %v2447
    %v3742 = vunpack.c.h.b16 %v2447
    %v3743 = vunpack.c.l.b16 %v2448
    %v3744 = vunpack.c.h.b16 %v2448
    %v3745 = vunpack.c.l.b16 %v2449
    %v3746 = vunpack.c.h.b16 %v2449
    %v3747 = vunpack.c.l.b16 %v2450
    %v3748 = vunpack.c.l.b16 %v2451
    %v3749 = vunpack.c.h.b16 %v2451
    %v3750 = vunpack.c.l.b16 %v2452
    %v3751 = vunpack.c.h.b16 %v2452
    %v3752 = vunpack.c.l.b16 %v2453
    %v3753 = vunpack.c.h.b16 %v2453
    %v3754 = vunpack.c.l.b16 %v2454
    %v3755 = vunpack.c.l.b16 %v2455
    %v3756 = vunpack.c.h.b16 %v2455
    %v3757 = vunpack.c.l.b16 %v2456
    %v3758 = vunpack.c.h.b16 %v2456
    %v3759 = vunpack.c.l.b16 %v2457
    %v3760 = vunpack.c.h.b16 %v2457
    %v3761 = vunpack.c.l.b16 %v2458
    %v3762 = vunpack.c.l.b16 %v2459
    %v3763 = vunpack.c.h.b16 %v2459
    %v3764 = vunpack.c.l.b16 %v2460
    %v3765 = vunpack.c.h.b16 %v2460
    %v3766 = vunpack.c.l.b16 %v2461
    %v3767 = vunpack.c.h.b16 %v2461
    %v3768 = vunpack.c.l.b16 %v2462
    %v3769 = vunpack.c.l.b16 %v2463
    %v3770 = vunpack.c.h.b16 %v2463
    %v3771 = vunpack.c.l.b16 %v2464
    %v3772 = vunpack.c.h.b16 %v2464
    %v3773 = vunpack.c.l.b16 %v2465
    %v3774 = vunpack.c.h.b16 %v2465
    %v3775 = vunpack.c.l.b16 %v2466
    %v3776 = vunpack.c.l.b16 %v2467
    %v3777 = vunpack.c.h.b16 %v2467
    %v3778 = vunpack.c.l.b16 %v2468
    %v3779 = vunpack.c.h.b16 %v2468
    %v3780 = vunpack.c.l.b16 %v2469
    %v3781 = vunpack.c.h.b16 %v2469
    %v3782 = vunpack.c.l.b16 %v2470
    %v3783 = vunpack.c.l.b16 %v2471
    %v3784 = vunpack.c.h.b16 %v2471
    %v3785 = vunpack.c.l.b16 %v2472
    %v3786 = vunpack.c.h.b16 %v2472
    %v3787 = vunpack.c.l.b16 %v2473
    %v3788 = vunpack.c.h.b16 %v2473
    %v3789 = vunpack.c.l.b16 %v2474
    %v3790 = vunpack.c.l.b16 %v2475
    %v3791 = vunpack.c.h.b16 %v2475
    %v3792 = vunpack.c.l.b16 %v2476
    %v3793 = vunpack.c.h.b16 %v2476
    %v3794 = vunpack.c.l.b16 %v2477
    %v3795 = vunpack.c.h.b16 %v2477
    %v3796 = vunpack.c.l.b16 %v2478
    %v3797 = vunpack.c.l.b16 %v2479
    %v3798 = vunpack.c.h.b16 %v2479
    %v3799 = vunpack.c.l.b16 %v2480
    %v3800 = vunpack.c.h.b16 %v2480
    %v3801 = vunpack.c.l.b16 %v2481
    %v3802 = vunpack.c.h.b16 %v2481
    %v3803 = vunpack.c.l.b16 %v2482
    %v3804 = vunpack.c.l.b16 %v2483
    %v3805 = vunpack.c.h.b16 %v2483
    %v3806 = vunpack.c.l.b16 %v2484
    %v3807 = vunpack.c.h.b16 %v2484
    %v3808 = vunpack.c.l.b16 %v2485
    %v3809 = vunpack.c.h.b16 %v2485
    %v3810 = vunpack.c.l.b16 %v2486
    %v3811 = vunpack.c.l.b16 %v2487
    %v3812 = vunpack.c.h.b16 %v2487
    %v3813 = vunpack.c.l.b16 %v2488
    %v3814 = vunpack.c.h.b16 %v2488
    %v3815 = vunpack.c.l.b16 %v2489
    %v3816 = vunpack.c.h.b16 %v2489
    %v3817 = vunpack.c.l.b16 %v2490
    %v3818 = vunpack.c.l.b16 %v2491
    %v3819 = vunpack.c.h.b16 %v2491
    %v3820 = vunpack.c.l.b16 %v2492
    %v3821 = vunpack.c.h.b16 %v2492
    %v3822 = vunpack.c.l.b16 %v2493
    %v3823 = vunpack.c.h.b16 %v2493
    %v3824 = vunpack.c.l.b16 %v2494
    %v3825 = vunpack.c.l.b16 %v2495
    %v3826 = vunpack.c.h.b16 %v2495
    %v3827 = vunpack.c.l.b16 %v2496
    %v3828 = vunpack.c.h.b16 %v2496
    %v3829 = vunpack.c.l.b16 %v2497
    %v3830 = vunpack.c.h.b16 %v2497
    %v3831 = vunpack.c.l.b16 %v2498
    %v3832 = vunpack.c.l.b16 %v2499
    %v3833 = vunpack.c.h.b16 %v2499
    %v3834 = vunpack.c.l.b16 %v2500
    %v3835 = vunpack.c.h.b16 %v2500
    %v3836 = vunpack.c.l.b16 %v2501
    %v3837 = vunpack.c.h.b16 %v2501
    %v3838 = vunpack.c.l.b16 %v2502
    %v3839 = vunpack.c.l.b16 %v2503
    %v3840 = vunpack.c.h.b16 %v2503
    %v3841 = vunpack.c.l.b16 %v2504
    %v3842 = vunpack.c.h.b16 %v2504
    %v3843 = vunpack.c.l.b16 %v2505
    %v3844 = vunpack.c.h.b16 %v2505
    %v3845 = vunpack.c.l.b16 %v2506
    %v3846 = vunpack.c.l.b16 %v2507
    %v3847 = vunpack.c.h.b16 %v2507
    %v3848 = vunpack.c.l.b16 %v2508
    %v3849 = vunpack.c.h.b16 %v2508
    %v3850 = vunpack.c.l.b16 %v2509
    %v3851 = vunpack.c.h.b16 %v2509
    %v3852 = vunpack.c.l.b16 %v2510
    %v3853 = vunpack.c.l.b16 %v2511
    %v3854 = vunpack.c.h.b16 %v2511
    %v3855 = vunpack.c.l.b16 %v2512
    %v3856 = vunpack.c.h.b16 %v2512
    %v3857 = vunpack.c.l.b16 %v2513
    %v3858 = vunpack.c.h.b16 %v2513
    %v3859 = vunpack.c.l.b16 %v2514
    %v3860 = vunpack.c.l.b16 %v2515
    %v3861 = vunpack.c.h.b16 %v2515
    %v3862 = vunpack.c.l.b16 %v2516
    %v3863 = vunpack.c.h.b16 %v2516
    %v3864 = vunpack.c.l.b16 %v2517
    %v3865 = vunpack.c.h.b16 %v2517
    %v3866 = vunpack.c.l.b16 %v2518
    %v3867 = vunpack.c.l.b16 %v2519
    %v3868 = vunpack.c.h.b16 %v2519
    %v3869 = vunpack.c.l.b16 %v2520
    %v3870 = vunpack.c.h.b16 %v2520
    %v3871 = vunpack.c.l.b16 %v2521
    %v3872 = vunpack.c.h.b16 %v2521
    %v3873 = vunpack.c.l.b16 %v2522
    %v3874 = vunpack.c.l.b16 %v2523
    %v3875 = vunpack.c.h.b16 %v2523
    %v3876 = vunpack.c.l.b16 %v2524
    %v3877 = vunpack.c.h.b16 %v2524
    %v3878 = vunpack.c.l.b16 %v2525
    %v3879 = vunpack.c.h.b16 %v2525
    %v3880 = vunpack.c.l.b16 %v2526
    %v3881 = vunpack.c.l.b16 %v2527
    %v3882 = vunpack.c.h.b16 %v2527
    %v3883 = vunpack.c.l.b16 %v2528
    %v3884 = vunpack.c.h.b16 %v2528
    %v3885 = vunpack.c.l.b16 %v2529
    %v3886 = vunpack.c.h.b16 %v2529
    %v3887 = vunpack.c.l.b16 %v2530
    %v3888 = vunpack.c.l.b16 %v2531
    %v3889 = vunpack.c.h.b16 %v2531
    %v3890 = vunpack.c.l.b16 %v2532
    %v3891 = vunpack.c.h.b16 %v2532
    %v3892 = vunpack.c.l.b16 %v2533
    %v3893 = vunpack.c.h.b16 %v2533
    %v3894 = vunpack.c.l.b16 %v2534
    %v3895 = vunpack.c.l.b16 %v2535
    %v3896 = vunpack.c.h.b16 %v2535
    %v3897 = vunpack.c.l.b16 %v2536
    %v3898 = vunpack.c.h.b16 %v2536
    %v3899 = vunpack.c.l.b16 %v2537
    %v3900 = vunpack.c.h.b16 %v2537
    %v3901 = vunpack.c.l.b16 %v2538
    %v3902 = vunpack.c.l.b16 %v2539
    %v3903 = vunpack.c.h.b16 %v2539
    %v3904 = vunpack.c.l.b16 %v2540
    %v3905 = vunpack.c.h.b16 %v2540
    %v3906 = vunpack.c.l.b16 %v2541
    %v3907 = vunpack.c.h.b16 %v2541
    %v3908 = vunpack.c.l.b16 %v2542
    %v3909 = vunpack.c.l.b16 %v2543
    %v3910 = vunpack.c.h.b16 %v2543
    %v3911 = vunpack.c.l.b16 %v2544
    %v3912 = vunpack.c.h.b16 %v2544
    %v3913 = vunpack.c.l.b16 %v2545
    %v3914 = vunpack.c.h.b16 %v2545
    %v3915 = vunpack.c.l.b16 %v2546
    %v3916 = vunpack.c.l.b16 %v2547
    %v3917 = vunpack.c.h.b16 %v2547
    %v3918 = vunpack.c.l.b16 %v2548
    %v3919 = vunpack.c.h.b16 %v2548
    %v3920 = vunpack.c.l.b16 %v2549
    %v3921 = vunpack.c.h.b16 %v2549
    %v3922 = vunpack.c.l.b16 %v2550
    %v3923 = vunpack.c.l.b16 %v2551
    %v3924 = vunpack.c.h.b16 %v2551
    %v3925 = vunpack.c.l.b16 %v2552
    %v3926 = vunpack.c.h.b16 %v2552
    %v3927 = vunpack.c.l.b16 %v2553
    %v3928 = vunpack.c.h.b16 %v2553
    %v3929 = vunpack.c.l.b16 %v2554
    %v3930 = vunpack.c.l.b16 %v2555
    %v3931 = vunpack.c.h.b16 %v2555
    %v3932 = vunpack.c.l.b16 %v2556
    %v3933 = vunpack.c.h.b16 %v2556
    %v3934 = vunpack.c.l.b16 %v2557
    %v3935 = vunpack.c.h.b16 %v2557
    %v3936 = vunpack.c.l.b16 %v2558
    %v3937 = vunpack.c.l.b16 %v2559
    %v3938 = vunpack.c.h.b16 %v2559
    %v3939 = vunpack.c.l.b16 %v2560
    %v3940 = vunpack.c.h.b16 %v2560
    %v3941 = vunpack.c.l.b16 %v2561
    %v3942 = vunpack.c.h.b16 %v2561
    %v3943 = vunpack.c.l.b16 %v2562
    %v3944 = vunpack.c.l.b16 %v2563
    %v3945 = vunpack.c.h.b16 %v2563
    %v3946 = vunpack.c.l.b16 %v2564
    %v3947 = vunpack.c.h.b16 %v2564
    %v3948 = vunpack.c.l.b16 %v2565
    %v3949 = vunpack.c.h.b16 %v2565
    %v3950 = vunpack.c.l.b16 %v2566
    %v3951 = vunpack.c.l.b16 %v2567
    %v3952 = vunpack.c.h.b16 %v2567
    %v3953 = vunpack.c.l.b16 %v2568
    %v3954 = vunpack.c.h.b16 %v2568
    %v3955 = vunpack.c.l.b16 %v2569
    %v3956 = vunpack.c.h.b16 %v2569
    %v3957 = vunpack.c.l.b16 %v2570
    %v3958 = vunpack.c.l.b16 %v2571
    %v3959 = vunpack.c.h.b16 %v2571
    %v3960 = vunpack.c.l.b16 %v2572
    %v3961 = vunpack.c.h.b16 %v2572
    %v3962 = vunpack.c.l.b16 %v2573
    %v3963 = vunpack.c.h.b16 %v2573
    %v3964 = vunpack.c.l.b16 %v2574
    %v3965 = vunpack.c.l.b16 %v2575
    %v3966 = vunpack.c.h.b16 %v2575
    %v3967 = vunpack.c.l.b16 %v2576
    %v3968 = vunpack.c.h.b16 %v2576
    %v3969 = vunpack.c.l.b16 %v2577
    %v3970 = vunpack.c.h.b16 %v2577
    %v3971 = vunpack.c.l.b16 %v2578
    %v3972 = vunpack.c.l.b16 %v2579
    %v3973 = vunpack.c.h.b16 %v2579
    %v3974 = vunpack.c.l.b16 %v2580
    %v3975 = vunpack.c.h.b16 %v2580
    %v3976 = vunpack.c.l.b16 %v2581
    %v3977 = vunpack.c.h.b16 %v2581
    %v3978 = vunpack.c.l.b16 %v2582
    %v3979 = vunpack.c.l.b16 %v2583
    %v3980 = vunpack.c.h.b16 %v2583
    %v3981 = vunpack.c.l.b16 %v2584
    %v3982 = vunpack.c.h.b16 %v2584
    %v3983 = vunpack.c.l.b16 %v2585
    %v3984 = vunpack.c.h.b16 %v2585
    %v3985 = vunpack.c.l.b16 %v2586
    %v3986 = vunpack.c.l.b16 %v2587
    %v3987 = vunpack.c.h.b16 %v2587
    %v3988 = vunpack.c.l.b16 %v2588
    %v3989 = vunpack.c.h.b16 %v2588
    %v3990 = vunpack.c.l.b16 %v2589
    %v3991 = vunpack.c.h.b16 %v2589
    %v3992 = vunpack.c.l.b16 %v2590
    %v3993 = vunpack.c.l.b16 %v2591
    %v3994 = vunpack.c.h.b16 %v2591
    %v3995 = vunpack.c.l.b16 %v2592
    %v3996 = vunpack.c.h.b16 %v2592
    %v3997 = vunpack.c.l.b16 %v2593
    %v3998 = vunpack.c.h.b16 %v2593
    %v3999 = vunpack.c.l.b16 %v2594
    %v4000 = vunpack.c.l.b16 %v2595
    %v4001 = vunpack.c.h.b16 %v2595
    %v4002 = vunpack.c.l.b16 %v2596
    %v4003 = vunpack.c.h.b16 %v2596
    %v4004 = vunpack.c.l.b16 %v2597
    %v4005 = vunpack.c.h.b16 %v2597
    %v4006 = vunpack.c.l.b16 %v2598
    %v4007 = vunpack.c.l.b16 %v2599
    %v4008 = vunpack.c.h.b16 %v2599
    %v4009 = vunpack.c.l.b16 %v2600
    %v4010 = vunpack.c.h.b16 %v2600
    %v4011 = vunpack.c.l.b16 %v2601
    %v4012 = vunpack.c.h.b16 %v2601
    %v4013 = vunpack.c.l.b16 %v2602
    %v4014 = vunpack.c.l.b16 %v2603
    %v4015 = vunpack.c.h.b16 %v2603
    %v4016 = vunpack.c.l.b16 %v2604
    %v4017 = vunpack.c.h.b16 %v2604
    %v4018 = vunpack.c.l.b16 %v2605
    %v4019 = vunpack.c.h.b16 %v2605
    %v4020 = vunpack.c.l.b16 %v2606
    %v4021 = vunpack.c.l.b16 %v2607
    %v4022 = vunpack.c.h.b16 %v2607
    %v4023 = vunpack.c.l.b16 %v2608
    %v4024 = vunpack.c.h.b16 %v2608
    %v4025 = vunpack.c.l.b16 %v2609
    %v4026 = vunpack.c.h.b16 %v2609
    %v4027 = vunpack.c.l.b16 %v2610
    %v4028 = vunpack.c.l.b16 %v2611
    %v4029 = vunpack.c.h.b16 %v2611
    %v4030 = vunpack.c.l.b16 %v2612
    %v4031 = vunpack.c.h.b16 %v2612
    %v4032 = vunpack.c.l.b16 %v2613
    %v4033 = vunpack.c.h.b16 %v2613
    %v4034 = vunpack.c.l.b16 %v2614
    %v4035 = vunpack.c.l.b16 %v2615
    %v4036 = vunpack.c.h.b16 %v2615
    %v4037 = vunpack.c.l.b16 %v2616
    %v4038 = vunpack.c.h.b16 %v2616
    %v4039 = vunpack.c.l.b16 %v2617
    %v4040 = vunpack.c.h.b16 %v2617
    %v4041 = vunpack.c.l.b16 %v2618
    %v4042 = vunpack.c.l.b16 %v2619
    %v4043 = vunpack.c.h.b16 %v2619
    %v4044 = vunpack.c.l.b16 %v2620
    %v4045 = vunpack.c.h.b16 %v2620
    %v4046 = vunpack.c.l.b16 %v2621
    %v4047 = vunpack.c.h.b16 %v2621
    %v4048 = vunpack.c.l.b16 %v2622
    %v4049 = vunpack.c.l.b16 %v2623
    %v4050 = vunpack.c.h.b16 %v2623
    %v4051 = vunpack.c.l.b16 %v2624
    %v4052 = vunpack.c.h.b16 %v2624
    %v4053 = vunpack.c.l.b16 %v2625
    %v4054 = vunpack.c.h.b16 %v2625
    %v4055 = vunpack.c.l.b16 %v2626
    %v4056 = vunpack.c.l.b16 %v2627
    %v4057 = vunpack.c.h.b16 %v2627
    %v4058 = vunpack.c.l.b16 %v2628
    %v4059 = vunpack.c.h.b16 %v2628
    %v4060 = vunpack.c.l.b16 %v2629
    %v4061 = vunpack.c.h.b16 %v2629
    %v4062 = vunpack.c.l.b16 %v2630
    %v4063 = vunpack.c.l.b16 %v2631
    %v4064 = vunpack.c.h.b16 %v2631
    %v4065 = vunpack.c.l.b16 %v2632
    %v4066 = vunpack.c.h.b16 %v2632
    %v4067 = vunpack.c.l.b16 %v2633
    %v4068 = vunpack.c.h.b16 %v2633
    %v4069 = vunpack.c.l.b16 %v2634
    %v4070 = vunpack.c.l.b16 %v2635
    %v4071 = vunpack.c.h.b16 %v2635
    %v4072 = vunpack.c.l.b16 %v2636
    %v4073 = vunpack.c.h.b16 %v2636
    %v4074 = vunpack.c.l.b16 %v2637
    %v4075 = vunpack.c.h.b16 %v2637
    %v4076 = vunpack.c.l.b16 %v2638
    %v4077 = vunpack.c.l.b16 %v2639
    %v4078 = vunpack.c.h.b16 %v2639
    %v4079 = vunpack.c.l.b16 %v2640
    %v4080 = vunpack.c.h.b16 %v2640
    %v4081 = vunpack.c.l.b16 %v2641
    %v4082 = vunpack.c.h.b16 %v2641
    %v4083 = vunpack.c.l.b16 %v2642
    %v4084 = vunpack.c.l.b16 %v2643
    %v4085 = vunpack.c.h.b16 %v2643
    %v4086 = vunpack.c.l.b16 %v2644
    %v4087 = vunpack.c.h.b16 %v2644
    %v4088 = vunpack.c.l.b16 %v2645
    %v4089 = vunpack.c.h.b16 %v2645
    %v4090 = vunpack.c.l.b16 %v2646
    %v4091 = vunpack.c.l.b16 %v2647
    %v4092 = vunpack.c.h.b16 %v2647
    %v4093 = vunpack.c.l.b16 %v2648
    %v4094 = vunpack.c.h.b16 %v2648
    %v4095 = vunpack.c.l.b16 %v2649
    %v4096 = vunpack.c.h.b16 %v2649
    %v4097 = vunpack.c.l.b16 %v2650
    %v4098 = vunpack.c.l.b16 %v2651
    %v4099 = vunpack.c.h.b16 %v2651
    %v4100 = vunpack.c.l.b16 %v2652
    %v4101 = vunpack.c.h.b16 %v2652
    %v4102 = vunpack.c.l.b16 %v2653
    %v4103 = vunpack.c.h.b16 %v2653
    %v4104 = vunpack.c.l.b16 %v2654
    %v4105 = vunpack.c.l.b16 %v2655
    %v4106 = vunpack.c.h.b16 %v2655
    %v4107 = vunpack.c.l.b16 %v2656
    %v4108 = vunpack.c.h.b16 %v2656
    %v4109 = vunpack.c.l.b16 %v2657
    %v4110 = vunpack.c.h.b16 %v2657
    %v4111 = vunpack.c.l.b16 %v2658
    %v4112 = vunpack.c.l.b16 %v2659
    %v4113 = vunpack.c.h.b16 %v2659
    %v4114 = vunpack.c.l.b16 %v2660
    %v4115 = vunpack.c.h.b16 %v2660
    %v4116 = vunpack.c.l.b16 %v2661
    %v4117 = vunpack.c.h.b16 %v2661
    %v4118 = vunpack.c.l.b16 %v2662
    %v4119 = vunpack.c.l.b16 %v2663
    %v4120 = vunpack.c.h.b16 %v2663
    %v4121 = vunpack.c.l.b16 %v2664
    %v4122 = vunpack.c.h.b16 %v2664
    %v4123 = vunpack.c.l.b16 %v2665
    %v4124 = vunpack.c.h.b16 %v2665
    %v4125 = vunpack.c.l.b16 %v2666
    %v4126 = vunpack.c.l.b16 %v2667
    %v4127 = vunpack.c.h.b16 %v2667
    %v4128 = vunpack.c.l.b16 %v2668
    %v4129 = vunpack.c.h.b16 %v2668
    %v4130 = vunpack.c.l.b16 %v2669
    %v4131 = vunpack.c.h.b16 %v2669
    %v4132 = vunpack.c.l.b16 %v2670
    %v4133 = vunpack.c.l.b16 %v2671
    %v4134 = vunpack.c.h.b16 %v2671
    %v4135 = vunpack.c.l.b16 %v2672
    %v4136 = vunpack.c.h.b16 %v2672
    %v4137 = vunpack.c.l.b16 %v2673
    %v4138 = vunpack.c.h.b16 %v2673
    %v4139 = vunpack.c.l.b16 %v2674
    %v4140 = vunpack.c.l.b16 %v2675
    %v4141 = vunpack.c.h.b16 %v2675
    %v4142 = vunpack.c.l.b16 %v2676
    %v4143 = vunpack.c.h.b16 %v2676
    %v4144 = vunpack.c.l.b16 %v2677
    %v4145 = vunpack.c.h.b16 %v2677
    %v4146 = vunpack.c.l.b16 %v2678
    %v4147 = vunpack.c.l.b16 %v2679
    %v4148 = vunpack.c.h.b16 %v2679
    %v4149 = vunpack.c.l.b16 %v2680
    %v4150 = vunpack.c.h.b16 %v2680
    %v4151 = vunpack.c.l.b16 %v2681
    %v4152 = vunpack.c.h.b16 %v2681
    %v4153 = vunpack.c.l.b16 %v2682
    %v4154 = vunpack.c.l.b16 %v2683
    %v4155 = vunpack.c.h.b16 %v2683
    %v4156 = vunpack.c.l.b16 %v2684
    %v4157 = vunpack.c.h.b16 %v2684
    %v4158 = vunpack.c.l.b16 %v2685
    %v4159 = vunpack.c.h.b16 %v2685
    %v4160 = vunpack.c.l.b16 %v2686
    %v4161 = vunpack.c.l.b16 %v2687
    %v4162 = vunpack.c.h.b16 %v2687
    %v4163 = vunpack.c.l.b16 %v2688
    %v4164 = vunpack.c.h.b16 %v2688
    %v4165 = vunpack.c.l.b16 %v2689
    %v4166 = vunpack.c.h.b16 %v2689
    %v4167 = vunpack.c.l.b16 %v2690
    %v4168 = vunpack.c.l.b16 %v2691
    %v4169 = vunpack.c.h.b16 %v2691
    %v4170 = vunpack.c.l.b16 %v2692
    %v4171 = vunpack.c.h.b16 %v2692
    %v4172 = vunpack.c.l.b16 %v2693
    %v4173 = vunpack.c.h.b16 %v2693
    %v4174 = vunpack.c.l.b16 %v2694
    %v4175 = vunpack.c.l.b16 %v2695
    %v4176 = vunpack.c.h.b16 %v2695
    %v4177 = vunpack.c.l.b16 %v2696
    %v4178 = vunpack.c.h.b16 %v2696
    %v4179 = vunpack.c.l.b16 %v2697
    %v4180 = vunpack.c.h.b16 %v2697
    %v4181 = vunpack.c.l.b16 %v2698
    %v4182 = vunpack.c.l.b16 %v2699
    %v4183 = vunpack.c.h.b16 %v2699
    %v4184 = vunpack.c.l.b16 %v2700
    %v4185 = vunpack.c.h.b16 %v2700
    %v4186 = vunpack.c.l.b16 %v2701
    %v4187 = vunpack.c.h.b16 %v2701
    %v4188 = vunpack.c.l.b16 %v2702
    %v4189 = vunpack.c.l.b16 %v2703
    %v4190 = vunpack.c.h.b16 %v2703
    %v4191 = vunpack.c.l.b16 %v2704
    %v4192 = vunpack.c.h.b16 %v2704
    %v4193 = vunpack.c.l.b16 %v2705
    %v4194 = vunpack.c.h.b16 %v2705
    %v4195 = vunpack.c.l.b16 %v2706
    %v4196 = vunpack.c.l.b16 %v2707
    %v4197 = vunpack.c.h.b16 %v2707
    %v4198 = vunpack.c.l.b16 %v2708
    %v4199 = vunpack.c.h.b16 %v2708
    %v4200 = vunpack.c.l.b16 %v2709
    %v4201 = vunpack.c.h.b16 %v2709
    %v4202 = vunpack.c.l.b16 %v2710
    %v4203 = vunpack.c.l.b16 %v2711
    %v4204 = vunpack.c.h.b16 %v2711
    %v4205 = vunpack.c.l.b16 %v2712
    %v4206 = vunpack.c.h.b16 %v2712
    %v4207 = vunpack.c.l.b16 %v2713
    %v4208 = vunpack.c.h.b16 %v2713
    %v4209 = vunpack.c.l.b16 %v2714
    %v4210 = vunpack.c.l.b16 %v2715
    %v4211 = vunpack.c.h.b16 %v2715
    %v4212 = vunpack.c.l.b16 %v2716
    %v4213 = vunpack.c.h.b16 %v2716
    %v4214 = vunpack.c.l.b16 %v2717
    %v4215 = vunpack.c.h.b16 %v2717
    %v4216 = vunpack.c.l.b16 %v2718
    %v4217 = vunpack.c.l.b16 %v2719
    %v4218 = vunpack.c.h.b16 %v2719
    %v4219 = vunpack.c.l.b16 %v2720
    %v4220 = vunpack.c.h.b16 %v2720
    %v4221 = vunpack.c.l.b16 %v2721
    %v4222 = vunpack.c.h.b16 %v2721
    %v4223 = vunpack.c.l.b16 %v2722
    %v4224 = vunpack.c.l.b16 %v2723
    %v4225 = vunpack.c.h.b16 %v2723
    %v4226 = vunpack.c.l.b16 %v2724
    %v4227 = vunpack.c.h.b16 %v2724
    %v4228 = vunpack.c.l.b16 %v2725
    %v4229 = vunpack.c.h.b16 %v2725
    %v4230 = vunpack.c.l.b16 %v2726
    %v4231 = vunpack.c.l.b16 %v2727
    %v4232 = vunpack.c.h.b16 %v2727
    %v4233 = vunpack.c.l.b16 %v2728
    %v4234 = vunpack.c.h.b16 %v2728
    %v4235 = vunpack.c.l.b16 %v2729
    %v4236 = vunpack.c.h.b16 %v2729
    %v4237 = vunpack.c.l.b16 %v2730
    %v4238 = vunpack.c.l.b16 %v2731
    %v4239 = vunpack.c.h.b16 %v2731
    %v4240 = vunpack.c.l.b16 %v2732
    %v4241 = vunpack.c.h.b16 %v2732
    %v4242 = vunpack.c.l.b16 %v2733
    %v4243 = vunpack.c.h.b16 %v2733
    %v4244 = vunpack.c.l.b16 %v2734
    %v4245 = vunpack.c.l.b16 %v2735
    %v4246 = vunpack.c.h.b16 %v2735
    %v4247 = vunpack.c.l.b16 %v2736
    %v4248 = vunpack.c.h.b16 %v2736
    %v4249 = vunpack.c.l.b16 %v2737
    %v4250 = vunpack.c.h.b16 %v2737
    %v4251 = vunpack.c.l.b16 %v2738
    %v4252 = vunpack.c.l.b16 %v2739
    %v4253 = vunpack.c.h.b16 %v2739
    %v4254 = vunpack.c.l.b16 %v2740
    %v4255 = vunpack.c.h.b16 %v2740
    %v4256 = vunpack.c.l.b16 %v2741
    %v4257 = vunpack.c.h.b16 %v2741
    %v4258 = vunpack.c.l.b16 %v2742
    %v4259 = vunpack.c.l.b16 %v2743
    %v4260 = vunpack.c.h.b16 %v2743
    %v4261 = vunpack.c.l.b16 %v2744
    %v4262 = vunpack.c.h.b16 %v2744
    %v4263 = vunpack.c.l.b16 %v2745
    %v4264 = vunpack.c.h.b16 %v2745
    %v4265 = vunpack.c.l.b16 %v2746
    %v4266 = vunpack.c.l.b16 %v2747
    %v4267 = vunpack.c.h.b16 %v2747
    %v4268 = vunpack.c.l.b16 %v2748
    %v4269 = vunpack.c.h.b16 %v2748
    %v4270 = vunpack.c.l.b16 %v2749
    %v4271 = vunpack.c.h.b16 %v2749
    %v4272 = vunpack.c.l.b16 %v2750
    %v4273 = vunpack.c.l.b16 %v2751
    %v4274 = vunpack.c.h.b16 %v2751
    %v4275 = vunpack.c.l.b16 %v2752
    %v4276 = vunpack.c.h.b16 %v2752
    %v4277 = vunpack.c.l.b16 %v2753
    %v4278 = vunpack.c.h.b16 %v2753
    %v4279 = vunpack.c.l.b16 %v2754
    %v4280 = vunpack.c.l.b16 %v2755
    %v4281 = vunpack.c.h.b16 %v2755
    %v4282 = vunpack.c.l.b16 %v2756
    %v4283 = vunpack.c.h.b16 %v2756
    %v4284 = vunpack.c.l.b16 %v2757
    %v4285 = vunpack.c.h.b16 %v2757
    %v4286 = vunpack.c.l.b16 %v2758
    %v4287 = vunpack.c.l.b16 %v2759
    %v4288 = vunpack.c.h.b16 %v2759
    %v4289 = vunpack.c.l.b16 %v2760
    %v4290 = vunpack.c.h.b16 %v2760
    %v4291 = vunpack.c.l.b16 %v2761
    %v4292 = vunpack.c.h.b16 %v2761
    %v4293 = vunpack.c.l.b16 %v2762
    %v4294 = vunpack.c.l.b16 %v2763
    %v4295 = vunpack.c.h.b16 %v2763
    %v4296 = vunpack.c.l.b16 %v2764
    %v4297 = vunpack.c.h.b16 %v2764
    %v4298 = vunpack.c.l.b16 %v2765
    %v4299 = vunpack.c.h.b16 %v2765
    %v4300 = vunpack.c.l.b16 %v2766
    %v4301 = vunpack.c.l.b16 %v2767
    %v4302 = vunpack.c.h.b16 %v2767
    %v4303 = vunpack.c.l.b16 %v2768
    %v4304 = vunpack.c.h.b16 %v2768
    %v4305 = vunpack.c.l.b16 %v2769
    %v4306 = vunpack.c.h.b16 %v2769
    %v4307 = vunpack.c.l.b16 %v2770
    %v4308 = vunpack.c.l.b16 %v2771
    %v4309 = vunpack.c.h.b16 %v2771
    %v4310 = vunpack.c.l.b16 %v2772
    %v4311 = vunpack.c.h.b16 %v2772
    %v4312 = vunpack.c.l.b16 %v2773
    %v4313 = vunpack.c.h.b16 %v2773
    %v4314 = vunpack.c.l.b16 %v2774
    %v4315 = vunpack.c.l.b16 %v2775
    %v4316 = vunpack.c.h.b16 %v2775
    %v4317 = vunpack.c.l.b16 %v2776
    %v4318 = vunpack.c.h.b16 %v2776
    %v4319 = vunpack.c.l.b16 %v2777
    %v4320 = vunpack.c.h.b16 %v2777
    %v4321 = vunpack.c.l.b16 %v2778
    %v4322 = vunpack.c.l.b16 %v2779
    %v4323 = vunpack.c.h.b16 %v2779
    %v4324 = vunpack.c.l.b16 %v2780
    %v4325 = vunpack.c.h.b16 %v2780
    %v4326 = vunpack.c.l.b16 %v2781
    %v4327 = vunpack.c.h.b16 %v2781
    %v4328 = vunpack.c.l.b16 %v2782
    %v4329 = vunpack.c.l.b16 %v2783
    %v4330 = vunpack.c.h.b16 %v2783
    %v4331 = vunpack.c.l.b16 %v2784
    %v4332 = vunpack.c.h.b16 %v2784
    %v4333 = vunpack.c.l.b16 %v2785
    %v4334 = vunpack.c.h.b16 %v2785
    %v4335 = vunpack.c.l.b16 %v2786
    %v4336 = vunpack.c.l.b16 %v2787
    %v4337 = vunpack.c.h.b16 %v2787
    %v4338 = vunpack.c.l.b16 %v2788
    %v4339 = vunpack.c.h.b16 %v2788
    %v4340 = vunpack.c.l.b16 %v2789
    %v4341 = vunpack.c.h.b16 %v2789
    %v4342 = vunpack.c.l.b16 %v2790
    %v4343 = vunpack.c.l.b16 %v2791
    %v4344 = vunpack.c.h.b16 %v2791
    %v4345 = vunpack.c.l.b16 %v2792
    %v4346 = vunpack.c.h.b16 %v2792
    %v4347 = vunpack.c.l.b16 %v2793
    %v4348 = vunpack.c.h.b16 %v2793
    %v4349 = vunpack.c.l.b16 %v2794
    %v4350 = vunpack.c.l.b16 %v2795
    %v4351 = vunpack.c.h.b16 %v2795
    %v4352 = vunpack.c.l.b16 %v2796
    %v4353 = vunpack.c.h.b16 %v2796
    %v4354 = vunpack.c.l.b16 %v2797
    %v4355 = vunpack.c.h.b16 %v2797
    %v4356 = vunpack.c.l.b16 %v2798
    %v4357 = vunpack.c.l.b16 %v2799
    %v4358 = vunpack.c.h.b16 %v2799
    %v4359 = vunpack.c.l.b16 %v2800
    %v4360 = vunpack.c.h.b16 %v2800
    %v4361 = vunpack.c.l.b16 %v2801
    %v4362 = vunpack.c.h.b16 %v2801
    %v4363 = vunpack.c.l.b16 %v2802
    %v4364 = vunpack.c.l.b16 %v2803
    %v4365 = vunpack.c.h.b16 %v2803
    %v4366 = vunpack.c.l.b16 %v2804
    %v4367 = vunpack.c.h.b16 %v2804
    %v4368 = vunpack.c.l.b16 %v2805
    %v4369 = vunpack.c.h.b16 %v2805
    %v4370 = vunpack.c.l.b16 %v2806
    %v4371 = vunpack.c.l.b16 %v2807
    %v4372 = vunpack.c.h.b16 %v2807
    %v4373 = vunpack.c.l.b16 %v2808
    %v4374 = vunpack.c.h.b16 %v2808
    %v4375 = vunpack.c.l.b16 %v2809
    %v4376 = vunpack.c.h.b16 %v2809
    %v4377 = vunpack.c.l.b16 %v2810
    %v4378 = vunpack.c.l.b16 %v2811
    %v4379 = vunpack.c.h.b16 %v2811
    %v4380 = vunpack.c.l.b16 %v2812
    %v4381 = vunpack.c.h.b16 %v2812
    %v4382 = vunpack.c.l.b16 %v2813
    %v4383 = vunpack.c.h.b16 %v2813
    %v4384 = vunpack.c.l.b16 %v2814
    %v4385 = vunpack.c.l.b16 %v2815
    %v4386 = vunpack.c.h.b16 %v2815
    %v4387 = vunpack.c.l.b16 %v2816
    %v4388 = vunpack.c.h.b16 %v2816
    %v4389 = vunpack.c.l.b16 %v2817
    %v4390 = vunpack.c.h.b16 %v2817
    %v4391 = vunpack.c.l.b16 %v2818
    %v4392 = vunpack.c.l.b16 %v2819
    %v4393 = vunpack.c.h.b16 %v2819
    %v4394 = vunpack.c.l.b16 %v2820
    %v4395 = vunpack.c.h.b16 %v2820
    %v4396 = vunpack.c.l.b16 %v2821
    %v4397 = vunpack.c.h.b16 %v2821
    %v4398 = vunpack.c.l.b16 %v2822
    %v4399 = vunpack.c.l.b16 %v2823
    %v4400 = vunpack.c.h.b16 %v2823
    %v4401 = vunpack.c.l.b16 %v2824
    %v4402 = vunpack.c.h.b16 %v2824
    %v4403 = vunpack.c.l.b16 %v2825
    %v4404 = vunpack.c.h.b16 %v2825
    %v4405 = vunpack.c.l.b16 %v2826
    %v4406 = vunpack.c.l.b16 %v2827
    %v4407 = vunpack.c.h.b16 %v2827
    %v4408 = vunpack.c.l.b16 %v2828
    %v4409 = vunpack.c.h.b16 %v2828
    %v4410 = vunpack.c.l.b16 %v2829
    %v4411 = vunpack.c.h.b16 %v2829
    %v4412 = vunpack.c.l.b16 %v2830
    %v4413 = vunpack.c.l.b16 %v2831
    %v4414 = vunpack.c.h.b16 %v2831
    %v4415 = vunpack.c.l.b16 %v2832
    %v4416 = vunpack.c.h.b16 %v2832
    %v4417 = vunpack.c.l.b16 %v2833
    %v4418 = vunpack.c.h.b16 %v2833
    %v4419 = vunpack.c.l.b16 %v2834
    %v4420 = vunpack.c.l.b16 %v2835
    %v4421 = vunpack.c.h.b16 %v2835
    %v4422 = vunpack.c.l.b16 %v2836
    %v4423 = vunpack.c.h.b16 %v2836
    %v4424 = vunpack.c.l.b16 %v2837
    %v4425 = vunpack.c.h.b16 %v2837
    %v4426 = vunpack.c.l.b16 %v2838
    %v4427 = vunpack.c.l.b16 %v2839
    %v4428 = vunpack.c.h.b16 %v2839
    %v4429 = vunpack.c.l.b16 %v2840
    %v4430 = vunpack.c.h.b16 %v2840
    %v4431 = vunpack.c.l.b16 %v2841
    %v4432 = vunpack.c.h.b16 %v2841
    %v4433 = vunpack.c.l.b16 %v2842
    %v4434 = vunpack.c.l.b16 %v2843
    %v4435 = vunpack.c.h.b16 %v2843
    %v4436 = vunpack.c.l.b16 %v2844
    %v4437 = vunpack.c.h.b16 %v2844
    %v4438 = vunpack.c.l.b16 %v2845
    %v4439 = vunpack.c.h.b16 %v2845
    %v4440 = vunpack.c.l.b16 %v2846
    %v4441 = vunpack.c.l.b16 %v2847
    %v4442 = vunpack.c.h.b16 %v2847
    %v4443 = vunpack.c.l.b16 %v2848
    %v4444 = vunpack.c.h.b16 %v2848
    %v4445 = vunpack.c.l.b16 %v2849
    %v4446 = vunpack.c.h.b16 %v2849
    %v4447 = vunpack.c.l.b16 %v2850
    %v4448 = vunpack.c.l.b16 %v2851
    %v4449 = vunpack.c.h.b16 %v2851
    %v4450 = vunpack.c.l.b16 %v2852
    %v4451 = vunpack.c.h.b16 %v2852
    %v4452 = vunpack.c.l.b16 %v2853
    %v4453 = vunpack.c.h.b16 %v2853
    %v4454 = vunpack.c.l.b16 %v2854
    %v4455 = vunpack.c.l.b16 %v2855
    %v4456 = vunpack.c.h.b16 %v2855
    %v4457 = vunpack.c.l.b16 %v2856
    %v4458 = vunpack.c.h.b16 %v2856
    %v4459 = vunpack.c.l.b16 %v2857
    %v4460 = vunpack.c.h.b16 %v2857
    %v4461 = vunpack.c.l.b16 %v2858
    %v4462 = vunpack.c.l.b16 %v2859
    %v4463 = vunpack.c.h.b16 %v2859
    %v4464 = vunpack.c.l.b16 %v2860
    %v4465 = vunpack.c.h.b16 %v2860
    %v4466 = vunpack.c.l.b16 %v2861
    %v4467 = vunpack.c.h.b16 %v2861
    %v4468 = vunpack.c.l.b16 %v2862
    %v4469 = vunpack.c.l.b16 %v2863
    %v4470 = vunpack.c.h.b16 %v2863
    %v4471 = vunpack.c.l.b16 %v2864
    %v4472 = vunpack.c.h.b16 %v2864
    %v4473 = vunpack.c.l.b16 %v2865
    %v4474 = vunpack.c.h.b16 %v2865
    %v4475 = vunpack.c.l.b16 %v2866
    %v4476 = vunpack.c.l.b16 %v2867
    %v4477 = vunpack.c.h.b16 %v2867
    %v4478 = vunpack.c.l.b16 %v2868
    %v4479 = vunpack.c.h.b16 %v2868
    %v4480 = vunpack.c.l.b16 %v2869
    %v4481 = vunpack.c.h.b16 %v2869
    %v4482 = vunpack.c.l.b16 %v2870
    %v4483 = vunpack.c.l.b16 %v2871
    %v4484 = vunpack.c.h.b16 %v2871
    %v4485 = vunpack.c.l.b16 %v2872
    %v4486 = vunpack.c.h.b16 %v2872
    %v4487 = vunpack.c.l.b16 %v2873
    %v4488 = vunpack.c.h.b16 %v2873
    %v4489 = vunpack.c.l.b16 %v2874
    %v4490 = vunpack.c.l.b16 %v2875
    %v4491 = vunpack.c.h.b16 %v2875
    %v4492 = vunpack.c.l.b16 %v2876
    %v4493 = vunpack.c.h.b16 %v2876
    %v4494 = vunpack.c.l.b16 %v2877
    %v4495 = vunpack.c.h.b16 %v2877
    %v4496 = vunpack.c.l.b16 %v2878
    %v4497 = vunpack.c.l.b16 %v2879
    %v4498 = vunpack.c.h.b16 %v2879
    %v4499 = vunpack.c.l.b16 %v2880
    %v4500 = vunpack.c.h.b16 %v2880
    %v4501 = vunpack.c.l.b16 %v2881
    %v4502 = vunpack.c.h.b16 %v2881
    %v4503 = vunpack.c.l.b16 %v2882
    %v4504 = vpack.c.b16 %v3503, %v3496
    %v4505 = vpack.c.b16 %v3504, %v3497
    %v4506 = vpack.c.b16 %v3505, %v3498
    %v4507 = vpack.c.b16 %v3506, %v3499
    %v4508 = vpack.c.b16 %v3507, %v3500
    %v4509 = vpack.c.b16 %v3508, %v3501
    %v4510 = vpack.c.b16 %v3509, %v3502
    %v4511 = vpack.c.b16 %v3517, %v3510
    %v4512 = vpack.c.b16 %v3518, %v3511
    %v4513 = vpack.c.b16 %v3519, %v3512
    %v4514 = vpack.c.b16 %v3520, %v3513
    %v4515 = vpack.c.b16 %v3521, %v3514
    %v4516 = vpack.c.b16 %v3522, %v3515
    %v4517 = vpack.c.b16 %v3523, %v3516
    %v4518 = vpack.c.b16 %v3531, %v3524
    %v4519 = vpack.c.b16 %v3532, %v3525
    %v4520 = vpack.c.b16 %v3533, %v3526
    %v4521 = vpack.c.b16 %v3534, %v3527
    %v4522 = vpack.c.b16 %v3535, %v3528
    %v4523 = vpack.c.b16 %v3536, %v3529
    %v4524 = vpack.c.b16 %v3537, %v3530
    %v4525 = vpack.c.b16 %v3545, %v3538
    %v4526 = vpack.c.b16 %v3546, %v3539
    %v4527 = vpack.c.b16 %v3547, %v3540
    %v4528 = vpack.c.b16 %v3548, %v3541
    %v4529 = vpack.c.b16 %v3549, %v3542
    %v4530 = vpack.c.b16 %v3550, %v3543
    %v4531 = vpack.c.b16 %v3551, %v3544
    %v4532 = vpack.c.b16 %v3559, %v3552
    %v4533 = vpack.c.b16 %v3560, %v3553
    %v4534 = vpack.c.b16 %v3561, %v3554
    %v4535 = vpack.c.b16 %v3562, %v3555
    %v4536 = vpack.c.b16 %v3563, %v3556
    %v4537 = vpack.c.b16 %v3564, %v3557
    %v4538 = vpack.c.b16 %v3565, %v3558
    %v4539 = vpack.c.b16 %v3573, %v3566
    %v4540 = vpack.c.b16 %v3574, %v3567
    %v4541 = vpack.c.b16 %v3575, %v3568
    %v4542 = vpack.c.b16 %v3576, %v3569
    %v4543 = vpack.c.b16 %v3577, %v3570
    %v4544 = vpack.c.b16 %v3578, %v3571
    %v4545 = vpack.c.b16 %v3579, %v3572
    %v4546 = vpack.c.b16 %v3587, %v3580
    %v4547 = vpack.c.b16 %v3588, %v3581
    %v4548 = vpack.c.b16 %v3589, %v3582
    %v4549 = vpack.c.b16 %v3590, %v3583
    %v4550 = vpack.c.b16 %v3591, %v3584
    %v4551 = vpack.c.b16 %v3592, %v3585
    %v4552 = vpack.c.b16 %v3593, %v3586
    %v4553 = vpack.c.b16 %v3601, %v3594
    %v4554 = vpack.c.b16 %v3602, %v3595
    %v4555 = vpack.c.b16 %v3603, %v3596
    %v4556 = vpack.c.b16 %v3604, %v3597
    %v4557 = vpack.c.b16 %v3605, %v3598
    %v4558 = vpack.c.b16 %v3606, %v3599
    %v4559 = vpack.c.b16 %v3607, %v3600
    %v4560 = vpack.c.b16 %v3615, %v3608
    %v4561 = vpack.c.b16 %v3616, %v3609
    %v4562 = vpack.c.b16 %v3617, %v3610
    %v4563 = vpack.c.b16 %v3618, %v3611
    %v4564 = vpack.c.b16 %v3619, %v3612
    %v4565 = vpack.c.b16 %v3620, %v3613
    %v4566 = vpack.c.b16 %v3621, %v3614
    %v4567 = vpack.c.b16 %v3629, %v3622
    %v4568 = vpack.c.b16 %v3630, %v3623
    %v4569 = vpack.c.b16 %v3631, %v3624
    %v4570 = vpack.c.b16 %v3632, %v3625
    %v4571 = vpack.c.b16 %v3633, %v3626
    %v4572 = vpack.c.b16 %v3634, %v3627
    %v4573 = vpack.c.b16 %v3635, %v3628
    %v4574 = vpack.c.b16 %v3643, %v3636
    %v4575 = vpack.c.b16 %v3644, %v3637
    %v4576 = vpack.c.b16 %v3645, %v3638
    %v4577 = vpack.c.b16 %v3646, %v3639
    %v4578 = vpack.c.b16 %v3647, %v3640
    %v4579 = vpack.c.b16 %v3648, %v3641
    %v4580 = vpack.c.b16 %v3649, %v3642
    %v4581 = vpack.c.b16 %v3657, %v3650
    %v4582 = vpack.c.b16 %v3658, %v3651
    %v4583 = vpack.c.b16 %v3659, %v3652
    %v4584 = vpack.c.b16 %v3660, %v3653
    %v4585 = vpack.c.b16 %v3661, %v3654
    %v4586 = vpack.c.b16 %v3662, %v3655
    %v4587 = vpack.c.b16 %v3663, %v3656
    %v4588 = vpack.c.b16 %v3671, %v3664
    %v4589 = vpack.c.b16 %v3672, %v3665
    %v4590 = vpack.c.b16 %v3673, %v3666
    %v4591 = vpack.c.b16 %v3674, %v3667
    %v4592 = vpack.c.b16 %v3675, %v3668
    %v4593 = vpack.c.b16 %v3676, %v3669
    %v4594 = vpack.c.b16 %v3677, %v3670
    %v4595 = vpack.c.b16 %v3685, %v3678
    %v4596 = vpack.c.b16 %v3686, %v3679
    %v4597 = vpack.c.b16 %v3687, %v3680
    %v4598 = vpack.c.b16 %v3688, %v3681
    %v4599 = vpack.c.b16 %v3689, %v3682
    %v4600 = vpack.c.b16 %v3690, %v3683
    %v4601 = vpack.c.b16 %v3691, %v3684
    %v4602 = vpack.c.b16 %v3699, %v3692
    %v4603 = vpack.c.b16 %v3700, %v3693
    %v4604 = vpack.c.b16 %v3701, %v3694
    %v4605 = vpack.c.b16 %v3702, %v3695
    %v4606 = vpack.c.b16 %v3703, %v3696
    %v4607 = vpack.c.b16 %v3704, %v3697
    %v4608 = vpack.c.b16 %v3705, %v3698
    %v4609 = vpack.c.b16 %v3713, %v3706
    %v4610 = vpack.c.b16 %v3714, %v3707
    %v4611 = vpack.c.b16 %v3715, %v3708
    %v4612 = vpack.c.b16 %v3716, %v3709
    %v4613 = vpack.c.b16 %v3717, %v3710
    %v4614 = vpack.c.b16 %v3718, %v3711
    %v4615 = vpack.c.b16 %v3719, %v3712
    %v4616 = vpack.c.b16 %v3727, %v3720
    %v4617 = vpack.c.b16 %v3728, %v3721
    %v4618 = vpack.c.b16 %v3729, %v3722
    %v4619 = vpack.c.b16 %v3730, %v3723
    %v4620 = vpack.c.b16 %v3731, %v3724
    %v4621 = vpack.c.b16 %v3732, %v3725
    %v4622 = vpack.c.b16 %v3733, %v3726
    %v4623 = vpack.c.b16 %v3741, %v3734
    %v4624 = vpack.c.b16 %v3742, %v3735
    %v4625 = vpack.c.b16 %v3743, %v3736
    %v4626 = vpack.c.b16 %v3744, %v3737
    %v4627 = vpack.c.b16 %v3745, %v3738
    %v4628 = vpack.c.b16 %v3746, %v3739
    %v4629 = vpack.c.b16 %v3747, %v3740
    %v4630 = vpack.c.b16 %v3755, %v3748
    %v4631 = vpack.c.b16 %v3756, %v3749
    %v4632 = vpack.c.b16 %v3757, %v3750
    %v4633 = vpack.c.b16 %v3758, %v3751
    %v4634 = vpack.c.b16 %v3759, %v3752
    %v4635 = vpack.c.b16 %v3760, %v3753
    %v4636 = vpack.c.b16 %v3761, %v3754
    %v4637 = vpack.c.b16 %v3769, %v3762
    %v4638 = vpack.c.b16 %v3770, %v3763
    %v4639 = vpack.c.b16 %v3771, %v3764
    %v4640 = vpack.c.b16 %v3772, %v3765
    %v4641 = vpack.c.b16 %v3773, %v3766
    %v4642 = vpack.c.b16 %v3774, %v3767
    %v4643 = vpack.c.b16 %v3775, %v3768
    %v4644 = vpack.c.b16 %v3783, %v3776
    %v4645 = vpack.c.b16 %v3784, %v3777
    %v4646 = vpack.c.b16 %v3785, %v3778
    %v4647 = vpack.c.b16 %v3786, %v3779
    %v4648 = vpack.c.b16 %v3787, %v3780
    %v4649 = vpack.c.b16 %v3788, %v3781
    %v4650 = vpack.c.b16 %v3789, %v3782
    %v4651 = vpack.c.b16 %v3797, %v3790
    %v4652 = vpack.c.b16 %v3798, %v3791
    %v4653 = vpack.c.b16 %v3799, %v3792
    %v4654 = vpack.c.b16 %v3800, %v3793
    %v4655 = vpack.c.b16 %v3801, %v3794
    %v4656 = vpack.c.b16 %v3802, %v3795
    %v4657 = vpack.c.b16 %v3803, %v3796
    %v4658 = vpack.c.b16 %v3811, %v3804
    %v4659 = vpack.c.b16 %v3812, %v3805
    %v4660 = vpack.c.b16 %v3813, %v3806
    %v4661 = vpack.c.b16 %v3814, %v3807
    %v4662 = vpack.c.b16 %v3815, %v3808
    %v4663 = vpack.c.b16 %v3816, %v3809
    %v4664 = vpack.c.b16 %v3817, %v3810
    %v4665 = vpack.c.b16 %v3825, %v3818
    %v4666 = vpack.c.b16 %v3826, %v3819
    %v4667 = vpack.c.b16 %v3827, %v3820
    %v4668 = vpack.c.b16 %v3828, %v3821
    %v4669 = vpack.c.b16 %v3829, %v3822
    %v4670 = vpack.c.b16 %v3830, %v3823
    %v4671 = vpack.c.b16 %v3831, %v3824
    %v4672 = vpack.c.b16 %v3839, %v3832
    %v4673 = vpack.c.b16 %v3840, %v3833
    %v4674 = vpack.c.b16 %v3841, %v3834
    %v4675 = vpack.c.b16 %v3842, %v3835
    %v4676 = vpack.c.b16 %v3843, %v3836
    %v4677 = vpack.c.b16 %v3844, %v3837
    %v4678 = vpack.c.b16 %v3845, %v3838
    %v4679 = vpack.c.b16 %v3853, %v3846
    %v4680 = vpack.c.b16 %v3854, %v3847
    %v4681 = vpack.c.b16 %v3855, %v3848
    %v4682 = vpack.c.b16 %v3856, %v3849
    %v4683 = vpack.c.b16 %v3857, %v3850
    %v4684 = vpack.c.b16 %v3858, %v3851
    %v4685 = vpack.c.b16 %v3859, %v3852
    %v4686 = vpack.c.b16 %v3867, %v3860
    %v4687 = vpack.c.b16 %v3868, %v3861
    %v4688 = vpack.c.b16 %v3869, %v3862
    %v4689 = vpack.c.b16 %v3870, %v3863
    %v4690 = vpack.c.b16 %v3871, %v3864
    %v4691 = vpack.c.b16 %v3872, %v3865
    %v4692 = vpack.c.b16 %v3873, %v3866
    %v4693 = vpack.c.b16 %v3881, %v3874
    %v4694 = vpack.c.b16 %v3882, %v3875
    %v4695 = vpack.c.b16 %v3883, %v3876
    %v4696 = vpack.c.b16 %v3884, %v3877
    %v4697 = vpack.c.b16 %v3885, %v3878
    %v4698 = vpack.c.b16 %v3886, %v3879
    %v4699 = vpack.c.b16 %v3887, %v3880
    %v4700 = vpack.c.b16 %v3895, %v3888
    %v4701 = vpack.c.b16 %v3896, %v3889
    %v4702 = vpack.c.b16 %v3897, %v3890
    %v4703 = vpack.c.b16 %v3898, %v3891
    %v4704 = vpack.c.b16 %v3899, %v3892
    %v4705 = vpack.c.b16 %v3900, %v3893
    %v4706 = vpack.c.b16 %v3901, %v3894
    %v4707 = vpack.c.b16 %v3909, %v3902
    %v4708 = vpack.c.b16 %v3910, %v3903
    %v4709 = vpack.c.b16 %v3911, %v3904
    %v4710 = vpack.c.b16 %v3912, %v3905
    %v4711 = vpack.c.b16 %v3913, %v3906
    %v4712 = vpack.c.b16 %v3914, %v3907
    %v4713 = vpack.c.b16 %v3915, %v3908
    %v4714 = vpack.c.b16 %v3923, %v3916
    %v4715 = vpack.c.b16 %v3924, %v3917
    %v4716 = vpack.c.b16 %v3925, %v3918
    %v4717 = vpack.c.b16 %v3926, %v3919
    %v4718 = vpack.c.b16 %v3927, %v3920
    %v4719 = vpack.c.b16 %v3928, %v3921
    %v4720 = vpack.c.b16 %v3929, %v3922
    %v4721 = vpack.c.b16 %v3937, %v3930
    %v4722 = vpack.c.b16 %v3938, %v3931
    %v4723 = vpack.c.b16 %v3939, %v3932
    %v4724 = vpack.c.b16 %v3940, %v3933
    %v4725 = vpack.c.b16 %v3941, %v3934
    %v4726 = vpack.c.b16 %v3942, %v3935
    %v4727 = vpack.c.b16 %v3943, %v3936
    %v4728 = vpack.c.b16 %v3951, %v3944
    %v4729 = vpack.c.b16 %v3952, %v3945
    %v4730 = vpack.c.b16 %v3953, %v3946
    %v4731 = vpack.c.b16 %v3954, %v3947
    %v4732 = vpack.c.b16 %v3955, %v3948
    %v4733 = vpack.c.b16 %v3956, %v3949
    %v4734 = vpack.c.b16 %v3957, %v3950
    %v4735 = vpack.c.b16 %v3965, %v3958
    %v4736 = vpack.c.b16 %v3966, %v3959
    %v4737 = vpack.c.b16 %v3967, %v3960
    %v4738 = vpack.c.b16 %v3968, %v3961
    %v4739 = vpack.c.b16 %v3969, %v3962
    %v4740 = vpack.c.b16 %v3970, %v3963
    %v4741 = vpack.c.b16 %v3971, %v3964
    %v4742 = vpack.c.b16 %v3979, %v3972
    %v4743 = vpack.c.b16 %v3980, %v3973
    %v4744 = vpack.c.b16 %v3981, %v3974
    %v4745 = vpack.c.b16 %v3982, %v3975
    %v4746 = vpack.c.b16 %v3983, %v3976
    %v4747 = vpack.c.b16 %v3984, %v3977
    %v4748 = vpack.c.b16 %v3985, %v3978
    %v4749 = vpack.c.b16 %v3993, %v3986
    %v4750 = vpack.c.b16 %v3994, %v3987
    %v4751 = vpack.c.b16 %v3995, %v3988
    %v4752 = vpack.c.b16 %v3996, %v3989
    %v4753 = vpack.c.b16 %v3997, %v3990
    %v4754 = vpack.c.b16 %v3998, %v3991
    %v4755 = vpack.c.b16 %v3999, %v3992
    %v4756 = vpack.c.b16 %v4007, %v4000
    %v4757 = vpack.c.b16 %v4008, %v4001
    %v4758 = vpack.c.b16 %v4009, %v4002
    %v4759 = vpack.c.b16 %v4010, %v4003
    %v4760 = vpack.c.b16 %v4011, %v4004
    %v4761 = vpack.c.b16 %v4012, %v4005
    %v4762 = vpack.c.b16 %v4013, %v4006
    %v4763 = vpack.c.b16 %v4021, %v4014
    %v4764 = vpack.c.b16 %v4022, %v4015
    %v4765 = vpack.c.b16 %v4023, %v4016
    %v4766 = vpack.c.b16 %v4024, %v4017
    %v4767 = vpack.c.b16 %v4025, %v4018
    %v4768 = vpack.c.b16 %v4026, %v4019
    %v4769 = vpack.c.b16 %v4027, %v4020
    %v4770 = vpack.c.b16 %v4035, %v4028
    %v4771 = vpack.c.b16 %v4036, %v4029
    %v4772 = vpack.c.b16 %v4037, %v4030
    %v4773 = vpack.c.b16 %v4038, %v4031
    %v4774 = vpack.c.b16 %v4039, %v4032
    %v4775 = vpack.c.b16 %v4040, %v4033
    %v4776 = vpack.c.b16 %v4041, %v4034
    %v4777 = vpack.c.b16 %v4049, %v4042
    %v4778 = vpack.c.b16 %v4050, %v4043
    %v4779 = vpack.c.b16 %v4051, %v4044
    %v4780 = vpack.c.b16 %v4052, %v4045
    %v4781 = vpack.c.b16 %v4053, %v4046
    %v4782 = vpack.c.b16 %v4054, %v4047
    %v4783 = vpack.c.b16 %v4055, %v4048
    %v4784 = vpack.c.b16 %v4063, %v4056
    %v4785 = vpack.c.b16 %v4064, %v4057
    %v4786 = vpack.c.b16 %v4065, %v4058
    %v4787 = vpack.c.b16 %v4066, %v4059
    %v4788 = vpack.c.b16 %v4067, %v4060
    %v4789 = vpack.c.b16 %v4068, %v4061
    %v4790 = vpack.c.b16 %v4069, %v4062
    %v4791 = vpack.c.b16 %v4077, %v4070
    %v4792 = vpack.c.b16 %v4078, %v4071
    %v4793 = vpack.c.b16 %v4079, %v4072
    %v4794 = vpack.c.b16 %v4080, %v4073
    %v4795 = vpack.c.b16 %v4081, %v4074
    %v4796 = vpack.c.b16 %v4082, %v4075
    %v4797 = vpack.c.b16 %v4083, %v4076
    %v4798 = vpack.c.b16 %v4091, %v4084
    %v4799 = vpack.c.b16 %v4092, %v4085
    %v4800 = vpack.c.b16 %v4093, %v4086
    %v4801 = vpack.c.b16 %v4094, %v4087
    %v4802 = vpack.c.b16 %v4095, %v4088
    %v4803 = vpack.c.b16 %v4096, %v4089
    %v4804 = vpack.c.b16 %v4097, %v4090
    %v4805 = vpack.c.b16 %v4105, %v4098
    %v4806 = vpack.c.b16 %v4106, %v4099
    %v4807 = vpack.c.b16 %v4107, %v4100
    %v4808 = vpack.c.b16 %v4108, %v4101
    %v4809 = vpack.c.b16 %v4109, %v4102
    %v4810 = vpack.c.b16 %v4110, %v4103
    %v4811 = vpack.c.b16 %v4111, %v4104
    %v4812 = vpack.c.b16 %v4119, %v4112
    %v4813 = vpack.c.b16 %v4120, %v4113
    %v4814 = vpack.c.b16 %v4121, %v4114
    %v4815 = vpack.c.b16 %v4122, %v4115
    %v4816 = vpack.c.b16 %v4123, %v4116
    %v4817 = vpack.c.b16 %v4124, %v4117
    %v4818 = vpack.c.b16 %v4125, %v4118
    %v4819 = vpack.c.b16 %v4133, %v4126
    %v4820 = vpack.c.b16 %v4134, %v4127
    %v4821 = vpack.c.b16 %v4135, %v4128
    %v4822 = vpack.c.b16 %v4136, %v4129
    %v4823 = vpack.c.b16 %v4137, %v4130
    %v4824 = vpack.c.b16 %v4138, %v4131
    %v4825 = vpack.c.b16 %v4139, %v4132
    %v4826 = vpack.c.b16 %v4147, %v4140
    %v4827 = vpack.c.b16 %v4148, %v4141
    %v4828 = vpack.c.b16 %v4149, %v4142
    %v4829 = vpack.c.b16 %v4150, %v4143
    %v4830 = vpack.c.b16 %v4151, %v4144
    %v4831 = vpack.c.b16 %v4152, %v4145
    %v4832 = vpack.c.b16 %v4153, %v4146
    %v4833 = vpack.c.b16 %v4161, %v4154
    %v4834 = vpack.c.b16 %v4162, %v4155
    %v4835 = vpack.c.b16 %v4163, %v4156
    %v4836 = vpack.c.b16 %v4164, %v4157
    %v4837 = vpack.c.b16 %v4165, %v4158
    %v4838 = vpack.c.b16 %v4166, %v4159
    %v4839 = vpack.c.b16 %v4167, %v4160
    %v4840 = vpack.c.b16 %v4175, %v4168
    %v4841 = vpack.c.b16 %v4176, %v4169
    %v4842 = vpack.c.b16 %v4177, %v4170
    %v4843 = vpack.c.b16 %v4178, %v4171
    %v4844 = vpack.c.b16 %v4179, %v4172
    %v4845 = vpack.c.b16 %v4180, %v4173
    %v4846 = vpack.c.b16 %v4181, %v4174
    %v4847 = vpack.c.b16 %v4189, %v4182
    %v4848 = vpack.c.b16 %v4190, %v4183
    %v4849 = vpack.c.b16 %v4191, %v4184
    %v4850 = vpack.c.b16 %v4192, %v4185
    %v4851 = vpack.c.b16 %v4193, %v4186
    %v4852 = vpack.c.b16 %v4194, %v4187
    %v4853 = vpack.c.b16 %v4195, %v4188
    %v4854 = vpack.c.b16 %v4203, %v4196
    %v4855 = vpack.c.b16 %v4204, %v4197
    %v4856 = vpack.c.b16 %v4205, %v4198
    %v4857 = vpack.c.b16 %v4206, %v4199
    %v4858 = vpack.c.b16 %v4207, %v4200
    %v4859 = vpack.c.b16 %v4208, %v4201
    %v4860 = vpack.c.b16 %v4209, %v4202
    %v4861 = vpack.c.b16 %v4217, %v4210
    %v4862 = vpack.c.b16 %v4218, %v4211
    %v4863 = vpack.c.b16 %v4219, %v4212
    %v4864 = vpack.c.b16 %v4220, %v4213
    %v4865 = vpack.c.b16 %v4221, %v4214
    %v4866 = vpack.c.b16 %v4222, %v4215
    %v4867 = vpack.c.b16 %v4223, %v4216
    %v4868 = vpack.c.b16 %v4231, %v4224
    %v4869 = vpack.c.b16 %v4232, %v4225
    %v4870 = vpack.c.b16 %v4233, %v4226
    %v4871 = vpack.c.b16 %v4234, %v4227
    %v4872 = vpack.c.b16 %v4235, %v4228
    %v4873 = vpack.c.b16 %v4236, %v4229
    %v4874 = vpack.c.b16 %v4237, %v4230
    %v4875 = vpack.c.b16 %v4245, %v4238
    %v4876 = vpack.c.b16 %v4246, %v4239
    %v4877 = vpack.c.b16 %v4247, %v4240
    %v4878 = vpack.c.b16 %v4248, %v4241
    %v4879 = vpack.c.b16 %v4249, %v4242
    %v4880 = vpack.c.b16 %v4250, %v4243
    %v4881 = vpack.c.b16 %v4251, %v4244
    %v4882 = vpack.c.b16 %v4259, %v4252
    %v4883 = vpack.c.b16 %v4260, %v4253
    %v4884 = vpack.c.b16 %v4261, %v4254
    %v4885 = vpack.c.b16 %v4262, %v4255
    %v4886 = vpack.c.b16 %v4263, %v4256
    %v4887 = vpack.c.b16 %v4264, %v4257
    %v4888 = vpack.c.b16 %v4265, %v4258
    %v4889 = vpack.c.b16 %v4273, %v4266
    %v4890 = vpack.c.b16 %v4274, %v4267
    %v4891 = vpack.c.b16 %v4275, %v4268
    %v4892 = vpack.c.b16 %v4276, %v4269
    %v4893 = vpack.c.b16 %v4277, %v4270
    %v4894 = vpack.c.b16 %v4278, %v4271
    %v4895 = vpack.c.b16 %v4279, %v4272
    %v4896 = vpack.c.b16 %v4287, %v4280
    %v4897 = vpack.c.b16 %v4288, %v4281
    %v4898 = vpack.c.b16 %v4289, %v4282
    %v4899 = vpack.c.b16 %v4290, %v4283
    %v4900 = vpack.c.b16 %v4291, %v4284
    %v4901 = vpack.c.b16 %v4292, %v4285
    %v4902 = vpack.c.b16 %v4293, %v4286
    %v4903 = vpack.c.b16 %v4301, %v4294
    %v4904 = vpack.c.b16 %v4302, %v4295
    %v4905 = vpack.c.b16 %v4303, %v4296
    %v4906 = vpack.c.b16 %v4304, %v4297
    %v4907 = vpack.c.b16 %v4305, %v4298
    %v4908 = vpack.c.b16 %v4306, %v4299
    %v4909 = vpack.c.b16 %v4307, %v4300
    %v4910 = vpack.c.b16 %v4315, %v4308
    %v4911 = vpack.c.b16 %v4316, %v4309
    %v4912 = vpack.c.b16 %v4317, %v4310
    %v4913 = vpack.c.b16 %v4318, %v4311
    %v4914 = vpack.c.b16 %v4319, %v4312
    %v4915 = vpack.c.b16 %v4320, %v4313
    %v4916 = vpack.c.b16 %v4321, %v4314
    %v4917 = vpack.c.b16 %v4329, %v4322
    %v4918 = vpack.c.b16 %v4330, %v4323
    %v4919 = vpack.c.b16 %v4331, %v4324
    %v4920 = vpack.c.b16 %v4332, %v4325
    %v4921 = vpack.c.b16 %v4333, %v4326
    %v4922 = vpack.c.b16 %v4334, %v4327
    %v4923 = vpack.c.b16 %v4335, %v4328
    %v4924 = vpack.c.b16 %v4343, %v4336
    %v4925 = vpack.c.b16 %v4344, %v4337
    %v4926 = vpack.c.b16 %v4345, %v4338
    %v4927 = vpack.c.b16 %v4346, %v4339
    %v4928 = vpack.c.b16 %v4347, %v4340
    %v4929 = vpack.c.b16 %v4348, %v4341
    %v4930 = vpack.c.b16 %v4349, %v4342
    %v4931 = vpack.c.b16 %v4357, %v4350
    %v4932 = vpack.c.b16 %v4358, %v4351
    %v4933 = vpack.c.b16 %v4359, %v4352
    %v4934 = vpack.c.b16 %v4360, %v4353
    %v4935 = vpack.c.b16 %v4361, %v4354
    %v4936 = vpack.c.b16 %v4362, %v4355
    %v4937 = vpack.c.b16 %v4363, %v4356
    %v4938 = vpack.c.b16 %v4371, %v4364
    %v4939 = vpack.c.b16 %v4372, %v4365
    %v4940 = vpack.c.b16 %v4373, %v4366
    %v4941 = vpack.c.b16 %v4374, %v4367
    %v4942 = vpack.c.b16 %v4375, %v4368
    %v4943 = vpack.c.b16 %v4376, %v4369
    %v4944 = vpack.c.b16 %v4377, %v4370
    %v4945 = vpack.c.b16 %v4385, %v4378
    %v4946 = vpack.c.b16 %v4386, %v4379
    %v4947 = vpack.c.b16 %v4387, %v4380
    %v4948 = vpack.c.b16 %v4388, %v4381
    %v4949 = vpack.c.b16 %v4389, %v4382
    %v4950 = vpack.c.b16 %v4390, %v4383
    %v4951 = vpack.c.b16 %v4391, %v4384
    %v4952 = vpack.c.b16 %v4399, %v4392
    %v4953 = vpack.c.b16 %v4400, %v4393
    %v4954 = vpack.c.b16 %v4401, %v4394
    %v4955 = vpack.c.b16 %v4402, %v4395
    %v4956 = vpack.c.b16 %v4403, %v4396
    %v4957 = vpack.c.b16 %v4404, %v4397
    %v4958 = vpack.c.b16 %v4405, %v4398
    %v4959 = vpack.c.b16 %v4413, %v4406
    %v4960 = vpack.c.b16 %v4414, %v4407
    %v4961 = vpack.c.b16 %v4415, %v4408
    %v4962 = vpack.c.b16 %v4416, %v4409
    %v4963 = vpack.c.b16 %v4417, %v4410
    %v4964 = vpack.c.b16 %v4418, %v4411
    %v4965 = vpack.c.b16 %v4419, %v4412
    %v4966 = vpack.c.b16 %v4427, %v4420
    %v4967 = vpack.c.b16 %v4428, %v4421
    %v4968 = vpack.c.b16 %v4429, %v4422
    %v4969 = vpack.c.b16 %v4430, %v4423
    %v4970 = vpack.c.b16 %v4431, %v4424
    %v4971 = vpack.c.b16 %v4432, %v4425
    %v4972 = vpack.c.b16 %v4433, %v4426
    %v4973 = vpack.c.b16 %v4441, %v4434
    %v4974 = vpack.c.b16 %v4442, %v4435
    %v4975 = vpack.c.b16 %v4443, %v4436
    %v4976 = vpack.c.b16 %v4444, %v4437
    %v4977 = vpack.c.b16 %v4445, %v4438
    %v4978 = vpack.c.b16 %v4446, %v4439
    %v4979 = vpack.c.b16 %v4447, %v4440
    %v4980 = vpack.c.b16 %v4455, %v4448
    %v4981 = vpack.c.b16 %v4456, %v4449
    %v4982 = vpack.c.b16 %v4457, %v4450
    %v4983 = vpack.c.b16 %v4458, %v4451
    %v4984 = vpack.c.b16 %v4459, %v4452
    %v4985 = vpack.c.b16 %v4460, %v4453
    %v4986 = vpack.c.b16 %v4461, %v4454
    %v4987 = vpack.c.b16 %v4469, %v4462
    %v4988 = vpack.c.b16 %v4470, %v4463
    %v4989 = vpack.c.b16 %v4471, %v4464
    %v4990 = vpack.c.b16 %v4472, %v4465
    %v4991 = vpack.c.b16 %v4473, %v4466
    %v4992 = vpack.c.b16 %v4474, %v4467
    %v4993 = vpack.c.b16 %v4475, %v4468
    %v4994 = vpack.c.b16 %v4483, %v4476
    %v4995 = vpack.c.b16 %v4484, %v4477
    %v4996 = vpack.c.b16 %v4485, %v4478
    %v4997 = vpack.c.b16 %v4486, %v4479
    %v4998 = vpack.c.b16 %v4487, %v4480
    %v4999 = vpack.c.b16 %v4488, %v4481
    %v5000 = vpack.c.b16 %v4489, %v4482
    %v5001 = vpack.c.b16 %v4497, %v4490
    %v5002 = vpack.c.b16 %v4498, %v4491
    %v5003 = vpack.c.b16 %v4499, %v4492
    %v5004 = vpack.c.b16 %v4500, %v4493
    %v5005 = vpack.c.b16 %v4501, %v4494
    %v5006 = vpack.c.b16 %v4502, %v4495
    %v5007 = vpack.c.b16 %v4503, %v4496
    %5512 = vmatprep.subr.bf16.mxu0 %v4505
    %5513 = vmatpush1.bf16.msra.mxu0 %v4504
    %5514 = vmatprep.subr.bf16.mxu0 %v4512
    %5515 = vmatpush1.bf16.msra.mxu0 %v4511
    %5516 = vmatprep.subr.bf16.mxu0 %v4519
    %5517 = vmatpush1.bf16.msra.mxu0 %v4518
    %5518 = vmatprep.subr.bf16.mxu0 %v4526
    %5519 = vmatpush1.bf16.msra.mxu0 %v4525
    %5520 = vmatprep.subr.bf16.mxu0 %v4533
    %5521 = vmatpush1.bf16.msra.mxu0 %v4532
    %5522 = vmatprep.subr.bf16.mxu0 %v4540
    %5523 = vmatpush1.bf16.msra.mxu0 %v4539
    %5524 = vmatprep.subr.bf16.mxu0 %v4547
    %5525 = vmatpush1.bf16.msra.mxu0 %v4546
    %5526 = vmatprep.subr.bf16.mxu0 %v4554
    %5527 = vmatpush1.bf16.msra.mxu0 %v4553
    %5528 = vmatprep.subr.bf16.mxu0 %v4561
    %5529 = vmatpush1.bf16.msra.mxu0 %v4560
    %5530 = vmatprep.subr.bf16.mxu0 %v4568
    %5531 = vmatpush1.bf16.msra.mxu0 %v4567
    %5532 = vmatprep.subr.bf16.mxu0 %v4575
    %5533 = vmatpush1.bf16.msra.mxu0 %v4574
    %5534 = vmatprep.subr.bf16.mxu0 %v4582
    %5535 = vmatpush1.bf16.msra.mxu0 %v4581
    %5536 = vmatprep.subr.bf16.mxu0 %v4589
    %5537 = vmatpush1.bf16.msra.mxu0 %v4588
    %5538 = vmatprep.subr.bf16.mxu0 %v4596
    %5539 = vmatpush1.bf16.msra.mxu0 %v4595
    %5540 = vmatprep.subr.bf16.mxu0 %v4603
    %5541 = vmatpush1.bf16.msra.mxu0 %v4602
    %5542 = vmatprep.subr.bf16.mxu0 %v4610
    %5543 = vmatpush1.bf16.msra.mxu0 %v4609
    %5544 = vmatprep.mubr.bf16.mxu0 %v2236
    %5545 = vmatmul.mubr.bf16.gmra.mrb[0].mxu0 %v2235
    %v5546 = vpop.f32.mrb[0].mxu0
    %v5547 = vadd.f32 %v2888, %v5546
    %v5548 = vpop.f32.mrb[0].mxu0
    %v5549 = vadd.f32 %v2892, %v5548
    %v5550 = vpop.f32.mrb[0].mxu0
    %v5551 = vadd.f32 %v2888, %v5550
    %v5552 = vpop.f32.mrb[0].mxu0
    %v5553 = vadd.f32 %v2892, %v5552
    %5554 = vmatprep.mubr.bf16.mxu0 %v2245
    %5555 = vmatmul.mubr.bf16.gmra.mrb[0].mxu0 %v2244
    %v5556 = vpop.f32.mrb[0].mxu0
    %v5557 = vadd.f32 %v2888, %v5556
    %v5558 = vpop.f32.mrb[0].mxu0
    %v5559 = vadd.f32 %v2892, %v5558
    %v5560 = vpop.f32.mrb[0].mxu0
    %v5561 = vadd.f32 %v2888, %v5560
    %v5562 = vpop.f32.mrb[0].mxu0
    %v5563 = vadd.f32 %v2892, %v5562
    %5564 = vmatprep.mubr.bf16.mxu0 %v2254
    %5565 = vmatmul.mubr.bf16.gmra.mrb[0].mxu0 %v2253
    %v5566 = vpop.f32.mrb[0].mxu0
    %v5567 = vadd.f32 %v2888, %v5566
    %v5568 = vpop.f32.mrb[0].mxu0
    %v5569 = vadd.f32 %v2892, %v5568
    %v5570 = vpop.f32.mrb[0].mxu0
    %v5571 = vadd.f32 %v2888, %v5570
    %v5572 = vpop.f32.mrb[0].mxu0
    %v5573 = vadd.f32 %v2892, %v5572
    %5574 = vmatprep.mubr.bf16.mxu0 %v2263
    %5575 = vmatmul.mubr.bf16.gmra.mrb[0].mxu0 %v2262
    %v5576 = vpop.f32.mrb[0].mxu0
    %v5577 = vadd.f32 %v2888, %v5576
    %v5578 = vpop.f32.mrb[0].mxu0
    %v5579 = vadd.f32 %v2892, %v5578
    %v5580 = vpop.f32.mrb[0].mxu0
    %v5581 = vadd.f32 %v2888, %v5580
    %v5582 = vpop.f32.mrb[0].mxu0
    %v5583 = vadd.f32 %v2892, %v5582
    %5584 = vmatprep.mubr.bf16.mxu0 %v2272
    %5585 = vmatmul.mubr.bf16.gmra.mrb[0].mxu0 %v2271
    %v5586 = vpop.f32.mrb[0].mxu0
    %v5587 = vadd.f32 %v2888, %v5586
    %v5588 = vpop.f32.mrb[0].mxu0
    %v5589 = vadd.f32 %v2892, %v5588
    %v5590 = vpop.f32.mrb[0].mxu0
    %v5591 = vadd.f32 %v2888, %v5590
    %v5592 = vpop.f32.mrb[0].mxu0
    %v5593 = vadd.f32 %v2892, %v5592
    %5594 = vmatprep.mubr.bf16.mxu0 %v2281
    %5595 = vmatmul.mubr.bf16.gmra.mrb[0].mxu0 %v2280
    %v5596 = vpop.f32.mrb[0].mxu0
    %v5597 = vadd.f32 %v2888, %v5596
    %v5598 = vpop.f32.mrb[0].mxu0
    %v5599 = vadd.f32 %v2892, %v5598
    %v5600 = vpop.f32.mrb[0].mxu0
    %v5601 = vadd.f32 %v2888, %v5600
    %v5602 = vpop.f32.mrb[0].mxu0
    %v5603 = vadd.f32 %v2892, %v5602
    %5604 = vmatprep.mubr.bf16.mxu0 %v2290
    %5605 = vmatmul.mubr.bf16.gmra.mrb[0].mxu0 %v2289
    %v5606 = vpop.f32.mrb[0].mxu0
    %v5607 = vadd.f32 %v2888, %v5606
    %v5608 = vpop.f32.mrb[0].mxu0
    %v5609 = vadd.f32 %v2892, %v5608
    %v5610 = vpop.f32.mrb[0].mxu0
    %v5611 = vadd.f32 %v2888, %v5610
    %v5612 = vpop.f32.mrb[0].mxu0
    %v5613 = vadd.f32 %v2892, %v5612
    %5614 = vmatprep.mubr.bf16.mxu0 %v2299
    %5615 = vmatmul.mubr.bf16.gmra.mrb[0].mxu0 %v2298
    %v5616 = vpop.f32.mrb[0].mxu0
    %v5617 = vadd.f32 %v2888, %v5616
    %v5618 = vpop.f32.mrb[0].mxu0
    %v5619 = vadd.f32 %v2892, %v5618
    %v5620 = vpop.f32.mrb[0].mxu0
    %v5621 = vadd.f32 %v2888, %v5620
    %v5622 = vpop.f32.mrb[0].mxu0
    %v5623 = vadd.f32 %v2892, %v5622
    %5624 = vdwg.mxu0
    %5625 = vmatprep.subr.bf16.mxu0 %v4617
    %5626 = vmatpush1.bf16.msra.mxu0 %v4616
    %5627 = vmatprep.subr.bf16.mxu0 %v4624
    %5628 = vmatpush1.bf16.msra.mxu0 %v4623
    %5629 = vmatprep.subr.bf16.mxu0 %v4631
    %5630 = vmatpush1.bf16.msra.mxu0 %v4630
    %5631 = vmatprep.subr.bf16.mxu0 %v4638
    %5632 = vmatpush1.bf16.msra.mxu0 %v4637
    %5633 = vmatprep.subr.bf16.mxu0 %v4645
    %5634 = vmatpush1.bf16.msra.mxu0 %v4644
    %5635 = vmatprep.subr.bf16.mxu0 %v4652
    %5636 = vmatpush1.bf16.msra.mxu0 %v4651
    %5637 = vmatprep.subr.bf16.mxu0 %v4659
    %5638 = vmatpush1.bf16.msra.mxu0 %v4658
    %5639 = vmatprep.subr.bf16.mxu0 %v4666
    %5640 = vmatpush1.bf16.msra.mxu0 %v4665
    %5641 = vmatprep.subr.bf16.mxu0 %v4673
    %5642 = vmatpush1.bf16.msra.mxu0 %v4672
    %5643 = vmatprep.subr.bf16.mxu0 %v4680
    %5644 = vmatpush1.bf16.msra.mxu0 %v4679
    %5645 = vmatprep.subr.bf16.mxu0 %v4687
    %5646 = vmatpush1.bf16.msra.mxu0 %v4686
    %5647 = vmatprep.subr.bf16.mxu0 %v4694
    %5648 = vmatpush1.bf16.msra.mxu0 %v4693
    %5649 = vmatprep.subr.bf16.mxu0 %v4701
    %5650 = vmatpush1.bf16.msra.mxu0 %v4700
    %5651 = vmatprep.subr.bf16.mxu0 %v4708
    %5652 = vmatpush1.bf16.msra.mxu0 %v4707
    %5653 = vmatprep.subr.bf16.mxu0 %v4715
    %5654 = vmatpush1.bf16.msra.mxu0 %v4714
    %5655 = vmatprep.subr.bf16.mxu0 %v4722
    %5656 = vmatpush1.bf16.msra.mxu0 %v4721
    %5657 = vmatprep.mubr.bf16.mxu0 %v2238
    %5658 = vmatmul.mubr.bf16.gmra.mrb[0].mxu0 %v2237
    %v5659 = vpop.f32.mrb[0].mxu0
    %v5660 = vadd.f32 %v5547, %v5659
    %v5661 = vpop.f32.mrb[0].mxu0
    %v5662 = vadd.f32 %v5549, %v5661
    %v5663 = vpop.f32.mrb[0].mxu0
    %v5664 = vadd.f32 %v5551, %v5663
    %v5665 = vpop.f32.mrb[0].mxu0
    %v5666 = vadd.f32 %v5553, %v5665
    %5667 = vmatprep.mubr.bf16.mxu0 %v2247
    %5668 = vmatmul.mubr.bf16.gmra.mrb[0].mxu0 %v2246
    %v5669 = vpop.f32.mrb[0].mxu0
    %v5670 = vadd.f32 %v5557, %v5669
    %v5671 = vpop.f32.mrb[0].mxu0
    %v5672 = vadd.f32 %v5559, %v5671
    %v5673 = vpop.f32.mrb[0].mxu0
    %v5674 = vadd.f32 %v5561, %v5673
    %v5675 = vpop.f32.mrb[0].mxu0
    %v5676 = vadd.f32 %v5563, %v5675
    %5677 = vmatprep.mubr.bf16.mxu0 %v2256
    %5678 = vmatmul.mubr.bf16.gmra.mrb[0].mxu0 %v2255
    %v5679 = vpop.f32.mrb[0].mxu0
    %v5680 = vadd.f32 %v5567, %v5679
    %v5681 = vpop.f32.mrb[0].mxu0
    %v5682 = vadd.f32 %v5569, %v5681
    %v5683 = vpop.f32.mrb[0].mxu0
    %v5684 = vadd.f32 %v5571, %v5683
    %v5685 = vpop.f32.mrb[0].mxu0
    %v5686 = vadd.f32 %v5573, %v5685
    %5687 = vmatprep.mubr.bf16.mxu0 %v2265
    %5688 = vmatmul.mubr.bf16.gmra.mrb[0].mxu0 %v2264
    %v5689 = vpop.f32.mrb[0].mxu0
    %v5690 = vadd.f32 %v5577, %v5689
    %v5691 = vpop.f32.mrb[0].mxu0
    %v5692 = vadd.f32 %v5579, %v5691
    %v5693 = vpop.f32.mrb[0].mxu0
    %v5694 = vadd.f32 %v5581, %v5693
    %v5695 = vpop.f32.mrb[0].mxu0
    %v5696 = vadd.f32 %v5583, %v5695
    %5697 = vmatprep.mubr.bf16.mxu0 %v2274
    %5698 = vmatmul.mubr.bf16.gmra.mrb[0].mxu0 %v2273
    %v5699 = vpop.f32.mrb[0].mxu0
    %v5700 = vadd.f32 %v5587, %v5699
    %v5701 = vpop.f32.mrb[0].mxu0
    %v5702 = vadd.f32 %v5589, %v5701
    %v5703 = vpop.f32.mrb[0].mxu0
    %v5704 = vadd.f32 %v5591, %v5703
    %v5705 = vpop.f32.mrb[0].mxu0
    %v5706 = vadd.f32 %v5593, %v5705
    %5707 = vmatprep.mubr.bf16.mxu0 %v2283
    %5708 = vmatmul.mubr.bf16.gmra.mrb[0].mxu0 %v2282
    %v5709 = vpop.f32.mrb[0].mxu0
    %v5710 = vadd.f32 %v5597, %v5709
    %v5711 = vpop.f32.mrb[0].mxu0
    %v5712 = vadd.f32 %v5599, %v5711
    %v5713 = vpop.f32.mrb[0].mxu0
    %v5714 = vadd.f32 %v5601, %v5713
    %v5715 = vpop.f32.mrb[0].mxu0
    %v5716 = vadd.f32 %v5603, %v5715
    %5717 = vmatprep.mubr.bf16.mxu0 %v2292
    %5718 = vmatmul.mubr.bf16.gmra.mrb[0].mxu0 %v2291
    %v5719 = vpop.f32.mrb[0].mxu0
    %v5720 = vadd.f32 %v5607, %v5719
    %v5721 = vpop.f32.mrb[0].mxu0
    %v5722 = vadd.f32 %v5609, %v5721
    %v5723 = vpop.f32.mrb[0].mxu0
    %v5724 = vadd.f32 %v5611, %v5723
    %v5725 = vpop.f32.mrb[0].mxu0
    %v5726 = vadd.f32 %v5613, %v5725
    %5727 = vmatprep.mubr.bf16.mxu0 %v2301
    %5728 = vmatmul.mubr.bf16.gmra.mrb[0].mxu0 %v2300
    %v5729 = vpop.f32.mrb[0].mxu0
    %v5730 = vadd.f32 %v5617, %v5729
    %v5731 = vpop.f32.mrb[0].mxu0
    %v5732 = vadd.f32 %v5619, %v5731
    %v5733 = vpop.f32.mrb[0].mxu0
    %v5734 = vadd.f32 %v5621, %v5733
    %v5735 = vpop.f32.mrb[0].mxu0
    %v5736 = vadd.f32 %v5623, %v5735
    %5737 = vdwg.mxu0
    %5738 = vmatprep.subr.bf16.mxu0 %v4729
    %5739 = vmatpush1.bf16.msra.mxu0 %v4728
    %5740 = vmatprep.subr.bf16.mxu0 %v4736
    %5741 = vmatpush1.bf16.msra.mxu0 %v4735
    %5742 = vmatprep.subr.bf16.mxu0 %v4743
    %5743 = vmatpush1.bf16.msra.mxu0 %v4742
    %5744 = vmatprep.subr.bf16.mxu0 %v4750
    %5745 = vmatpush1.bf16.msra.mxu0 %v4749
    %5746 = vmatprep.subr.bf16.mxu0 %v4757
    %5747 = vmatpush1.bf16.msra.mxu0 %v4756
    %5748 = vmatprep.subr.bf16.mxu0 %v4764
    %5749 = vmatpush1.bf16.msra.mxu0 %v4763
    %5750 = vmatprep.subr.bf16.mxu0 %v4771
    %5751 = vmatpush1.bf16.msra.mxu0 %v4770
    %5752 = vmatprep.subr.bf16.mxu0 %v4778
    %5753 = vmatpush1.bf16.msra.mxu0 %v4777
    %5754 = vmatprep.subr.bf16.mxu0 %v4785
    %5755 = vmatpush1.bf16.msra.mxu0 %v4784
    %5756 = vmatprep.subr.bf16.mxu0 %v4792
    %5757 = vmatpush1.bf16.msra.mxu0 %v4791
    %5758 = vmatprep.subr.bf16.mxu0 %v4799
    %5759 = vmatpush1.bf16.msra.mxu0 %v4798
    %5760 = vmatprep.subr.bf16.mxu0 %v4806
    %5761 = vmatpush1.bf16.msra.mxu0 %v4805
    %5762 = vmatprep.subr.bf16.mxu0 %v4813
    %5763 = vmatpush1.bf16.msra.mxu0 %v4812
    %5764 = vmatprep.subr.bf16.mxu0 %v4820
    %5765 = vmatpush1.bf16.msra.mxu0 %v4819
    %5766 = vmatprep.subr.bf16.mxu0 %v4827
    %5767 = vmatpush1.bf16.msra.mxu0 %v4826
    %5768 = vmatprep.subr.bf16.mxu0 %v4834
    %5769 = vmatpush1.bf16.msra.mxu0 %v4833
    %5770 = vmatprep.mubr.bf16.mxu0 %v2240
    %5771 = vmatmul.mubr.bf16.gmra.mrb[0].mxu0 %v2239
    %v5772 = vpop.f32.mrb[0].mxu0
    %v5773 = vadd.f32 %v5660, %v5772
    %v5774 = vpop.f32.mrb[0].mxu0
    %v5775 = vadd.f32 %v5662, %v5774
    %v5776 = vpop.f32.mrb[0].mxu0
    %v5777 = vadd.f32 %v5664, %v5776
    %v5778 = vpop.f32.mrb[0].mxu0
    %v5779 = vadd.f32 %v5666, %v5778
    %5780 = vmatprep.mubr.bf16.mxu0 %v2249
    %5781 = vmatmul.mubr.bf16.gmra.mrb[0].mxu0 %v2248
    %v5782 = vpop.f32.mrb[0].mxu0
    %v5783 = vadd.f32 %v5670, %v5782
    %v5784 = vpop.f32.mrb[0].mxu0
    %v5785 = vadd.f32 %v5672, %v5784
    %v5786 = vpop.f32.mrb[0].mxu0
    %v5787 = vadd.f32 %v5674, %v5786
    %v5788 = vpop.f32.mrb[0].mxu0
    %v5789 = vadd.f32 %v5676, %v5788
    %5790 = vmatprep.mubr.bf16.mxu0 %v2258
    %5791 = vmatmul.mubr.bf16.gmra.mrb[0].mxu0 %v2257
    %v5792 = vpop.f32.mrb[0].mxu0
    %v5793 = vadd.f32 %v5680, %v5792
    %v5794 = vpop.f32.mrb[0].mxu0
    %v5795 = vadd.f32 %v5682, %v5794
    %v5796 = vpop.f32.mrb[0].mxu0
    %v5797 = vadd.f32 %v5684, %v5796
    %v5798 = vpop.f32.mrb[0].mxu0
    %v5799 = vadd.f32 %v5686, %v5798
    %5800 = vmatprep.mubr.bf16.mxu0 %v2267
    %5801 = vmatmul.mubr.bf16.gmra.mrb[0].mxu0 %v2266
    %v5802 = vpop.f32.mrb[0].mxu0
    %v5803 = vadd.f32 %v5690, %v5802
    %v5804 = vpop.f32.mrb[0].mxu0
    %v5805 = vadd.f32 %v5692, %v5804
    %v5806 = vpop.f32.mrb[0].mxu0
    %v5807 = vadd.f32 %v5694, %v5806
    %v5808 = vpop.f32.mrb[0].mxu0
    %v5809 = vadd.f32 %v5696, %v5808
    %5810 = vmatprep.mubr.bf16.mxu0 %v2276
    %5811 = vmatmul.mubr.bf16.gmra.mrb[0].mxu0 %v2275
    %v5812 = vpop.f32.mrb[0].mxu0
    %v5813 = vadd.f32 %v5700, %v5812
    %v5814 = vpop.f32.mrb[0].mxu0
    %v5815 = vadd.f32 %v5702, %v5814
    %v5816 = vpop.f32.mrb[0].mxu0
    %v5817 = vadd.f32 %v5704, %v5816
    %v5818 = vpop.f32.mrb[0].mxu0
    %v5819 = vadd.f32 %v5706, %v5818
    %5820 = vmatprep.mubr.bf16.mxu0 %v2285
    %5821 = vmatmul.mubr.bf16.gmra.mrb[0].mxu0 %v2284
    %v5822 = vpop.f32.mrb[0].mxu0
    %v5823 = vadd.f32 %v5710, %v5822
    %v5824 = vpop.f32.mrb[0].mxu0
    %v5825 = vadd.f32 %v5712, %v5824
    %v5826 = vpop.f32.mrb[0].mxu0
    %v5827 = vadd.f32 %v5714, %v5826
    %v5828 = vpop.f32.mrb[0].mxu0
    %v5829 = vadd.f32 %v5716, %v5828
    %5830 = vmatprep.mubr.bf16.mxu0 %v2294
    %5831 = vmatmul.mubr.bf16.gmra.mrb[0].mxu0 %v2293
    %v5832 = vpop.f32.mrb[0].mxu0
    %v5833 = vadd.f32 %v5720, %v5832
    %v5834 = vpop.f32.mrb[0].mxu0
    %v5835 = vadd.f32 %v5722, %v5834
    %v5836 = vpop.f32.mrb[0].mxu0
    %v5837 = vadd.f32 %v5724, %v5836
    %v5838 = vpop.f32.mrb[0].mxu0
    %v5839 = vadd.f32 %v5726, %v5838
    %5840 = vmatprep.mubr.bf16.mxu0 %v2303
    %5841 = vmatmul.mubr.bf16.gmra.mrb[0].mxu0 %v2302
    %v5842 = vpop.f32.mrb[0].mxu0
    %v5843 = vadd.f32 %v5730, %v5842
    %v5844 = vpop.f32.mrb[0].mxu0
    %v5845 = vadd.f32 %v5732, %v5844
    %v5846 = vpop.f32.mrb[0].mxu0
    %v5847 = vadd.f32 %v5734, %v5846
    %v5848 = vpop.f32.mrb[0].mxu0
    %v5849 = vadd.f32 %v5736, %v5848
    %5850 = vdwg.mxu0
    %5851 = vmatprep.subr.bf16.mxu0 %v4841
    %5852 = vmatpush1.bf16.msra.mxu0 %v4840
    %5853 = vmatprep.subr.bf16.mxu0 %v4848
    %5854 = vmatpush1.bf16.msra.mxu0 %v4847
    %5855 = vmatprep.subr.bf16.mxu0 %v4855
    %5856 = vmatpush1.bf16.msra.mxu0 %v4854
    %5857 = vmatprep.subr.bf16.mxu0 %v4862
    %5858 = vmatpush1.bf16.msra.mxu0 %v4861
    %5859 = vmatprep.subr.bf16.mxu0 %v4869
    %5860 = vmatpush1.bf16.msra.mxu0 %v4868
    %5861 = vmatprep.subr.bf16.mxu0 %v4876
    %5862 = vmatpush1.bf16.msra.mxu0 %v4875
    %5863 = vmatprep.subr.bf16.mxu0 %v4883
    %5864 = vmatpush1.bf16.msra.mxu0 %v4882
    %5865 = vmatprep.subr.bf16.mxu0 %v4890
    %5866 = vmatpush1.bf16.msra.mxu0 %v4889
    %5867 = vmatprep.subr.bf16.mxu0 %v4897
    %5868 = vmatpush1.bf16.msra.mxu0 %v4896
    %5869 = vmatprep.subr.bf16.mxu0 %v4904
    %5870 = vmatpush1.bf16.msra.mxu0 %v4903
    %5871 = vmatprep.subr.bf16.mxu0 %v4911
    %5872 = vmatpush1.bf16.msra.mxu0 %v4910
    %5873 = vmatprep.subr.bf16.mxu0 %v4918
    %5874 = vmatpush1.bf16.msra.mxu0 %v4917
    %5875 = vmatprep.subr.bf16.mxu0 %v4925
    %5876 = vmatpush1.bf16.msra.mxu0 %v4924
    %5877 = vmatprep.subr.bf16.mxu0 %v4932
    %5878 = vmatpush1.bf16.msra.mxu0 %v4931
    %5879 = vmatprep.subr.bf16.mxu0 %v4939
    %5880 = vmatpush1.bf16.msra.mxu0 %v4938
    %5881 = vmatprep.subr.bf16.mxu0 %v4946
    %5882 = vmatpush1.bf16.msra.mxu0 %v4945
    %5883 = vmatprep.mubr.bf16.mxu0 %v2242
    %5884 = vmatmul.mubr.bf16.gmra.mrb[0].mxu0 %v2241
    %v5885 = vpop.f32.mrb[0].mxu0
    %v5886 = vadd.f32 %v5773, %v5885
    %v5887 = vpop.f32.mrb[0].mxu0
    %v5888 = vadd.f32 %v5775, %v5887
    %v5889 = vpop.f32.mrb[0].mxu0
    %v5890 = vadd.f32 %v5777, %v5889
    %v5891 = vpop.f32.mrb[0].mxu0
    %v5892 = vadd.f32 %v5779, %v5891
    %5893 = vmatprep.mubr.bf16.mxu0 %v2251
    %5894 = vmatmul.mubr.bf16.gmra.mrb[0].mxu0 %v2250
    %v5895 = vpop.f32.mrb[0].mxu0
    %v5896 = vadd.f32 %v5783, %v5895
    %v5897 = vpop.f32.mrb[0].mxu0
    %v5898 = vadd.f32 %v5785, %v5897
    %v5899 = vpop.f32.mrb[0].mxu0
    %v5900 = vadd.f32 %v5787, %v5899
    %v5901 = vpop.f32.mrb[0].mxu0
    %v5902 = vadd.f32 %v5789, %v5901
    %5903 = vmatprep.mubr.bf16.mxu0 %v2260
    %5904 = vmatmul.mubr.bf16.gmra.mrb[0].mxu0 %v2259
    %v5905 = vpop.f32.mrb[0].mxu0
    %v5906 = vadd.f32 %v5793, %v5905
    %v5907 = vpop.f32.mrb[0].mxu0
    %v5908 = vadd.f32 %v5795, %v5907
    %v5909 = vpop.f32.mrb[0].mxu0
    %v5910 = vadd.f32 %v5797, %v5909
    %v5911 = vpop.f32.mrb[0].mxu0
    %v5912 = vadd.f32 %v5799, %v5911
    %5913 = vmatprep.mubr.bf16.mxu0 %v2269
    %5914 = vmatmul.mubr.bf16.gmra.mrb[0].mxu0 %v2268
    %v5915 = vpop.f32.mrb[0].mxu0
    %v5916 = vadd.f32 %v5803, %v5915
    %v5917 = vpop.f32.mrb[0].mxu0
    %v5918 = vadd.f32 %v5805, %v5917
    %v5919 = vpop.f32.mrb[0].mxu0
    %v5920 = vadd.f32 %v5807, %v5919
    %v5921 = vpop.f32.mrb[0].mxu0
    %v5922 = vadd.f32 %v5809, %v5921
    %5923 = vmatprep.mubr.bf16.mxu0 %v2278
    %5924 = vmatmul.mubr.bf16.gmra.mrb[0].mxu0 %v2277
    %v5925 = vpop.f32.mrb[0].mxu0
    %v5926 = vadd.f32 %v5813, %v5925
    %v5927 = vpop.f32.mrb[0].mxu0
    %v5928 = vadd.f32 %v5815, %v5927
    %v5929 = vpop.f32.mrb[0].mxu0
    %v5930 = vadd.f32 %v5817, %v5929
    %v5931 = vpop.f32.mrb[0].mxu0
    %v5932 = vadd.f32 %v5819, %v5931
    %5933 = vmatprep.mubr.bf16.mxu0 %v2287
    %5934 = vmatmul.mubr.bf16.gmra.mrb[0].mxu0 %v2286
    %v5935 = vpop.f32.mrb[0].mxu0
    %v5936 = vadd.f32 %v5823, %v5935
    %v5937 = vpop.f32.mrb[0].mxu0
    %v5938 = vadd.f32 %v5825, %v5937
    %v5939 = vpop.f32.mrb[0].mxu0
    %v5940 = vadd.f32 %v5827, %v5939
    %v5941 = vpop.f32.mrb[0].mxu0
    %v5942 = vadd.f32 %v5829, %v5941
    %5943 = vmatprep.mubr.bf16.mxu0 %v2296
    %5944 = vmatmul.mubr.bf16.gmra.mrb[0].mxu0 %v2295
    %v5945 = vpop.f32.mrb[0].mxu0
    %v5946 = vadd.f32 %v5833, %v5945
    %v5947 = vpop.f32.mrb[0].mxu0
    %v5948 = vadd.f32 %v5835, %v5947
    %v5949 = vpop.f32.mrb[0].mxu0
    %v5950 = vadd.f32 %v5837, %v5949
    %v5951 = vpop.f32.mrb[0].mxu0
    %v5952 = vadd.f32 %v5839, %v5951
    %5953 = vmatprep.mubr.bf16.mxu0 %v2305
    %5954 = vmatmul.mubr.bf16.gmra.mrb[0].mxu0 %v2304
    %v5955 = vpop.f32.mrb[0].mxu0
    %v5956 = vadd.f32 %v5843, %v5955
    %v5957 = vpop.f32.mrb[0].mxu0
    %v5958 = vadd.f32 %v5845, %v5957
    %v5959 = vpop.f32.mrb[0].mxu0
    %v5960 = vadd.f32 %v5847, %v5959
    %v5961 = vpop.f32.mrb[0].mxu0
    %v5962 = vadd.f32 %v5849, %v5961
    %5963 = vdwg.mxu0
    %5964 = vmatprep.subr.bf16.mxu0 %v4953
    %5965 = vmatpush1.bf16.msra.mxu0 %v4952
    %5966 = vmatprep.subr.bf16.mxu0 %v4960
    %5967 = vmatpush1.bf16.msra.mxu0 %v4959
    %5968 = vmatprep.subr.bf16.mxu0 %v4967
    %5969 = vmatpush1.bf16.msra.mxu0 %v4966
    %5970 = vmatprep.subr.bf16.mxu0 %v4974
    %5971 = vmatpush1.bf16.msra.mxu0 %v4973
    %5972 = vmatprep.subr.bf16.mxu0 %v4981
    %5973 = vmatpush1.bf16.msra.mxu0 %v4980
    %5974 = vmatprep.subr.bf16.mxu0 %v4988
    %5975 = vmatpush1.bf16.msra.mxu0 %v4987
    %5976 = vmatprep.subr.bf16.mxu0 %v4995
    %5977 = vmatpush1.bf16.msra.mxu0 %v4994
    %5978 = vmatprep.subr.bf16.mxu0 %v5002
    %5979 = vmatpush1.bf16.msra.mxu0 %v5001
    %5980 = vmatprep.subr.bf16.mxu0 0
    %5981 = vmatpush1.bf16.msra.mxu0 0
    %5982 = vmatprep.subr.bf16.mxu0 0
    %5983 = vmatpush1.bf16.msra.mxu0 0
    %5984 = vmatprep.subr.bf16.mxu0 0
    %5985 = vmatpush1.bf16.msra.mxu0 0
    %5986 = vmatprep.subr.bf16.mxu0 0
    %5987 = vmatpush1.bf16.msra.mxu0 0
    %5988 = vmatprep.subr.bf16.mxu0 0
    %5989 = vmatpush1.bf16.msra.mxu0 0
    %5990 = vmatprep.subr.bf16.mxu0 0
    %5991 = vmatpush1.bf16.msra.mxu0 0
    %5992 = vmatprep.subr.bf16.mxu0 0
    %5993 = vmatpush1.bf16.msra.mxu0 0
    %5994 = vmatprep.subr.bf16.mxu0 0
    %5995 = vmatpush1.bf16.msra.mxu0 0
    %5996 = vmatprep.mubr.bf16.mxu0 0
    %5997 = vmatmul.mubr.bf16.gmra.mrb[0].mxu0 %v2243
    %v5998 = vpop.f32.mrb[0].mxu0
    %v5999 = vadd.f32 %v5886, %v5998
    %v6000 = vpop.f32.mrb[0].mxu0
    %v6001 = vadd.f32 %v5888, %v6000
    %v6002 = vpop.f32.mrb[0].mxu0
    %v6003 = vadd.f32 %v5890, %v6002
    %v6004 = vpop.f32.mrb[0].mxu0
    %v6005 = vadd.f32 %v5892, %v6004
    %6006 = vmatprep.mubr.bf16.mxu0 0
    %6007 = vmatmul.mubr.bf16.gmra.mrb[0].mxu0 %v2252
    %v6008 = vpop.f32.mrb[0].mxu0
    %v6009 = vadd.f32 %v5896, %v6008
    %v6010 = vpop.f32.mrb[0].mxu0
    %v6011 = vadd.f32 %v5898, %v6010
    %v6012 = vpop.f32.mrb[0].mxu0
    %v6013 = vadd.f32 %v5900, %v6012
    %v6014 = vpop.f32.mrb[0].mxu0
    %v6015 = vadd.f32 %v5902, %v6014
    %6016 = vmatprep.mubr.bf16.mxu0 0
    %6017 = vmatmul.mubr.bf16.gmra.mrb[0].mxu0 %v2261
    %v6018 = vpop.f32.mrb[0].mxu0
    %v6019 = vadd.f32 %v5906, %v6018
    %v6020 = vpop.f32.mrb[0].mxu0
    %v6021 = vadd.f32 %v5908, %v6020
    %v6022 = vpop.f32.mrb[0].mxu0
    %v6023 = vadd.f32 %v5910, %v6022
    %v6024 = vpop.f32.mrb[0].mxu0
    %v6025 = vadd.f32 %v5912, %v6024
    %6026 = vmatprep.mubr.bf16.mxu0 0
    %6027 = vmatmul.mubr.bf16.gmra.mrb[0].mxu0 %v2270
    %v6028 = vpop.f32.mrb[0].mxu0
    %v6029 = vadd.f32 %v5916, %v6028
    %v6030 = vpop.f32.mrb[0].mxu0
    %v6031 = vadd.f32 %v5918, %v6030
    %v6032 = vpop.f32.mrb[0].mxu0
    %v6033 = vadd.f32 %v5920, %v6032
    %v6034 = vpop.f32.mrb[0].mxu0
    %v6035 = vadd.f32 %v5922, %v6034
    %6036 = vmatprep.mubr.bf16.mxu0 0
    %6037 = vmatmul.mubr.bf16.gmra.mrb[0].mxu0 %v2279
    %v6038 = vpop.f32.mrb[0].mxu0
    %v6039 = vadd.f32 %v5926, %v6038
    %v6040 = vpop.f32.mrb[0].mxu0
    %v6041 = vadd.f32 %v5928, %v6040
    %v6042 = vpop.f32.mrb[0].mxu0
    %v6043 = vadd.f32 %v5930, %v6042
    %v6044 = vpop.f32.mrb[0].mxu0
    %v6045 = vadd.f32 %v5932, %v6044
    %6046 = vmatprep.mubr.bf16.mxu0 0
    %6047 = vmatmul.mubr.bf16.gmra.mrb[0].mxu0 %v2288
    %v6048 = vpop.f32.mrb[0].mxu0
    %v6049 = vadd.f32 %v5936, %v6048
    %v6050 = vpop.f32.mrb[0].mxu0
    %v6051 = vadd.f32 %v5938, %v6050
    %v6052 = vpop.f32.mrb[0].mxu0
    %v6053 = vadd.f32 %v5940, %v6052
    %v6054 = vpop.f32.mrb[0].mxu0
    %v6055 = vadd.f32 %v5942, %v6054
    %6056 = vmatprep.mubr.bf16.mxu0 0
    %6057 = vmatmul.mubr.bf16.gmra.mrb[0].mxu0 %v2297
    %v6058 = vpop.f32.mrb[0].mxu0
    %v6059 = vadd.f32 %v5946, %v6058
    %v6060 = vpop.f32.mrb[0].mxu0
    %v6061 = vadd.f32 %v5948, %v6060
    %v6062 = vpop.f32.mrb[0].mxu0
    %v6063 = vadd.f32 %v5950, %v6062
    %v6064 = vpop.f32.mrb[0].mxu0
    %v6065 = vadd.f32 %v5952, %v6064
    %6066 = vmatprep.mubr.bf16.mxu0 0
    %6067 = vmatmul.mubr.bf16.gmra.mrb[0].mxu0 %v2306
    %v6068 = vpop.f32.mrb[0].mxu0
    %v6069 = vadd.f32 %v5956, %v6068
    %v6070 = vpop.f32.mrb[0].mxu0
    %v6071 = vadd.f32 %v5958, %v6070
    %v6072 = vpop.f32.mrb[0].mxu0
    %v6073 = vadd.f32 %v5960, %v6072
    %v6074 = vpop.f32.mrb[0].mxu0
    %v6075 = vadd.f32 %v5962, %v6074
    %6076 = vdwg.mxu0
    %6077 = vmatprep.subr.bf16.mxu0 %v4507
    %6078 = vmatpush1.bf16.msra.mxu0 %v4506
    %6079 = vmatprep.subr.bf16.mxu0 %v4514
    %6080 = vmatpush1.bf16.msra.mxu0 %v4513
    %6081 = vmatprep.subr.bf16.mxu0 %v4521
    %6082 = vmatpush1.bf16.msra.mxu0 %v4520
    %6083 = vmatprep.subr.bf16.mxu0 %v4528
    %6084 = vmatpush1.bf16.msra.mxu0 %v4527
    %6085 = vmatprep.subr.bf16.mxu0 %v4535
    %6086 = vmatpush1.bf16.msra.mxu0 %v4534
    %6087 = vmatprep.subr.bf16.mxu0 %v4542
    %6088 = vmatpush1.bf16.msra.mxu0 %v4541
    %6089 = vmatprep.subr.bf16.mxu0 %v4549
    %6090 = vmatpush1.bf16.msra.mxu0 %v4548
    %6091 = vmatprep.subr.bf16.mxu0 %v4556
    %6092 = vmatpush1.bf16.msra.mxu0 %v4555
    %6093 = vmatprep.subr.bf16.mxu0 %v4563
    %6094 = vmatpush1.bf16.msra.mxu0 %v4562
    %6095 = vmatprep.subr.bf16.mxu0 %v4570
    %6096 = vmatpush1.bf16.msra.mxu0 %v4569
    %6097 = vmatprep.subr.bf16.mxu0 %v4577
    %6098 = vmatpush1.bf16.msra.mxu0 %v4576
    %6099 = vmatprep.subr.bf16.mxu0 %v4584
    %6100 = vmatpush1.bf16.msra.mxu0 %v4583
    %6101 = vmatprep.subr.bf16.mxu0 %v4591
    %6102 = vmatpush1.bf16.msra.mxu0 %v4590
    %6103 = vmatprep.subr.bf16.mxu0 %v4598
    %6104 = vmatpush1.bf16.msra.mxu0 %v4597
    %6105 = vmatprep.subr.bf16.mxu0 %v4605
    %6106 = vmatpush1.bf16.msra.mxu0 %v4604
    %6107 = vmatprep.subr.bf16.mxu0 %v4612
    %6108 = vmatpush1.bf16.msra.mxu0 %v4611
    %6109 = vmatprep.mubr.bf16.mxu0 %v2236
    %6110 = vmatmul.mubr.bf16.gmra.mrb[0].mxu0 %v2235
    %v6111 = vpop.f32.mrb[0].mxu0
    %v6112 = vadd.f32 %v2896, %v6111
    %v6113 = vpop.f32.mrb[0].mxu0
    %v6114 = vadd.f32 %v2900, %v6113
    %v6115 = vpop.f32.mrb[0].mxu0
    %v6116 = vadd.f32 %v2896, %v6115
    %v6117 = vpop.f32.mrb[0].mxu0
    %v6118 = vadd.f32 %v2900, %v6117
    %6119 = vmatprep.mubr.bf16.mxu0 %v2245
    %6120 = vmatmul.mubr.bf16.gmra.mrb[0].mxu0 %v2244
    %v6121 = vpop.f32.mrb[0].mxu0
    %v6122 = vadd.f32 %v2896, %v6121
    %v6123 = vpop.f32.mrb[0].mxu0
    %v6124 = vadd.f32 %v2900, %v6123
    %v6125 = vpop.f32.mrb[0].mxu0
    %v6126 = vadd.f32 %v2896, %v6125
    %v6127 = vpop.f32.mrb[0].mxu0
    %v6128 = vadd.f32 %v2900, %v6127
    %6129 = vmatprep.mubr.bf16.mxu0 %v2254
    %6130 = vmatmul.mubr.bf16.gmra.mrb[0].mxu0 %v2253
    %v6131 = vpop.f32.mrb[0].mxu0
    %v6132 = vadd.f32 %v2896, %v6131
    %v6133 = vpop.f32.mrb[0].mxu0
    %v6134 = vadd.f32 %v2900, %v6133
    %v6135 = vpop.f32.mrb[0].mxu0
    %v6136 = vadd.f32 %v2896, %v6135
    %v6137 = vpop.f32.mrb[0].mxu0
    %v6138 = vadd.f32 %v2900, %v6137
    %6139 = vmatprep.mubr.bf16.mxu0 %v2263
    %6140 = vmatmul.mubr.bf16.gmra.mrb[0].mxu0 %v2262
    %v6141 = vpop.f32.mrb[0].mxu0
    %v6142 = vadd.f32 %v2896, %v6141
    %v6143 = vpop.f32.mrb[0].mxu0
    %v6144 = vadd.f32 %v2900, %v6143
    %v6145 = vpop.f32.mrb[0].mxu0
    %v6146 = vadd.f32 %v2896, %v6145
    %v6147 = vpop.f32.mrb[0].mxu0
    %v6148 = vadd.f32 %v2900, %v6147
    %6149 = vmatprep.mubr.bf16.mxu0 %v2272
    %6150 = vmatmul.mubr.bf16.gmra.mrb[0].mxu0 %v2271
    %v6151 = vpop.f32.mrb[0].mxu0
    %v6152 = vadd.f32 %v2896, %v6151
    %v6153 = vpop.f32.mrb[0].mxu0
    %v6154 = vadd.f32 %v2900, %v6153
    %v6155 = vpop.f32.mrb[0].mxu0
    %v6156 = vadd.f32 %v2896, %v6155
    %v6157 = vpop.f32.mrb[0].mxu0
    %v6158 = vadd.f32 %v2900, %v6157
    %6159 = vmatprep.mubr.bf16.mxu0 %v2281
    %6160 = vmatmul.mubr.bf16.gmra.mrb[0].mxu0 %v2280
    %v6161 = vpop.f32.mrb[0].mxu0
    %v6162 = vadd.f32 %v2896, %v6161
    %v6163 = vpop.f32.mrb[0].mxu0
    %v6164 = vadd.f32 %v2900, %v6163
    %v6165 = vpop.f32.mrb[0].mxu0
    %v6166 = vadd.f32 %v2896, %v6165
    %v6167 = vpop.f32.mrb[0].mxu0
    %v6168 = vadd.f32 %v2900, %v6167
    %6169 = vmatprep.mubr.bf16.mxu0 %v2290
    %6170 = vmatmul.mubr.bf16.gmra.mrb[0].mxu0 %v2289
    %v6171 = vpop.f32.mrb[0].mxu0
    %v6172 = vadd.f32 %v2896, %v6171
    %v6173 = vpop.f32.mrb[0].mxu0
    %v6174 = vadd.f32 %v2900, %v6173
    %v6175 = vpop.f32.mrb[0].mxu0
    %v6176 = vadd.f32 %v2896, %v6175
    %v6177 = vpop.f32.mrb[0].mxu0
    %v6178 = vadd.f32 %v2900, %v6177
    %6179 = vmatprep.mubr.bf16.mxu0 %v2299
    %6180 = vmatmul.mubr.bf16.gmra.mrb[0].mxu0 %v2298
    %v6181 = vpop.f32.mrb[0].mxu0
    %v6182 = vadd.f32 %v2896, %v6181
    %v6183 = vpop.f32.mrb[0].mxu0
    %v6184 = vadd.f32 %v2900, %v6183
    %v6185 = vpop.f32.mrb[0].mxu0
    %v6186 = vadd.f32 %v2896, %v6185
    %v6187 = vpop.f32.mrb[0].mxu0
    %v6188 = vadd.f32 %v2900, %v6187
    %6189 = vdwg.mxu0
    %6190 = vmatprep.subr.bf16.mxu0 %v4619
    %6191 = vmatpush1.bf16.msra.mxu0 %v4618
    %6192 = vmatprep.subr.bf16.mxu0 %v4626
    %6193 = vmatpush1.bf16.msra.mxu0 %v4625
    %6194 = vmatprep.subr.bf16.mxu0 %v4633
    %6195 = vmatpush1.bf16.msra.mxu0 %v4632
    %6196 = vmatprep.subr.bf16.mxu0 %v4640
    %6197 = vmatpush1.bf16.msra.mxu0 %v4639
    %6198 = vmatprep.subr.bf16.mxu0 %v4647
    %6199 = vmatpush1.bf16.msra.mxu0 %v4646
    %6200 = vmatprep.subr.bf16.mxu0 %v4654
    %6201 = vmatpush1.bf16.msra.mxu0 %v4653
    %6202 = vmatprep.subr.bf16.mxu0 %v4661
    %6203 = vmatpush1.bf16.msra.mxu0 %v4660
    %6204 = vmatprep.subr.bf16.mxu0 %v4668
    %6205 = vmatpush1.bf16.msra.mxu0 %v4667
    %6206 = vmatprep.subr.bf16.mxu0 %v4675
    %6207 = vmatpush1.bf16.msra.mxu0 %v4674
    %6208 = vmatprep.subr.bf16.mxu0 %v4682
    %6209 = vmatpush1.bf16.msra.mxu0 %v4681
    %6210 = vmatprep.subr.bf16.mxu0 %v4689
    %6211 = vmatpush1.bf16.msra.mxu0 %v4688
    %6212 = vmatprep.subr.bf16.mxu0 %v4696
    %6213 = vmatpush1.bf16.msra.mxu0 %v4695
    %6214 = vmatprep.subr.bf16.mxu0 %v4703
    %6215 = vmatpush1.bf16.msra.mxu0 %v4702
    %6216 = vmatprep.subr.bf16.mxu0 %v4710
    %6217 = vmatpush1.bf16.msra.mxu0 %v4709
    %6218 = vmatprep.subr.bf16.mxu0 %v4717
    %6219 = vmatpush1.bf16.msra.mxu0 %v4716
    %6220 = vmatprep.subr.bf16.mxu0 %v4724
    %6221 = vmatpush1.bf16.msra.mxu0 %v4723
    %6222 = vmatprep.mubr.bf16.mxu0 %v2238
    %6223 = vmatmul.mubr.bf16.gmra.mrb[0].mxu0 %v2237
    %v6224 = vpop.f32.mrb[0].mxu0
    %v6225 = vadd.f32 %v6112, %v6224
    %v6226 = vpop.f32.mrb[0].mxu0
    %v6227 = vadd.f32 %v6114, %v6226
    %v6228 = vpop.f32.mrb[0].mxu0
    %v6229 = vadd.f32 %v6116, %v6228
    %v6230 = vpop.f32.mrb[0].mxu0
    %v6231 = vadd.f32 %v6118, %v6230
    %6232 = vmatprep.mubr.bf16.mxu0 %v2247
    %6233 = vmatmul.mubr.bf16.gmra.mrb[0].mxu0 %v2246
    %v6234 = vpop.f32.mrb[0].mxu0
    %v6235 = vadd.f32 %v6122, %v6234
    %v6236 = vpop.f32.mrb[0].mxu0
    %v6237 = vadd.f32 %v6124, %v6236
    %v6238 = vpop.f32.mrb[0].mxu0
    %v6239 = vadd.f32 %v6126, %v6238
    %v6240 = vpop.f32.mrb[0].mxu0
    %v6241 = vadd.f32 %v6128, %v6240
    %6242 = vmatprep.mubr.bf16.mxu0 %v2256
    %6243 = vmatmul.mubr.bf16.gmra.mrb[0].mxu0 %v2255
    %v6244 = vpop.f32.mrb[0].mxu0
    %v6245 = vadd.f32 %v6132, %v6244
    %v6246 = vpop.f32.mrb[0].mxu0
    %v6247 = vadd.f32 %v6134, %v6246
    %v6248 = vpop.f32.mrb[0].mxu0
    %v6249 = vadd.f32 %v6136, %v6248
    %v6250 = vpop.f32.mrb[0].mxu0
    %v6251 = vadd.f32 %v6138, %v6250
    %6252 = vmatprep.mubr.bf16.mxu0 %v2265
    %6253 = vmatmul.mubr.bf16.gmra.mrb[0].mxu0 %v2264
    %v6254 = vpop.f32.mrb[0].mxu0
    %v6255 = vadd.f32 %v6142, %v6254
    %v6256 = vpop.f32.mrb[0].mxu0
    %v6257 = vadd.f32 %v6144, %v6256
    %v6258 = vpop.f32.mrb[0].mxu0
    %v6259 = vadd.f32 %v6146, %v6258
    %v6260 = vpop.f32.mrb[0].mxu0
    %v6261 = vadd.f32 %v6148, %v6260
    %6262 = vmatprep.mubr.bf16.mxu0 %v2274
    %6263 = vmatmul.mubr.bf16.gmra.mrb[0].mxu0 %v2273
    %v6264 = vpop.f32.mrb[0].mxu0
    %v6265 = vadd.f32 %v6152, %v6264
    %v6266 = vpop.f32.mrb[0].mxu0
    %v6267 = vadd.f32 %v6154, %v6266
    %v6268 = vpop.f32.mrb[0].mxu0
    %v6269 = vadd.f32 %v6156, %v6268
    %v6270 = vpop.f32.mrb[0].mxu0
    %v6271 = vadd.f32 %v6158, %v6270
    %6272 = vmatprep.mubr.bf16.mxu0 %v2283
    %6273 = vmatmul.mubr.bf16.gmra.mrb[0].mxu0 %v2282
    %v6274 = vpop.f32.mrb[0].mxu0
    %v6275 = vadd.f32 %v6162, %v6274
    %v6276 = vpop.f32.mrb[0].mxu0
    %v6277 = vadd.f32 %v6164, %v6276
    %v6278 = vpop.f32.mrb[0].mxu0
    %v6279 = vadd.f32 %v6166, %v6278
    %v6280 = vpop.f32.mrb[0].mxu0
    %v6281 = vadd.f32 %v6168, %v6280
    %6282 = vmatprep.mubr.bf16.mxu0 %v2292
    %6283 = vmatmul.mubr.bf16.gmra.mrb[0].mxu0 %v2291
    %v6284 = vpop.f32.mrb[0].mxu0
    %v6285 = vadd.f32 %v6172, %v6284
    %v6286 = vpop.f32.mrb[0].mxu0
    %v6287 = vadd.f32 %v6174, %v6286
    %v6288 = vpop.f32.mrb[0].mxu0
    %v6289 = vadd.f32 %v6176, %v6288
    %v6290 = vpop.f32.mrb[0].mxu0
    %v6291 = vadd.f32 %v6178, %v6290
    %6292 = vmatprep.mubr.bf16.mxu0 %v2301
    %6293 = vmatmul.mubr.bf16.gmra.mrb[0].mxu0 %v2300
    %v6294 = vpop.f32.mrb[0].mxu0
    %v6295 = vadd.f32 %v6182, %v6294
    %v6296 = vpop.f32.mrb[0].mxu0
    %v6297 = vadd.f32 %v6184, %v6296
    %v6298 = vpop.f32.mrb[0].mxu0
    %v6299 = vadd.f32 %v6186, %v6298
    %v6300 = vpop.f32.mrb[0].mxu0
    %v6301 = vadd.f32 %v6188, %v6300
    %6302 = vdwg.mxu0
    %6303 = vmatprep.subr.bf16.mxu0 %v4731
    %6304 = vmatpush1.bf16.msra.mxu0 %v4730
    %6305 = vmatprep.subr.bf16.mxu0 %v4738
    %6306 = vmatpush1.bf16.msra.mxu0 %v4737
    %6307 = vmatprep.subr.bf16.mxu0 %v4745
    %6308 = vmatpush1.bf16.msra.mxu0 %v4744
    %6309 = vmatprep.subr.bf16.mxu0 %v4752
    %6310 = vmatpush1.bf16.msra.mxu0 %v4751
    %6311 = vmatprep.subr.bf16.mxu0 %v4759
    %6312 = vmatpush1.bf16.msra.mxu0 %v4758
    %6313 = vmatprep.subr.bf16.mxu0 %v4766
    %6314 = vmatpush1.bf16.msra.mxu0 %v4765
    %6315 = vmatprep.subr.bf16.mxu0 %v4773
    %6316 = vmatpush1.bf16.msra.mxu0 %v4772
    %6317 = vmatprep.subr.bf16.mxu0 %v4780
    %6318 = vmatpush1.bf16.msra.mxu0 %v4779
    %6319 = vmatprep.subr.bf16.mxu0 %v4787
    %6320 = vmatpush1.bf16.msra.mxu0 %v4786
    %6321 = vmatprep.subr.bf16.mxu0 %v4794
    %6322 = vmatpush1.bf16.msra.mxu0 %v4793
    %6323 = vmatprep.subr.bf16.mxu0 %v4801
    %6324 = vmatpush1.bf16.msra.mxu0 %v4800
    %6325 = vmatprep.subr.bf16.mxu0 %v4808
    %6326 = vmatpush1.bf16.msra.mxu0 %v4807
    %6327 = vmatprep.subr.bf16.mxu0 %v4815
    %6328 = vmatpush1.bf16.msra.mxu0 %v4814
    %6329 = vmatprep.subr.bf16.mxu0 %v4822
    %6330 = vmatpush1.bf16.msra.mxu0 %v4821
    %6331 = vmatprep.subr.bf16.mxu0 %v4829
    %6332 = vmatpush1.bf16.msra.mxu0 %v4828
    %6333 = vmatprep.subr.bf16.mxu0 %v4836
    %6334 = vmatpush1.bf16.msra.mxu0 %v4835
    %6335 = vmatprep.mubr.bf16.mxu0 %v2240
    %6336 = vmatmul.mubr.bf16.gmra.mrb[0].mxu0 %v2239
    %v6337 = vpop.f32.mrb[0].mxu0
    %v6338 = vadd.f32 %v6225, %v6337
    %v6339 = vpop.f32.mrb[0].mxu0
    %v6340 = vadd.f32 %v6227, %v6339
    %v6341 = vpop.f32.mrb[0].mxu0
    %v6342 = vadd.f32 %v6229, %v6341
    %v6343 = vpop.f32.mrb[0].mxu0
    %v6344 = vadd.f32 %v6231, %v6343
    %6345 = vmatprep.mubr.bf16.mxu0 %v2249
    %6346 = vmatmul.mubr.bf16.gmra.mrb[0].mxu0 %v2248
    %v6347 = vpop.f32.mrb[0].mxu0
    %v6348 = vadd.f32 %v6235, %v6347
    %v6349 = vpop.f32.mrb[0].mxu0
    %v6350 = vadd.f32 %v6237, %v6349
    %v6351 = vpop.f32.mrb[0].mxu0
    %v6352 = vadd.f32 %v6239, %v6351
    %v6353 = vpop.f32.mrb[0].mxu0
    %v6354 = vadd.f32 %v6241, %v6353
    %6355 = vmatprep.mubr.bf16.mxu0 %v2258
    %6356 = vmatmul.mubr.bf16.gmra.mrb[0].mxu0 %v2257
    %v6357 = vpop.f32.mrb[0].mxu0
    %v6358 = vadd.f32 %v6245, %v6357
    %v6359 = vpop.f32.mrb[0].mxu0
    %v6360 = vadd.f32 %v6247, %v6359
    %v6361 = vpop.f32.mrb[0].mxu0
    %v6362 = vadd.f32 %v6249, %v6361
    %v6363 = vpop.f32.mrb[0].mxu0
    %v6364 = vadd.f32 %v6251, %v6363
    %6365 = vmatprep.mubr.bf16.mxu0 %v2267
    %6366 = vmatmul.mubr.bf16.gmra.mrb[0].mxu0 %v2266
    %v6367 = vpop.f32.mrb[0].mxu0
    %v6368 = vadd.f32 %v6255, %v6367
    %v6369 = vpop.f32.mrb[0].mxu0
    %v6370 = vadd.f32 %v6257, %v6369
    %v6371 = vpop.f32.mrb[0].mxu0
    %v6372 = vadd.f32 %v6259, %v6371
    %v6373 = vpop.f32.mrb[0].mxu0
    %v6374 = vadd.f32 %v6261, %v6373
    %6375 = vmatprep.mubr.bf16.mxu0 %v2276
    %6376 = vmatmul.mubr.bf16.gmra.mrb[0].mxu0 %v2275
    %v6377 = vpop.f32.mrb[0].mxu0
    %v6378 = vadd.f32 %v6265, %v6377
    %v6379 = vpop.f32.mrb[0].mxu0
    %v6380 = vadd.f32 %v6267, %v6379
    %v6381 = vpop.f32.mrb[0].mxu0
    %v6382 = vadd.f32 %v6269, %v6381
    %v6383 = vpop.f32.mrb[0].mxu0
    %v6384 = vadd.f32 %v6271, %v6383
    %6385 = vmatprep.mubr.bf16.mxu0 %v2285
    %6386 = vmatmul.mubr.bf16.gmra.mrb[0].mxu0 %v2284
    %v6387 = vpop.f32.mrb[0].mxu0
    %v6388 = vadd.f32 %v6275, %v6387
    %v6389 = vpop.f32.mrb[0].mxu0
    %v6390 = vadd.f32 %v6277, %v6389
    %v6391 = vpop.f32.mrb[0].mxu0
    %v6392 = vadd.f32 %v6279, %v6391
    %v6393 = vpop.f32.mrb[0].mxu0
    %v6394 = vadd.f32 %v6281, %v6393
    %6395 = vmatprep.mubr.bf16.mxu0 %v2294
    %6396 = vmatmul.mubr.bf16.gmra.mrb[0].mxu0 %v2293
    %v6397 = vpop.f32.mrb[0].mxu0
    %v6398 = vadd.f32 %v6285, %v6397
    %v6399 = vpop.f32.mrb[0].mxu0
    %v6400 = vadd.f32 %v6287, %v6399
    %v6401 = vpop.f32.mrb[0].mxu0
    %v6402 = vadd.f32 %v6289, %v6401
    %v6403 = vpop.f32.mrb[0].mxu0
    %v6404 = vadd.f32 %v6291, %v6403
    %6405 = vmatprep.mubr.bf16.mxu0 %v2303
    %6406 = vmatmul.mubr.bf16.gmra.mrb[0].mxu0 %v2302
    %v6407 = vpop.f32.mrb[0].mxu0
    %v6408 = vadd.f32 %v6295, %v6407
    %v6409 = vpop.f32.mrb[0].mxu0
    %v6410 = vadd.f32 %v6297, %v6409
    %v6411 = vpop.f32.mrb[0].mxu0
    %v6412 = vadd.f32 %v6299, %v6411
    %v6413 = vpop.f32.mrb[0].mxu0
    %v6414 = vadd.f32 %v6301, %v6413
    %6415 = vdwg.mxu0
    %6416 = vmatprep.subr.bf16.mxu0 %v4843
    %6417 = vmatpush1.bf16.msra.mxu0 %v4842
    %6418 = vmatprep.subr.bf16.mxu0 %v4850
    %6419 = vmatpush1.bf16.msra.mxu0 %v4849
    %6420 = vmatprep.subr.bf16.mxu0 %v4857
    %6421 = vmatpush1.bf16.msra.mxu0 %v4856
    %6422 = vmatprep.subr.bf16.mxu0 %v4864
    %6423 = vmatpush1.bf16.msra.mxu0 %v4863
    %6424 = vmatprep.subr.bf16.mxu0 %v4871
    %6425 = vmatpush1.bf16.msra.mxu0 %v4870
    %6426 = vmatprep.subr.bf16.mxu0 %v4878
    %6427 = vmatpush1.bf16.msra.mxu0 %v4877
    %6428 = vmatprep.subr.bf16.mxu0 %v4885
    %6429 = vmatpush1.bf16.msra.mxu0 %v4884
    %6430 = vmatprep.subr.bf16.mxu0 %v4892
    %6431 = vmatpush1.bf16.msra.mxu0 %v4891
    %6432 = vmatprep.subr.bf16.mxu0 %v4899
    %6433 = vmatpush1.bf16.msra.mxu0 %v4898
    %6434 = vmatprep.subr.bf16.mxu0 %v4906
    %6435 = vmatpush1.bf16.msra.mxu0 %v4905
    %6436 = vmatprep.subr.bf16.mxu0 %v4913
    %6437 = vmatpush1.bf16.msra.mxu0 %v4912
    %6438 = vmatprep.subr.bf16.mxu0 %v4920
    %6439 = vmatpush1.bf16.msra.mxu0 %v4919
    %6440 = vmatprep.subr.bf16.mxu0 %v4927
    %6441 = vmatpush1.bf16.msra.mxu0 %v4926
    %6442 = vmatprep.subr.bf16.mxu0 %v4934
    %6443 = vmatpush1.bf16.msra.mxu0 %v4933
    %6444 = vmatprep.subr.bf16.mxu0 %v4941
    %6445 = vmatpush1.bf16.msra.mxu0 %v4940
    %6446 = vmatprep.subr.bf16.mxu0 %v4948
    %6447 = vmatpush1.bf16.msra.mxu0 %v4947
    %6448 = vmatprep.mubr.bf16.mxu0 %v2242
    %6449 = vmatmul.mubr.bf16.gmra.mrb[0].mxu0 %v2241
    %v6450 = vpop.f32.mrb[0].mxu0
    %v6451 = vadd.f32 %v6338, %v6450
    %v6452 = vpop.f32.mrb[0].mxu0
    %v6453 = vadd.f32 %v6340, %v6452
    %v6454 = vpop.f32.mrb[0].mxu0
    %v6455 = vadd.f32 %v6342, %v6454
    %v6456 = vpop.f32.mrb[0].mxu0
    %v6457 = vadd.f32 %v6344, %v6456
    %6458 = vmatprep.mubr.bf16.mxu0 %v2251
    %6459 = vmatmul.mubr.bf16.gmra.mrb[0].mxu0 %v2250
    %v6460 = vpop.f32.mrb[0].mxu0
    %v6461 = vadd.f32 %v6348, %v6460
    %v6462 = vpop.f32.mrb[0].mxu0
    %v6463 = vadd.f32 %v6350, %v6462
    %v6464 = vpop.f32.mrb[0].mxu0
    %v6465 = vadd.f32 %v6352, %v6464
    %v6466 = vpop.f32.mrb[0].mxu0
    %v6467 = vadd.f32 %v6354, %v6466
    %6468 = vmatprep.mubr.bf16.mxu0 %v2260
    %6469 = vmatmul.mubr.bf16.gmra.mrb[0].mxu0 %v2259
    %v6470 = vpop.f32.mrb[0].mxu0
    %v6471 = vadd.f32 %v6358, %v6470
    %v6472 = vpop.f32.mrb[0].mxu0
    %v6473 = vadd.f32 %v6360, %v6472
    %v6474 = vpop.f32.mrb[0].mxu0
    %v6475 = vadd.f32 %v6362, %v6474
    %v6476 = vpop.f32.mrb[0].mxu0
    %v6477 = vadd.f32 %v6364, %v6476
    %6478 = vmatprep.mubr.bf16.mxu0 %v2269
    %6479 = vmatmul.mubr.bf16.gmra.mrb[0].mxu0 %v2268
    %v6480 = vpop.f32.mrb[0].mxu0
    %v6481 = vadd.f32 %v6368, %v6480
    %v6482 = vpop.f32.mrb[0].mxu0
    %v6483 = vadd.f32 %v6370, %v6482
    %v6484 = vpop.f32.mrb[0].mxu0
    %v6485 = vadd.f32 %v6372, %v6484
    %v6486 = vpop.f32.mrb[0].mxu0
    %v6487 = vadd.f32 %v6374, %v6486
    %6488 = vmatprep.mubr.bf16.mxu0 %v2278
    %6489 = vmatmul.mubr.bf16.gmra.mrb[0].mxu0 %v2277
    %v6490 = vpop.f32.mrb[0].mxu0
    %v6491 = vadd.f32 %v6378, %v6490
    %v6492 = vpop.f32.mrb[0].mxu0
    %v6493 = vadd.f32 %v6380, %v6492
    %v6494 = vpop.f32.mrb[0].mxu0
    %v6495 = vadd.f32 %v6382, %v6494
    %v6496 = vpop.f32.mrb[0].mxu0
    %v6497 = vadd.f32 %v6384, %v6496
    %6498 = vmatprep.mubr.bf16.mxu0 %v2287
    %6499 = vmatmul.mubr.bf16.gmra.mrb[0].mxu0 %v2286
    %v6500 = vpop.f32.mrb[0].mxu0
    %v6501 = vadd.f32 %v6388, %v6500
    %v6502 = vpop.f32.mrb[0].mxu0
    %v6503 = vadd.f32 %v6390, %v6502
    %v6504 = vpop.f32.mrb[0].mxu0
    %v6505 = vadd.f32 %v6392, %v6504
    %v6506 = vpop.f32.mrb[0].mxu0
    %v6507 = vadd.f32 %v6394, %v6506
    %6508 = vmatprep.mubr.bf16.mxu0 %v2296
    %6509 = vmatmul.mubr.bf16.gmra.mrb[0].mxu0 %v2295
    %v6510 = vpop.f32.mrb[0].mxu0
    %v6511 = vadd.f32 %v6398, %v6510
    %v6512 = vpop.f32.mrb[0].mxu0
    %v6513 = vadd.f32 %v6400, %v6512
    %v6514 = vpop.f32.mrb[0].mxu0
    %v6515 = vadd.f32 %v6402, %v6514
    %v6516 = vpop.f32.mrb[0].mxu0
    %v6517 = vadd.f32 %v6404, %v6516
    %6518 = vmatprep.mubr.bf16.mxu0 %v2305
    %6519 = vmatmul.mubr.bf16.gmra.mrb[0].mxu0 %v2304
    %v6520 = vpop.f32.mrb[0].mxu0
    %v6521 = vadd.f32 %v6408, %v6520
    %v6522 = vpop.f32.mrb[0].mxu0
    %v6523 = vadd.f32 %v6410, %v6522
    %v6524 = vpop.f32.mrb[0].mxu0
    %v6525 = vadd.f32 %v6412, %v6524
    %v6526 = vpop.f32.mrb[0].mxu0
    %v6527 = vadd.f32 %v6414, %v6526
    %6528 = vdwg.mxu0
    %6529 = vmatprep.subr.bf16.mxu0 %v4955
    %6530 = vmatpush1.bf16.msra.mxu0 %v4954
    %6531 = vmatprep.subr.bf16.mxu0 %v4962
    %6532 = vmatpush1.bf16.msra.mxu0 %v4961
    %6533 = vmatprep.subr.bf16.mxu0 %v4969
    %6534 = vmatpush1.bf16.msra.mxu0 %v4968
    %6535 = vmatprep.subr.bf16.mxu0 %v4976
    %6536 = vmatpush1.bf16.msra.mxu0 %v4975
    %6537 = vmatprep.subr.bf16.mxu0 %v4983
    %6538 = vmatpush1.bf16.msra.mxu0 %v4982
    %6539 = vmatprep.subr.bf16.mxu0 %v4990
    %6540 = vmatpush1.bf16.msra.mxu0 %v4989
    %6541 = vmatprep.subr.bf16.mxu0 %v4997
    %6542 = vmatpush1.bf16.msra.mxu0 %v4996
    %6543 = vmatprep.subr.bf16.mxu0 %v5004
    %6544 = vmatpush1.bf16.msra.mxu0 %v5003
    %6545 = vmatprep.subr.bf16.mxu0 0
    %6546 = vmatpush1.bf16.msra.mxu0 0
    %6547 = vmatprep.subr.bf16.mxu0 0
    %6548 = vmatpush1.bf16.msra.mxu0 0
    %6549 = vmatprep.subr.bf16.mxu0 0
    %6550 = vmatpush1.bf16.msra.mxu0 0
    %6551 = vmatprep.subr.bf16.mxu0 0
    %6552 = vmatpush1.bf16.msra.mxu0 0
    %6553 = vmatprep.subr.bf16.mxu0 0
    %6554 = vmatpush1.bf16.msra.mxu0 0
    %6555 = vmatprep.subr.bf16.mxu0 0
    %6556 = vmatpush1.bf16.msra.mxu0 0
    %6557 = vmatprep.subr.bf16.mxu0 0
    %6558 = vmatpush1.bf16.msra.mxu0 0
    %6559 = vmatprep.subr.bf16.mxu0 0
    %6560 = vmatpush1.bf16.msra.mxu0 0
    %6561 = vmatprep.mubr.bf16.mxu0 0
    %6562 = vmatmul.mubr.bf16.gmra.mrb[0].mxu0 %v2243
    %v6563 = vpop.f32.mrb[0].mxu0
    %v6564 = vadd.f32 %v6451, %v6563
    %v6565 = vpop.f32.mrb[0].mxu0
    %v6566 = vadd.f32 %v6453, %v6565
    %v6567 = vpop.f32.mrb[0].mxu0
    %v6568 = vadd.f32 %v6455, %v6567
    %v6569 = vpop.f32.mrb[0].mxu0
    %v6570 = vadd.f32 %v6457, %v6569
    %6571 = vmatprep.mubr.bf16.mxu0 0
    %6572 = vmatmul.mubr.bf16.gmra.mrb[0].mxu0 %v2252
    %v6573 = vpop.f32.mrb[0].mxu0
    %v6574 = vadd.f32 %v6461, %v6573
    %v6575 = vpop.f32.mrb[0].mxu0
    %v6576 = vadd.f32 %v6463, %v6575
    %v6577 = vpop.f32.mrb[0].mxu0
    %v6578 = vadd.f32 %v6465, %v6577
    %v6579 = vpop.f32.mrb[0].mxu0
    %v6580 = vadd.f32 %v6467, %v6579
    %6581 = vmatprep.mubr.bf16.mxu0 0
    %6582 = vmatmul.mubr.bf16.gmra.mrb[0].mxu0 %v2261
    %v6583 = vpop.f32.mrb[0].mxu0
    %v6584 = vadd.f32 %v6471, %v6583
    %v6585 = vpop.f32.mrb[0].mxu0
    %v6586 = vadd.f32 %v6473, %v6585
    %v6587 = vpop.f32.mrb[0].mxu0
    %v6588 = vadd.f32 %v6475, %v6587
    %v6589 = vpop.f32.mrb[0].mxu0
    %v6590 = vadd.f32 %v6477, %v6589
    %6591 = vmatprep.mubr.bf16.mxu0 0
    %6592 = vmatmul.mubr.bf16.gmra.mrb[0].mxu0 %v2270
    %v6593 = vpop.f32.mrb[0].mxu0
    %v6594 = vadd.f32 %v6481, %v6593
    %v6595 = vpop.f32.mrb[0].mxu0
    %v6596 = vadd.f32 %v6483, %v6595
    %v6597 = vpop.f32.mrb[0].mxu0
    %v6598 = vadd.f32 %v6485, %v6597
    %v6599 = vpop.f32.mrb[0].mxu0
    %v6600 = vadd.f32 %v6487, %v6599
    %6601 = vmatprep.mubr.bf16.mxu0 0
    %6602 = vmatmul.mubr.bf16.gmra.mrb[0].mxu0 %v2279
    %v6603 = vpop.f32.mrb[0].mxu0
    %v6604 = vadd.f32 %v6491, %v6603
    %v6605 = vpop.f32.mrb[0].mxu0
    %v6606 = vadd.f32 %v6493, %v6605
    %v6607 = vpop.f32.mrb[0].mxu0
    %v6608 = vadd.f32 %v6495, %v6607
    %v6609 = vpop.f32.mrb[0].mxu0
    %v6610 = vadd.f32 %v6497, %v6609
    %6611 = vmatprep.mubr.bf16.mxu0 0
    %6612 = vmatmul.mubr.bf16.gmra.mrb[0].mxu0 %v2288
    %v6613 = vpop.f32.mrb[0].mxu0
    %v6614 = vadd.f32 %v6501, %v6613
    %v6615 = vpop.f32.mrb[0].mxu0
    %v6616 = vadd.f32 %v6503, %v6615
    %v6617 = vpop.f32.mrb[0].mxu0
    %v6618 = vadd.f32 %v6505, %v6617
    %v6619 = vpop.f32.mrb[0].mxu0
    %v6620 = vadd.f32 %v6507, %v6619
    %6621 = vmatprep.mubr.bf16.mxu0 0
    %6622 = vmatmul.mubr.bf16.gmra.mrb[0].mxu0 %v2297
    %v6623 = vpop.f32.mrb[0].mxu0
    %v6624 = vadd.f32 %v6511, %v6623
    %v6625 = vpop.f32.mrb[0].mxu0
    %v6626 = vadd.f32 %v6513, %v6625
    %v6627 = vpop.f32.mrb[0].mxu0
    %v6628 = vadd.f32 %v6515, %v6627
    %v6629 = vpop.f32.mrb[0].mxu0
    %v6630 = vadd.f32 %v6517, %v6629
    %6631 = vmatprep.mubr.bf16.mxu0 0
    %6632 = vmatmul.mubr.bf16.gmra.mrb[0].mxu0 %v2306
    %v6633 = vpop.f32.mrb[0].mxu0
    %v6634 = vadd.f32 %v6521, %v6633
    %v6635 = vpop.f32.mrb[0].mxu0
    %v6636 = vadd.f32 %v6523, %v6635
    %v6637 = vpop.f32.mrb[0].mxu0
    %v6638 = vadd.f32 %v6525, %v6637
    %v6639 = vpop.f32.mrb[0].mxu0
    %v6640 = vadd.f32 %v6527, %v6639
    %6641 = vdwg.mxu0
    %6642 = vmatprep.subr.bf16.mxu0 %v4509
    %6643 = vmatpush1.bf16.msra.mxu0 %v4508
    %6644 = vmatprep.subr.bf16.mxu0 %v4516
    %6645 = vmatpush1.bf16.msra.mxu0 %v4515
    %6646 = vmatprep.subr.bf16.mxu0 %v4523
    %6647 = vmatpush1.bf16.msra.mxu0 %v4522
    %6648 = vmatprep.subr.bf16.mxu0 %v4530
    %6649 = vmatpush1.bf16.msra.mxu0 %v4529
    %6650 = vmatprep.subr.bf16.mxu0 %v4537
    %6651 = vmatpush1.bf16.msra.mxu0 %v4536
    %6652 = vmatprep.subr.bf16.mxu0 %v4544
    %6653 = vmatpush1.bf16.msra.mxu0 %v4543
    %6654 = vmatprep.subr.bf16.mxu0 %v4551
    %6655 = vmatpush1.bf16.msra.mxu0 %v4550
    %6656 = vmatprep.subr.bf16.mxu0 %v4558
    %6657 = vmatpush1.bf16.msra.mxu0 %v4557
    %6658 = vmatprep.subr.bf16.mxu0 %v4565
    %6659 = vmatpush1.bf16.msra.mxu0 %v4564
    %6660 = vmatprep.subr.bf16.mxu0 %v4572
    %6661 = vmatpush1.bf16.msra.mxu0 %v4571
    %6662 = vmatprep.subr.bf16.mxu0 %v4579
    %6663 = vmatpush1.bf16.msra.mxu0 %v4578
    %6664 = vmatprep.subr.bf16.mxu0 %v4586
    %6665 = vmatpush1.bf16.msra.mxu0 %v4585
    %6666 = vmatprep.subr.bf16.mxu0 %v4593
    %6667 = vmatpush1.bf16.msra.mxu0 %v4592
    %6668 = vmatprep.subr.bf16.mxu0 %v4600
    %6669 = vmatpush1.bf16.msra.mxu0 %v4599
    %6670 = vmatprep.subr.bf16.mxu0 %v4607
    %6671 = vmatpush1.bf16.msra.mxu0 %v4606
    %6672 = vmatprep.subr.bf16.mxu0 %v4614
    %6673 = vmatpush1.bf16.msra.mxu0 %v4613
    %6674 = vmatprep.mubr.bf16.mxu0 %v2236
    %6675 = vmatmul.mubr.bf16.gmra.mrb[0].mxu0 %v2235
    %v6676 = vpop.f32.mrb[0].mxu0
    %v6677 = vadd.f32 %v2904, %v6676
    %v6678 = vpop.f32.mrb[0].mxu0
    %v6679 = vadd.f32 %v2908, %v6678
    %v6680 = vpop.f32.mrb[0].mxu0
    %v6681 = vadd.f32 %v2904, %v6680
    %v6682 = vpop.f32.mrb[0].mxu0
    %v6683 = vadd.f32 %v2908, %v6682
    %6684 = vmatprep.mubr.bf16.mxu0 %v2245
    %6685 = vmatmul.mubr.bf16.gmra.mrb[0].mxu0 %v2244
    %v6686 = vpop.f32.mrb[0].mxu0
    %v6687 = vadd.f32 %v2904, %v6686
    %v6688 = vpop.f32.mrb[0].mxu0
    %v6689 = vadd.f32 %v2908, %v6688
    %v6690 = vpop.f32.mrb[0].mxu0
    %v6691 = vadd.f32 %v2904, %v6690
    %v6692 = vpop.f32.mrb[0].mxu0
    %v6693 = vadd.f32 %v2908, %v6692
    %6694 = vmatprep.mubr.bf16.mxu0 %v2254
    %6695 = vmatmul.mubr.bf16.gmra.mrb[0].mxu0 %v2253
    %v6696 = vpop.f32.mrb[0].mxu0
    %v6697 = vadd.f32 %v2904, %v6696
    %v6698 = vpop.f32.mrb[0].mxu0
    %v6699 = vadd.f32 %v2908, %v6698
    %v6700 = vpop.f32.mrb[0].mxu0
    %v6701 = vadd.f32 %v2904, %v6700
    %v6702 = vpop.f32.mrb[0].mxu0
    %v6703 = vadd.f32 %v2908, %v6702
    %6704 = vmatprep.mubr.bf16.mxu0 %v2263
    %6705 = vmatmul.mubr.bf16.gmra.mrb[0].mxu0 %v2262
    %v6706 = vpop.f32.mrb[0].mxu0
    %v6707 = vadd.f32 %v2904, %v6706
    %v6708 = vpop.f32.mrb[0].mxu0
    %v6709 = vadd.f32 %v2908, %v6708
    %v6710 = vpop.f32.mrb[0].mxu0
    %v6711 = vadd.f32 %v2904, %v6710
    %v6712 = vpop.f32.mrb[0].mxu0
    %v6713 = vadd.f32 %v2908, %v6712
    %6714 = vmatprep.mubr.bf16.mxu0 %v2272
    %6715 = vmatmul.mubr.bf16.gmra.mrb[0].mxu0 %v2271
    %v6716 = vpop.f32.mrb[0].mxu0
    %v6717 = vadd.f32 %v2904, %v6716
    %v6718 = vpop.f32.mrb[0].mxu0
    %v6719 = vadd.f32 %v2908, %v6718
    %v6720 = vpop.f32.mrb[0].mxu0
    %v6721 = vadd.f32 %v2904, %v6720
    %v6722 = vpop.f32.mrb[0].mxu0
    %v6723 = vadd.f32 %v2908, %v6722
    %6724 = vmatprep.mubr.bf16.mxu0 %v2281
    %6725 = vmatmul.mubr.bf16.gmra.mrb[0].mxu0 %v2280
    %v6726 = vpop.f32.mrb[0].mxu0
    %v6727 = vadd.f32 %v2904, %v6726
    %v6728 = vpop.f32.mrb[0].mxu0
    %v6729 = vadd.f32 %v2908, %v6728
    %v6730 = vpop.f32.mrb[0].mxu0
    %v6731 = vadd.f32 %v2904, %v6730
    %v6732 = vpop.f32.mrb[0].mxu0
    %v6733 = vadd.f32 %v2908, %v6732
    %6734 = vmatprep.mubr.bf16.mxu0 %v2290
    %6735 = vmatmul.mubr.bf16.gmra.mrb[0].mxu0 %v2289
    %v6736 = vpop.f32.mrb[0].mxu0
    %v6737 = vadd.f32 %v2904, %v6736
    %v6738 = vpop.f32.mrb[0].mxu0
    %v6739 = vadd.f32 %v2908, %v6738
    %v6740 = vpop.f32.mrb[0].mxu0
    %v6741 = vadd.f32 %v2904, %v6740
    %v6742 = vpop.f32.mrb[0].mxu0
    %v6743 = vadd.f32 %v2908, %v6742
    %6744 = vmatprep.mubr.bf16.mxu0 %v2299
    %6745 = vmatmul.mubr.bf16.gmra.mrb[0].mxu0 %v2298
    %v6746 = vpop.f32.mrb[0].mxu0
    %v6747 = vadd.f32 %v2904, %v6746
    %v6748 = vpop.f32.mrb[0].mxu0
    %v6749 = vadd.f32 %v2908, %v6748
    %v6750 = vpop.f32.mrb[0].mxu0
    %v6751 = vadd.f32 %v2904, %v6750
    %v6752 = vpop.f32.mrb[0].mxu0
    %v6753 = vadd.f32 %v2908, %v6752
    %6754 = vdwg.mxu0
    %6755 = vmatprep.subr.bf16.mxu0 %v4621
    %6756 = vmatpush1.bf16.msra.mxu0 %v4620
    %6757 = vmatprep.subr.bf16.mxu0 %v4628
    %6758 = vmatpush1.bf16.msra.mxu0 %v4627
    %6759 = vmatprep.subr.bf16.mxu0 %v4635
    %6760 = vmatpush1.bf16.msra.mxu0 %v4634
    %6761 = vmatprep.subr.bf16.mxu0 %v4642
    %6762 = vmatpush1.bf16.msra.mxu0 %v4641
    %6763 = vmatprep.subr.bf16.mxu0 %v4649
    %6764 = vmatpush1.bf16.msra.mxu0 %v4648
    %6765 = vmatprep.subr.bf16.mxu0 %v4656
    %6766 = vmatpush1.bf16.msra.mxu0 %v4655
    %6767 = vmatprep.subr.bf16.mxu0 %v4663
    %6768 = vmatpush1.bf16.msra.mxu0 %v4662
    %6769 = vmatprep.subr.bf16.mxu0 %v4670
    %6770 = vmatpush1.bf16.msra.mxu0 %v4669
    %6771 = vmatprep.subr.bf16.mxu0 %v4677
    %6772 = vmatpush1.bf16.msra.mxu0 %v4676
    %6773 = vmatprep.subr.bf16.mxu0 %v4684
    %6774 = vmatpush1.bf16.msra.mxu0 %v4683
    %6775 = vmatprep.subr.bf16.mxu0 %v4691
    %6776 = vmatpush1.bf16.msra.mxu0 %v4690
    %6777 = vmatprep.subr.bf16.mxu0 %v4698
    %6778 = vmatpush1.bf16.msra.mxu0 %v4697
    %6779 = vmatprep.subr.bf16.mxu0 %v4705
    %6780 = vmatpush1.bf16.msra.mxu0 %v4704
    %6781 = vmatprep.subr.bf16.mxu0 %v4712
    %6782 = vmatpush1.bf16.msra.mxu0 %v4711
    %6783 = vmatprep.subr.bf16.mxu0 %v4719
    %6784 = vmatpush1.bf16.msra.mxu0 %v4718
    %6785 = vmatprep.subr.bf16.mxu0 %v4726
    %6786 = vmatpush1.bf16.msra.mxu0 %v4725
    %6787 = vmatprep.mubr.bf16.mxu0 %v2238
    %6788 = vmatmul.mubr.bf16.gmra.mrb[0].mxu0 %v2237
    %v6789 = vpop.f32.mrb[0].mxu0
    %v6790 = vadd.f32 %v6677, %v6789
    %v6791 = vpop.f32.mrb[0].mxu0
    %v6792 = vadd.f32 %v6679, %v6791
    %v6793 = vpop.f32.mrb[0].mxu0
    %v6794 = vadd.f32 %v6681, %v6793
    %v6795 = vpop.f32.mrb[0].mxu0
    %v6796 = vadd.f32 %v6683, %v6795
    %6797 = vmatprep.mubr.bf16.mxu0 %v2247
    %6798 = vmatmul.mubr.bf16.gmra.mrb[0].mxu0 %v2246
    %v6799 = vpop.f32.mrb[0].mxu0
    %v6800 = vadd.f32 %v6687, %v6799
    %v6801 = vpop.f32.mrb[0].mxu0
    %v6802 = vadd.f32 %v6689, %v6801
    %v6803 = vpop.f32.mrb[0].mxu0
    %v6804 = vadd.f32 %v6691, %v6803
    %v6805 = vpop.f32.mrb[0].mxu0
    %v6806 = vadd.f32 %v6693, %v6805
    %6807 = vmatprep.mubr.bf16.mxu0 %v2256
    %6808 = vmatmul.mubr.bf16.gmra.mrb[0].mxu0 %v2255
    %v6809 = vpop.f32.mrb[0].mxu0
    %v6810 = vadd.f32 %v6697, %v6809
    %v6811 = vpop.f32.mrb[0].mxu0
    %v6812 = vadd.f32 %v6699, %v6811
    %v6813 = vpop.f32.mrb[0].mxu0
    %v6814 = vadd.f32 %v6701, %v6813
    %v6815 = vpop.f32.mrb[0].mxu0
    %v6816 = vadd.f32 %v6703, %v6815
    %6817 = vmatprep.mubr.bf16.mxu0 %v2265
    %6818 = vmatmul.mubr.bf16.gmra.mrb[0].mxu0 %v2264
    %v6819 = vpop.f32.mrb[0].mxu0
    %v6820 = vadd.f32 %v6707, %v6819
    %v6821 = vpop.f32.mrb[0].mxu0
    %v6822 = vadd.f32 %v6709, %v6821
    %v6823 = vpop.f32.mrb[0].mxu0
    %v6824 = vadd.f32 %v6711, %v6823
    %v6825 = vpop.f32.mrb[0].mxu0
    %v6826 = vadd.f32 %v6713, %v6825
    %6827 = vmatprep.mubr.bf16.mxu0 %v2274
    %6828 = vmatmul.mubr.bf16.gmra.mrb[0].mxu0 %v2273
    %v6829 = vpop.f32.mrb[0].mxu0
    %v6830 = vadd.f32 %v6717, %v6829
    %v6831 = vpop.f32.mrb[0].mxu0
    %v6832 = vadd.f32 %v6719, %v6831
    %v6833 = vpop.f32.mrb[0].mxu0
    %v6834 = vadd.f32 %v6721, %v6833
    %v6835 = vpop.f32.mrb[0].mxu0
    %v6836 = vadd.f32 %v6723, %v6835
    %6837 = vmatprep.mubr.bf16.mxu0 %v2283
    %6838 = vmatmul.mubr.bf16.gmra.mrb[0].mxu0 %v2282
    %v6839 = vpop.f32.mrb[0].mxu0
    %v6840 = vadd.f32 %v6727, %v6839
    %v6841 = vpop.f32.mrb[0].mxu0
    %v6842 = vadd.f32 %v6729, %v6841
    %v6843 = vpop.f32.mrb[0].mxu0
    %v6844 = vadd.f32 %v6731, %v6843
    %v6845 = vpop.f32.mrb[0].mxu0
    %v6846 = vadd.f32 %v6733, %v6845
    %6847 = vmatprep.mubr.bf16.mxu0 %v2292
    %6848 = vmatmul.mubr.bf16.gmra.mrb[0].mxu0 %v2291
    %v6849 = vpop.f32.mrb[0].mxu0
    %v6850 = vadd.f32 %v6737, %v6849
    %v6851 = vpop.f32.mrb[0].mxu0
    %v6852 = vadd.f32 %v6739, %v6851
    %v6853 = vpop.f32.mrb[0].mxu0
    %v6854 = vadd.f32 %v6741, %v6853
    %v6855 = vpop.f32.mrb[0].mxu0
    %v6856 = vadd.f32 %v6743, %v6855
    %6857 = vmatprep.mubr.bf16.mxu0 %v2301
    %6858 = vmatmul.mubr.bf16.gmra.mrb[0].mxu0 %v2300
    %v6859 = vpop.f32.mrb[0].mxu0
    %v6860 = vadd.f32 %v6747, %v6859
    %v6861 = vpop.f32.mrb[0].mxu0
    %v6862 = vadd.f32 %v6749, %v6861
    %v6863 = vpop.f32.mrb[0].mxu0
    %v6864 = vadd.f32 %v6751, %v6863
    %v6865 = vpop.f32.mrb[0].mxu0
    %v6866 = vadd.f32 %v6753, %v6865
    %6867 = vdwg.mxu0
    %6868 = vmatprep.subr.bf16.mxu0 %v4733
    %6869 = vmatpush1.bf16.msra.mxu0 %v4732
    %6870 = vmatprep.subr.bf16.mxu0 %v4740
    %6871 = vmatpush1.bf16.msra.mxu0 %v4739
    %6872 = vmatprep.subr.bf16.mxu0 %v4747
    %6873 = vmatpush1.bf16.msra.mxu0 %v4746
    %6874 = vmatprep.subr.bf16.mxu0 %v4754
    %6875 = vmatpush1.bf16.msra.mxu0 %v4753
    %6876 = vmatprep.subr.bf16.mxu0 %v4761
    %6877 = vmatpush1.bf16.msra.mxu0 %v4760
    %6878 = vmatprep.subr.bf16.mxu0 %v4768
    %6879 = vmatpush1.bf16.msra.mxu0 %v4767
    %6880 = vmatprep.subr.bf16.mxu0 %v4775
    %6881 = vmatpush1.bf16.msra.mxu0 %v4774
    %6882 = vmatprep.subr.bf16.mxu0 %v4782
    %6883 = vmatpush1.bf16.msra.mxu0 %v4781
    %6884 = vmatprep.subr.bf16.mxu0 %v4789
    %6885 = vmatpush1.bf16.msra.mxu0 %v4788
    %6886 = vmatprep.subr.bf16.mxu0 %v4796
    %6887 = vmatpush1.bf16.msra.mxu0 %v4795
    %6888 = vmatprep.subr.bf16.mxu0 %v4803
    %6889 = vmatpush1.bf16.msra.mxu0 %v4802
    %6890 = vmatprep.subr.bf16.mxu0 %v4810
    %6891 = vmatpush1.bf16.msra.mxu0 %v4809
    %6892 = vmatprep.subr.bf16.mxu0 %v4817
    %6893 = vmatpush1.bf16.msra.mxu0 %v4816
    %6894 = vmatprep.subr.bf16.mxu0 %v4824
    %6895 = vmatpush1.bf16.msra.mxu0 %v4823
    %6896 = vmatprep.subr.bf16.mxu0 %v4831
    %6897 = vmatpush1.bf16.msra.mxu0 %v4830
    %6898 = vmatprep.subr.bf16.mxu0 %v4838
    %6899 = vmatpush1.bf16.msra.mxu0 %v4837
    %6900 = vmatprep.mubr.bf16.mxu0 %v2240
    %6901 = vmatmul.mubr.bf16.gmra.mrb[0].mxu0 %v2239
    %v6902 = vpop.f32.mrb[0].mxu0
    %v6903 = vadd.f32 %v6790, %v6902
    %v6904 = vpop.f32.mrb[0].mxu0
    %v6905 = vadd.f32 %v6792, %v6904
    %v6906 = vpop.f32.mrb[0].mxu0
    %v6907 = vadd.f32 %v6794, %v6906
    %v6908 = vpop.f32.mrb[0].mxu0
    %v6909 = vadd.f32 %v6796, %v6908
    %6910 = vmatprep.mubr.bf16.mxu0 %v2249
    %6911 = vmatmul.mubr.bf16.gmra.mrb[0].mxu0 %v2248
    %v6912 = vpop.f32.mrb[0].mxu0
    %v6913 = vadd.f32 %v6800, %v6912
    %v6914 = vpop.f32.mrb[0].mxu0
    %v6915 = vadd.f32 %v6802, %v6914
    %v6916 = vpop.f32.mrb[0].mxu0
    %v6917 = vadd.f32 %v6804, %v6916
    %v6918 = vpop.f32.mrb[0].mxu0
    %v6919 = vadd.f32 %v6806, %v6918
    %6920 = vmatprep.mubr.bf16.mxu0 %v2258
    %6921 = vmatmul.mubr.bf16.gmra.mrb[0].mxu0 %v2257
    %v6922 = vpop.f32.mrb[0].mxu0
    %v6923 = vadd.f32 %v6810, %v6922
    %v6924 = vpop.f32.mrb[0].mxu0
    %v6925 = vadd.f32 %v6812, %v6924
    %v6926 = vpop.f32.mrb[0].mxu0
    %v6927 = vadd.f32 %v6814, %v6926
    %v6928 = vpop.f32.mrb[0].mxu0
    %v6929 = vadd.f32 %v6816, %v6928
    %6930 = vmatprep.mubr.bf16.mxu0 %v2267
    %6931 = vmatmul.mubr.bf16.gmra.mrb[0].mxu0 %v2266
    %v6932 = vpop.f32.mrb[0].mxu0
    %v6933 = vadd.f32 %v6820, %v6932
    %v6934 = vpop.f32.mrb[0].mxu0
    %v6935 = vadd.f32 %v6822, %v6934
    %v6936 = vpop.f32.mrb[0].mxu0
    %v6937 = vadd.f32 %v6824, %v6936
    %v6938 = vpop.f32.mrb[0].mxu0
    %v6939 = vadd.f32 %v6826, %v6938
    %6940 = vmatprep.mubr.bf16.mxu0 %v2276
    %6941 = vmatmul.mubr.bf16.gmra.mrb[0].mxu0 %v2275
    %v6942 = vpop.f32.mrb[0].mxu0
    %v6943 = vadd.f32 %v6830, %v6942
    %v6944 = vpop.f32.mrb[0].mxu0
    %v6945 = vadd.f32 %v6832, %v6944
    %v6946 = vpop.f32.mrb[0].mxu0
    %v6947 = vadd.f32 %v6834, %v6946
    %v6948 = vpop.f32.mrb[0].mxu0
    %v6949 = vadd.f32 %v6836, %v6948
    %6950 = vmatprep.mubr.bf16.mxu0 %v2285
    %6951 = vmatmul.mubr.bf16.gmra.mrb[0].mxu0 %v2284
    %v6952 = vpop.f32.mrb[0].mxu0
    %v6953 = vadd.f32 %v6840, %v6952
    %v6954 = vpop.f32.mrb[0].mxu0
    %v6955 = vadd.f32 %v6842, %v6954
    %v6956 = vpop.f32.mrb[0].mxu0
    %v6957 = vadd.f32 %v6844, %v6956
    %v6958 = vpop.f32.mrb[0].mxu0
    %v6959 = vadd.f32 %v6846, %v6958
    %6960 = vmatprep.mubr.bf16.mxu0 %v2294
    %6961 = vmatmul.mubr.bf16.gmra.mrb[0].mxu0 %v2293
    %v6962 = vpop.f32.mrb[0].mxu0
    %v6963 = vadd.f32 %v6850, %v6962
    %v6964 = vpop.f32.mrb[0].mxu0
    %v6965 = vadd.f32 %v6852, %v6964
    %v6966 = vpop.f32.mrb[0].mxu0
    %v6967 = vadd.f32 %v6854, %v6966
    %v6968 = vpop.f32.mrb[0].mxu0
    %v6969 = vadd.f32 %v6856, %v6968
    %6970 = vmatprep.mubr.bf16.mxu0 %v2303
    %6971 = vmatmul.mubr.bf16.gmra.mrb[0].mxu0 %v2302
    %v6972 = vpop.f32.mrb[0].mxu0
    %v6973 = vadd.f32 %v6860, %v6972
    %v6974 = vpop.f32.mrb[0].mxu0
    %v6975 = vadd.f32 %v6862, %v6974
    %v6976 = vpop.f32.mrb[0].mxu0
    %v6977 = vadd.f32 %v6864, %v6976
    %v6978 = vpop.f32.mrb[0].mxu0
    %v6979 = vadd.f32 %v6866, %v6978
    %6980 = vdwg.mxu0
    %6981 = vmatprep.subr.bf16.mxu0 %v4845
    %6982 = vmatpush1.bf16.msra.mxu0 %v4844
    %6983 = vmatprep.subr.bf16.mxu0 %v4852
    %6984 = vmatpush1.bf16.msra.mxu0 %v4851
    %6985 = vmatprep.subr.bf16.mxu0 %v4859
    %6986 = vmatpush1.bf16.msra.mxu0 %v4858
    %6987 = vmatprep.subr.bf16.mxu0 %v4866
    %6988 = vmatpush1.bf16.msra.mxu0 %v4865
    %6989 = vmatprep.subr.bf16.mxu0 %v4873
    %6990 = vmatpush1.bf16.msra.mxu0 %v4872
    %6991 = vmatprep.subr.bf16.mxu0 %v4880
    %6992 = vmatpush1.bf16.msra.mxu0 %v4879
    %6993 = vmatprep.subr.bf16.mxu0 %v4887
    %6994 = vmatpush1.bf16.msra.mxu0 %v4886
    %6995 = vmatprep.subr.bf16.mxu0 %v4894
    %6996 = vmatpush1.bf16.msra.mxu0 %v4893
    %6997 = vmatprep.subr.bf16.mxu0 %v4901
    %6998 = vmatpush1.bf16.msra.mxu0 %v4900
    %6999 = vmatprep.subr.bf16.mxu0 %v4908
    %7000 = vmatpush1.bf16.msra.mxu0 %v4907
    %7001 = vmatprep.subr.bf16.mxu0 %v4915
    %7002 = vmatpush1.bf16.msra.mxu0 %v4914
    %7003 = vmatprep.subr.bf16.mxu0 %v4922
    %7004 = vmatpush1.bf16.msra.mxu0 %v4921
    %7005 = vmatprep.subr.bf16.mxu0 %v4929
    %7006 = vmatpush1.bf16.msra.mxu0 %v4928
    %7007 = vmatprep.subr.bf16.mxu0 %v4936
    %7008 = vmatpush1.bf16.msra.mxu0 %v4935
    %7009 = vmatprep.subr.bf16.mxu0 %v4943
    %7010 = vmatpush1.bf16.msra.mxu0 %v4942
    %7011 = vmatprep.subr.bf16.mxu0 %v4950
    %7012 = vmatpush1.bf16.msra.mxu0 %v4949
    %7013 = vmatprep.mubr.bf16.mxu0 %v2242
    %7014 = vmatmul.mubr.bf16.gmra.mrb[0].mxu0 %v2241
    %v7015 = vpop.f32.mrb[0].mxu0
    %v7016 = vadd.f32 %v6903, %v7015
    %v7017 = vpop.f32.mrb[0].mxu0
    %v7018 = vadd.f32 %v6905, %v7017
    %v7019 = vpop.f32.mrb[0].mxu0
    %v7020 = vadd.f32 %v6907, %v7019
    %v7021 = vpop.f32.mrb[0].mxu0
    %v7022 = vadd.f32 %v6909, %v7021
    %7023 = vmatprep.mubr.bf16.mxu0 %v2251
    %7024 = vmatmul.mubr.bf16.gmra.mrb[0].mxu0 %v2250
    %v7025 = vpop.f32.mrb[0].mxu0
    %v7026 = vadd.f32 %v6913, %v7025
    %v7027 = vpop.f32.mrb[0].mxu0
    %v7028 = vadd.f32 %v6915, %v7027
    %v7029 = vpop.f32.mrb[0].mxu0
    %v7030 = vadd.f32 %v6917, %v7029
    %v7031 = vpop.f32.mrb[0].mxu0
    %v7032 = vadd.f32 %v6919, %v7031
    %7033 = vmatprep.mubr.bf16.mxu0 %v2260
    %7034 = vmatmul.mubr.bf16.gmra.mrb[0].mxu0 %v2259
    %v7035 = vpop.f32.mrb[0].mxu0
    %v7036 = vadd.f32 %v6923, %v7035
    %v7037 = vpop.f32.mrb[0].mxu0
    %v7038 = vadd.f32 %v6925, %v7037
    %v7039 = vpop.f32.mrb[0].mxu0
    %v7040 = vadd.f32 %v6927, %v7039
    %v7041 = vpop.f32.mrb[0].mxu0
    %v7042 = vadd.f32 %v6929, %v7041
    %7043 = vmatprep.mubr.bf16.mxu0 %v2269
    %7044 = vmatmul.mubr.bf16.gmra.mrb[0].mxu0 %v2268
    %v7045 = vpop.f32.mrb[0].mxu0
    %v7046 = vadd.f32 %v6933, %v7045
    %v7047 = vpop.f32.mrb[0].mxu0
    %v7048 = vadd.f32 %v6935, %v7047
    %v7049 = vpop.f32.mrb[0].mxu0
    %v7050 = vadd.f32 %v6937, %v7049
    %v7051 = vpop.f32.mrb[0].mxu0
    %v7052 = vadd.f32 %v6939, %v7051
    %7053 = vmatprep.mubr.bf16.mxu0 %v2278
    %7054 = vmatmul.mubr.bf16.gmra.mrb[0].mxu0 %v2277
    %v7055 = vpop.f32.mrb[0].mxu0
    %v7056 = vadd.f32 %v6943, %v7055
    %v7057 = vpop.f32.mrb[0].mxu0
    %v7058 = vadd.f32 %v6945, %v7057
    %v7059 = vpop.f32.mrb[0].mxu0
    %v7060 = vadd.f32 %v6947, %v7059
    %v7061 = vpop.f32.mrb[0].mxu0
    %v7062 = vadd.f32 %v6949, %v7061
    %7063 = vmatprep.mubr.bf16.mxu0 %v2287
    %7064 = vmatmul.mubr.bf16.gmra.mrb[0].mxu0 %v2286
    %v7065 = vpop.f32.mrb[0].mxu0
    %v7066 = vadd.f32 %v6953, %v7065
    %v7067 = vpop.f32.mrb[0].mxu0
    %v7068 = vadd.f32 %v6955, %v7067
    %v7069 = vpop.f32.mrb[0].mxu0
    %v7070 = vadd.f32 %v6957, %v7069
    %v7071 = vpop.f32.mrb[0].mxu0
    %v7072 = vadd.f32 %v6959, %v7071
    %7073 = vmatprep.mubr.bf16.mxu0 %v2296
    %7074 = vmatmul.mubr.bf16.gmra.mrb[0].mxu0 %v2295
    %v7075 = vpop.f32.mrb[0].mxu0
    %v7076 = vadd.f32 %v6963, %v7075
    %v7077 = vpop.f32.mrb[0].mxu0
    %v7078 = vadd.f32 %v6965, %v7077
    %v7079 = vpop.f32.mrb[0].mxu0
    %v7080 = vadd.f32 %v6967, %v7079
    %v7081 = vpop.f32.mrb[0].mxu0
    %v7082 = vadd.f32 %v6969, %v7081
    %7083 = vmatprep.mubr.bf16.mxu0 %v2305
    %7084 = vmatmul.mubr.bf16.gmra.mrb[0].mxu0 %v2304
    %v7085 = vpop.f32.mrb[0].mxu0
    %v7086 = vadd.f32 %v6973, %v7085
    %v7087 = vpop.f32.mrb[0].mxu0
    %v7088 = vadd.f32 %v6975, %v7087
    %v7089 = vpop.f32.mrb[0].mxu0
    %v7090 = vadd.f32 %v6977, %v7089
    %v7091 = vpop.f32.mrb[0].mxu0
    %v7092 = vadd.f32 %v6979, %v7091
    %7093 = vdwg.mxu0
    %7094 = vmatprep.subr.bf16.mxu0 %v4957
    %7095 = vmatpush1.bf16.msra.mxu0 %v4956
    %7096 = vmatprep.subr.bf16.mxu0 %v4964
    %7097 = vmatpush1.bf16.msra.mxu0 %v4963
    %7098 = vmatprep.subr.bf16.mxu0 %v4971
    %7099 = vmatpush1.bf16.msra.mxu0 %v4970
    %7100 = vmatprep.subr.bf16.mxu0 %v4978
    %7101 = vmatpush1.bf16.msra.mxu0 %v4977
    %7102 = vmatprep.subr.bf16.mxu0 %v4985
    %7103 = vmatpush1.bf16.msra.mxu0 %v4984
    %7104 = vmatprep.subr.bf16.mxu0 %v4992
    %7105 = vmatpush1.bf16.msra.mxu0 %v4991
    %7106 = vmatprep.subr.bf16.mxu0 %v4999
    %7107 = vmatpush1.bf16.msra.mxu0 %v4998
    %7108 = vmatprep.subr.bf16.mxu0 %v5006
    %7109 = vmatpush1.bf16.msra.mxu0 %v5005
    %7110 = vmatprep.subr.bf16.mxu0 0
    %7111 = vmatpush1.bf16.msra.mxu0 0
    %7112 = vmatprep.subr.bf16.mxu0 0
    %7113 = vmatpush1.bf16.msra.mxu0 0
    %7114 = vmatprep.subr.bf16.mxu0 0
    %7115 = vmatpush1.bf16.msra.mxu0 0
    %7116 = vmatprep.subr.bf16.mxu0 0
    %7117 = vmatpush1.bf16.msra.mxu0 0
    %7118 = vmatprep.subr.bf16.mxu0 0
    %7119 = vmatpush1.bf16.msra.mxu0 0
    %7120 = vmatprep.subr.bf16.mxu0 0
    %7121 = vmatpush1.bf16.msra.mxu0 0
    %7122 = vmatprep.subr.bf16.mxu0 0
    %7123 = vmatpush1.bf16.msra.mxu0 0
    %7124 = vmatprep.subr.bf16.mxu0 0
    %7125 = vmatpush1.bf16.msra.mxu0 0
    %7126 = vmatprep.mubr.bf16.mxu0 0
    %7127 = vmatmul.mubr.bf16.gmra.mrb[0].mxu0 %v2243
    %v7128 = vpop.f32.mrb[0].mxu0
    %v7129 = vadd.f32 %v7016, %v7128
    %v7130 = vpop.f32.mrb[0].mxu0
    %v7131 = vadd.f32 %v7018, %v7130
    %v7132 = vpop.f32.mrb[0].mxu0
    %v7133 = vadd.f32 %v7020, %v7132
    %v7134 = vpop.f32.mrb[0].mxu0
    %v7135 = vadd.f32 %v7022, %v7134
    %7136 = vmatprep.mubr.bf16.mxu0 0
    %7137 = vmatmul.mubr.bf16.gmra.mrb[0].mxu0 %v2252
    %v7138 = vpop.f32.mrb[0].mxu0
    %v7139 = vadd.f32 %v7026, %v7138
    %v7140 = vpop.f32.mrb[0].mxu0
    %v7141 = vadd.f32 %v7028, %v7140
    %v7142 = vpop.f32.mrb[0].mxu0
    %v7143 = vadd.f32 %v7030, %v7142
    %v7144 = vpop.f32.mrb[0].mxu0
    %v7145 = vadd.f32 %v7032, %v7144
    %7146 = vmatprep.mubr.bf16.mxu0 0
    %7147 = vmatmul.mubr.bf16.gmra.mrb[0].mxu0 %v2261
    %v7148 = vpop.f32.mrb[0].mxu0
    %v7149 = vadd.f32 %v7036, %v7148
    %v7150 = vpop.f32.mrb[0].mxu0
    %v7151 = vadd.f32 %v7038, %v7150
    %v7152 = vpop.f32.mrb[0].mxu0
    %v7153 = vadd.f32 %v7040, %v7152
    %v7154 = vpop.f32.mrb[0].mxu0
    %v7155 = vadd.f32 %v7042, %v7154
    %7156 = vmatprep.mubr.bf16.mxu0 0
    %7157 = vmatmul.mubr.bf16.gmra.mrb[0].mxu0 %v2270
    %v7158 = vpop.f32.mrb[0].mxu0
    %v7159 = vadd.f32 %v7046, %v7158
    %v7160 = vpop.f32.mrb[0].mxu0
    %v7161 = vadd.f32 %v7048, %v7160
    %v7162 = vpop.f32.mrb[0].mxu0
    %v7163 = vadd.f32 %v7050, %v7162
    %v7164 = vpop.f32.mrb[0].mxu0
    %v7165 = vadd.f32 %v7052, %v7164
    %7166 = vmatprep.mubr.bf16.mxu0 0
    %7167 = vmatmul.mubr.bf16.gmra.mrb[0].mxu0 %v2279
    %v7168 = vpop.f32.mrb[0].mxu0
    %v7169 = vadd.f32 %v7056, %v7168
    %v7170 = vpop.f32.mrb[0].mxu0
    %v7171 = vadd.f32 %v7058, %v7170
    %v7172 = vpop.f32.mrb[0].mxu0
    %v7173 = vadd.f32 %v7060, %v7172
    %v7174 = vpop.f32.mrb[0].mxu0
    %v7175 = vadd.f32 %v7062, %v7174
    %7176 = vmatprep.mubr.bf16.mxu0 0
    %7177 = vmatmul.mubr.bf16.gmra.mrb[0].mxu0 %v2288
    %v7178 = vpop.f32.mrb[0].mxu0
    %v7179 = vadd.f32 %v7066, %v7178
    %v7180 = vpop.f32.mrb[0].mxu0
    %v7181 = vadd.f32 %v7068, %v7180
    %v7182 = vpop.f32.mrb[0].mxu0
    %v7183 = vadd.f32 %v7070, %v7182
    %v7184 = vpop.f32.mrb[0].mxu0
    %v7185 = vadd.f32 %v7072, %v7184
    %7186 = vmatprep.mubr.bf16.mxu0 0
    %7187 = vmatmul.mubr.bf16.gmra.mrb[0].mxu0 %v2297
    %v7188 = vpop.f32.mrb[0].mxu0
    %v7189 = vadd.f32 %v7076, %v7188
    %v7190 = vpop.f32.mrb[0].mxu0
    %v7191 = vadd.f32 %v7078, %v7190
    %v7192 = vpop.f32.mrb[0].mxu0
    %v7193 = vadd.f32 %v7080, %v7192
    %v7194 = vpop.f32.mrb[0].mxu0
    %v7195 = vadd.f32 %v7082, %v7194
    %7196 = vmatprep.mubr.bf16.mxu0 0
    %7197 = vmatmul.mubr.bf16.gmra.mrb[0].mxu0 %v2306
    %v7198 = vpop.f32.mrb[0].mxu0
    %v7199 = vadd.f32 %v7086, %v7198
    %v7200 = vpop.f32.mrb[0].mxu0
    %v7201 = vadd.f32 %v7088, %v7200
    %v7202 = vpop.f32.mrb[0].mxu0
    %v7203 = vadd.f32 %v7090, %v7202
    %v7204 = vpop.f32.mrb[0].mxu0
    %v7205 = vadd.f32 %v7092, %v7204
    %7206 = vdwg.mxu0
    %7207 = vmatprep.subr.bf16.mxu0 0
    %7208 = vmatpush1.bf16.msra.mxu0 %v4510
    %7209 = vmatprep.subr.bf16.mxu0 0
    %7210 = vmatpush1.bf16.msra.mxu0 %v4517
    %7211 = vmatprep.subr.bf16.mxu0 0
    %7212 = vmatpush1.bf16.msra.mxu0 %v4524
    %7213 = vmatprep.subr.bf16.mxu0 0
    %7214 = vmatpush1.bf16.msra.mxu0 %v4531
    %7215 = vmatprep.subr.bf16.mxu0 0
    %7216 = vmatpush1.bf16.msra.mxu0 %v4538
    %7217 = vmatprep.subr.bf16.mxu0 0
    %7218 = vmatpush1.bf16.msra.mxu0 %v4545
    %7219 = vmatprep.subr.bf16.mxu0 0
    %7220 = vmatpush1.bf16.msra.mxu0 %v4552
    %7221 = vmatprep.subr.bf16.mxu0 0
    %7222 = vmatpush1.bf16.msra.mxu0 %v4559
    %7223 = vmatprep.subr.bf16.mxu0 0
    %7224 = vmatpush1.bf16.msra.mxu0 %v4566
    %7225 = vmatprep.subr.bf16.mxu0 0
    %7226 = vmatpush1.bf16.msra.mxu0 %v4573
    %7227 = vmatprep.subr.bf16.mxu0 0
    %7228 = vmatpush1.bf16.msra.mxu0 %v4580
    %7229 = vmatprep.subr.bf16.mxu0 0
    %7230 = vmatpush1.bf16.msra.mxu0 %v4587
    %7231 = vmatprep.subr.bf16.mxu0 0
    %7232 = vmatpush1.bf16.msra.mxu0 %v4594
    %7233 = vmatprep.subr.bf16.mxu0 0
    %7234 = vmatpush1.bf16.msra.mxu0 %v4601
    %7235 = vmatprep.subr.bf16.mxu0 0
    %7236 = vmatpush1.bf16.msra.mxu0 %v4608
    %7237 = vmatprep.subr.bf16.mxu0 0
    %7238 = vmatpush1.bf16.msra.mxu0 %v4615
    %7239 = vmatprep.mubr.bf16.mxu0 %v2236
    %7240 = vmatmul.mubr.bf16.gmra.mrb[0].mxu0 %v2235
    %v7241 = vpop.f32.mrb[0].mxu0
    %v7242 = vadd.f32 %v2912, %v7241
    %v7243 = vpop.f32.mrb[0].mxu0
    %v7244 = vpop.f32.mrb[0].mxu0
    %v7245 = vadd.f32 %v2912, %v7244
    %v7246 = vpop.f32.mrb[0].mxu0
    %7247 = vmatprep.mubr.bf16.mxu0 %v2245
    %7248 = vmatmul.mubr.bf16.gmra.mrb[0].mxu0 %v2244
    %v7249 = vpop.f32.mrb[0].mxu0
    %v7250 = vadd.f32 %v2912, %v7249
    %v7251 = vpop.f32.mrb[0].mxu0
    %v7252 = vpop.f32.mrb[0].mxu0
    %v7253 = vadd.f32 %v2912, %v7252
    %v7254 = vpop.f32.mrb[0].mxu0
    %7255 = vmatprep.mubr.bf16.mxu0 %v2254
    %7256 = vmatmul.mubr.bf16.gmra.mrb[0].mxu0 %v2253
    %v7257 = vpop.f32.mrb[0].mxu0
    %v7258 = vadd.f32 %v2912, %v7257
    %v7259 = vpop.f32.mrb[0].mxu0
    %v7260 = vpop.f32.mrb[0].mxu0
    %v7261 = vadd.f32 %v2912, %v7260
    %v7262 = vpop.f32.mrb[0].mxu0
    %7263 = vmatprep.mubr.bf16.mxu0 %v2263
    %7264 = vmatmul.mubr.bf16.gmra.mrb[0].mxu0 %v2262
    %v7265 = vpop.f32.mrb[0].mxu0
    %v7266 = vadd.f32 %v2912, %v7265
    %v7267 = vpop.f32.mrb[0].mxu0
    %v7268 = vpop.f32.mrb[0].mxu0
    %v7269 = vadd.f32 %v2912, %v7268
    %v7270 = vpop.f32.mrb[0].mxu0
    %7271 = vmatprep.mubr.bf16.mxu0 %v2272
    %7272 = vmatmul.mubr.bf16.gmra.mrb[0].mxu0 %v2271
    %v7273 = vpop.f32.mrb[0].mxu0
    %v7274 = vadd.f32 %v2912, %v7273
    %v7275 = vpop.f32.mrb[0].mxu0
    %v7276 = vpop.f32.mrb[0].mxu0
    %v7277 = vadd.f32 %v2912, %v7276
    %v7278 = vpop.f32.mrb[0].mxu0
    %7279 = vmatprep.mubr.bf16.mxu0 %v2281
    %7280 = vmatmul.mubr.bf16.gmra.mrb[0].mxu0 %v2280
    %v7281 = vpop.f32.mrb[0].mxu0
    %v7282 = vadd.f32 %v2912, %v7281
    %v7283 = vpop.f32.mrb[0].mxu0
    %v7284 = vpop.f32.mrb[0].mxu0
    %v7285 = vadd.f32 %v2912, %v7284
    %v7286 = vpop.f32.mrb[0].mxu0
    %7287 = vmatprep.mubr.bf16.mxu0 %v2290
    %7288 = vmatmul.mubr.bf16.gmra.mrb[0].mxu0 %v2289
    %v7289 = vpop.f32.mrb[0].mxu0
    %v7290 = vadd.f32 %v2912, %v7289
    %v7291 = vpop.f32.mrb[0].mxu0
    %v7292 = vpop.f32.mrb[0].mxu0
    %v7293 = vadd.f32 %v2912, %v7292
    %v7294 = vpop.f32.mrb[0].mxu0
    %7295 = vmatprep.mubr.bf16.mxu0 %v2299
    %7296 = vmatmul.mubr.bf16.gmra.mrb[0].mxu0 %v2298
    %v7297 = vpop.f32.mrb[0].mxu0
    %v7298 = vadd.f32 %v2912, %v7297
    %v7299 = vpop.f32.mrb[0].mxu0
    %v7300 = vpop.f32.mrb[0].mxu0
    %v7301 = vadd.f32 %v2912, %v7300
    %v7302 = vpop.f32.mrb[0].mxu0
    %7303 = vdwg.mxu0
    %7304 = vmatprep.subr.bf16.mxu0 0
    %7305 = vmatpush1.bf16.msra.mxu0 %v4622
    %7306 = vmatprep.subr.bf16.mxu0 0
    %7307 = vmatpush1.bf16.msra.mxu0 %v4629
    %7308 = vmatprep.subr.bf16.mxu0 0
    %7309 = vmatpush1.bf16.msra.mxu0 %v4636
    %7310 = vmatprep.subr.bf16.mxu0 0
    %7311 = vmatpush1.bf16.msra.mxu0 %v4643
    %7312 = vmatprep.subr.bf16.mxu0 0
    %7313 = vmatpush1.bf16.msra.mxu0 %v4650
    %7314 = vmatprep.subr.bf16.mxu0 0
    %7315 = vmatpush1.bf16.msra.mxu0 %v4657
    %7316 = vmatprep.subr.bf16.mxu0 0
    %7317 = vmatpush1.bf16.msra.mxu0 %v4664
    %7318 = vmatprep.subr.bf16.mxu0 0
    %7319 = vmatpush1.bf16.msra.mxu0 %v4671
    %7320 = vmatprep.subr.bf16.mxu0 0
    %7321 = vmatpush1.bf16.msra.mxu0 %v4678
    %7322 = vmatprep.subr.bf16.mxu0 0
    %7323 = vmatpush1.bf16.msra.mxu0 %v4685
    %7324 = vmatprep.subr.bf16.mxu0 0
    %7325 = vmatpush1.bf16.msra.mxu0 %v4692
    %7326 = vmatprep.subr.bf16.mxu0 0
    %7327 = vmatpush1.bf16.msra.mxu0 %v4699
    %7328 = vmatprep.subr.bf16.mxu0 0
    %7329 = vmatpush1.bf16.msra.mxu0 %v4706
    %7330 = vmatprep.subr.bf16.mxu0 0
    %7331 = vmatpush1.bf16.msra.mxu0 %v4713
    %7332 = vmatprep.subr.bf16.mxu0 0
    %7333 = vmatpush1.bf16.msra.mxu0 %v4720
    %7334 = vmatprep.subr.bf16.mxu0 0
    %7335 = vmatpush1.bf16.msra.mxu0 %v4727
    %7336 = vmatprep.mubr.bf16.mxu0 %v2238
    %7337 = vmatmul.mubr.bf16.gmra.mrb[0].mxu0 %v2237
    %v7338 = vpop.f32.mrb[0].mxu0
    %v7339 = vadd.f32 %v7242, %v7338
    %v7340 = vpop.f32.mrb[0].mxu0
    %v7341 = vpop.f32.mrb[0].mxu0
    %v7342 = vadd.f32 %v7245, %v7341
    %v7343 = vpop.f32.mrb[0].mxu0
    %7344 = vmatprep.mubr.bf16.mxu0 %v2247
    %7345 = vmatmul.mubr.bf16.gmra.mrb[0].mxu0 %v2246
    %v7346 = vpop.f32.mrb[0].mxu0
    %v7347 = vadd.f32 %v7250, %v7346
    %v7348 = vpop.f32.mrb[0].mxu0
    %v7349 = vpop.f32.mrb[0].mxu0
    %v7350 = vadd.f32 %v7253, %v7349
    %v7351 = vpop.f32.mrb[0].mxu0
    %7352 = vmatprep.mubr.bf16.mxu0 %v2256
    %7353 = vmatmul.mubr.bf16.gmra.mrb[0].mxu0 %v2255
    %v7354 = vpop.f32.mrb[0].mxu0
    %v7355 = vadd.f32 %v7258, %v7354
    %v7356 = vpop.f32.mrb[0].mxu0
    %v7357 = vpop.f32.mrb[0].mxu0
    %v7358 = vadd.f32 %v7261, %v7357
    %v7359 = vpop.f32.mrb[0].mxu0
    %7360 = vmatprep.mubr.bf16.mxu0 %v2265
    %7361 = vmatmul.mubr.bf16.gmra.mrb[0].mxu0 %v2264
    %v7362 = vpop.f32.mrb[0].mxu0
    %v7363 = vadd.f32 %v7266, %v7362
    %v7364 = vpop.f32.mrb[0].mxu0
    %v7365 = vpop.f32.mrb[0].mxu0
    %v7366 = vadd.f32 %v7269, %v7365
    %v7367 = vpop.f32.mrb[0].mxu0
    %7368 = vmatprep.mubr.bf16.mxu0 %v2274
    %7369 = vmatmul.mubr.bf16.gmra.mrb[0].mxu0 %v2273
    %v7370 = vpop.f32.mrb[0].mxu0
    %v7371 = vadd.f32 %v7274, %v7370
    %v7372 = vpop.f32.mrb[0].mxu0
    %v7373 = vpop.f32.mrb[0].mxu0
    %v7374 = vadd.f32 %v7277, %v7373
    %v7375 = vpop.f32.mrb[0].mxu0
    %7376 = vmatprep.mubr.bf16.mxu0 %v2283
    %7377 = vmatmul.mubr.bf16.gmra.mrb[0].mxu0 %v2282
    %v7378 = vpop.f32.mrb[0].mxu0
    %v7379 = vadd.f32 %v7282, %v7378
    %v7380 = vpop.f32.mrb[0].mxu0
    %v7381 = vpop.f32.mrb[0].mxu0
    %v7382 = vadd.f32 %v7285, %v7381
    %v7383 = vpop.f32.mrb[0].mxu0
    %7384 = vmatprep.mubr.bf16.mxu0 %v2292
    %7385 = vmatmul.mubr.bf16.gmra.mrb[0].mxu0 %v2291
    %v7386 = vpop.f32.mrb[0].mxu0
    %v7387 = vadd.f32 %v7290, %v7386
    %v7388 = vpop.f32.mrb[0].mxu0
    %v7389 = vpop.f32.mrb[0].mxu0
    %v7390 = vadd.f32 %v7293, %v7389
    %v7391 = vpop.f32.mrb[0].mxu0
    %7392 = vmatprep.mubr.bf16.mxu0 %v2301
    %7393 = vmatmul.mubr.bf16.gmra.mrb[0].mxu0 %v2300
    %v7394 = vpop.f32.mrb[0].mxu0
    %v7395 = vadd.f32 %v7298, %v7394
    %v7396 = vpop.f32.mrb[0].mxu0
    %v7397 = vpop.f32.mrb[0].mxu0
    %v7398 = vadd.f32 %v7301, %v7397
    %v7399 = vpop.f32.mrb[0].mxu0
    %7400 = vdwg.mxu0
    %7401 = vmatprep.subr.bf16.mxu0 0
    %7402 = vmatpush1.bf16.msra.mxu0 %v4734
    %7403 = vmatprep.subr.bf16.mxu0 0
    %7404 = vmatpush1.bf16.msra.mxu0 %v4741
    %7405 = vmatprep.subr.bf16.mxu0 0
    %7406 = vmatpush1.bf16.msra.mxu0 %v4748
    %7407 = vmatprep.subr.bf16.mxu0 0
    %7408 = vmatpush1.bf16.msra.mxu0 %v4755
    %7409 = vmatprep.subr.bf16.mxu0 0
    %7410 = vmatpush1.bf16.msra.mxu0 %v4762
    %7411 = vmatprep.subr.bf16.mxu0 0
    %7412 = vmatpush1.bf16.msra.mxu0 %v4769
    %7413 = vmatprep.subr.bf16.mxu0 0
    %7414 = vmatpush1.bf16.msra.mxu0 %v4776
    %7415 = vmatprep.subr.bf16.mxu0 0
    %7416 = vmatpush1.bf16.msra.mxu0 %v4783
    %7417 = vmatprep.subr.bf16.mxu0 0
    %7418 = vmatpush1.bf16.msra.mxu0 %v4790
    %7419 = vmatprep.subr.bf16.mxu0 0
    %7420 = vmatpush1.bf16.msra.mxu0 %v4797
    %7421 = vmatprep.subr.bf16.mxu0 0
    %7422 = vmatpush1.bf16.msra.mxu0 %v4804
    %7423 = vmatprep.subr.bf16.mxu0 0
    %7424 = vmatpush1.bf16.msra.mxu0 %v4811
    %7425 = vmatprep.subr.bf16.mxu0 0
    %7426 = vmatpush1.bf16.msra.mxu0 %v4818
    %7427 = vmatprep.subr.bf16.mxu0 0
    %7428 = vmatpush1.bf16.msra.mxu0 %v4825
    %7429 = vmatprep.subr.bf16.mxu0 0
    %7430 = vmatpush1.bf16.msra.mxu0 %v4832
    %7431 = vmatprep.subr.bf16.mxu0 0
    %7432 = vmatpush1.bf16.msra.mxu0 %v4839
    %7433 = vmatprep.mubr.bf16.mxu0 %v2240
    %7434 = vmatmul.mubr.bf16.gmra.mrb[0].mxu0 %v2239
    %v7435 = vpop.f32.mrb[0].mxu0
    %v7436 = vadd.f32 %v7339, %v7435
    %v7437 = vpop.f32.mrb[0].mxu0
    %v7438 = vpop.f32.mrb[0].mxu0
    %v7439 = vadd.f32 %v7342, %v7438
    %v7440 = vpop.f32.mrb[0].mxu0
    %7441 = vmatprep.mubr.bf16.mxu0 %v2249
    %7442 = vmatmul.mubr.bf16.gmra.mrb[0].mxu0 %v2248
    %v7443 = vpop.f32.mrb[0].mxu0
    %v7444 = vadd.f32 %v7347, %v7443
    %v7445 = vpop.f32.mrb[0].mxu0
    %v7446 = vpop.f32.mrb[0].mxu0
    %v7447 = vadd.f32 %v7350, %v7446
    %v7448 = vpop.f32.mrb[0].mxu0
    %7449 = vmatprep.mubr.bf16.mxu0 %v2258
    %7450 = vmatmul.mubr.bf16.gmra.mrb[0].mxu0 %v2257
    %v7451 = vpop.f32.mrb[0].mxu0
    %v7452 = vadd.f32 %v7355, %v7451
    %v7453 = vpop.f32.mrb[0].mxu0
    %v7454 = vpop.f32.mrb[0].mxu0
    %v7455 = vadd.f32 %v7358, %v7454
    %v7456 = vpop.f32.mrb[0].mxu0
    %7457 = vmatprep.mubr.bf16.mxu0 %v2267
    %7458 = vmatmul.mubr.bf16.gmra.mrb[0].mxu0 %v2266
    %v7459 = vpop.f32.mrb[0].mxu0
    %v7460 = vadd.f32 %v7363, %v7459
    %v7461 = vpop.f32.mrb[0].mxu0
    %v7462 = vpop.f32.mrb[0].mxu0
    %v7463 = vadd.f32 %v7366, %v7462
    %v7464 = vpop.f32.mrb[0].mxu0
    %7465 = vmatprep.mubr.bf16.mxu0 %v2276
    %7466 = vmatmul.mubr.bf16.gmra.mrb[0].mxu0 %v2275
    %v7467 = vpop.f32.mrb[0].mxu0
    %v7468 = vadd.f32 %v7371, %v7467
    %v7469 = vpop.f32.mrb[0].mxu0
    %v7470 = vpop.f32.mrb[0].mxu0
    %v7471 = vadd.f32 %v7374, %v7470
    %v7472 = vpop.f32.mrb[0].mxu0
    %7473 = vmatprep.mubr.bf16.mxu0 %v2285
    %7474 = vmatmul.mubr.bf16.gmra.mrb[0].mxu0 %v2284
    %v7475 = vpop.f32.mrb[0].mxu0
    %v7476 = vadd.f32 %v7379, %v7475
    %v7477 = vpop.f32.mrb[0].mxu0
    %v7478 = vpop.f32.mrb[0].mxu0
    %v7479 = vadd.f32 %v7382, %v7478
    %v7480 = vpop.f32.mrb[0].mxu0
    %7481 = vmatprep.mubr.bf16.mxu0 %v2294
    %7482 = vmatmul.mubr.bf16.gmra.mrb[0].mxu0 %v2293
    %v7483 = vpop.f32.mrb[0].mxu0
    %v7484 = vadd.f32 %v7387, %v7483
    %v7485 = vpop.f32.mrb[0].mxu0
    %v7486 = vpop.f32.mrb[0].mxu0
    %v7487 = vadd.f32 %v7390, %v7486
    %v7488 = vpop.f32.mrb[0].mxu0
    %7489 = vmatprep.mubr.bf16.mxu0 %v2303
    %7490 = vmatmul.mubr.bf16.gmra.mrb[0].mxu0 %v2302
    %v7491 = vpop.f32.mrb[0].mxu0
    %v7492 = vadd.f32 %v7395, %v7491
    %v7493 = vpop.f32.mrb[0].mxu0
    %v7494 = vpop.f32.mrb[0].mxu0
    %v7495 = vadd.f32 %v7398, %v7494
    %v7496 = vpop.f32.mrb[0].mxu0
    %7497 = vdwg.mxu0
    %7498 = vmatprep.subr.bf16.mxu0 0
    %7499 = vmatpush1.bf16.msra.mxu0 %v4846
    %7500 = vmatprep.subr.bf16.mxu0 0
    %7501 = vmatpush1.bf16.msra.mxu0 %v4853
    %7502 = vmatprep.subr.bf16.mxu0 0
    %7503 = vmatpush1.bf16.msra.mxu0 %v4860
    %7504 = vmatprep.subr.bf16.mxu0 0
    %7505 = vmatpush1.bf16.msra.mxu0 %v4867
    %7506 = vmatprep.subr.bf16.mxu0 0
    %7507 = vmatpush1.bf16.msra.mxu0 %v4874
    %7508 = vmatprep.subr.bf16.mxu0 0
    %7509 = vmatpush1.bf16.msra.mxu0 %v4881
    %7510 = vmatprep.subr.bf16.mxu0 0
    %7511 = vmatpush1.bf16.msra.mxu0 %v4888
    %7512 = vmatprep.subr.bf16.mxu0 0
    %7513 = vmatpush1.bf16.msra.mxu0 %v4895
    %7514 = vmatprep.subr.bf16.mxu0 0
    %7515 = vmatpush1.bf16.msra.mxu0 %v4902
    %7516 = vmatprep.subr.bf16.mxu0 0
    %7517 = vmatpush1.bf16.msra.mxu0 %v4909
    %7518 = vmatprep.subr.bf16.mxu0 0
    %7519 = vmatpush1.bf16.msra.mxu0 %v4916
    %7520 = vmatprep.subr.bf16.mxu0 0
    %7521 = vmatpush1.bf16.msra.mxu0 %v4923
    %7522 = vmatprep.subr.bf16.mxu0 0
    %7523 = vmatpush1.bf16.msra.mxu0 %v4930
    %7524 = vmatprep.subr.bf16.mxu0 0
    %7525 = vmatpush1.bf16.msra.mxu0 %v4937
    %7526 = vmatprep.subr.bf16.mxu0 0
    %7527 = vmatpush1.bf16.msra.mxu0 %v4944
    %7528 = vmatprep.subr.bf16.mxu0 0
    %7529 = vmatpush1.bf16.msra.mxu0 %v4951
    %7530 = vmatprep.mubr.bf16.mxu0 %v2242
    %7531 = vmatmul.mubr.bf16.gmra.mrb[0].mxu0 %v2241
    %v7532 = vpop.f32.mrb[0].mxu0
    %v7533 = vadd.f32 %v7436, %v7532
    %v7534 = vpop.f32.mrb[0].mxu0
    %v7535 = vpop.f32.mrb[0].mxu0
    %v7536 = vadd.f32 %v7439, %v7535
    %v7537 = vpop.f32.mrb[0].mxu0
    %7538 = vmatprep.mubr.bf16.mxu0 %v2251
    %7539 = vmatmul.mubr.bf16.gmra.mrb[0].mxu0 %v2250
    %v7540 = vpop.f32.mrb[0].mxu0
    %v7541 = vadd.f32 %v7444, %v7540
    %v7542 = vpop.f32.mrb[0].mxu0
    %v7543 = vpop.f32.mrb[0].mxu0
    %v7544 = vadd.f32 %v7447, %v7543
    %v7545 = vpop.f32.mrb[0].mxu0
    %7546 = vmatprep.mubr.bf16.mxu0 %v2260
    %7547 = vmatmul.mubr.bf16.gmra.mrb[0].mxu0 %v2259
    %v7548 = vpop.f32.mrb[0].mxu0
    %v7549 = vadd.f32 %v7452, %v7548
    %v7550 = vpop.f32.mrb[0].mxu0
    %v7551 = vpop.f32.mrb[0].mxu0
    %v7552 = vadd.f32 %v7455, %v7551
    %v7553 = vpop.f32.mrb[0].mxu0
    %7554 = vmatprep.mubr.bf16.mxu0 %v2269
    %7555 = vmatmul.mubr.bf16.gmra.mrb[0].mxu0 %v2268
    %v7556 = vpop.f32.mrb[0].mxu0
    %v7557 = vadd.f32 %v7460, %v7556
    %v7558 = vpop.f32.mrb[0].mxu0
    %v7559 = vpop.f32.mrb[0].mxu0
    %v7560 = vadd.f32 %v7463, %v7559
    %v7561 = vpop.f32.mrb[0].mxu0
    %7562 = vmatprep.mubr.bf16.mxu0 %v2278
    %7563 = vmatmul.mubr.bf16.gmra.mrb[0].mxu0 %v2277
    %v7564 = vpop.f32.mrb[0].mxu0
    %v7565 = vadd.f32 %v7468, %v7564
    %v7566 = vpop.f32.mrb[0].mxu0
    %v7567 = vpop.f32.mrb[0].mxu0
    %v7568 = vadd.f32 %v7471, %v7567
    %v7569 = vpop.f32.mrb[0].mxu0
    %7570 = vmatprep.mubr.bf16.mxu0 %v2287
    %7571 = vmatmul.mubr.bf16.gmra.mrb[0].mxu0 %v2286
    %v7572 = vpop.f32.mrb[0].mxu0
    %v7573 = vadd.f32 %v7476, %v7572
    %v7574 = vpop.f32.mrb[0].mxu0
    %v7575 = vpop.f32.mrb[0].mxu0
    %v7576 = vadd.f32 %v7479, %v7575
    %v7577 = vpop.f32.mrb[0].mxu0
    %7578 = vmatprep.mubr.bf16.mxu0 %v2296
    %7579 = vmatmul.mubr.bf16.gmra.mrb[0].mxu0 %v2295
    %v7580 = vpop.f32.mrb[0].mxu0
    %v7581 = vadd.f32 %v7484, %v7580
    %v7582 = vpop.f32.mrb[0].mxu0
    %v7583 = vpop.f32.mrb[0].mxu0
    %v7584 = vadd.f32 %v7487, %v7583
    %v7585 = vpop.f32.mrb[0].mxu0
    %7586 = vmatprep.mubr.bf16.mxu0 %v2305
    %7587 = vmatmul.mubr.bf16.gmra.mrb[0].mxu0 %v2304
    %v7588 = vpop.f32.mrb[0].mxu0
    %v7589 = vadd.f32 %v7492, %v7588
    %v7590 = vpop.f32.mrb[0].mxu0
    %v7591 = vpop.f32.mrb[0].mxu0
    %v7592 = vadd.f32 %v7495, %v7591
    %v7593 = vpop.f32.mrb[0].mxu0
    %7594 = vdwg.mxu0
    %7595 = vmatprep.subr.bf16.mxu0 0
    %7596 = vmatpush1.bf16.msra.mxu0 %v4958
    %7597 = vmatprep.subr.bf16.mxu0 0
    %7598 = vmatpush1.bf16.msra.mxu0 %v4965
    %7599 = vmatprep.subr.bf16.mxu0 0
    %7600 = vmatpush1.bf16.msra.mxu0 %v4972
    %7601 = vmatprep.subr.bf16.mxu0 0
    %7602 = vmatpush1.bf16.msra.mxu0 %v4979
    %7603 = vmatprep.subr.bf16.mxu0 0
    %7604 = vmatpush1.bf16.msra.mxu0 %v4986
    %7605 = vmatprep.subr.bf16.mxu0 0
    %7606 = vmatpush1.bf16.msra.mxu0 %v4993
    %7607 = vmatprep.subr.bf16.mxu0 0
    %7608 = vmatpush1.bf16.msra.mxu0 %v5000
    %7609 = vmatprep.subr.bf16.mxu0 0
    %7610 = vmatpush1.bf16.msra.mxu0 %v5007
    %7611 = vmatprep.subr.bf16.mxu0 0
    %7612 = vmatpush1.bf16.msra.mxu0 0
    %7613 = vmatprep.subr.bf16.mxu0 0
    %7614 = vmatpush1.bf16.msra.mxu0 0
    %7615 = vmatprep.subr.bf16.mxu0 0
    %7616 = vmatpush1.bf16.msra.mxu0 0
    %7617 = vmatprep.subr.bf16.mxu0 0
    %7618 = vmatpush1.bf16.msra.mxu0 0
    %7619 = vmatprep.subr.bf16.mxu0 0
    %7620 = vmatpush1.bf16.msra.mxu0 0
    %7621 = vmatprep.subr.bf16.mxu0 0
    %7622 = vmatpush1.bf16.msra.mxu0 0
    %7623 = vmatprep.subr.bf16.mxu0 0
    %7624 = vmatpush1.bf16.msra.mxu0 0
    %7625 = vmatprep.subr.bf16.mxu0 0
    %7626 = vmatpush1.bf16.msra.mxu0 0
    %7627 = vmatprep.mubr.bf16.mxu0 0
    %7628 = vmatmul.mubr.bf16.gmra.mrb[0].mxu0 %v2243
    %v7629 = vpop.f32.mrb[0].mxu0
    %v7630 = vadd.f32 %v7533, %v7629
    %v7631 = vpop.f32.mrb[0].mxu0
    %v7632 = vpop.f32.mrb[0].mxu0
    %v7633 = vadd.f32 %v7536, %v7632
    %v7634 = vpop.f32.mrb[0].mxu0
    %7635 = vmatprep.mubr.bf16.mxu0 0
    %7636 = vmatmul.mubr.bf16.gmra.mrb[0].mxu0 %v2252
    %v7637 = vpop.f32.mrb[0].mxu0
    %v7638 = vadd.f32 %v7541, %v7637
    %v7639 = vpop.f32.mrb[0].mxu0
    %v7640 = vpop.f32.mrb[0].mxu0
    %v7641 = vadd.f32 %v7544, %v7640
    %v7642 = vpop.f32.mrb[0].mxu0
    %7643 = vmatprep.mubr.bf16.mxu0 0
    %7644 = vmatmul.mubr.bf16.gmra.mrb[0].mxu0 %v2261
    %v7645 = vpop.f32.mrb[0].mxu0
    %v7646 = vadd.f32 %v7549, %v7645
    %v7647 = vpop.f32.mrb[0].mxu0
    %v7648 = vpop.f32.mrb[0].mxu0
    %v7649 = vadd.f32 %v7552, %v7648
    %v7650 = vpop.f32.mrb[0].mxu0
    %7651 = vmatprep.mubr.bf16.mxu0 0
    %7652 = vmatmul.mubr.bf16.gmra.mrb[0].mxu0 %v2270
    %v7653 = vpop.f32.mrb[0].mxu0
    %v7654 = vadd.f32 %v7557, %v7653
    %v7655 = vpop.f32.mrb[0].mxu0
    %v7656 = vpop.f32.mrb[0].mxu0
    %v7657 = vadd.f32 %v7560, %v7656
    %v7658 = vpop.f32.mrb[0].mxu0
    %7659 = vmatprep.mubr.bf16.mxu0 0
    %7660 = vmatmul.mubr.bf16.gmra.mrb[0].mxu0 %v2279
    %v7661 = vpop.f32.mrb[0].mxu0
    %v7662 = vadd.f32 %v7565, %v7661
    %v7663 = vpop.f32.mrb[0].mxu0
    %v7664 = vpop.f32.mrb[0].mxu0
    %v7665 = vadd.f32 %v7568, %v7664
    %v7666 = vpop.f32.mrb[0].mxu0
    %7667 = vmatprep.mubr.bf16.mxu0 0
    %7668 = vmatmul.mubr.bf16.gmra.mrb[0].mxu0 %v2288
    %v7669 = vpop.f32.mrb[0].mxu0
    %v7670 = vadd.f32 %v7573, %v7669
    %v7671 = vpop.f32.mrb[0].mxu0
    %v7672 = vpop.f32.mrb[0].mxu0
    %v7673 = vadd.f32 %v7576, %v7672
    %v7674 = vpop.f32.mrb[0].mxu0
    %7675 = vmatprep.mubr.bf16.mxu0 0
    %7676 = vmatmul.mubr.bf16.gmra.mrb[0].mxu0 %v2297
    %v7677 = vpop.f32.mrb[0].mxu0
    %v7678 = vadd.f32 %v7581, %v7677
    %v7679 = vpop.f32.mrb[0].mxu0
    %v7680 = vpop.f32.mrb[0].mxu0
    %v7681 = vadd.f32 %v7584, %v7680
    %v7682 = vpop.f32.mrb[0].mxu0
    %7683 = vmatprep.mubr.bf16.mxu0 0
    %7684 = vmatmul.mubr.bf16.gmra.mrb[0].mxu0 %v2306
    %v7685 = vpop.f32.mrb[0].mxu0
    %v7686 = vadd.f32 %v7589, %v7685
    %v7687 = vpop.f32.mrb[0].mxu0
    %v7688 = vpop.f32.mrb[0].mxu0
    %v7689 = vadd.f32 %v7592, %v7688
    %v7690 = vpop.f32.mrb[0].mxu0
    %7691 = vdwg.mxu0
    %v7692 = vand.u32 2147483647, %v5999
    %v7693 = vand.u32 2147483647, %v6001
    %v7694 = vand.u32 2147483647, %v6564
    %v7695 = vand.u32 2147483647, %v6566
    %v7696 = vand.u32 2147483647, %v7129
    %v7697 = vand.u32 2147483647, %v7131
    %v7698 = vand.u32 2147483647, %v7630
    %v7699 = vand.u32 2147483647, %v6003
    %v7700 = vand.u32 2147483647, %v6005
    %v7701 = vand.u32 2147483647, %v6568
    %v7702 = vand.u32 2147483647, %v6570
    %v7703 = vand.u32 2147483647, %v7133
    %v7704 = vand.u32 2147483647, %v7135
    %v7705 = vand.u32 2147483647, %v7633
    %v7706 = vand.u32 2147483647, %v6009
    %v7707 = vand.u32 2147483647, %v6011
    %v7708 = vand.u32 2147483647, %v6574
    %v7709 = vand.u32 2147483647, %v6576
    %v7710 = vand.u32 2147483647, %v7139
    %v7711 = vand.u32 2147483647, %v7141
    %v7712 = vand.u32 2147483647, %v7638
    %v7713 = vand.u32 2147483647, %v6013
    %v7714 = vand.u32 2147483647, %v6015
    %v7715 = vand.u32 2147483647, %v6578
    %v7716 = vand.u32 2147483647, %v6580
    %v7717 = vand.u32 2147483647, %v7143
    %v7718 = vand.u32 2147483647, %v7145
    %v7719 = vand.u32 2147483647, %v7641
    %v7720 = vand.u32 2147483647, %v6019
    %v7721 = vand.u32 2147483647, %v6021
    %v7722 = vand.u32 2147483647, %v6584
    %v7723 = vand.u32 2147483647, %v6586
    %v7724 = vand.u32 2147483647, %v7149
    %v7725 = vand.u32 2147483647, %v7151
    %v7726 = vand.u32 2147483647, %v7646
    %v7727 = vand.u32 2147483647, %v6023
    %v7728 = vand.u32 2147483647, %v6025
    %v7729 = vand.u32 2147483647, %v6588
    %v7730 = vand.u32 2147483647, %v6590
    %v7731 = vand.u32 2147483647, %v7153
    %v7732 = vand.u32 2147483647, %v7155
    %v7733 = vand.u32 2147483647, %v7649
    %v7734 = vand.u32 2147483647, %v6029
    %v7735 = vand.u32 2147483647, %v6031
    %v7736 = vand.u32 2147483647, %v6594
    %v7737 = vand.u32 2147483647, %v6596
    %v7738 = vand.u32 2147483647, %v7159
    %v7739 = vand.u32 2147483647, %v7161
    %v7740 = vand.u32 2147483647, %v7654
    %v7741 = vand.u32 2147483647, %v6033
    %v7742 = vand.u32 2147483647, %v6035
    %v7743 = vand.u32 2147483647, %v6598
    %v7744 = vand.u32 2147483647, %v6600
    %v7745 = vand.u32 2147483647, %v7163
    %v7746 = vand.u32 2147483647, %v7165
    %v7747 = vand.u32 2147483647, %v7657
    %v7748 = vand.u32 2147483647, %v6039
    %v7749 = vand.u32 2147483647, %v6041
    %v7750 = vand.u32 2147483647, %v6604
    %v7751 = vand.u32 2147483647, %v6606
    %v7752 = vand.u32 2147483647, %v7169
    %v7753 = vand.u32 2147483647, %v7171
    %v7754 = vand.u32 2147483647, %v7662
    %v7755 = vand.u32 2147483647, %v6043
    %v7756 = vand.u32 2147483647, %v6045
    %v7757 = vand.u32 2147483647, %v6608
    %v7758 = vand.u32 2147483647, %v6610
    %v7759 = vand.u32 2147483647, %v7173
    %v7760 = vand.u32 2147483647, %v7175
    %v7761 = vand.u32 2147483647, %v7665
    %v7762 = vand.u32 2147483647, %v6049
    %v7763 = vand.u32 2147483647, %v6051
    %v7764 = vand.u32 2147483647, %v6614
    %v7765 = vand.u32 2147483647, %v6616
    %v7766 = vand.u32 2147483647, %v7179
    %v7767 = vand.u32 2147483647, %v7181
    %v7768 = vand.u32 2147483647, %v7670
    %v7769 = vand.u32 2147483647, %v6053
    %v7770 = vand.u32 2147483647, %v6055
    %v7771 = vand.u32 2147483647, %v6618
    %v7772 = vand.u32 2147483647, %v6620
    %v7773 = vand.u32 2147483647, %v7183
    %v7774 = vand.u32 2147483647, %v7185
    %v7775 = vand.u32 2147483647, %v7673
    %v7776 = vand.u32 2147483647, %v6059
    %v7777 = vand.u32 2147483647, %v6061
    %v7778 = vand.u32 2147483647, %v6624
    %v7779 = vand.u32 2147483647, %v6626
    %v7780 = vand.u32 2147483647, %v7189
    %v7781 = vand.u32 2147483647, %v7191
    %v7782 = vand.u32 2147483647, %v7678
    %v7783 = vand.u32 2147483647, %v6063
    %v7784 = vand.u32 2147483647, %v6065
    %v7785 = vand.u32 2147483647, %v6628
    %v7786 = vand.u32 2147483647, %v6630
    %v7787 = vand.u32 2147483647, %v7193
    %v7788 = vand.u32 2147483647, %v7195
    %v7789 = vand.u32 2147483647, %v7681
    %v7790 = vand.u32 2147483647, %v6069
    %v7791 = vand.u32 2147483647, %v6071
    %v7792 = vand.u32 2147483647, %v6634
    %v7793 = vand.u32 2147483647, %v6636
    %v7794 = vand.u32 2147483647, %v7199
    %v7795 = vand.u32 2147483647, %v7201
    %v7796 = vand.u32 2147483647, %v7686
    %v7797 = vand.u32 2147483647, %v6073
    %v7798 = vand.u32 2147483647, %v6075
    %v7799 = vand.u32 2147483647, %v6638
    %v7800 = vand.u32 2147483647, %v6640
    %v7801 = vand.u32 2147483647, %v7203
    %v7802 = vand.u32 2147483647, %v7205
    %v7803 = vand.u32 2147483647, %v7689
    %v7804 = vsub.f32 0.0, %v7692
    %v7805 = vsub.f32 0.0, %v7693
    %v7806 = vsub.f32 0.0, %v7694
    %v7807 = vsub.f32 0.0, %v7695
    %v7808 = vsub.f32 0.0, %v7696
    %v7809 = vsub.f32 0.0, %v7697
    %v7810 = vsub.f32 0.0, %v7698
    %v7811 = vsub.f32 0.0, %v7699
    %v7812 = vsub.f32 0.0, %v7700
    %v7813 = vsub.f32 0.0, %v7701
    %v7814 = vsub.f32 0.0, %v7702
    %v7815 = vsub.f32 0.0, %v7703
    %v7816 = vsub.f32 0.0, %v7704
    %v7817 = vsub.f32 0.0, %v7705
    %v7818 = vsub.f32 0.0, %v7706
    %v7819 = vsub.f32 0.0, %v7707
    %v7820 = vsub.f32 0.0, %v7708
    %v7821 = vsub.f32 0.0, %v7709
    %v7822 = vsub.f32 0.0, %v7710
    %v7823 = vsub.f32 0.0, %v7711
    %v7824 = vsub.f32 0.0, %v7712
    %v7825 = vsub.f32 0.0, %v7713
    %v7826 = vsub.f32 0.0, %v7714
    %v7827 = vsub.f32 0.0, %v7715
    %v7828 = vsub.f32 0.0, %v7716
    %v7829 = vsub.f32 0.0, %v7717
    %v7830 = vsub.f32 0.0, %v7718
    %v7831 = vsub.f32 0.0, %v7719
    %v7832 = vsub.f32 0.0, %v7720
    %v7833 = vsub.f32 0.0, %v7721
    %v7834 = vsub.f32 0.0, %v7722
    %v7835 = vsub.f32 0.0, %v7723
    %v7836 = vsub.f32 0.0, %v7724
    %v7837 = vsub.f32 0.0, %v7725
    %v7838 = vsub.f32 0.0, %v7726
    %v7839 = vsub.f32 0.0, %v7727
    %v7840 = vsub.f32 0.0, %v7728
    %v7841 = vsub.f32 0.0, %v7729
    %v7842 = vsub.f32 0.0, %v7730
    %v7843 = vsub.f32 0.0, %v7731
    %v7844 = vsub.f32 0.0, %v7732
    %v7845 = vsub.f32 0.0, %v7733
    %v7846 = vsub.f32 0.0, %v7734
    %v7847 = vsub.f32 0.0, %v7735
    %v7848 = vsub.f32 0.0, %v7736
    %v7849 = vsub.f32 0.0, %v7737
    %v7850 = vsub.f32 0.0, %v7738
    %v7851 = vsub.f32 0.0, %v7739
    %v7852 = vsub.f32 0.0, %v7740
    %v7853 = vsub.f32 0.0, %v7741
    %v7854 = vsub.f32 0.0, %v7742
    %v7855 = vsub.f32 0.0, %v7743
    %v7856 = vsub.f32 0.0, %v7744
    %v7857 = vsub.f32 0.0, %v7745
    %v7858 = vsub.f32 0.0, %v7746
    %v7859 = vsub.f32 0.0, %v7747
    %v7860 = vsub.f32 0.0, %v7748
    %v7861 = vsub.f32 0.0, %v7749
    %v7862 = vsub.f32 0.0, %v7750
    %v7863 = vsub.f32 0.0, %v7751
    %v7864 = vsub.f32 0.0, %v7752
    %v7865 = vsub.f32 0.0, %v7753
    %v7866 = vsub.f32 0.0, %v7754
    %v7867 = vsub.f32 0.0, %v7755
    %v7868 = vsub.f32 0.0, %v7756
    %v7869 = vsub.f32 0.0, %v7757
    %v7870 = vsub.f32 0.0, %v7758
    %v7871 = vsub.f32 0.0, %v7759
    %v7872 = vsub.f32 0.0, %v7760
    %v7873 = vsub.f32 0.0, %v7761
    %v7874 = vsub.f32 0.0, %v7762
    %v7875 = vsub.f32 0.0, %v7763
    %v7876 = vsub.f32 0.0, %v7764
    %v7877 = vsub.f32 0.0, %v7765
    %v7878 = vsub.f32 0.0, %v7766
    %v7879 = vsub.f32 0.0, %v7767
    %v7880 = vsub.f32 0.0, %v7768
    %v7881 = vsub.f32 0.0, %v7769
    %v7882 = vsub.f32 0.0, %v7770
    %v7883 = vsub.f32 0.0, %v7771
    %v7884 = vsub.f32 0.0, %v7772
    %v7885 = vsub.f32 0.0, %v7773
    %v7886 = vsub.f32 0.0, %v7774
    %v7887 = vsub.f32 0.0, %v7775
    %v7888 = vsub.f32 0.0, %v7776
    %v7889 = vsub.f32 0.0, %v7777
    %v7890 = vsub.f32 0.0, %v7778
    %v7891 = vsub.f32 0.0, %v7779
    %v7892 = vsub.f32 0.0, %v7780
    %v7893 = vsub.f32 0.0, %v7781
    %v7894 = vsub.f32 0.0, %v7782
    %v7895 = vsub.f32 0.0, %v7783
    %v7896 = vsub.f32 0.0, %v7784
    %v7897 = vsub.f32 0.0, %v7785
    %v7898 = vsub.f32 0.0, %v7786
    %v7899 = vsub.f32 0.0, %v7787
    %v7900 = vsub.f32 0.0, %v7788
    %v7901 = vsub.f32 0.0, %v7789
    %v7902 = vsub.f32 0.0, %v7790
    %v7903 = vsub.f32 0.0, %v7791
    %v7904 = vsub.f32 0.0, %v7792
    %v7905 = vsub.f32 0.0, %v7793
    %v7906 = vsub.f32 0.0, %v7794
    %v7907 = vsub.f32 0.0, %v7795
    %v7908 = vsub.f32 0.0, %v7796
    %v7909 = vsub.f32 0.0, %v7797
    %v7910 = vsub.f32 0.0, %v7798
    %v7911 = vsub.f32 0.0, %v7799
    %v7912 = vsub.f32 0.0, %v7800
    %v7913 = vsub.f32 0.0, %v7801
    %v7914 = vsub.f32 0.0, %v7802
    %v7915 = vsub.f32 0.0, %v7803
    %v7916 = vmul.f32 %v7804, 1.442695
    %v7917 = vpow.pop %v7916
    %v7918 = vmul.f32 %v7805, 1.442695
    %v7919 = vpow.pop %v7918
    %v7920 = vmul.f32 %v7806, 1.442695
    %v7921 = vpow.pop %v7920
    %v7922 = vmul.f32 %v7807, 1.442695
    %v7923 = vpow.pop %v7922
    %v7924 = vmul.f32 %v7808, 1.442695
    %v7925 = vpow.pop %v7924
    %v7926 = vmul.f32 %v7809, 1.442695
    %v7927 = vpow.pop %v7926
    %v7928 = vmul.f32 %v7810, 1.442695
    %v7929 = vpow.pop %v7928
    %v7930 = vmul.f32 %v7811, 1.442695
    %v7931 = vpow.pop %v7930
    %v7932 = vmul.f32 %v7812, 1.442695
    %v7933 = vpow.pop %v7932
    %v7934 = vmul.f32 %v7813, 1.442695
    %v7935 = vpow.pop %v7934
    %v7936 = vmul.f32 %v7814, 1.442695
    %v7937 = vpow.pop %v7936
    %v7938 = vmul.f32 %v7815, 1.442695
    %v7939 = vpow.pop %v7938
    %v7940 = vmul.f32 %v7816, 1.442695
    %v7941 = vpow.pop %v7940
    %v7942 = vmul.f32 %v7817, 1.442695
    %v7943 = vpow.pop %v7942
    %v7944 = vmul.f32 %v7818, 1.442695
    %v7945 = vpow.pop %v7944
    %v7946 = vmul.f32 %v7819, 1.442695
    %v7947 = vpow.pop %v7946
    %v7948 = vmul.f32 %v7820, 1.442695
    %v7949 = vpow.pop %v7948
    %v7950 = vmul.f32 %v7821, 1.442695
    %v7951 = vpow.pop %v7950
    %v7952 = vmul.f32 %v7822, 1.442695
    %v7953 = vpow.pop %v7952
    %v7954 = vmul.f32 %v7823, 1.442695
    %v7955 = vpow.pop %v7954
    %v7956 = vmul.f32 %v7824, 1.442695
    %v7957 = vpow.pop %v7956
    %v7958 = vmul.f32 %v7825, 1.442695
    %v7959 = vpow.pop %v7958
    %v7960 = vmul.f32 %v7826, 1.442695
    %v7961 = vpow.pop %v7960
    %v7962 = vmul.f32 %v7827, 1.442695
    %v7963 = vpow.pop %v7962
    %v7964 = vmul.f32 %v7828, 1.442695
    %v7965 = vpow.pop %v7964
    %v7966 = vmul.f32 %v7829, 1.442695
    %v7967 = vpow.pop %v7966
    %v7968 = vmul.f32 %v7830, 1.442695
    %v7969 = vpow.pop %v7968
    %v7970 = vmul.f32 %v7831, 1.442695
    %v7971 = vpow.pop %v7970
    %v7972 = vmul.f32 %v7832, 1.442695
    %v7973 = vpow.pop %v7972
    %v7974 = vmul.f32 %v7833, 1.442695
    %v7975 = vpow.pop %v7974
    %v7976 = vmul.f32 %v7834, 1.442695
    %v7977 = vpow.pop %v7976
    %v7978 = vmul.f32 %v7835, 1.442695
    %v7979 = vpow.pop %v7978
    %v7980 = vmul.f32 %v7836, 1.442695
    %v7981 = vpow.pop %v7980
    %v7982 = vmul.f32 %v7837, 1.442695
    %v7983 = vpow.pop %v7982
    %v7984 = vmul.f32 %v7838, 1.442695
    %v7985 = vpow.pop %v7984
    %v7986 = vmul.f32 %v7839, 1.442695
    %v7987 = vpow.pop %v7986
    %v7988 = vmul.f32 %v7840, 1.442695
    %v7989 = vpow.pop %v7988
    %v7990 = vmul.f32 %v7841, 1.442695
    %v7991 = vpow.pop %v7990
    %v7992 = vmul.f32 %v7842, 1.442695
    %v7993 = vpow.pop %v7992
    %v7994 = vmul.f32 %v7843, 1.442695
    %v7995 = vpow.pop %v7994
    %v7996 = vmul.f32 %v7844, 1.442695
    %v7997 = vpow.pop %v7996
    %v7998 = vmul.f32 %v7845, 1.442695
    %v7999 = vpow.pop %v7998
    %v8000 = vmul.f32 %v7846, 1.442695
    %v8001 = vpow.pop %v8000
    %v8002 = vmul.f32 %v7847, 1.442695
    %v8003 = vpow.pop %v8002
    %v8004 = vmul.f32 %v7848, 1.442695
    %v8005 = vpow.pop %v8004
    %v8006 = vmul.f32 %v7849, 1.442695
    %v8007 = vpow.pop %v8006
    %v8008 = vmul.f32 %v7850, 1.442695
    %v8009 = vpow.pop %v8008
    %v8010 = vmul.f32 %v7851, 1.442695
    %v8011 = vpow.pop %v8010
    %v8012 = vmul.f32 %v7852, 1.442695
    %v8013 = vpow.pop %v8012
    %v8014 = vmul.f32 %v7853, 1.442695
    %v8015 = vpow.pop %v8014
    %v8016 = vmul.f32 %v7854, 1.442695
    %v8017 = vpow.pop %v8016
    %v8018 = vmul.f32 %v7855, 1.442695
    %v8019 = vpow.pop %v8018
    %v8020 = vmul.f32 %v7856, 1.442695
    %v8021 = vpow.pop %v8020
    %v8022 = vmul.f32 %v7857, 1.442695
    %v8023 = vpow.pop %v8022
    %v8024 = vmul.f32 %v7858, 1.442695
    %v8025 = vpow.pop %v8024
    %v8026 = vmul.f32 %v7859, 1.442695
    %v8027 = vpow.pop %v8026
    %v8028 = vmul.f32 %v7860, 1.442695
    %v8029 = vpow.pop %v8028
    %v8030 = vmul.f32 %v7861, 1.442695
    %v8031 = vpow.pop %v8030
    %v8032 = vmul.f32 %v7862, 1.442695
    %v8033 = vpow.pop %v8032
    %v8034 = vmul.f32 %v7863, 1.442695
    %v8035 = vpow.pop %v8034
    %v8036 = vmul.f32 %v7864, 1.442695
    %v8037 = vpow.pop %v8036
    %v8038 = vmul.f32 %v7865, 1.442695
    %v8039 = vpow.pop %v8038
    %v8040 = vmul.f32 %v7866, 1.442695
    %v8041 = vpow.pop %v8040
    %v8042 = vmul.f32 %v7867, 1.442695
    %v8043 = vpow.pop %v8042
    %v8044 = vmul.f32 %v7868, 1.442695
    %v8045 = vpow.pop %v8044
    %v8046 = vmul.f32 %v7869, 1.442695
    %v8047 = vpow.pop %v8046
    %v8048 = vmul.f32 %v7870, 1.442695
    %v8049 = vpow.pop %v8048
    %v8050 = vmul.f32 %v7871, 1.442695
    %v8051 = vpow.pop %v8050
    %v8052 = vmul.f32 %v7872, 1.442695
    %v8053 = vpow.pop %v8052
    %v8054 = vmul.f32 %v7873, 1.442695
    %v8055 = vpow.pop %v8054
    %v8056 = vmul.f32 %v7874, 1.442695
    %v8057 = vpow.pop %v8056
    %v8058 = vmul.f32 %v7875, 1.442695
    %v8059 = vpow.pop %v8058
    %v8060 = vmul.f32 %v7876, 1.442695
    %v8061 = vpow.pop %v8060
    %v8062 = vmul.f32 %v7877, 1.442695
    %v8063 = vpow.pop %v8062
    %v8064 = vmul.f32 %v7878, 1.442695
    %v8065 = vpow.pop %v8064
    %v8066 = vmul.f32 %v7879, 1.442695
    %v8067 = vpow.pop %v8066
    %v8068 = vmul.f32 %v7880, 1.442695
    %v8069 = vpow.pop %v8068
    %v8070 = vmul.f32 %v7881, 1.442695
    %v8071 = vpow.pop %v8070
    %v8072 = vmul.f32 %v7882, 1.442695
    %v8073 = vpow.pop %v8072
    %v8074 = vmul.f32 %v7883, 1.442695
    %v8075 = vpow.pop %v8074
    %v8076 = vmul.f32 %v7884, 1.442695
    %v8077 = vpow.pop %v8076
    %v8078 = vmul.f32 %v7885, 1.442695
    %v8079 = vpow.pop %v8078
    %v8080 = vmul.f32 %v7886, 1.442695
    %v8081 = vpow.pop %v8080
    %v8082 = vmul.f32 %v7887, 1.442695
    %v8083 = vpow.pop %v8082
    %v8084 = vmul.f32 %v7888, 1.442695
    %v8085 = vpow.pop %v8084
    %v8086 = vmul.f32 %v7889, 1.442695
    %v8087 = vpow.pop %v8086
    %v8088 = vmul.f32 %v7890, 1.442695
    %v8089 = vpow.pop %v8088
    %v8090 = vmul.f32 %v7891, 1.442695
    %v8091 = vpow.pop %v8090
    %v8092 = vmul.f32 %v7892, 1.442695
    %v8093 = vpow.pop %v8092
    %v8094 = vmul.f32 %v7893, 1.442695
    %v8095 = vpow.pop %v8094
    %v8096 = vmul.f32 %v7894, 1.442695
    %v8097 = vpow.pop %v8096
    %v8098 = vmul.f32 %v7895, 1.442695
    %v8099 = vpow.pop %v8098
    %v8100 = vmul.f32 %v7896, 1.442695
    %v8101 = vpow.pop %v8100
    %v8102 = vmul.f32 %v7897, 1.442695
    %v8103 = vpow.pop %v8102
    %v8104 = vmul.f32 %v7898, 1.442695
    %v8105 = vpow.pop %v8104
    %v8106 = vmul.f32 %v7899, 1.442695
    %v8107 = vpow.pop %v8106
    %v8108 = vmul.f32 %v7900, 1.442695
    %v8109 = vpow.pop %v8108
    %v8110 = vmul.f32 %v7901, 1.442695
    %v8111 = vpow.pop %v8110
    %v8112 = vmul.f32 %v7902, 1.442695
    %v8113 = vpow.pop %v8112
    %v8114 = vmul.f32 %v7903, 1.442695
    %v8115 = vpow.pop %v8114
    %v8116 = vmul.f32 %v7904, 1.442695
    %v8117 = vpow.pop %v8116
    %v8118 = vmul.f32 %v7905, 1.442695
    %v8119 = vpow.pop %v8118
    %v8120 = vmul.f32 %v7906, 1.442695
    %v8121 = vpow.pop %v8120
    %v8122 = vmul.f32 %v7907, 1.442695
    %v8123 = vpow.pop %v8122
    %v8124 = vmul.f32 %v7908, 1.442695
    %v8125 = vpow.pop %v8124
    %v8126 = vmul.f32 %v7909, 1.442695
    %v8127 = vpow.pop %v8126
    %v8128 = vmul.f32 %v7910, 1.442695
    %v8129 = vpow.pop %v8128
    %v8130 = vmul.f32 %v7911, 1.442695
    %v8131 = vpow.pop %v8130
    %v8132 = vmul.f32 %v7912, 1.442695
    %v8133 = vpow.pop %v8132
    %v8134 = vmul.f32 %v7913, 1.442695
    %v8135 = vpow.pop %v8134
    %v8136 = vmul.f32 %v7914, 1.442695
    %v8137 = vpow.pop %v8136
    %v8138 = vmul.f32 %v7915, 1.442695
    %v8139 = vpow.pop %v8138
    %vm8140 = vcmp.ge.f32.partialorder %v5999, 0.0
    %vm8141 = vcmp.ge.f32.partialorder %v6001, 0.0
    %vm8142 = vcmp.ge.f32.partialorder %v6564, 0.0
    %vm8143 = vcmp.ge.f32.partialorder %v6566, 0.0
    %vm8144 = vcmp.ge.f32.partialorder %v7129, 0.0
    %vm8145 = vcmp.ge.f32.partialorder %v7131, 0.0
    %vm8146 = vcmp.ge.f32.partialorder %v7630, 0.0
    %vm8147 = vcmp.ge.f32.partialorder %v6003, 0.0
    %vm8148 = vcmp.ge.f32.partialorder %v6005, 0.0
    %vm8149 = vcmp.ge.f32.partialorder %v6568, 0.0
    %vm8150 = vcmp.ge.f32.partialorder %v6570, 0.0
    %vm8151 = vcmp.ge.f32.partialorder %v7133, 0.0
    %vm8152 = vcmp.ge.f32.partialorder %v7135, 0.0
    %vm8153 = vcmp.ge.f32.partialorder %v7633, 0.0
    %vm8154 = vcmp.ge.f32.partialorder %v6009, 0.0
    %vm8155 = vcmp.ge.f32.partialorder %v6011, 0.0
    %vm8156 = vcmp.ge.f32.partialorder %v6574, 0.0
    %vm8157 = vcmp.ge.f32.partialorder %v6576, 0.0
    %vm8158 = vcmp.ge.f32.partialorder %v7139, 0.0
    %vm8159 = vcmp.ge.f32.partialorder %v7141, 0.0
    %vm8160 = vcmp.ge.f32.partialorder %v7638, 0.0
    %vm8161 = vcmp.ge.f32.partialorder %v6013, 0.0
    %vm8162 = vcmp.ge.f32.partialorder %v6015, 0.0
    %vm8163 = vcmp.ge.f32.partialorder %v6578, 0.0
    %vm8164 = vcmp.ge.f32.partialorder %v6580, 0.0
    %vm8165 = vcmp.ge.f32.partialorder %v7143, 0.0
    %vm8166 = vcmp.ge.f32.partialorder %v7145, 0.0
    %vm8167 = vcmp.ge.f32.partialorder %v7641, 0.0
    %vm8168 = vcmp.ge.f32.partialorder %v6019, 0.0
    %vm8169 = vcmp.ge.f32.partialorder %v6021, 0.0
    %vm8170 = vcmp.ge.f32.partialorder %v6584, 0.0
    %vm8171 = vcmp.ge.f32.partialorder %v6586, 0.0
    %vm8172 = vcmp.ge.f32.partialorder %v7149, 0.0
    %vm8173 = vcmp.ge.f32.partialorder %v7151, 0.0
    %vm8174 = vcmp.ge.f32.partialorder %v7646, 0.0
    %vm8175 = vcmp.ge.f32.partialorder %v6023, 0.0
    %vm8176 = vcmp.ge.f32.partialorder %v6025, 0.0
    %vm8177 = vcmp.ge.f32.partialorder %v6588, 0.0
    %vm8178 = vcmp.ge.f32.partialorder %v6590, 0.0
    %vm8179 = vcmp.ge.f32.partialorder %v7153, 0.0
    %vm8180 = vcmp.ge.f32.partialorder %v7155, 0.0
    %vm8181 = vcmp.ge.f32.partialorder %v7649, 0.0
    %vm8182 = vcmp.ge.f32.partialorder %v6029, 0.0
    %vm8183 = vcmp.ge.f32.partialorder %v6031, 0.0
    %vm8184 = vcmp.ge.f32.partialorder %v6594, 0.0
    %vm8185 = vcmp.ge.f32.partialorder %v6596, 0.0
    %vm8186 = vcmp.ge.f32.partialorder %v7159, 0.0
    %vm8187 = vcmp.ge.f32.partialorder %v7161, 0.0
    %vm8188 = vcmp.ge.f32.partialorder %v7654, 0.0
    %vm8189 = vcmp.ge.f32.partialorder %v6033, 0.0
    %vm8190 = vcmp.ge.f32.partialorder %v6035, 0.0
    %vm8191 = vcmp.ge.f32.partialorder %v6598, 0.0
    %vm8192 = vcmp.ge.f32.partialorder %v6600, 0.0
    %vm8193 = vcmp.ge.f32.partialorder %v7163, 0.0
    %vm8194 = vcmp.ge.f32.partialorder %v7165, 0.0
    %vm8195 = vcmp.ge.f32.partialorder %v7657, 0.0
    %vm8196 = vcmp.ge.f32.partialorder %v6039, 0.0
    %vm8197 = vcmp.ge.f32.partialorder %v6041, 0.0
    %vm8198 = vcmp.ge.f32.partialorder %v6604, 0.0
    %vm8199 = vcmp.ge.f32.partialorder %v6606, 0.0
    %vm8200 = vcmp.ge.f32.partialorder %v7169, 0.0
    %vm8201 = vcmp.ge.f32.partialorder %v7171, 0.0
    %vm8202 = vcmp.ge.f32.partialorder %v7662, 0.0
    %vm8203 = vcmp.ge.f32.partialorder %v6043, 0.0
    %vm8204 = vcmp.ge.f32.partialorder %v6045, 0.0
    %vm8205 = vcmp.ge.f32.partialorder %v6608, 0.0
    %vm8206 = vcmp.ge.f32.partialorder %v6610, 0.0
    %vm8207 = vcmp.ge.f32.partialorder %v7173, 0.0
    %vm8208 = vcmp.ge.f32.partialorder %v7175, 0.0
    %vm8209 = vcmp.ge.f32.partialorder %v7665, 0.0
    %vm8210 = vcmp.ge.f32.partialorder %v6049, 0.0
    %vm8211 = vcmp.ge.f32.partialorder %v6051, 0.0
    %vm8212 = vcmp.ge.f32.partialorder %v6614, 0.0
    %vm8213 = vcmp.ge.f32.partialorder %v6616, 0.0
    %vm8214 = vcmp.ge.f32.partialorder %v7179, 0.0
    %vm8215 = vcmp.ge.f32.partialorder %v7181, 0.0
    %vm8216 = vcmp.ge.f32.partialorder %v7670, 0.0
    %vm8217 = vcmp.ge.f32.partialorder %v6053, 0.0
    %vm8218 = vcmp.ge.f32.partialorder %v6055, 0.0
    %vm8219 = vcmp.ge.f32.partialorder %v6618, 0.0
    %vm8220 = vcmp.ge.f32.partialorder %v6620, 0.0
    %vm8221 = vcmp.ge.f32.partialorder %v7183, 0.0
    %vm8222 = vcmp.ge.f32.partialorder %v7185, 0.0
    %vm8223 = vcmp.ge.f32.partialorder %v7673, 0.0
    %vm8224 = vcmp.ge.f32.partialorder %v6059, 0.0
    %vm8225 = vcmp.ge.f32.partialorder %v6061, 0.0
    %vm8226 = vcmp.ge.f32.partialorder %v6624, 0.0
    %vm8227 = vcmp.ge.f32.partialorder %v6626, 0.0
    %vm8228 = vcmp.ge.f32.partialorder %v7189, 0.0
    %vm8229 = vcmp.ge.f32.partialorder %v7191, 0.0
    %vm8230 = vcmp.ge.f32.partialorder %v7678, 0.0
    %vm8231 = vcmp.ge.f32.partialorder %v6063, 0.0
    %vm8232 = vcmp.ge.f32.partialorder %v6065, 0.0
    %vm8233 = vcmp.ge.f32.partialorder %v6628, 0.0
    %vm8234 = vcmp.ge.f32.partialorder %v6630, 0.0
    %vm8235 = vcmp.ge.f32.partialorder %v7193, 0.0
    %vm8236 = vcmp.ge.f32.partialorder %v7195, 0.0
    %vm8237 = vcmp.ge.f32.partialorder %v7681, 0.0
    %vm8238 = vcmp.ge.f32.partialorder %v6069, 0.0
    %vm8239 = vcmp.ge.f32.partialorder %v6071, 0.0
    %vm8240 = vcmp.ge.f32.partialorder %v6634, 0.0
    %vm8241 = vcmp.ge.f32.partialorder %v6636, 0.0
    %vm8242 = vcmp.ge.f32.partialorder %v7199, 0.0
    %vm8243 = vcmp.ge.f32.partialorder %v7201, 0.0
    %vm8244 = vcmp.ge.f32.partialorder %v7686, 0.0
    %vm8245 = vcmp.ge.f32.partialorder %v6073, 0.0
    %vm8246 = vcmp.ge.f32.partialorder %v6075, 0.0
    %vm8247 = vcmp.ge.f32.partialorder %v6638, 0.0
    %vm8248 = vcmp.ge.f32.partialorder %v6640, 0.0
    %vm8249 = vcmp.ge.f32.partialorder %v7203, 0.0
    %vm8250 = vcmp.ge.f32.partialorder %v7205, 0.0
    %vm8251 = vcmp.ge.f32.partialorder %v7689, 0.0
    %v8252 = vsel %vm8140, 1.0, %v7917
    %v8253 = vsel %vm8141, 1.0, %v7919
    %v8254 = vsel %vm8142, 1.0, %v7921
    %v8255 = vsel %vm8143, 1.0, %v7923
    %v8256 = vsel %vm8144, 1.0, %v7925
    %v8257 = vsel %vm8145, 1.0, %v7927
    %v8258 = vsel %vm8146, 1.0, %v7929
    %v8259 = vsel %vm8147, 1.0, %v7931
    %v8260 = vsel %vm8148, 1.0, %v7933
    %v8261 = vsel %vm8149, 1.0, %v7935
    %v8262 = vsel %vm8150, 1.0, %v7937
    %v8263 = vsel %vm8151, 1.0, %v7939
    %v8264 = vsel %vm8152, 1.0, %v7941
    %v8265 = vsel %vm8153, 1.0, %v7943
    %v8266 = vsel %vm8154, 1.0, %v7945
    %v8267 = vsel %vm8155, 1.0, %v7947
    %v8268 = vsel %vm8156, 1.0, %v7949
    %v8269 = vsel %vm8157, 1.0, %v7951
    %v8270 = vsel %vm8158, 1.0, %v7953
    %v8271 = vsel %vm8159, 1.0, %v7955
    %v8272 = vsel %vm8160, 1.0, %v7957
    %v8273 = vsel %vm8161, 1.0, %v7959
    %v8274 = vsel %vm8162, 1.0, %v7961
    %v8275 = vsel %vm8163, 1.0, %v7963
    %v8276 = vsel %vm8164, 1.0, %v7965
    %v8277 = vsel %vm8165, 1.0, %v7967
    %v8278 = vsel %vm8166, 1.0, %v7969
    %v8279 = vsel %vm8167, 1.0, %v7971
    %v8280 = vsel %vm8168, 1.0, %v7973
    %v8281 = vsel %vm8169, 1.0, %v7975
    %v8282 = vsel %vm8170, 1.0, %v7977
    %v8283 = vsel %vm8171, 1.0, %v7979
    %v8284 = vsel %vm8172, 1.0, %v7981
    %v8285 = vsel %vm8173, 1.0, %v7983
    %v8286 = vsel %vm8174, 1.0, %v7985
    %v8287 = vsel %vm8175, 1.0, %v7987
    %v8288 = vsel %vm8176, 1.0, %v7989
    %v8289 = vsel %vm8177, 1.0, %v7991
    %v8290 = vsel %vm8178, 1.0, %v7993
    %v8291 = vsel %vm8179, 1.0, %v7995
    %v8292 = vsel %vm8180, 1.0, %v7997
    %v8293 = vsel %vm8181, 1.0, %v7999
    %v8294 = vsel %vm8182, 1.0, %v8001
    %v8295 = vsel %vm8183, 1.0, %v8003
    %v8296 = vsel %vm8184, 1.0, %v8005
    %v8297 = vsel %vm8185, 1.0, %v8007
    %v8298 = vsel %vm8186, 1.0, %v8009
    %v8299 = vsel %vm8187, 1.0, %v8011
    %v8300 = vsel %vm8188, 1.0, %v8013
    %v8301 = vsel %vm8189, 1.0, %v8015
    %v8302 = vsel %vm8190, 1.0, %v8017
    %v8303 = vsel %vm8191, 1.0, %v8019
    %v8304 = vsel %vm8192, 1.0, %v8021
    %v8305 = vsel %vm8193, 1.0, %v8023
    %v8306 = vsel %vm8194, 1.0, %v8025
    %v8307 = vsel %vm8195, 1.0, %v8027
    %v8308 = vsel %vm8196, 1.0, %v8029
    %v8309 = vsel %vm8197, 1.0, %v8031
    %v8310 = vsel %vm8198, 1.0, %v8033
    %v8311 = vsel %vm8199, 1.0, %v8035
    %v8312 = vsel %vm8200, 1.0, %v8037
    %v8313 = vsel %vm8201, 1.0, %v8039
    %v8314 = vsel %vm8202, 1.0, %v8041
    %v8315 = vsel %vm8203, 1.0, %v8043
    %v8316 = vsel %vm8204, 1.0, %v8045
    %v8317 = vsel %vm8205, 1.0, %v8047
    %v8318 = vsel %vm8206, 1.0, %v8049
    %v8319 = vsel %vm8207, 1.0, %v8051
    %v8320 = vsel %vm8208, 1.0, %v8053
    %v8321 = vsel %vm8209, 1.0, %v8055
    %v8322 = vsel %vm8210, 1.0, %v8057
    %v8323 = vsel %vm8211, 1.0, %v8059
    %v8324 = vsel %vm8212, 1.0, %v8061
    %v8325 = vsel %vm8213, 1.0, %v8063
    %v8326 = vsel %vm8214, 1.0, %v8065
    %v8327 = vsel %vm8215, 1.0, %v8067
    %v8328 = vsel %vm8216, 1.0, %v8069
    %v8329 = vsel %vm8217, 1.0, %v8071
    %v8330 = vsel %vm8218, 1.0, %v8073
    %v8331 = vsel %vm8219, 1.0, %v8075
    %v8332 = vsel %vm8220, 1.0, %v8077
    %v8333 = vsel %vm8221, 1.0, %v8079
    %v8334 = vsel %vm8222, 1.0, %v8081
    %v8335 = vsel %vm8223, 1.0, %v8083
    %v8336 = vsel %vm8224, 1.0, %v8085
    %v8337 = vsel %vm8225, 1.0, %v8087
    %v8338 = vsel %vm8226, 1.0, %v8089
    %v8339 = vsel %vm8227, 1.0, %v8091
    %v8340 = vsel %vm8228, 1.0, %v8093
    %v8341 = vsel %vm8229, 1.0, %v8095
    %v8342 = vsel %vm8230, 1.0, %v8097
    %v8343 = vsel %vm8231, 1.0, %v8099
    %v8344 = vsel %vm8232, 1.0, %v8101
    %v8345 = vsel %vm8233, 1.0, %v8103
    %v8346 = vsel %vm8234, 1.0, %v8105
    %v8347 = vsel %vm8235, 1.0, %v8107
    %v8348 = vsel %vm8236, 1.0, %v8109
    %v8349 = vsel %vm8237, 1.0, %v8111
    %v8350 = vsel %vm8238, 1.0, %v8113
    %v8351 = vsel %vm8239, 1.0, %v8115
    %v8352 = vsel %vm8240, 1.0, %v8117
    %v8353 = vsel %vm8241, 1.0, %v8119
    %v8354 = vsel %vm8242, 1.0, %v8121
    %v8355 = vsel %vm8243, 1.0, %v8123
    %v8356 = vsel %vm8244, 1.0, %v8125
    %v8357 = vsel %vm8245, 1.0, %v8127
    %v8358 = vsel %vm8246, 1.0, %v8129
    %v8359 = vsel %vm8247, 1.0, %v8131
    %v8360 = vsel %vm8248, 1.0, %v8133
    %v8361 = vsel %vm8249, 1.0, %v8135
    %v8362 = vsel %vm8250, 1.0, %v8137
    %v8363 = vsel %vm8251, 1.0, %v8139
    %v8364 = vadd.f32 %v7917, 1.0
    %v8365 = vadd.f32 %v7919, 1.0
    %v8366 = vadd.f32 %v7921, 1.0
    %v8367 = vadd.f32 %v7923, 1.0
    %v8368 = vadd.f32 %v7925, 1.0
    %v8369 = vadd.f32 %v7927, 1.0
    %v8370 = vadd.f32 %v7929, 1.0
    %v8371 = vadd.f32 %v7931, 1.0
    %v8372 = vadd.f32 %v7933, 1.0
    %v8373 = vadd.f32 %v7935, 1.0
    %v8374 = vadd.f32 %v7937, 1.0
    %v8375 = vadd.f32 %v7939, 1.0
    %v8376 = vadd.f32 %v7941, 1.0
    %v8377 = vadd.f32 %v7943, 1.0
    %v8378 = vadd.f32 %v7945, 1.0
    %v8379 = vadd.f32 %v7947, 1.0
    %v8380 = vadd.f32 %v7949, 1.0
    %v8381 = vadd.f32 %v7951, 1.0
    %v8382 = vadd.f32 %v7953, 1.0
    %v8383 = vadd.f32 %v7955, 1.0
    %v8384 = vadd.f32 %v7957, 1.0
    %v8385 = vadd.f32 %v7959, 1.0
    %v8386 = vadd.f32 %v7961, 1.0
    %v8387 = vadd.f32 %v7963, 1.0
    %v8388 = vadd.f32 %v7965, 1.0
    %v8389 = vadd.f32 %v7967, 1.0
    %v8390 = vadd.f32 %v7969, 1.0
    %v8391 = vadd.f32 %v7971, 1.0
    %v8392 = vadd.f32 %v7973, 1.0
    %v8393 = vadd.f32 %v7975, 1.0
    %v8394 = vadd.f32 %v7977, 1.0
    %v8395 = vadd.f32 %v7979, 1.0
    %v8396 = vadd.f32 %v7981, 1.0
    %v8397 = vadd.f32 %v7983, 1.0
    %v8398 = vadd.f32 %v7985, 1.0
    %v8399 = vadd.f32 %v7987, 1.0
    %v8400 = vadd.f32 %v7989, 1.0
    %v8401 = vadd.f32 %v7991, 1.0
    %v8402 = vadd.f32 %v7993, 1.0
    %v8403 = vadd.f32 %v7995, 1.0
    %v8404 = vadd.f32 %v7997, 1.0
    %v8405 = vadd.f32 %v7999, 1.0
    %v8406 = vadd.f32 %v8001, 1.0
    %v8407 = vadd.f32 %v8003, 1.0
    %v8408 = vadd.f32 %v8005, 1.0
    %v8409 = vadd.f32 %v8007, 1.0
    %v8410 = vadd.f32 %v8009, 1.0
    %v8411 = vadd.f32 %v8011, 1.0
    %v8412 = vadd.f32 %v8013, 1.0
    %v8413 = vadd.f32 %v8015, 1.0
    %v8414 = vadd.f32 %v8017, 1.0
    %v8415 = vadd.f32 %v8019, 1.0
    %v8416 = vadd.f32 %v8021, 1.0
    %v8417 = vadd.f32 %v8023, 1.0
    %v8418 = vadd.f32 %v8025, 1.0
    %v8419 = vadd.f32 %v8027, 1.0
    %v8420 = vadd.f32 %v8029, 1.0
    %v8421 = vadd.f32 %v8031, 1.0
    %v8422 = vadd.f32 %v8033, 1.0
    %v8423 = vadd.f32 %v8035, 1.0
    %v8424 = vadd.f32 %v8037, 1.0
    %v8425 = vadd.f32 %v8039, 1.0
    %v8426 = vadd.f32 %v8041, 1.0
    %v8427 = vadd.f32 %v8043, 1.0
    %v8428 = vadd.f32 %v8045, 1.0
    %v8429 = vadd.f32 %v8047, 1.0
    %v8430 = vadd.f32 %v8049, 1.0
    %v8431 = vadd.f32 %v8051, 1.0
    %v8432 = vadd.f32 %v8053, 1.0
    %v8433 = vadd.f32 %v8055, 1.0
    %v8434 = vadd.f32 %v8057, 1.0
    %v8435 = vadd.f32 %v8059, 1.0
    %v8436 = vadd.f32 %v8061, 1.0
    %v8437 = vadd.f32 %v8063, 1.0
    %v8438 = vadd.f32 %v8065, 1.0
    %v8439 = vadd.f32 %v8067, 1.0
    %v8440 = vadd.f32 %v8069, 1.0
    %v8441 = vadd.f32 %v8071, 1.0
    %v8442 = vadd.f32 %v8073, 1.0
    %v8443 = vadd.f32 %v8075, 1.0
    %v8444 = vadd.f32 %v8077, 1.0
    %v8445 = vadd.f32 %v8079, 1.0
    %v8446 = vadd.f32 %v8081, 1.0
    %v8447 = vadd.f32 %v8083, 1.0
    %v8448 = vadd.f32 %v8085, 1.0
    %v8449 = vadd.f32 %v8087, 1.0
    %v8450 = vadd.f32 %v8089, 1.0
    %v8451 = vadd.f32 %v8091, 1.0
    %v8452 = vadd.f32 %v8093, 1.0
    %v8453 = vadd.f32 %v8095, 1.0
    %v8454 = vadd.f32 %v8097, 1.0
    %v8455 = vadd.f32 %v8099, 1.0
    %v8456 = vadd.f32 %v8101, 1.0
    %v8457 = vadd.f32 %v8103, 1.0
    %v8458 = vadd.f32 %v8105, 1.0
    %v8459 = vadd.f32 %v8107, 1.0
    %v8460 = vadd.f32 %v8109, 1.0
    %v8461 = vadd.f32 %v8111, 1.0
    %v8462 = vadd.f32 %v8113, 1.0
    %v8463 = vadd.f32 %v8115, 1.0
    %v8464 = vadd.f32 %v8117, 1.0
    %v8465 = vadd.f32 %v8119, 1.0
    %v8466 = vadd.f32 %v8121, 1.0
    %v8467 = vadd.f32 %v8123, 1.0
    %v8468 = vadd.f32 %v8125, 1.0
    %v8469 = vadd.f32 %v8127, 1.0
    %v8470 = vadd.f32 %v8129, 1.0
    %v8471 = vadd.f32 %v8131, 1.0
    %v8472 = vadd.f32 %v8133, 1.0
    %v8473 = vadd.f32 %v8135, 1.0
    %v8474 = vadd.f32 %v8137, 1.0
    %v8475 = vadd.f32 %v8139, 1.0
    %v8476 = vrcp.pop %v8364
    %v8477 = vrcp.pop %v8365
    %v8478 = vrcp.pop %v8366
    %v8479 = vrcp.pop %v8367
    %v8480 = vrcp.pop %v8368
    %v8481 = vrcp.pop %v8369
    %v8482 = vrcp.pop %v8370
    %v8483 = vrcp.pop %v8371
    %v8484 = vrcp.pop %v8372
    %v8485 = vrcp.pop %v8373
    %v8486 = vrcp.pop %v8374
    %v8487 = vrcp.pop %v8375
    %v8488 = vrcp.pop %v8376
    %v8489 = vrcp.pop %v8377
    %v8490 = vrcp.pop %v8378
    %v8491 = vrcp.pop %v8379
    %v8492 = vrcp.pop %v8380
    %v8493 = vrcp.pop %v8381
    %v8494 = vrcp.pop %v8382
    %v8495 = vrcp.pop %v8383
    %v8496 = vrcp.pop %v8384
    %v8497 = vrcp.pop %v8385
    %v8498 = vrcp.pop %v8386
    %v8499 = vrcp.pop %v8387
    %v8500 = vrcp.pop %v8388
    %v8501 = vrcp.pop %v8389
    %v8502 = vrcp.pop %v8390
    %v8503 = vrcp.pop %v8391
    %v8504 = vrcp.pop %v8392
    %v8505 = vrcp.pop %v8393
    %v8506 = vrcp.pop %v8394
    %v8507 = vrcp.pop %v8395
    %v8508 = vrcp.pop %v8396
    %v8509 = vrcp.pop %v8397
    %v8510 = vrcp.pop %v8398
    %v8511 = vrcp.pop %v8399
    %v8512 = vrcp.pop %v8400
    %v8513 = vrcp.pop %v8401
    %v8514 = vrcp.pop %v8402
    %v8515 = vrcp.pop %v8403
    %v8516 = vrcp.pop %v8404
    %v8517 = vrcp.pop %v8405
    %v8518 = vrcp.pop %v8406
    %v8519 = vrcp.pop %v8407
    %v8520 = vrcp.pop %v8408
    %v8521 = vrcp.pop %v8409
    %v8522 = vrcp.pop %v8410
    %v8523 = vrcp.pop %v8411
    %v8524 = vrcp.pop %v8412
    %v8525 = vrcp.pop %v8413
    %v8526 = vrcp.pop %v8414
    %v8527 = vrcp.pop %v8415
    %v8528 = vrcp.pop %v8416
    %v8529 = vrcp.pop %v8417
    %v8530 = vrcp.pop %v8418
    %v8531 = vrcp.pop %v8419
    %v8532 = vrcp.pop %v8420
    %v8533 = vrcp.pop %v8421
    %v8534 = vrcp.pop %v8422
    %v8535 = vrcp.pop %v8423
    %v8536 = vrcp.pop %v8424
    %v8537 = vrcp.pop %v8425
    %v8538 = vrcp.pop %v8426
    %v8539 = vrcp.pop %v8427
    %v8540 = vrcp.pop %v8428
    %v8541 = vrcp.pop %v8429
    %v8542 = vrcp.pop %v8430
    %v8543 = vrcp.pop %v8431
    %v8544 = vrcp.pop %v8432
    %v8545 = vrcp.pop %v8433
    %v8546 = vrcp.pop %v8434
    %v8547 = vrcp.pop %v8435
    %v8548 = vrcp.pop %v8436
    %v8549 = vrcp.pop %v8437
    %v8550 = vrcp.pop %v8438
    %v8551 = vrcp.pop %v8439
    %v8552 = vrcp.pop %v8440
    %v8553 = vrcp.pop %v8441
    %v8554 = vrcp.pop %v8442
    %v8555 = vrcp.pop %v8443
    %v8556 = vrcp.pop %v8444
    %v8557 = vrcp.pop %v8445
    %v8558 = vrcp.pop %v8446
    %v8559 = vrcp.pop %v8447
    %v8560 = vrcp.pop %v8448
    %v8561 = vrcp.pop %v8449
    %v8562 = vrcp.pop %v8450
    %v8563 = vrcp.pop %v8451
    %v8564 = vrcp.pop %v8452
    %v8565 = vrcp.pop %v8453
    %v8566 = vrcp.pop %v8454
    %v8567 = vrcp.pop %v8455
    %v8568 = vrcp.pop %v8456
    %v8569 = vrcp.pop %v8457
    %v8570 = vrcp.pop %v8458
    %v8571 = vrcp.pop %v8459
    %v8572 = vrcp.pop %v8460
    %v8573 = vrcp.pop %v8461
    %v8574 = vrcp.pop %v8462
    %v8575 = vrcp.pop %v8463
    %v8576 = vrcp.pop %v8464
    %v8577 = vrcp.pop %v8465
    %v8578 = vrcp.pop %v8466
    %v8579 = vrcp.pop %v8467
    %v8580 = vrcp.pop %v8468
    %v8581 = vrcp.pop %v8469
    %v8582 = vrcp.pop %v8470
    %v8583 = vrcp.pop %v8471
    %v8584 = vrcp.pop %v8472
    %v8585 = vrcp.pop %v8473
    %v8586 = vrcp.pop %v8474
    %v8587 = vrcp.pop %v8475
    %v8588 = vmul.f32 %v8252, %v8476
    %v8589 = vmul.f32 %v8253, %v8477
    %v8590 = vmul.f32 %v8254, %v8478
    %v8591 = vmul.f32 %v8255, %v8479
    %v8592 = vmul.f32 %v8256, %v8480
    %v8593 = vmul.f32 %v8257, %v8481
    %v8594 = vmul.f32 %v8258, %v8482
    %v8595 = vmul.f32 %v8259, %v8483
    %v8596 = vmul.f32 %v8260, %v8484
    %v8597 = vmul.f32 %v8261, %v8485
    %v8598 = vmul.f32 %v8262, %v8486
    %v8599 = vmul.f32 %v8263, %v8487
    %v8600 = vmul.f32 %v8264, %v8488
    %v8601 = vmul.f32 %v8265, %v8489
    %v8602 = vmul.f32 %v8266, %v8490
    %v8603 = vmul.f32 %v8267, %v8491
    %v8604 = vmul.f32 %v8268, %v8492
    %v8605 = vmul.f32 %v8269, %v8493
    %v8606 = vmul.f32 %v8270, %v8494
    %v8607 = vmul.f32 %v8271, %v8495
    %v8608 = vmul.f32 %v8272, %v8496
    %v8609 = vmul.f32 %v8273, %v8497
    %v8610 = vmul.f32 %v8274, %v8498
    %v8611 = vmul.f32 %v8275, %v8499
    %v8612 = vmul.f32 %v8276, %v8500
    %v8613 = vmul.f32 %v8277, %v8501
    %v8614 = vmul.f32 %v8278, %v8502
    %v8615 = vmul.f32 %v8279, %v8503
    %v8616 = vmul.f32 %v8280, %v8504
    %v8617 = vmul.f32 %v8281, %v8505
    %v8618 = vmul.f32 %v8282, %v8506
    %v8619 = vmul.f32 %v8283, %v8507
    %v8620 = vmul.f32 %v8284, %v8508
    %v8621 = vmul.f32 %v8285, %v8509
    %v8622 = vmul.f32 %v8286, %v8510
    %v8623 = vmul.f32 %v8287, %v8511
    %v8624 = vmul.f32 %v8288, %v8512
    %v8625 = vmul.f32 %v8289, %v8513
    %v8626 = vmul.f32 %v8290, %v8514
    %v8627 = vmul.f32 %v8291, %v8515
    %v8628 = vmul.f32 %v8292, %v8516
    %v8629 = vmul.f32 %v8293, %v8517
    %v8630 = vmul.f32 %v8294, %v8518
    %v8631 = vmul.f32 %v8295, %v8519
    %v8632 = vmul.f32 %v8296, %v8520
    %v8633 = vmul.f32 %v8297, %v8521
    %v8634 = vmul.f32 %v8298, %v8522
    %v8635 = vmul.f32 %v8299, %v8523
    %v8636 = vmul.f32 %v8300, %v8524
    %v8637 = vmul.f32 %v8301, %v8525
    %v8638 = vmul.f32 %v8302, %v8526
    %v8639 = vmul.f32 %v8303, %v8527
    %v8640 = vmul.f32 %v8304, %v8528
    %v8641 = vmul.f32 %v8305, %v8529
    %v8642 = vmul.f32 %v8306, %v8530
    %v8643 = vmul.f32 %v8307, %v8531
    %v8644 = vmul.f32 %v8308, %v8532
    %v8645 = vmul.f32 %v8309, %v8533
    %v8646 = vmul.f32 %v8310, %v8534
    %v8647 = vmul.f32 %v8311, %v8535
    %v8648 = vmul.f32 %v8312, %v8536
    %v8649 = vmul.f32 %v8313, %v8537
    %v8650 = vmul.f32 %v8314, %v8538
    %v8651 = vmul.f32 %v8315, %v8539
    %v8652 = vmul.f32 %v8316, %v8540
    %v8653 = vmul.f32 %v8317, %v8541
    %v8654 = vmul.f32 %v8318, %v8542
    %v8655 = vmul.f32 %v8319, %v8543
    %v8656 = vmul.f32 %v8320, %v8544
    %v8657 = vmul.f32 %v8321, %v8545
    %v8658 = vmul.f32 %v8322, %v8546
    %v8659 = vmul.f32 %v8323, %v8547
    %v8660 = vmul.f32 %v8324, %v8548
    %v8661 = vmul.f32 %v8325, %v8549
    %v8662 = vmul.f32 %v8326, %v8550
    %v8663 = vmul.f32 %v8327, %v8551
    %v8664 = vmul.f32 %v8328, %v8552
    %v8665 = vmul.f32 %v8329, %v8553
    %v8666 = vmul.f32 %v8330, %v8554
    %v8667 = vmul.f32 %v8331, %v8555
    %v8668 = vmul.f32 %v8332, %v8556
    %v8669 = vmul.f32 %v8333, %v8557
    %v8670 = vmul.f32 %v8334, %v8558
    %v8671 = vmul.f32 %v8335, %v8559
    %v8672 = vmul.f32 %v8336, %v8560
    %v8673 = vmul.f32 %v8337, %v8561
    %v8674 = vmul.f32 %v8338, %v8562
    %v8675 = vmul.f32 %v8339, %v8563
    %v8676 = vmul.f32 %v8340, %v8564
    %v8677 = vmul.f32 %v8341, %v8565
    %v8678 = vmul.f32 %v8342, %v8566
    %v8679 = vmul.f32 %v8343, %v8567
    %v8680 = vmul.f32 %v8344, %v8568
    %v8681 = vmul.f32 %v8345, %v8569
    %v8682 = vmul.f32 %v8346, %v8570
    %v8683 = vmul.f32 %v8347, %v8571
    %v8684 = vmul.f32 %v8348, %v8572
    %v8685 = vmul.f32 %v8349, %v8573
    %v8686 = vmul.f32 %v8350, %v8574
    %v8687 = vmul.f32 %v8351, %v8575
    %v8688 = vmul.f32 %v8352, %v8576
    %v8689 = vmul.f32 %v8353, %v8577
    %v8690 = vmul.f32 %v8354, %v8578
    %v8691 = vmul.f32 %v8355, %v8579
    %v8692 = vmul.f32 %v8356, %v8580
    %v8693 = vmul.f32 %v8357, %v8581
    %v8694 = vmul.f32 %v8358, %v8582
    %v8695 = vmul.f32 %v8359, %v8583
    %v8696 = vmul.f32 %v8360, %v8584
    %v8697 = vmul.f32 %v8361, %v8585
    %v8698 = vmul.f32 %v8362, %v8586
    %v8699 = vmul.f32 %v8363, %v8587
    %8700 = vst [vmem:[#allocation16] sm:$0xff] %v8588
    %8701 = vst [vmem:[#allocation16 + $0x8] sm:$0xff] %v8589
    %8702 = vst [vmem:[#allocation16 + $0x10] sm:$0xff] %v8590
    %8703 = vst [vmem:[#allocation16 + $0x18] sm:$0xff] %v8591
    %8704 = vst [vmem:[#allocation16 + $0x20] sm:$0xff] %v8592
    %8705 = vst [vmem:[#allocation16 + $0x28] sm:$0xff] %v8593
    %8706 = vst [vmem:[#allocation16 + $0x30] sm:$0xff] %v8594
    %8707 = vst [vmem:[#allocation16 + $0x38] sm:$0xff] %v8595
    %8708 = vst [vmem:[#allocation16 + $0x40] sm:$0xff] %v8596
    %8709 = vst [vmem:[#allocation16 + $0x48] sm:$0xff] %v8597
    %8710 = vst [vmem:[#allocation16 + $0x50] sm:$0xff] %v8598
    %8711 = vst [vmem:[#allocation16 + $0x58] sm:$0xff] %v8599
    %8712 = vst [vmem:[#allocation16 + $0x60] sm:$0xff] %v8600
    %8713 = vst [vmem:[#allocation16 + $0x68] sm:$0xff] %v8601
    %8714 = vst [vmem:[#allocation16 + $0x70] sm:$0xff] %v8602
    %8715 = vst [vmem:[#allocation16 + $0x78] sm:$0xff] %v8603
    %8716 = vst [vmem:[#allocation16 + $0x80] sm:$0xff] %v8604
    %8717 = vst [vmem:[#allocation16 + $0x88] sm:$0xff] %v8605
    %8718 = vst [vmem:[#allocation16 + $0x90] sm:$0xff] %v8606
    %8719 = vst [vmem:[#allocation16 + $0x98] sm:$0xff] %v8607
    %8720 = vst [vmem:[#allocation16 + $0xa0] sm:$0xff] %v8608
    %8721 = vst [vmem:[#allocation16 + $0xa8] sm:$0xff] %v8609
    %8722 = vst [vmem:[#allocation16 + $0xb0] sm:$0xff] %v8610
    %8723 = vst [vmem:[#allocation16 + $0xb8] sm:$0xff] %v8611
    %8724 = vst [vmem:[#allocation16 + $0xc0] sm:$0xff] %v8612
    %8725 = vst [vmem:[#allocation16 + $0xc8] sm:$0xff] %v8613
    %8726 = vst [vmem:[#allocation16 + $0xd0] sm:$0xff] %v8614
    %8727 = vst [vmem:[#allocation16 + $0xd8] sm:$0xff] %v8615
    %8728 = vst [vmem:[#allocation16 + $0xe0] sm:$0xff] %v8616
    %8729 = vst [vmem:[#allocation16 + $0xe8] sm:$0xff] %v8617
    %8730 = vst [vmem:[#allocation16 + $0xf0] sm:$0xff] %v8618
    %8731 = vst [vmem:[#allocation16 + $0xf8] sm:$0xff] %v8619
    %8732 = vst [vmem:[#allocation16 + $0x100] sm:$0xff] %v8620
    %8733 = vst [vmem:[#allocation16 + $0x108] sm:$0xff] %v8621
    %8734 = vst [vmem:[#allocation16 + $0x110] sm:$0xff] %v8622
    %8735 = vst [vmem:[#allocation16 + $0x118] sm:$0xff] %v8623
    %8736 = vst [vmem:[#allocation16 + $0x120] sm:$0xff] %v8624
    %8737 = vst [vmem:[#allocation16 + $0x128] sm:$0xff] %v8625
    %8738 = vst [vmem:[#allocation16 + $0x130] sm:$0xff] %v8626
    %8739 = vst [vmem:[#allocation16 + $0x138] sm:$0xff] %v8627
    %8740 = vst [vmem:[#allocation16 + $0x140] sm:$0xff] %v8628
    %8741 = vst [vmem:[#allocation16 + $0x148] sm:$0xff] %v8629
    %8742 = vst [vmem:[#allocation16 + $0x150] sm:$0xff] %v8630
    %8743 = vst [vmem:[#allocation16 + $0x158] sm:$0xff] %v8631
    %8744 = vst [vmem:[#allocation16 + $0x160] sm:$0xff] %v8632
    %8745 = vst [vmem:[#allocation16 + $0x168] sm:$0xff] %v8633
    %8746 = vst [vmem:[#allocation16 + $0x170] sm:$0xff] %v8634
    %8747 = vst [vmem:[#allocation16 + $0x178] sm:$0xff] %v8635
    %8748 = vst [vmem:[#allocation16 + $0x180] sm:$0xff] %v8636
    %8749 = vst [vmem:[#allocation16 + $0x188] sm:$0xff] %v8637
    %8750 = vst [vmem:[#allocation16 + $0x190] sm:$0xff] %v8638
    %8751 = vst [vmem:[#allocation16 + $0x198] sm:$0xff] %v8639
    %8752 = vst [vmem:[#allocation16 + $0x1a0] sm:$0xff] %v8640
    %8753 = vst [vmem:[#allocation16 + $0x1a8] sm:$0xff] %v8641
    %8754 = vst [vmem:[#allocation16 + $0x1b0] sm:$0xff] %v8642
    %8755 = vst [vmem:[#allocation16 + $0x1b8] sm:$0xff] %v8643
    %8756 = vst [vmem:[#allocation16 + $0x1c0] sm:$0xff] %v8644
    %8757 = vst [vmem:[#allocation16 + $0x1c8] sm:$0xff] %v8645
    %8758 = vst [vmem:[#allocation16 + $0x1d0] sm:$0xff] %v8646
    %8759 = vst [vmem:[#allocation16 + $0x1d8] sm:$0xff] %v8647
    %8760 = vst [vmem:[#allocation16 + $0x1e0] sm:$0xff] %v8648
    %8761 = vst [vmem:[#allocation16 + $0x1e8] sm:$0xff] %v8649
    %8762 = vst [vmem:[#allocation16 + $0x1f0] sm:$0xff] %v8650
    %8763 = vst [vmem:[#allocation16 + $0x1f8] sm:$0xff] %v8651
    %8764 = vst [vmem:[#allocation16 + $0x200] sm:$0xff] %v8652
    %8765 = vst [vmem:[#allocation16 + $0x208] sm:$0xff] %v8653
    %8766 = vst [vmem:[#allocation16 + $0x210] sm:$0xff] %v8654
    %8767 = vst [vmem:[#allocation16 + $0x218] sm:$0xff] %v8655
    %8768 = vst [vmem:[#allocation16 + $0x220] sm:$0xff] %v8656
    %8769 = vst [vmem:[#allocation16 + $0x228] sm:$0xff] %v8657
    %8770 = vst [vmem:[#allocation16 + $0x230] sm:$0xff] %v8658
    %8771 = vst [vmem:[#allocation16 + $0x238] sm:$0xff] %v8659
    %8772 = vst [vmem:[#allocation16 + $0x240] sm:$0xff] %v8660
    %8773 = vst [vmem:[#allocation16 + $0x248] sm:$0xff] %v8661
    %8774 = vst [vmem:[#allocation16 + $0x250] sm:$0xff] %v8662
    %8775 = vst [vmem:[#allocation16 + $0x258] sm:$0xff] %v8663
    %8776 = vst [vmem:[#allocation16 + $0x260] sm:$0xff] %v8664
    %8777 = vst [vmem:[#allocation16 + $0x268] sm:$0xff] %v8665
    %8778 = vst [vmem:[#allocation16 + $0x270] sm:$0xff] %v8666
    %8779 = vst [vmem:[#allocation16 + $0x278] sm:$0xff] %v8667
    %8780 = vst [vmem:[#allocation16 + $0x280] sm:$0xff] %v8668
    %8781 = vst [vmem:[#allocation16 + $0x288] sm:$0xff] %v8669
    %8782 = vst [vmem:[#allocation16 + $0x290] sm:$0xff] %v8670
    %8783 = vst [vmem:[#allocation16 + $0x298] sm:$0xff] %v8671
    %8784 = vst [vmem:[#allocation16 + $0x2a0] sm:$0xff] %v8672
    %8785 = vst [vmem:[#allocation16 + $0x2a8] sm:$0xff] %v8673
    %8786 = vst [vmem:[#allocation16 + $0x2b0] sm:$0xff] %v8674
    %8787 = vst [vmem:[#allocation16 + $0x2b8] sm:$0xff] %v8675
    %8788 = vst [vmem:[#allocation16 + $0x2c0] sm:$0xff] %v8676
    %8789 = vst [vmem:[#allocation16 + $0x2c8] sm:$0xff] %v8677
    %8790 = vst [vmem:[#allocation16 + $0x2d0] sm:$0xff] %v8678
    %8791 = vst [vmem:[#allocation16 + $0x2d8] sm:$0xff] %v8679
    %8792 = vst [vmem:[#allocation16 + $0x2e0] sm:$0xff] %v8680
    %8793 = vst [vmem:[#allocation16 + $0x2e8] sm:$0xff] %v8681
    %8794 = vst [vmem:[#allocation16 + $0x2f0] sm:$0xff] %v8682
    %8795 = vst [vmem:[#allocation16 + $0x2f8] sm:$0xff] %v8683
    %8796 = vst [vmem:[#allocation16 + $0x300] sm:$0xff] %v8684
    %8797 = vst [vmem:[#allocation16 + $0x308] sm:$0xff] %v8685
    %8798 = vst [vmem:[#allocation16 + $0x310] sm:$0xff] %v8686
    %8799 = vst [vmem:[#allocation16 + $0x318] sm:$0xff] %v8687
    %8800 = vst [vmem:[#allocation16 + $0x320] sm:$0xff] %v8688
    %8801 = vst [vmem:[#allocation16 + $0x328] sm:$0xff] %v8689
    %8802 = vst [vmem:[#allocation16 + $0x330] sm:$0xff] %v8690
    %8803 = vst [vmem:[#allocation16 + $0x338] sm:$0xff] %v8691
    %8804 = vst [vmem:[#allocation16 + $0x340] sm:$0xff] %v8692
    %8805 = vst [vmem:[#allocation16 + $0x348] sm:$0xff] %v8693
    %8806 = vst [vmem:[#allocation16 + $0x350] sm:$0xff] %v8694
    %8807 = vst [vmem:[#allocation16 + $0x358] sm:$0xff] %v8695
    %8808 = vst [vmem:[#allocation16 + $0x360] sm:$0xff] %v8696
    %8809 = vst [vmem:[#allocation16 + $0x368] sm:$0xff] %v8697
    %8810 = vst [vmem:[#allocation16 + $0x370] sm:$0xff] %v8698
    %8811 = vst [vmem:[#allocation16 + $0x378] sm:$0xff] %v8699
    // Predicated region
    $region70: #{tpu_custom_call.1} parent=1 // pred_check
      _
    $region71: #{tpu_custom_call.1} parent=1 // pred_check_branch
      %8813 = sbr.rel (0) target = $region73
    $region72: #{tpu_custom_call.1} parent=1 // pred_region
      %s8815 = ssub.s32 14336, 14336
      %8816 = vsyncadd [#allocation4], %s8815
      %s8817 = sshll.u32 [#allocation16], 4
      %s8818 = int_to_ptr.vmem [resolvable:$true] %s8817
      %8823 = dma.vmem_to_hbm [thread:$0]  %s8818, 14336, %s9, [#allocation4], 896, 896, 56
    $region73: #{tpu_custom_call.1} parent=1 // pred_fallthru
      _
    // Predicated region
    $region74: #{tpu_custom_call.1} parent=1 // pred_check
      _
    $region75: #{tpu_custom_call.1} parent=1 // pred_check_branch
      %8825 = sbr.rel (0) target = $region77
    $region76: #{tpu_custom_call.1} parent=1 // pred_region
      %8826 = dma.done [#allocation4], 14336
    $region77: #{tpu_custom_call.1} parent=1 // pred_fallthru
      _
    %8827 = vsyncpa [#allocation3], 1
    %8828 = vsyncpa [#allocation6], 1
    %8829 = vsyncpa [#allocation9], 1
    %8830 = vsyncpa [#allocation12], 1
    %8831 = vsyncpa [#allocation15], 1
    %8832 = vsyncpa [#allocation4], 1

</llo_original>
